<compile_context>
chip_gen: v7x
topology: tpu7x:2x2x1
jax: 0.10.0
libtpu: 0.0.40
codegen_flags: <defaults>
</compile_context>

<pallas_src>
import functools
import math

import jax
import jax.numpy as jnp
from jax import lax
from jax.experimental import pallas as pl
from jax.experimental.pallas import tpu as pltpu

_NWP = 128  # lane-friendly padded class dimension for the output block


def _mel_kernel(q_ref, s_ref, onehot_ref, o_ref, *, gamma, gamma2, alpha, hw, n_doublings):
    # q_ref:      (1, tq*hw, c)  query tile, spatial-major / channel-last
    # s_ref:      (1, c, Ms)     support class prototypes of this episode batch
    # onehot_ref: (Ms, NWP)      hoisted class-sum matrix (padded with zero columns)
    # o_ref:      (1, tq, NWP)   per-class normalized Katz mass ("predicts", padded)
    qf = q_ref[0].astype(jnp.float32)                            # (tq*hw, c)
    sf = s_ref[0].astype(jnp.float32)                            # (c, Ms)
    ms = sf.shape[1]
    tq = qf.shape[0] // hw

    # Cosine normalization kept in f32 (gamma=20 amplifies S errors; bf16 only after softmax).
    eps = 1e-12
    qn = qf * lax.rsqrt(jnp.sum(qf * qf, axis=-1, keepdims=True) + eps)
    sn = sf * lax.rsqrt(jnp.sum(sf * sf, axis=0, keepdims=True) + eps)

    # All queries of this tile in one dense MXU matmul: S[(e,i), m] = <qn, sn>.
    S = jnp.dot(qn, sn, preferred_element_type=jnp.float32)      # (tq*hw, Ms)
    # View-level reshape when hw % 8 == 0 (the wrapper keeps hw*tq 8-aligned when tiling).
    S3 = S.reshape(tq, hw, ms)                                   # (tq, Mq, Ms)

    # T_sq = softmax(gamma * S) over support positions (rows over Ms sum to 1).
    gS = gamma * S3
    Tsq = jnp.exp(gS - jnp.max(gS, axis=-1, keepdims=True))
    Tsq = Tsq / jnp.sum(Tsq, axis=-1, keepdims=True)             # (tq, Mq, Ms)

    # B = T_qs^T = softmax(gamma2 * S) over query positions (columns over Mq sum to 1).
    g2S = gamma2 * S3
    Bm = jnp.exp(g2S - jnp.max(g2S, axis=1, keepdims=True))
    Bm = Bm / jnp.sum(Bm, axis=1, keepdims=True)                 # (tq, Mq, Ms)

    # Post-softmax probabilities -> bf16 MXU operands (f32 accumulation everywhere below).
    Tsq_b = Tsq.astype(jnp.bfloat16)
    Bm_b = Bm.astype(jnp.bfloat16)

    alpha2 = alpha * alpha
    # Row-vector Katz operator N = alpha^2 * Tsq @ Bm^T, one batched (Mq,Ms)x(Ms,Mq) matmul.
    Npow = (alpha2 * jnp.einsum('eim,ejm->eij', Tsq_b, Bm_b,
                                preferred_element_type=jnp.float32)).astype(jnp.bfloat16)
    # v = alpha * B @ 1 + 1, carried in f32 as a (tq, 1, Mq) row vector.
    v = (alpha * jnp.sum(Bm, axis=-1) + 1.0)[:, None, :]

    # Log-depth doubling of the Neumann series: after k steps y = v * sum_{t<2^k} N^t.
    y = v
    for j in range(n_doublings):
        y = y + jnp.einsum('eoi,eij->eoj', y.astype(jnp.bfloat16), Npow,
                           preferred_element_type=jnp.float32)
        if j + 1 < n_doublings:
            Npow = jnp.einsum('eij,ejk->eik', Npow, Npow,
                              preferred_element_type=jnp.float32).astype(jnp.bfloat16)

    # Katz mass on support nodes: alpha * A @ x_q == alpha * y @ Tsq.
    katz_s = alpha * jnp.einsum('eoi,eim->eom', y.astype(jnp.bfloat16), Tsq_b,
                                preferred_element_type=jnp.float32)[:, 0, :]   # (tq, Ms)
    # Exact divide (this feeds log() in the NLL loss).
    partial = katz_s / jnp.sum(katz_s, axis=-1, keepdims=True)

    # Per-class sum via the hoisted one-hot matmul; padded columns stay zero.
    o_ref[0] = jnp.dot(partial, onehot_ref[...], preferred_element_type=jnp.float32)


def _choose_query_tile(q, hw, c, ms, query_tile=None, budget_bytes=24 << 20):
    """Pick the largest query tile whose in-kernel working set fits comfortably in VMEM."""
    if query_tile is not None:
        tq = int(query_tile)
        if tq >= q:
            return q
        # Tiles smaller than q must be 8-aligned so the (tq*hw, c) / (tq, NWP) blocks
        # satisfy the (8, 128) block-shape rule regardless of hw.
        return max(8, (tq // 8) * 8)

    def est(tq):
        big = tq * hw * ms                       # S3 / Tsq / Bm sized tensors
        return 4 * (6 * big + 4 * tq * hw * c + 3 * tq * hw * hw + 3 * c * ms + ms * _NWP)

    if est(q) <= budget_bytes:
        return q
    tq = max(8, (q // 8) * 8)
    while tq > 8 and est(tq) > budget_bytes:
        tq -= 8
    return tq


def mel_forward(support_xf, support_y, query_xf, query_y, n_way, k_shot,
                gamma=20.0, gamma2=10.0, katz_factor=0.5,
                query_tile=None, vmem_limit_bytes=None):
    del support_y  # unused by the forward path, like in the PyTorch module
    b, s, c, h, w = support_xf.shape
    q = query_xf.shape[1]
    hw = h * w
    N = b * q
    Ms = n_way * hw
    assert s == n_way * k_shot
    assert n_way <= _NWP

    # Glue: class prototypes (mean over k_shot), class-major spatial flatten -> (b, c, Ms).
    proto = support_xf.reshape(b, n_way, k_shot, c, hw).mean(axis=2)          # (b, n, c, hw)
    s_feat = jnp.transpose(proto, (0, 2, 1, 3)).reshape(b, c, Ms)             # (b, c, Ms)
    # Glue: queries spatial-major / channel-last so S is one (tq*hw, c) @ (c, Ms) matmul.
    # (Folding this transpose into the kernel's first matmul would save one HBM round trip
    #  of q_feat — mainly a v5e bandwidth concern; kept here for lowering robustness.)
    q_feat = jnp.transpose(query_xf.reshape(b, q, c, hw), (0, 1, 3, 2)).reshape(b, q * hw, c)

    # Hoisted one-hot class-sum matrix, padded to a lane-friendly width.
    onehot = (jnp.arange(Ms)[:, None] // hw == jnp.arange(_NWP)[None, :]).astype(jnp.float32)

    tq = _choose_query_tile(q, hw, c, Ms, query_tile)
    q_pad = -(-q // tq) * tq
    if q_pad != q:
        # Zero-padded dummy queries: qn=0 -> S=0 -> uniform softmaxes; finite everywhere,
        # sliced away below before the loss.
        q_feat = jnp.pad(q_feat, ((0, 0), (0, (q_pad - q) * hw), (0, 0)))
    n_qt = q_pad // tq

    # Doubling count (trace time): 2^k Neumann terms, residual <= a2^(2^k)/(1-a2) * ||v||.
    alpha = float(katz_factor)
    a2 = alpha * alpha
    assert 0.0 < a2 < 1.0, "bipartite Katz requires 0 < katz_factor < 1"
    n_terms = max(4, int(math.ceil(math.log(1e-8 * (1.0 - a2)) / math.log(a2))))
    n_doublings = max(3, int(math.ceil(math.log2(n_terms))))

    kernel = functools.partial(_mel_kernel, gamma=float(gamma), gamma2=float(gamma2),
                               alpha=alpha, hw=hw, n_doublings=n_doublings)

    mxu_flops = 2 * b * q_pad * hw * c * Ms                                   # S matmul
    mxu_flops += 2 * b * q_pad * hw * hw * Ms                                 # N formation
    mxu_flops += 2 * b * q_pad * hw * hw * hw * max(n_doublings - 1, 0)       # squarings
    mxu_flops += 2 * b * q_pad * hw * hw * n_doublings                        # matvecs
    mxu_flops += 2 * b * q_pad * hw * Ms                                      # katz matvec
    mxu_flops += 2 * b * q_pad * Ms * _NWP                                    # class sum
    cost = pl.CostEstimate(
        flops=int(mxu_flops),
        transcendentals=int(2 * b * q_pad * hw * Ms),
        bytes_accessed=int(q_feat.size * q_feat.dtype.itemsize
                           + s_feat.size * s_feat.dtype.itemsize
                           + onehot.size * 4 + b * q_pad * _NWP * 4))

    predicts_pad = pl.pallas_call(
        kernel,
        out_shape=jax.ShapeDtypeStruct((b, q_pad, _NWP), jnp.float32),
        grid=(b, n_qt),
        in_specs=[pl.BlockSpec((1, tq * hw, c), lambda bb, qt: (bb, qt, 0)),
                  pl.BlockSpec((1, c, Ms), lambda bb, qt: (bb, 0, 0)),
                  pl.BlockSpec((Ms, _NWP), lambda bb, qt: (0, 0))],
        out_specs=pl.BlockSpec((1, tq, _NWP), lambda bb, qt: (bb, qt, 0)),
        # Both axes independent: episode batch and query tile (helps v7x's 2 TCs when b<=2).
        compiler_params=pltpu.CompilerParams(
            dimension_semantics=("parallel", "parallel"),
            vmem_limit_bytes=vmem_limit_bytes),
        cost_estimate=cost,
    )(q_feat, s_feat, onehot)

    predicts = predicts_pad[:, :q, :n_way].reshape(N, n_way)

    # NLLLoss(log(predicts), query_y), reduction='mean'  (glue).
    qy = query_y.reshape(N)
    logp = jnp.log(predicts)
    loss = -jnp.mean(jnp.take_along_axis(logp, qy[:, None], axis=1))
    # TODO(synk): eval-mode rewards/argmax branch of the PyTorch module is not implemented;
    # this mirrors the training-mode return ({'MEL_loss': loss}) plus the predicts.
    return {'MEL_loss': loss}, predicts


def mel_reference(support_xf, query_xf, query_y, n_way, k_shot, gamma, gamma2, alpha):
    """Pure-JAX transliteration of the PyTorch bipartite_katz_forward path."""
    b, s, c, h, w = support_xf.shape
    q = query_xf.shape[1]
    hw = h * w
    N = b * q
    Mq, Ms = hw, n_way * hw
    proto = support_xf.reshape(b, n_way, k_shot, c, hw).mean(axis=2)
    pn = proto * lax.rsqrt(jnp.sum(proto ** 2, axis=2, keepdims=True) + 1e-12)
    qf = query_xf.reshape(b, q, c, hw)
    qn = qf * lax.rsqrt(jnp.sum(qf ** 2, axis=2, keepdims=True) + 1e-12)
    S = jnp.einsum('bqci,bncj->bqnij', qn, pn, precision=lax.Precision.HIGHEST)
    S = jnp.transpose(S, (0, 1, 3, 2, 4)).reshape(N, Mq, Ms)
    St = jnp.swapaxes(S, -1, -2)
    Tsq = jax.nn.softmax(gamma * S, axis=-1)
    Tqs = jax.nn.softmax(gamma2 * St, axis=-1)
    T = jnp.concatenate([
        jnp.concatenate([jnp.zeros((N, Ms, Ms)), jnp.swapaxes(Tsq, -1, -2)], axis=-1),
        jnp.concatenate([jnp.swapaxes(Tqs, -1, -2), jnp.zeros((N, Mq, Mq))], axis=-1),
    ], axis=-2)
    I = jnp.broadcast_to(jnp.eye(Ms + Mq), (N, Ms + Mq, Ms + Mq))
    katz = jnp.matmul(jnp.linalg.inv(I - alpha * T) - I,
                      jnp.ones((N, Ms + Mq, 1)),
                      precision=lax.Precision.HIGHEST)[..., 0]
    partial = katz[:, :Ms] / jnp.sum(katz[:, :Ms], axis=-1, keepdims=True)
    predicts = partial.reshape(N, n_way, hw).sum(-1)
    qy = query_y.reshape(N)
    loss = -jnp.mean(jnp.take_along_axis(jnp.log(predicts), qy[:, None], axis=1))
    return loss, predicts


if __name__ == "__main__":
    key = jax.random.PRNGKey(0)
    b, n_way, k_shot, q = 2, 2, 2, 12
    c, h, w = 32, 4, 4
    s = n_way * k_shot
    k1, k2, k3 = jax.random.split(key, 3)
    support_xf = jax.random.normal(k1, (b, s, c, h, w), dtype=jnp.float32)
    query_xf = jax.random.normal(k2, (b, q, c, h, w), dtype=jnp.float32)
    query_y = jax.random.randint(k3, (b, q), 0, n_way)
    support_y = jnp.zeros((b, s), dtype=jnp.int32)  # unused by forward()

    ref_loss, ref_predicts = mel_reference(support_xf, query_xf, query_y,
                                           n_way, k_shot, 20.0, 10.0, 0.5)

    # Default path: whole query set in one tile per episode batch.
    out, predicts = mel_forward(support_xf, support_y, query_xf, query_y,
                                n_way, k_shot, gamma=20.0, gamma2=10.0, katz_factor=0.5)
    loss = jax.block_until_ready(out['MEL_loss'])

    # Tolerances sized for bf16 MXU operands in the post-softmax Neumann path.
    assert jnp.all(jnp.isfinite(predicts))
    assert jnp.allclose(predicts, ref_predicts, rtol=2e-2, atol=1e-3)
    assert jnp.allclose(loss, ref_loss, rtol=2e-2, atol=1e-3)

    # Tiled path: exercises the (batch, query-tile) grid and the q -> q_pad zero padding.
    out_t, predicts_t = mel_forward(support_xf, support_y, query_xf, query_y,
                                    n_way, k_shot, gamma=20.0, gamma2=10.0,
                                    katz_factor=0.5, query_tile=8)
    loss_t = jax.block_until_ready(out_t['MEL_loss'])
    assert jnp.all(jnp.isfinite(predicts_t))
    assert jnp.allclose(predicts_t, ref_predicts, rtol=2e-2, atol=1e-3)
    assert jnp.allclose(loss_t, ref_loss, rtol=2e-2, atol=1e-3)

    print("KERNEL_OK")
</pallas_src>

<mosaic_0001>
module attributes {stable_mosaic.version = 11 : i64} {
  func.func @_mel_kernel(%arg0: i32, %arg1: i32, %arg2: memref<1x192x32xf32, #tpu.memory_space<vmem>>, %arg3: memref<1x32x32xf32, #tpu.memory_space<vmem>>, %arg4: memref<32x128xf32, #tpu.memory_space<vmem>>, %arg5: memref<1x12x128xf32, #tpu.memory_space<vmem>>) attributes {dimension_semantics = [#tpu.dimension_semantics<parallel>, #tpu.dimension_semantics<parallel>], iteration_bounds = array<i64: 2, 1>, scalar_prefetch = 0 : i64, scratch_operands = 0 : i64, tpu.core_type = #tpu.core_type<tc>, window_params = [{transform_indices = @transform_0, window_bounds = array<i64: 1, 192, 32>}, {transform_indices = @transform_1, window_bounds = array<i64: 1, 32, 32>}, {pipeline_mode = #tpu.pipeline_mode<synchronous>, transform_indices = @transform_2, window_bounds = array<i64: 32, 128>}, {transform_indices = @transform_3, window_bounds = array<i64: 1, 12, 128>}]} {
    %c0 = arith.constant 0 : index
    %c0_0 = arith.constant 0 : index
    %c0_1 = arith.constant 0 : index
    %0 = vector.load %arg2[%c0, %c0_0, %c0_1] : memref<1x192x32xf32, #tpu.memory_space<vmem>>, vector<1x192x32xf32>
    %1 = vector.shape_cast %0 : vector<1x192x32xf32> to vector<192x32xf32>
    %c0_2 = arith.constant 0 : index
    %c0_3 = arith.constant 0 : index
    %c0_4 = arith.constant 0 : index
    %2 = vector.load %arg3[%c0_2, %c0_3, %c0_4] : memref<1x32x32xf32, #tpu.memory_space<vmem>>, vector<1x32x32xf32>
    %3 = vector.shape_cast %2 : vector<1x32x32xf32> to vector<32x32xf32>
    %4 = arith.mulf %1, %1 : vector<192x32xf32>
    %cst = arith.constant dense<0.000000e+00> : vector<192xf32>
    %5 = vector.multi_reduction <add>, %4, %cst [1] : vector<192x32xf32> to vector<192xf32>
    %6 = vector.shape_cast %5 : vector<192xf32> to vector<192x1xf32>
    %cst_5 = arith.constant 9.99999996E-13 : f32
    %7 = vector.broadcast %cst_5 : f32 to vector<192x1xf32>
    %8 = arith.addf %6, %7 : vector<192x1xf32>
    %9 = math.rsqrt %8 : vector<192x1xf32>
    %10 = vector.broadcast %9 : vector<192x1xf32> to vector<192x32xf32>
    %11 = arith.mulf %1, %10 : vector<192x32xf32>
    %12 = arith.mulf %3, %3 : vector<32x32xf32>
    %cst_6 = arith.constant dense<0.000000e+00> : vector<32xf32>
    %13 = vector.multi_reduction <add>, %12, %cst_6 [0] : vector<32x32xf32> to vector<32xf32>
    %14 = vector.shape_cast %13 : vector<32xf32> to vector<1x32xf32>
    %cst_7 = arith.constant 9.99999996E-13 : f32
    %15 = vector.broadcast %cst_7 : f32 to vector<1x32xf32>
    %16 = arith.addf %14, %15 : vector<1x32xf32>
    %17 = math.rsqrt %16 : vector<1x32xf32>
    %18 = vector.broadcast %17 : vector<1x32xf32> to vector<32x32xf32>
    %19 = arith.mulf %3, %18 : vector<32x32xf32>
    %cst_8 = arith.constant dense<0.000000e+00> : vector<192x32xf32>
    %20 = tpu.matmul %11, %19, %cst_8 {dimension_numbers = #tpu.dot_dimension_numbers<[1], [0], [0], [1], [0, 0, 1, 1], [], []>} : vector<192x32xf32>, vector<32x32xf32>, vector<192x32xf32> -> vector<192x32xf32>
    %21 = vector.shape_cast %20 : vector<192x32xf32> to vector<12x16x32xf32>
    %cst_9 = arith.constant 2.000000e+01 : f32
    %22 = vector.broadcast %cst_9 : f32 to vector<12x16x32xf32>
    %23 = arith.mulf %22, %21 : vector<12x16x32xf32>
    %cst_10 = arith.constant dense<0xFF800000> : vector<12x16xf32>
    %24 = vector.multi_reduction <maximumf>, %23, %cst_10 [2] : vector<12x16x32xf32> to vector<12x16xf32>
    %25 = vector.shape_cast %24 : vector<12x16xf32> to vector<12x16x1xf32>
    %26 = vector.broadcast %25 : vector<12x16x1xf32> to vector<12x16x32xf32>
    %27 = arith.subf %23, %26 : vector<12x16x32xf32>
    %28 = math.exp %27 : vector<12x16x32xf32>
    %cst_11 = arith.constant dense<0.000000e+00> : vector<12x16xf32>
    %29 = vector.multi_reduction <add>, %28, %cst_11 [2] : vector<12x16x32xf32> to vector<12x16xf32>
    %30 = vector.shape_cast %29 : vector<12x16xf32> to vector<12x16x1xf32>
    %31 = vector.broadcast %30 : vector<12x16x1xf32> to vector<12x16x32xf32>
    %32 = arith.divf %28, %31 : vector<12x16x32xf32>
    %cst_12 = arith.constant 1.000000e+01 : f32
    %33 = vector.broadcast %cst_12 : f32 to vector<12x16x32xf32>
    %34 = arith.mulf %33, %21 : vector<12x16x32xf32>
    %cst_13 = arith.constant dense<0xFF800000> : vector<12x32xf32>
    %35 = vector.multi_reduction <maximumf>, %34, %cst_13 [1] : vector<12x16x32xf32> to vector<12x32xf32>
    %36 = vector.shape_cast %35 : vector<12x32xf32> to vector<12x1x32xf32>
    %37 = vector.broadcast %36 : vector<12x1x32xf32> to vector<12x16x32xf32>
    %38 = arith.subf %34, %37 : vector<12x16x32xf32>
    %39 = math.exp %38 : vector<12x16x32xf32>
    %cst_14 = arith.constant dense<0.000000e+00> : vector<12x32xf32>
    %40 = vector.multi_reduction <add>, %39, %cst_14 [1] : vector<12x16x32xf32> to vector<12x32xf32>
    %41 = vector.shape_cast %40 : vector<12x32xf32> to vector<12x1x32xf32>
    %42 = vector.broadcast %41 : vector<12x1x32xf32> to vector<12x16x32xf32>
    %43 = arith.divf %39, %42 : vector<12x16x32xf32>
    %44 = arith.truncf %32 : vector<12x16x32xf32> to vector<12x16x32xbf16>
    %45 = arith.truncf %43 : vector<12x16x32xf32> to vector<12x16x32xbf16>
    "tpu.trace_start"() <{level = 10 : i32, message = "eim,ejm->eij"}> : () -> ()
    %cst_15 = arith.constant dense<0.000000e+00> : vector<12x16x16xf32>
    %46 = tpu.matmul %44, %45, %cst_15 {dimension_numbers = #tpu.dot_dimension_numbers<[2], [2], [1], [1], [0, 0, 0, 1, 1, 1], [0], [0]>} : vector<12x16x32xbf16>, vector<12x16x32xbf16>, vector<12x16x16xf32> -> vector<12x16x16xf32>
    "tpu.trace_stop"() : () -> ()
    %cst_16 = arith.constant 2.500000e-01 : f32
    %47 = vector.broadcast %cst_16 : f32 to vector<12x16x16xf32>
    %48 = arith.mulf %47, %46 : vector<12x16x16xf32>
    %49 = arith.truncf %48 : vector<12x16x16xf32> to vector<12x16x16xbf16>
    %cst_17 = arith.constant dense<0.000000e+00> : vector<12x16xf32>
    %50 = vector.multi_reduction <add>, %43, %cst_17 [2] : vector<12x16x32xf32> to vector<12x16xf32>
    %cst_18 = arith.constant 5.000000e-01 : f32
    %51 = vector.broadcast %cst_18 : f32 to vector<12x16xf32>
    %52 = arith.mulf %51, %50 : vector<12x16xf32>
    %cst_19 = arith.constant 1.000000e+00 : f32
    %53 = vector.broadcast %cst_19 : f32 to vector<12x16xf32>
    %54 = arith.addf %52, %53 : vector<12x16xf32>
    %55 = vector.shape_cast %54 : vector<12x16xf32> to vector<12x1x16xf32>
    %56 = arith.truncf %55 : vector<12x1x16xf32> to vector<12x1x16xbf16>
    "tpu.trace_start"() <{level = 10 : i32, message = "eoi,eij->eoj"}> : () -> ()
    %cst_20 = arith.constant dense<0.000000e+00> : vector<12x1x16xf32>
    %57 = tpu.matmul %56, %49, %cst_20 {dimension_numbers = #tpu.dot_dimension_numbers<[2], [1], [1], [2], [0, 0, 0, 1, 1, 2], [0], [0]>} : vector<12x1x16xbf16>, vector<12x16x16xbf16>, vector<12x1x16xf32> -> vector<12x1x16xf32>
    "tpu.trace_stop"() : () -> ()
    %58 = arith.addf %55, %57 : vector<12x1x16xf32>
    "tpu.trace_start"() <{level = 10 : i32, message = "eij,ejk->eik"}> : () -> ()
    %cst_21 = arith.constant dense<0.000000e+00> : vector<12x16x16xf32>
    %59 = tpu.matmul %49, %49, %cst_21 {dimension_numbers = #tpu.dot_dimension_numbers<[2], [1], [1], [2], [0, 0, 0, 1, 1, 2], [0], [0]>} : vector<12x16x16xbf16>, vector<12x16x16xbf16>, vector<12x16x16xf32> -> vector<12x16x16xf32>
    "tpu.trace_stop"() : () -> ()
    %60 = arith.truncf %59 : vector<12x16x16xf32> to vector<12x16x16xbf16>
    %61 = arith.truncf %58 : vector<12x1x16xf32> to vector<12x1x16xbf16>
    "tpu.trace_start"() <{level = 10 : i32, message = "eoi,eij->eoj"}> : () -> ()
    %cst_22 = arith.constant dense<0.000000e+00> : vector<12x1x16xf32>
    %62 = tpu.matmul %61, %60, %cst_22 {dimension_numbers = #tpu.dot_dimension_numbers<[2], [1], [1], [2], [0, 0, 0, 1, 1, 2], [0], [0]>} : vector<12x1x16xbf16>, vector<12x16x16xbf16>, vector<12x1x16xf32> -> vector<12x1x16xf32>
    "tpu.trace_stop"() : () -> ()
    %63 = arith.addf %58, %62 : vector<12x1x16xf32>
    "tpu.trace_start"() <{level = 10 : i32, message = "eij,ejk->eik"}> : () -> ()
    %cst_23 = arith.constant dense<0.000000e+00> : vector<12x16x16xf32>
    %64 = tpu.matmul %60, %60, %cst_23 {dimension_numbers = #tpu.dot_dimension_numbers<[2], [1], [1], [2], [0, 0, 0, 1, 1, 2], [0], [0]>} : vector<12x16x16xbf16>, vector<12x16x16xbf16>, vector<12x16x16xf32> -> vector<12x16x16xf32>
    "tpu.trace_stop"() : () -> ()
    %65 = arith.truncf %64 : vector<12x16x16xf32> to vector<12x16x16xbf16>
    %66 = arith.truncf %63 : vector<12x1x16xf32> to vector<12x1x16xbf16>
    "tpu.trace_start"() <{level = 10 : i32, message = "eoi,eij->eoj"}> : () -> ()
    %cst_24 = arith.constant dense<0.000000e+00> : vector<12x1x16xf32>
    %67 = tpu.matmul %66, %65, %cst_24 {dimension_numbers = #tpu.dot_dimension_numbers<[2], [1], [1], [2], [0, 0, 0, 1, 1, 2], [0], [0]>} : vector<12x1x16xbf16>, vector<12x16x16xbf16>, vector<12x1x16xf32> -> vector<12x1x16xf32>
    "tpu.trace_stop"() : () -> ()
    %68 = arith.addf %63, %67 : vector<12x1x16xf32>
    "tpu.trace_start"() <{level = 10 : i32, message = "eij,ejk->eik"}> : () -> ()
    %cst_25 = arith.constant dense<0.000000e+00> : vector<12x16x16xf32>
    %69 = tpu.matmul %65, %65, %cst_25 {dimension_numbers = #tpu.dot_dimension_numbers<[2], [1], [1], [2], [0, 0, 0, 1, 1, 2], [0], [0]>} : vector<12x16x16xbf16>, vector<12x16x16xbf16>, vector<12x16x16xf32> -> vector<12x16x16xf32>
    "tpu.trace_stop"() : () -> ()
    %70 = arith.truncf %69 : vector<12x16x16xf32> to vector<12x16x16xbf16>
    %71 = arith.truncf %68 : vector<12x1x16xf32> to vector<12x1x16xbf16>
    "tpu.trace_start"() <{level = 10 : i32, message = "eoi,eij->eoj"}> : () -> ()
    %cst_26 = arith.constant dense<0.000000e+00> : vector<12x1x16xf32>
    %72 = tpu.matmul %71, %70, %cst_26 {dimension_numbers = #tpu.dot_dimension_numbers<[2], [1], [1], [2], [0, 0, 0, 1, 1, 2], [0], [0]>} : vector<12x1x16xbf16>, vector<12x16x16xbf16>, vector<12x1x16xf32> -> vector<12x1x16xf32>
    "tpu.trace_stop"() : () -> ()
    %73 = arith.addf %68, %72 : vector<12x1x16xf32>
    %74 = arith.truncf %73 : vector<12x1x16xf32> to vector<12x1x16xbf16>
    "tpu.trace_start"() <{level = 10 : i32, message = "eoi,eim->eom"}> : () -> ()
    %cst_27 = arith.constant dense<0.000000e+00> : vector<12x1x32xf32>
    %75 = tpu.matmul %74, %44, %cst_27 {dimension_numbers = #tpu.dot_dimension_numbers<[2], [1], [1], [2], [0, 0, 0, 1, 1, 2], [0], [0]>} : vector<12x1x16xbf16>, vector<12x16x32xbf16>, vector<12x1x32xf32> -> vector<12x1x32xf32>
    "tpu.trace_stop"() : () -> ()
    %76 = vector.shape_cast %75 : vector<12x1x32xf32> to vector<12x32xf32>
    %cst_28 = arith.constant 5.000000e-01 : f32
    %77 = vector.broadcast %cst_28 : f32 to vector<12x32xf32>
    %78 = arith.mulf %77, %76 : vector<12x32xf32>
    %cst_29 = arith.constant dense<0.000000e+00> : vector<12xf32>
    %79 = vector.multi_reduction <add>, %78, %cst_29 [1] : vector<12x32xf32> to vector<12xf32>
    %80 = vector.shape_cast %79 : vector<12xf32> to vector<12x1xf32>
    %81 = vector.broadcast %80 : vector<12x1xf32> to vector<12x32xf32>
    %82 = arith.divf %78, %81 : vector<12x32xf32>
    %c0_30 = arith.constant 0 : index
    %c0_31 = arith.constant 0 : index
    %83 = vector.load %arg4[%c0_30, %c0_31] : memref<32x128xf32, #tpu.memory_space<vmem>>, vector<32x128xf32>
    %cst_32 = arith.constant dense<0.000000e+00> : vector<12x128xf32>
    %84 = tpu.matmul %82, %83, %cst_32 {dimension_numbers = #tpu.dot_dimension_numbers<[1], [0], [0], [1], [0, 0, 1, 1], [], []>} : vector<12x32xf32>, vector<32x128xf32>, vector<12x128xf32> -> vector<12x128xf32>
    %c0_33 = arith.constant 0 : index
    %c0_34 = arith.constant 0 : index
    %c0_35 = arith.constant 0 : index
    %85 = vector.load %arg5[%c0_33, %c0_34, %c0_35] : memref<1x12x128xf32, #tpu.memory_space<vmem>>, vector<1x12x128xf32>
    %86 = vector.shape_cast %85 : vector<1x12x128xf32> to vector<12x128xf32>
    %87 = vector.shape_cast %84 : vector<12x128xf32> to vector<1x12x128xf32>
    tpu.vector_store %arg5[%c0_33, %c0_34, %c0_35], %87 {strides = array<i32>} : memref<1x12x128xf32, #tpu.memory_space<vmem>>, vector<1x12x128xf32>,
    return
  }
  func.func @transform_0(%arg0: i32, %arg1: i32) -> (i32, i32, i32) {
    %c0_i32 = arith.constant 0 : i32
    %c0_i32_0 = arith.constant 0 : i32
    return %arg0, %arg1, %c0_i32 : i32, i32, i32
  }
  func.func @transform_1(%arg0: i32, %arg1: i32) -> (i32, i32, i32) {
    %c0_i32 = arith.constant 0 : i32
    %c0_i32_0 = arith.constant 0 : i32
    %c0_i32_1 = arith.constant 0 : i32
    return %arg0, %c0_i32, %c0_i32_0 : i32, i32, i32
  }
  func.func @transform_2(%arg0: i32, %arg1: i32) -> (i32, i32) {
    %c0_i32 = arith.constant 0 : i32
    %c0_i32_0 = arith.constant 0 : i32
    %c0_i32_1 = arith.constant 0 : i32
    return %c0_i32, %c0_i32_0 : i32, i32
  }
  func.func @transform_3(%arg0: i32, %arg1: i32) -> (i32, i32, i32) {
    %c0_i32 = arith.constant 0 : i32
    %c0_i32_0 = arith.constant 0 : i32
    return %arg0, %arg1, %c0_i32 : i32, i32, i32
  }
}

</mosaic_0001>

<llo_original>
// kernel: tpu_custom_call.1
$region0: #{tpu_custom_call.1}
  #allocation0 [shape = 'u32[]', space=smem, size = 0x4, offset = 0x4, fixed_abs, tag = 'smem constant byte address 0x4 - core index']
  #allocation1 [shape = 'u32[144,128]{1,0:T(1,128)}', space=vmem, size = 0x12000, scoped, tag = 'internal scratch']
  %s0 = inlined_call_operand.vmem [shape: f32[2,192,32], index: 0, kind: input, shape index: {}]
  %s1 = inlined_call_operand.vmem [shape: f32[2,32,32], index: 1, kind: input, shape index: {}]
  %s2 = inlined_call_operand.vmem [shape: f32[32,128], index: 2, kind: input, shape index: {}]
  %s3 = inlined_call_operand.vmem [shape: f32[2,12,128], index: 3, kind: output, shape index: {}]
  %s4 = sld [smem:[#allocation0]]
  $region45: #{tpu_custom_call.1} parent=0
    _
  %s6 = ssub.s32 1, %s4
  %s7 = scalar_select 0, %s6, %s4
  loop: start=0, step=1, limit=4
  $region2: #{tpu_custom_call.1} parent=0 // loop_pre_header
    _
  $region3: #{tpu_custom_call.1} parent=0 // loop_header
    %s9 = sphi 0, %s13
    %p10 = scmp.ge.s32.totalorder %s9, 4
    %s16 = sphi 0, %s28
    %s17 = sphi 0, %s24
    %s18 = sphi 0, %s16
    %s19 = sphi 0, %s17
    %s20 = sphi 0, %s18
    %s21 = sphi 0, %s19
    %s33 = sphi 0, %s35
    %s36 = sphi 0, %s33
    %s37 = sphi 0, %s36
    %s53 = sphi 0, %s37
    %s59 = sphi 0, %s61
    %s62 = sphi 0, %s59
    %s63 = sphi 0, %s62
    %s79 = sphi 0, %s63
    %s83 = sphi 0, %s83
    %s85 = sphi 0, %s83
    %s86 = sphi 0, %s85
    %s100 = sphi 0, %s86
    %s108 = sphi 0, %s110
    %s111 = sphi 0, %s108
    %s112 = sphi 0, %s111
    %s128 = sphi 0, %s112
  $region4: #{tpu_custom_call.1} parent=0 // loop_header_branch
    %12 = sbr.rel (%p10) target = $region8
  $region5: #{tpu_custom_call.1} parent=0 // loop_body
    %s14 = ssub.s32 %s9, 1
    %s15 = ssub.s32 %s9, 2
    %s22 = sadd.s32 1, %s17
    %p23 = scmp.ge.s32.totalorder %s22, 1
    %s24 = scalar_select %p23, 0, %s22
    %s25 = sadd.s32 1, %s16
    %s26 = scalar_select %p23, %s25, %s16
    %p27 = scmp.ge.s32.totalorder %s26, 2
    %s28 = scalar_select %p27, 0, %s26
    %s29 = ssub.s32 %s16, %s28
    %s30 = ssub.s32 %s17, %s24
    %s31 = sor.u32 %s29, %s30
    %p32 = scmp.eq.s32.totalorder %s31, 0
    %s34 = sadd.s32 %s33, 1
    %s35 = scalar_select %p32, %s33, %s34
    %p38 = pneg %p32
    %p39 = scmp.eq.s32.totalorder %s9, 1
    %p40 = por %p38, %p39
    %p41 = scmp.ne.s32.totalorder %s33, %s36
    %p42 = scmp.eq.s32.totalorder %s9, 0
    %p43 = por %p41, %p42
    %p44 = scmp.ne.s32.totalorder %s33, %s36
    %p45 = scmp.eq.s32.totalorder %s14, 1
    %p46 = por %p44, %p45
    %p47 = scmp.ne.s32.totalorder %s36, %s37
    %p48 = scmp.eq.s32.totalorder %s14, 0
    %p49 = por %p47, %p48
    %p50 = scmp.ne.s32.totalorder %s36, %s37
    %p51 = scmp.eq.s32.totalorder %s15, 1
    %p52 = por %p50, %p51
    %p54 = scmp.ne.s32.totalorder %s37, %s53
    %p55 = scmp.eq.s32.totalorder %s15, 0
    %p56 = por %p54, %p55
    %s57 = ssub.s32 %s16, %s28
    %p58 = scmp.eq.s32.totalorder %s57, 0
    %s60 = sadd.s32 %s59, 1
    %s61 = scalar_select %p58, %s59, %s60
    %p64 = pneg %p58
    %p65 = scmp.eq.s32.totalorder %s9, 1
    %p66 = por %p64, %p65
    %p67 = scmp.ne.s32.totalorder %s59, %s62
    %p68 = scmp.eq.s32.totalorder %s9, 0
    %p69 = por %p67, %p68
    %p70 = scmp.ne.s32.totalorder %s59, %s62
    %p71 = scmp.eq.s32.totalorder %s14, 1
    %p72 = por %p70, %p71
    %p73 = scmp.ne.s32.totalorder %s62, %s63
    %p74 = scmp.eq.s32.totalorder %s14, 0
    %p75 = por %p73, %p74
    %p76 = scmp.ne.s32.totalorder %s62, %s63
    %p77 = scmp.eq.s32.totalorder %s15, 1
    %p78 = por %p76, %p77
    %p80 = scmp.ne.s32.totalorder %s63, %s79
    %p81 = scmp.eq.s32.totalorder %s15, 0
    %p82 = por %p80, %p81
    %s84 = sadd.s32 %s83, 1
    %p87 = scmp.eq.s32.totalorder %s9, 1
    %p88 = scmp.ne.s32.totalorder %s83, %s85
    %p89 = scmp.eq.s32.totalorder %s9, 0
    %p90 = por %p88, %p89
    %p91 = scmp.ne.s32.totalorder %s83, %s85
    %p92 = scmp.eq.s32.totalorder %s14, 1
    %p93 = por %p91, %p92
    %p94 = scmp.ne.s32.totalorder %s85, %s86
    %p95 = scmp.eq.s32.totalorder %s14, 0
    %p96 = por %p94, %p95
    %p97 = scmp.ne.s32.totalorder %s85, %s86
    %p98 = scmp.eq.s32.totalorder %s15, 1
    %p99 = por %p97, %p98
    %p101 = scmp.ne.s32.totalorder %s86, %s100
    %p102 = scmp.eq.s32.totalorder %s15, 0
    %p103 = por %p101, %p102
    %s104 = ssub.s32 %s16, %s28
    %s105 = ssub.s32 %s17, %s24
    %s106 = sor.u32 %s104, %s105
    %p107 = scmp.eq.s32.totalorder %s106, 0
    %s109 = sadd.s32 %s108, 1
    %s110 = scalar_select %p107, %s108, %s109
    %p113 = pneg %p107
    %p114 = scmp.eq.s32.totalorder %s9, 1
    %p115 = por %p113, %p114
    %p116 = scmp.ne.s32.totalorder %s108, %s111
    %p117 = scmp.eq.s32.totalorder %s9, 0
    %p118 = por %p116, %p117
    %p119 = scmp.ne.s32.totalorder %s108, %s111
    %p120 = scmp.eq.s32.totalorder %s14, 1
    %p121 = por %p119, %p120
    %p122 = scmp.ne.s32.totalorder %s111, %s112
    %p123 = scmp.eq.s32.totalorder %s14, 0
    %p124 = por %p122, %p123
    %p125 = scmp.ne.s32.totalorder %s111, %s112
    %p126 = scmp.eq.s32.totalorder %s15, 1
    %p127 = por %p125, %p126
    %p129 = scmp.ne.s32.totalorder %s112, %s128
    %p130 = scmp.eq.s32.totalorder %s15, 0
    %p131 = por %p129, %p130
    %p132 = scmp.le.s32.totalorder 1, %s9
    %p133 = scmp.lt.s32.totalorder %s9, 3
    %p134 = pnand %p132, %p133
    %p135 = pneg %p134
    // Predicated region
    $region9: #{tpu_custom_call.1} parent=5 // pred_check
      _
    $region10: #{tpu_custom_call.1} parent=5 // pred_check_branch
      %137 = sbr.rel (%p134) target = $region12
    $region11: #{tpu_custom_call.1} parent=5 // pred_region
      %s138 = ssub.s32 %s9, 1
      // Predicated region
      $region13: #{tpu_custom_call.1} parent=11 // pred_check
        %p139 = pneg %p96
      $region14: #{tpu_custom_call.1} parent=11 // pred_check_branch
        %141 = sbr.rel (%p139) target = $region16
      $region15: #{tpu_custom_call.1} parent=11 // pred_region
        _
      $region16: #{tpu_custom_call.1} parent=11 // pred_fallthru
        _
    $region12: #{tpu_custom_call.1} parent=5 // pred_fallthru
      _
    %p142 = scmp.lt.s32.totalorder %s9, 2
    // Predicated region
    $region17: #{tpu_custom_call.1} parent=5 // pred_check
      %p143 = pneg %p142
    $region18: #{tpu_custom_call.1} parent=5 // pred_check_branch
      %145 = sbr.rel (%p143) target = $region20
    $region19: #{tpu_custom_call.1} parent=5 // pred_region
      // Predicated region
      $region21: #{tpu_custom_call.1} parent=19 // pred_check
        %p146 = pneg %p43
      $region22: #{tpu_custom_call.1} parent=19 // pred_check_branch
        %148 = sbr.rel (%p146) target = $region24
      $region23: #{tpu_custom_call.1} parent=19 // pred_region
        %s149 = smul.u32 24, %s17
        %p150 = scmp.lt.s32.totalorder %s16, 1
        %s151 = scalar_select %p150, %s16, 1
        %p152 = scmp.lt.s32.totalorder %s149, 23
        %s153 = scalar_select %p152, %s149, 23
        %s154 = smul.addr %s151, 24
        %s155 = sadd.s32 %s153, %s154
        %s156 = smul.addr %s155, 8
        %s157 = scalar_lea.vmem %s0, %s156
        %s158 = smul.u32 24, %s17
      $region24: #{tpu_custom_call.1} parent=19 // pred_fallthru
        _
      // Predicated region
      $region25: #{tpu_custom_call.1} parent=19 // pred_check
        %p159 = pneg %p69
      $region26: #{tpu_custom_call.1} parent=19 // pred_check_branch
        %161 = sbr.rel (%p159) target = $region28
      $region27: #{tpu_custom_call.1} parent=19 // pred_region
        %p162 = scmp.lt.s32.totalorder %s16, 1
        %s163 = scalar_select %p162, %s16, 1
        %s164 = smul.addr %s163, 4
        %s165 = smul.addr %s164, 8
        %s166 = scalar_lea.vmem %s1, %s165
      $region28: #{tpu_custom_call.1} parent=19 // pred_fallthru
        _
    $region20: #{tpu_custom_call.1} parent=5 // pred_fallthru
      _
    %p167 = scmp.le.s32.totalorder 1, %s9
    %p168 = scmp.lt.s32.totalorder %s9, 3
    %p169 = pnand %p167, %p168
    %p170 = pneg %p169
    // Predicated region
    $region29: #{tpu_custom_call.1} parent=5 // pred_check
      _
    $region30: #{tpu_custom_call.1} parent=5 // pred_check_branch
      %172 = sbr.rel (%p169) target = $region32
    $region31: #{tpu_custom_call.1} parent=5 // pred_region
      %s173 = ssub.s32 %s9, 1
      %s174 = smul.u32 24, %s19
      %p175 = scmp.lt.s32.totalorder %s18, 1
      %s176 = scalar_select %p175, %s18, 1
      %p177 = scmp.lt.s32.totalorder %s174, 23
      %s178 = scalar_select %p177, %s174, 23
      %s179 = smul.addr %s176, 24
      %s180 = sadd.s32 %s178, %s179
      %s181 = smul.addr %s180, 8
      %s182 = scalar_lea.vmem %s0, %s181
      %p183 = pneg %p49
      %p184 = pneg %p46
      %p185 = scmp.lt.s32.totalorder %s18, 1
      %s186 = scalar_select %p185, %s18, 1
      %s187 = smul.addr %s186, 4
      %s188 = smul.addr %s187, 8
      %s189 = scalar_lea.vmem %s1, %s188
      %p190 = pneg %p75
      %p191 = pneg %p72
      %p192 = pneg %p96
      %p193 = pneg %p93
      %p194 = pneg %p124
      %p195 = pneg %p121
      %s196 = smul.u32 2, %s19
      %p197 = scmp.lt.s32.totalorder %s18, 1
      %s198 = scalar_select %p197, %s18, 1
      %p199 = scmp.lt.s32.totalorder %s196, 1
      %s200 = scalar_select %p199, %s196, 1
      %s201 = smul.addr %s198, 2
      %s202 = sadd.s32 %s200, %s201
      %s203 = smul.addr %s202, 8
      %s204 = scalar_lea.vmem %s3, %s203
      %s205 = smul.u32 24, %s19
      %p206 = scmp.lt.s32.totalorder %s18, 1
      %s207 = scalar_select %p206, %s18, 1
      %p208 = scmp.lt.s32.totalorder %s205, 23
      %s209 = scalar_select %p208, %s205, 23
      %s210 = smul.addr %s207, 24
      %s211 = sadd.s32 %s209, %s210
      %s212 = smul.addr %s211, 8
      %s213 = scalar_lea.vmem %s0, %s212
      %s214 = smul.u32 24, %s19
      %p215 = scmp.lt.s32.totalorder %s18, 1
      %s216 = scalar_select %p215, %s18, 1
      %s217 = smul.addr %s216, 4
      %s218 = smul.addr %s217, 8
      %s219 = scalar_lea.vmem %s1, %s218
      %s220 = smul.u32 2, %s19
      %p221 = scmp.lt.s32.totalorder %s18, 1
      %s222 = scalar_select %p221, %s18, 1
      %p223 = scmp.lt.s32.totalorder %s220, 1
      %s224 = scalar_select %p223, %s220, 1
      %s225 = smul.addr %s222, 2
      %s226 = sadd.s32 %s224, %s225
      %s227 = smul.addr %s226, 8
      %s228 = scalar_lea.vmem %s3, %s227
      %s229 = smul.u32 2, %s19
      %v231 = vld [vmem:[%s213] sm:$0xff]
      %v232 = vld [vmem:[%s213 + $0x8] sm:$0xff]
      %v233 = vld [vmem:[%s213 + $0x10] sm:$0xff]
      %v234 = vld [vmem:[%s213 + $0x18] sm:$0xff]
      %v235 = vld [vmem:[%s213 + $0x20] sm:$0xff]
      %v236 = vld [vmem:[%s213 + $0x28] sm:$0xff]
      %v237 = vld [vmem:[%s213 + $0x30] sm:$0xff]
      %v238 = vld [vmem:[%s213 + $0x38] sm:$0xff]
      %v239 = vld [vmem:[%s213 + $0x40] sm:$0xff]
      %v240 = vld [vmem:[%s213 + $0x48] sm:$0xff]
      %v241 = vld [vmem:[%s213 + $0x50] sm:$0xff]
      %v242 = vld [vmem:[%s213 + $0x58] sm:$0xff]
      %v243 = vld [vmem:[%s213 + $0x60] sm:$0xff]
      %v244 = vld [vmem:[%s213 + $0x68] sm:$0xff]
      %v245 = vld [vmem:[%s213 + $0x70] sm:$0xff]
      %v246 = vld [vmem:[%s213 + $0x78] sm:$0xff]
      %v247 = vld [vmem:[%s213 + $0x80] sm:$0xff]
      %v248 = vld [vmem:[%s213 + $0x88] sm:$0xff]
      %v249 = vld [vmem:[%s213 + $0x90] sm:$0xff]
      %v250 = vld [vmem:[%s213 + $0x98] sm:$0xff]
      %v251 = vld [vmem:[%s213 + $0xa0] sm:$0xff]
      %v252 = vld [vmem:[%s213 + $0xa8] sm:$0xff]
      %v253 = vld [vmem:[%s213 + $0xb0] sm:$0xff]
      %v254 = vld [vmem:[%s213 + $0xb8] sm:$0xff]
      %v255 = vld [vmem:[%s219] sm:$0xff]
      %v256 = vld [vmem:[%s219 + $0x8] sm:$0xff]
      %v257 = vld [vmem:[%s219 + $0x10] sm:$0xff]
      %v258 = vld [vmem:[%s219 + $0x18] sm:$0xff]
      %v259 = vmul.f32 %v231, %v231
      %v260 = vmul.f32 %v232, %v232
      %v261 = vmul.f32 %v233, %v233
      %v262 = vmul.f32 %v234, %v234
      %v263 = vmul.f32 %v235, %v235
      %v264 = vmul.f32 %v236, %v236
      %v265 = vmul.f32 %v237, %v237
      %v266 = vmul.f32 %v238, %v238
      %v267 = vmul.f32 %v239, %v239
      %v268 = vmul.f32 %v240, %v240
      %v269 = vmul.f32 %v241, %v241
      %v270 = vmul.f32 %v242, %v242
      %v271 = vmul.f32 %v243, %v243
      %v272 = vmul.f32 %v244, %v244
      %v273 = vmul.f32 %v245, %v245
      %v274 = vmul.f32 %v246, %v246
      %v275 = vmul.f32 %v247, %v247
      %v276 = vmul.f32 %v248, %v248
      %v277 = vmul.f32 %v249, %v249
      %v278 = vmul.f32 %v250, %v250
      %v279 = vmul.f32 %v251, %v251
      %v280 = vmul.f32 %v252, %v252
      %v281 = vmul.f32 %v253, %v253
      %v282 = vmul.f32 %v254, %v254
      %vm283 = vcmask 261120
      %v284 = vsel %vm283, %v259, 0.0
      %285 = vadd.xlane.f32.xlu0 %v284
      %v286 = vpop.xlane.xlu0 %285
      %v287 = vsel %vm283, %v260, 0.0
      %288 = vadd.xlane.f32.xlu0 %v287
      %v289 = vpop.xlane.xlu0 %288
      %v290 = vsel %vm283, %v261, 0.0
      %291 = vadd.xlane.f32.xlu0 %v290
      %v292 = vpop.xlane.xlu0 %291
      %v293 = vsel %vm283, %v262, 0.0
      %294 = vadd.xlane.f32.xlu0 %v293
      %v295 = vpop.xlane.xlu0 %294
      %v296 = vsel %vm283, %v263, 0.0
      %297 = vadd.xlane.f32.xlu0 %v296
      %v298 = vpop.xlane.xlu0 %297
      %v299 = vsel %vm283, %v264, 0.0
      %300 = vadd.xlane.f32.xlu0 %v299
      %v301 = vpop.xlane.xlu0 %300
      %v302 = vsel %vm283, %v265, 0.0
      %303 = vadd.xlane.f32.xlu0 %v302
      %v304 = vpop.xlane.xlu0 %303
      %v305 = vsel %vm283, %v266, 0.0
      %306 = vadd.xlane.f32.xlu0 %v305
      %v307 = vpop.xlane.xlu0 %306
      %v308 = vsel %vm283, %v267, 0.0
      %309 = vadd.xlane.f32.xlu0 %v308
      %v310 = vpop.xlane.xlu0 %309
      %v311 = vsel %vm283, %v268, 0.0
      %312 = vadd.xlane.f32.xlu0 %v311
      %v313 = vpop.xlane.xlu0 %312
      %v314 = vsel %vm283, %v269, 0.0
      %315 = vadd.xlane.f32.xlu0 %v314
      %v316 = vpop.xlane.xlu0 %315
      %v317 = vsel %vm283, %v270, 0.0
      %318 = vadd.xlane.f32.xlu0 %v317
      %v319 = vpop.xlane.xlu0 %318
      %v320 = vsel %vm283, %v271, 0.0
      %321 = vadd.xlane.f32.xlu0 %v320
      %v322 = vpop.xlane.xlu0 %321
      %v323 = vsel %vm283, %v272, 0.0
      %324 = vadd.xlane.f32.xlu0 %v323
      %v325 = vpop.xlane.xlu0 %324
      %v326 = vsel %vm283, %v273, 0.0
      %327 = vadd.xlane.f32.xlu0 %v326
      %v328 = vpop.xlane.xlu0 %327
      %v329 = vsel %vm283, %v274, 0.0
      %330 = vadd.xlane.f32.xlu0 %v329
      %v331 = vpop.xlane.xlu0 %330
      %v332 = vsel %vm283, %v275, 0.0
      %333 = vadd.xlane.f32.xlu0 %v332
      %v334 = vpop.xlane.xlu0 %333
      %v335 = vsel %vm283, %v276, 0.0
      %336 = vadd.xlane.f32.xlu0 %v335
      %v337 = vpop.xlane.xlu0 %336
      %v338 = vsel %vm283, %v277, 0.0
      %339 = vadd.xlane.f32.xlu0 %v338
      %v340 = vpop.xlane.xlu0 %339
      %v341 = vsel %vm283, %v278, 0.0
      %342 = vadd.xlane.f32.xlu0 %v341
      %v343 = vpop.xlane.xlu0 %342
      %v344 = vsel %vm283, %v279, 0.0
      %345 = vadd.xlane.f32.xlu0 %v344
      %v346 = vpop.xlane.xlu0 %345
      %v347 = vsel %vm283, %v280, 0.0
      %348 = vadd.xlane.f32.xlu0 %v347
      %v349 = vpop.xlane.xlu0 %348
      %v350 = vsel %vm283, %v281, 0.0
      %351 = vadd.xlane.f32.xlu0 %v350
      %v352 = vpop.xlane.xlu0 %351
      %v353 = vsel %vm283, %v282, 0.0
      %354 = vadd.xlane.f32.xlu0 %v353
      %v355 = vpop.xlane.xlu0 %354
      %v356 = vadd.f32 %v286, 1e-12
      %v357 = vadd.f32 %v289, 1e-12
      %v358 = vadd.f32 %v292, 1e-12
      %v359 = vadd.f32 %v295, 1e-12
      %v360 = vadd.f32 %v298, 1e-12
      %v361 = vadd.f32 %v301, 1e-12
      %v362 = vadd.f32 %v304, 1e-12
      %v363 = vadd.f32 %v307, 1e-12
      %v364 = vadd.f32 %v310, 1e-12
      %v365 = vadd.f32 %v313, 1e-12
      %v366 = vadd.f32 %v316, 1e-12
      %v367 = vadd.f32 %v319, 1e-12
      %v368 = vadd.f32 %v322, 1e-12
      %v369 = vadd.f32 %v325, 1e-12
      %v370 = vadd.f32 %v328, 1e-12
      %v371 = vadd.f32 %v331, 1e-12
      %v372 = vadd.f32 %v334, 1e-12
      %v373 = vadd.f32 %v337, 1e-12
      %v374 = vadd.f32 %v340, 1e-12
      %v375 = vadd.f32 %v343, 1e-12
      %v376 = vadd.f32 %v346, 1e-12
      %v377 = vadd.f32 %v349, 1e-12
      %v378 = vadd.f32 %v352, 1e-12
      %v379 = vadd.f32 %v355, 1e-12
      %v380 = vrsqrt.pop %v356
      %v381 = vrsqrt.pop %v357
      %v382 = vrsqrt.pop %v358
      %v383 = vrsqrt.pop %v359
      %v384 = vrsqrt.pop %v360
      %v385 = vrsqrt.pop %v361
      %v386 = vrsqrt.pop %v362
      %v387 = vrsqrt.pop %v363
      %v388 = vrsqrt.pop %v364
      %v389 = vrsqrt.pop %v365
      %v390 = vrsqrt.pop %v366
      %v391 = vrsqrt.pop %v367
      %v392 = vrsqrt.pop %v368
      %v393 = vrsqrt.pop %v369
      %v394 = vrsqrt.pop %v370
      %v395 = vrsqrt.pop %v371
      %v396 = vrsqrt.pop %v372
      %v397 = vrsqrt.pop %v373
      %v398 = vrsqrt.pop %v374
      %v399 = vrsqrt.pop %v375
      %v400 = vrsqrt.pop %v376
      %v401 = vrsqrt.pop %v377
      %v402 = vrsqrt.pop %v378
      %v403 = vrsqrt.pop %v379
      %v404 = vmul.f32 %v231, %v380
      %v405 = vmul.f32 %v232, %v381
      %v406 = vmul.f32 %v233, %v382
      %v407 = vmul.f32 %v234, %v383
      %v408 = vmul.f32 %v235, %v384
      %v409 = vmul.f32 %v236, %v385
      %v410 = vmul.f32 %v237, %v386
      %v411 = vmul.f32 %v238, %v387
      %v412 = vmul.f32 %v239, %v388
      %v413 = vmul.f32 %v240, %v389
      %v414 = vmul.f32 %v241, %v390
      %v415 = vmul.f32 %v242, %v391
      %v416 = vmul.f32 %v243, %v392
      %v417 = vmul.f32 %v244, %v393
      %v418 = vmul.f32 %v245, %v394
      %v419 = vmul.f32 %v246, %v395
      %v420 = vmul.f32 %v247, %v396
      %v421 = vmul.f32 %v248, %v397
      %v422 = vmul.f32 %v249, %v398
      %v423 = vmul.f32 %v250, %v399
      %v424 = vmul.f32 %v251, %v400
      %v425 = vmul.f32 %v252, %v401
      %v426 = vmul.f32 %v253, %v402
      %v427 = vmul.f32 %v254, %v403
      %v428 = vmul.f32 %v255, %v255
      %v429 = vmul.f32 %v256, %v256
      %v430 = vmul.f32 %v257, %v257
      %v431 = vmul.f32 %v258, %v258
      %v432 = vsel %vm283, %v428, 0.0
      %v433 = vsel %vm283, %v429, 0.0
      %v434 = vadd.f32 %v432, %v433
      %v435 = vsel %vm283, %v430, 0.0
      %v436 = vadd.f32 %v434, %v435
      %v437 = vsel %vm283, %v431, 0.0
      %v438 = vadd.f32 %v436, %v437
      %v439 = vrot.slane %v438, 4
      %v440 = vadd.f32 %v438, %v439
      %v441 = vrot.slane %v440, 2
      %v442 = vadd.f32 %v440, %v441
      %v443 = vrot.slane %v442, 1
      %v444 = vadd.f32 %v442, %v443
      %v445 = vadd.f32 %v444, 1e-12
      %v446 = vrsqrt.pop %v445
      %v447 = vmul.f32 %v255, %v446
      %v448 = vmul.f32 %v256, %v446
      %v449 = vmul.f32 %v257, %v446
      %v450 = vmul.f32 %v258, %v446
      %v452 = vsel %vm283, %v404, 0
      %v455 = vsel %vm283, %v405, 0
      %v458 = vsel %vm283, %v406, 0
      %v461 = vsel %vm283, %v407, 0
      %v464 = vsel %vm283, %v408, 0
      %v467 = vsel %vm283, %v409, 0
      %v470 = vsel %vm283, %v410, 0
      %v473 = vsel %vm283, %v411, 0
      %v476 = vsel %vm283, %v412, 0
      %v479 = vsel %vm283, %v413, 0
      %v482 = vsel %vm283, %v414, 0
      %v485 = vsel %vm283, %v415, 0
      %v488 = vsel %vm283, %v416, 0
      %v491 = vsel %vm283, %v417, 0
      %v494 = vsel %vm283, %v418, 0
      %v497 = vsel %vm283, %v419, 0
      %v500 = vsel %vm283, %v420, 0
      %v503 = vsel %vm283, %v421, 0
      %v506 = vsel %vm283, %v422, 0
      %v509 = vsel %vm283, %v423, 0
      %v512 = vsel %vm283, %v424, 0
      %v515 = vsel %vm283, %v425, 0
      %v518 = vsel %vm283, %v426, 0
      %v521 = vsel %vm283, %v427, 0
      %523 = vmatprep.subr.mxu0 0.0
      %524 = vmatpush1.msra.mxu0 %v447
      %525 = vmatprep.subr.mxu0 0.0
      %526 = vmatpush1.msra.mxu0 %v448
      %527 = vmatprep.subr.mxu0 0.0
      %528 = vmatpush1.msra.mxu0 %v449
      %529 = vmatprep.subr.mxu0 0.0
      %530 = vmatpush1.msra.mxu0 %v450
      %531 = vmatprep.subr.mxu0 0.0
      %532 = vmatpush1.msra.mxu0 0.0
      %533 = vmatprep.subr.mxu0 0.0
      %534 = vmatpush1.msra.mxu0 0.0
      %535 = vmatprep.subr.mxu0 0.0
      %536 = vmatpush1.msra.mxu0 0.0
      %537 = vmatprep.subr.mxu0 0.0
      %538 = vmatpush1.msra.mxu0 0.0
      %539 = vmatprep.subr.mxu0 0.0
      %540 = vmatpush1.msra.mxu0 0.0
      %541 = vmatprep.subr.mxu0 0.0
      %542 = vmatpush1.msra.mxu0 0.0
      %543 = vmatprep.subr.mxu0 0.0
      %544 = vmatpush1.msra.mxu0 0.0
      %545 = vmatprep.subr.mxu0 0.0
      %546 = vmatpush1.msra.mxu0 0.0
      %547 = vmatprep.subr.mxu0 0.0
      %548 = vmatpush1.msra.mxu0 0.0
      %549 = vmatprep.subr.mxu0 0.0
      %550 = vmatpush1.msra.mxu0 0.0
      %551 = vmatprep.subr.mxu0 0.0
      %552 = vmatpush1.msra.mxu0 0.0
      %553 = vmatprep.subr.mxu0 0.0
      %554 = vmatpush1.msra.mxu0 0.0
      %555 = vmatprep.subr.mxu0 0.0
      %556 = vmatpush1.msra.mxu0 0.0
      %557 = vmatprep.subr.mxu0 0.0
      %558 = vmatpush1.msra.mxu0 0.0
      %559 = vmatprep.subr.mxu0 0.0
      %560 = vmatpush1.msra.mxu0 0.0
      %561 = vmatprep.subr.mxu0 0.0
      %562 = vmatpush1.msra.mxu0 0.0
      %563 = vmatprep.subr.mxu0 0.0
      %564 = vmatpush1.msra.mxu0 0.0
      %565 = vmatprep.subr.mxu0 0.0
      %566 = vmatpush1.msra.mxu0 0.0
      %567 = vmatprep.subr.mxu0 0.0
      %568 = vmatpush1.msra.mxu0 0.0
      %569 = vmatprep.subr.mxu0 0.0
      %570 = vmatpush1.msra.mxu0 0.0
      %571 = vmatprep.subr.mxu0 0.0
      %572 = vmatpush1.msra.mxu0 0.0
      %573 = vmatprep.subr.mxu0 0.0
      %574 = vmatpush1.msra.mxu0 0.0
      %575 = vmatprep.subr.mxu0 0.0
      %576 = vmatpush1.msra.mxu0 0.0
      %577 = vmatprep.subr.mxu0 0.0
      %578 = vmatpush1.msra.mxu0 0.0
      %579 = vmatprep.subr.mxu0 0.0
      %580 = vmatpush1.msra.mxu0 0.0
      %581 = vmatprep.subr.mxu0 0.0
      %582 = vmatpush1.msra.mxu0 0.0
      %583 = vmatprep.subr.mxu0 0.0
      %584 = vmatpush1.msra.mxu0 0.0
      %585 = vmatprep.subr.mxu0 0.0
      %586 = vmatpush1.msra.mxu0 0.0
      %587 = vmatprep.mubr.f32.mxu0 0.0
      %588 = vmatmul.mubr.f32.gmra.mrb[0].mxu0 %v452
      %v589 = vpop.f32.mrb[0].mxu0
      %v590 = vadd.f32 0.0, %v589
      %v591 = vpop.f32.mrb[0].mxu0
      %592 = vmatprep.mubr.f32.mxu0 0.0
      %593 = vmatmul.mubr.f32.gmra.mrb[0].mxu0 %v455
      %v594 = vpop.f32.mrb[0].mxu0
      %v595 = vadd.f32 0.0, %v594
      %v596 = vpop.f32.mrb[0].mxu0
      %597 = vmatprep.mubr.f32.mxu0 0.0
      %598 = vmatmul.mubr.f32.gmra.mrb[0].mxu0 %v458
      %v599 = vpop.f32.mrb[0].mxu0
      %v600 = vadd.f32 0.0, %v599
      %v601 = vpop.f32.mrb[0].mxu0
      %602 = vmatprep.mubr.f32.mxu0 0.0
      %603 = vmatmul.mubr.f32.gmra.mrb[0].mxu0 %v461
      %v604 = vpop.f32.mrb[0].mxu0
      %v605 = vadd.f32 0.0, %v604
      %v606 = vpop.f32.mrb[0].mxu0
      %607 = vmatprep.mubr.f32.mxu0 0.0
      %608 = vmatmul.mubr.f32.gmra.mrb[0].mxu0 %v464
      %v609 = vpop.f32.mrb[0].mxu0
      %v610 = vadd.f32 0.0, %v609
      %v611 = vpop.f32.mrb[0].mxu0
      %612 = vmatprep.mubr.f32.mxu0 0.0
      %613 = vmatmul.mubr.f32.gmra.mrb[0].mxu0 %v467
      %v614 = vpop.f32.mrb[0].mxu0
      %v615 = vadd.f32 0.0, %v614
      %v616 = vpop.f32.mrb[0].mxu0
      %617 = vmatprep.mubr.f32.mxu0 0.0
      %618 = vmatmul.mubr.f32.gmra.mrb[0].mxu0 %v470
      %v619 = vpop.f32.mrb[0].mxu0
      %v620 = vadd.f32 0.0, %v619
      %v621 = vpop.f32.mrb[0].mxu0
      %622 = vmatprep.mubr.f32.mxu0 0.0
      %623 = vmatmul.mubr.f32.gmra.mrb[0].mxu0 %v473
      %v624 = vpop.f32.mrb[0].mxu0
      %v625 = vadd.f32 0.0, %v624
      %v626 = vpop.f32.mrb[0].mxu0
      %627 = vmatprep.mubr.f32.mxu0 0.0
      %628 = vmatmul.mubr.f32.gmra.mrb[0].mxu0 %v476
      %v629 = vpop.f32.mrb[0].mxu0
      %v630 = vadd.f32 0.0, %v629
      %v631 = vpop.f32.mrb[0].mxu0
      %632 = vmatprep.mubr.f32.mxu0 0.0
      %633 = vmatmul.mubr.f32.gmra.mrb[0].mxu0 %v479
      %v634 = vpop.f32.mrb[0].mxu0
      %v635 = vadd.f32 0.0, %v634
      %v636 = vpop.f32.mrb[0].mxu0
      %637 = vmatprep.mubr.f32.mxu0 0.0
      %638 = vmatmul.mubr.f32.gmra.mrb[0].mxu0 %v482
      %v639 = vpop.f32.mrb[0].mxu0
      %v640 = vadd.f32 0.0, %v639
      %v641 = vpop.f32.mrb[0].mxu0
      %642 = vmatprep.mubr.f32.mxu0 0.0
      %643 = vmatmul.mubr.f32.gmra.mrb[0].mxu0 %v485
      %v644 = vpop.f32.mrb[0].mxu0
      %v645 = vadd.f32 0.0, %v644
      %v646 = vpop.f32.mrb[0].mxu0
      %647 = vmatprep.mubr.f32.mxu0 0.0
      %648 = vmatmul.mubr.f32.gmra.mrb[0].mxu0 %v488
      %v649 = vpop.f32.mrb[0].mxu0
      %v650 = vadd.f32 0.0, %v649
      %v651 = vpop.f32.mrb[0].mxu0
      %652 = vmatprep.mubr.f32.mxu0 0.0
      %653 = vmatmul.mubr.f32.gmra.mrb[0].mxu0 %v491
      %v654 = vpop.f32.mrb[0].mxu0
      %v655 = vadd.f32 0.0, %v654
      %v656 = vpop.f32.mrb[0].mxu0
      %657 = vmatprep.mubr.f32.mxu0 0.0
      %658 = vmatmul.mubr.f32.gmra.mrb[0].mxu0 %v494
      %v659 = vpop.f32.mrb[0].mxu0
      %v660 = vadd.f32 0.0, %v659
      %v661 = vpop.f32.mrb[0].mxu0
      %662 = vmatprep.mubr.f32.mxu0 0.0
      %663 = vmatmul.mubr.f32.gmra.mrb[0].mxu0 %v497
      %v664 = vpop.f32.mrb[0].mxu0
      %v665 = vadd.f32 0.0, %v664
      %v666 = vpop.f32.mrb[0].mxu0
      %667 = vmatprep.mubr.f32.mxu0 0.0
      %668 = vmatmul.mubr.f32.gmra.mrb[0].mxu0 %v500
      %v669 = vpop.f32.mrb[0].mxu0
      %v670 = vadd.f32 0.0, %v669
      %v671 = vpop.f32.mrb[0].mxu0
      %672 = vmatprep.mubr.f32.mxu0 0.0
      %673 = vmatmul.mubr.f32.gmra.mrb[0].mxu0 %v503
      %v674 = vpop.f32.mrb[0].mxu0
      %v675 = vadd.f32 0.0, %v674
      %v676 = vpop.f32.mrb[0].mxu0
      %677 = vmatprep.mubr.f32.mxu0 0.0
      %678 = vmatmul.mubr.f32.gmra.mrb[0].mxu0 %v506
      %v679 = vpop.f32.mrb[0].mxu0
      %v680 = vadd.f32 0.0, %v679
      %v681 = vpop.f32.mrb[0].mxu0
      %682 = vmatprep.mubr.f32.mxu0 0.0
      %683 = vmatmul.mubr.f32.gmra.mrb[0].mxu0 %v509
      %v684 = vpop.f32.mrb[0].mxu0
      %v685 = vadd.f32 0.0, %v684
      %v686 = vpop.f32.mrb[0].mxu0
      %687 = vmatprep.mubr.f32.mxu0 0.0
      %688 = vmatmul.mubr.f32.gmra.mrb[0].mxu0 %v512
      %v689 = vpop.f32.mrb[0].mxu0
      %v690 = vadd.f32 0.0, %v689
      %v691 = vpop.f32.mrb[0].mxu0
      %692 = vmatprep.mubr.f32.mxu0 0.0
      %693 = vmatmul.mubr.f32.gmra.mrb[0].mxu0 %v515
      %v694 = vpop.f32.mrb[0].mxu0
      %v695 = vadd.f32 0.0, %v694
      %v696 = vpop.f32.mrb[0].mxu0
      %697 = vmatprep.mubr.f32.mxu0 0.0
      %698 = vmatmul.mubr.f32.gmra.mrb[0].mxu0 %v518
      %v699 = vpop.f32.mrb[0].mxu0
      %v700 = vadd.f32 0.0, %v699
      %v701 = vpop.f32.mrb[0].mxu0
      %702 = vmatprep.mubr.f32.mxu0 0.0
      %703 = vmatmul.mubr.f32.gmra.mrb[0].mxu0 %v521
      %v704 = vpop.f32.mrb[0].mxu0
      %v705 = vadd.f32 0.0, %v704
      %v706 = vpop.f32.mrb[0].mxu0
      %707 = vdwg.mxu0
      %v708 = vmul.f32 %v590, 20.0
      %v709 = vmul.f32 %v595, 20.0
      %v710 = vmul.f32 %v600, 20.0
      %v711 = vmul.f32 %v605, 20.0
      %v712 = vmul.f32 %v610, 20.0
      %v713 = vmul.f32 %v615, 20.0
      %v714 = vmul.f32 %v620, 20.0
      %v715 = vmul.f32 %v625, 20.0
      %v716 = vmul.f32 %v630, 20.0
      %v717 = vmul.f32 %v635, 20.0
      %v718 = vmul.f32 %v640, 20.0
      %v719 = vmul.f32 %v645, 20.0
      %v720 = vmul.f32 %v650, 20.0
      %v721 = vmul.f32 %v655, 20.0
      %v722 = vmul.f32 %v660, 20.0
      %v723 = vmul.f32 %v665, 20.0
      %v724 = vmul.f32 %v670, 20.0
      %v725 = vmul.f32 %v675, 20.0
      %v726 = vmul.f32 %v680, 20.0
      %v727 = vmul.f32 %v685, 20.0
      %v728 = vmul.f32 %v690, 20.0
      %v729 = vmul.f32 %v695, 20.0
      %v730 = vmul.f32 %v700, 20.0
      %v731 = vmul.f32 %v705, 20.0
      %v732 = vsel %vm283, %v708, -inf
      %733 = vmax.xlane.f32.xlu0 %v732
      %v734 = vpop.xlane.xlu0 %733
      %v735 = vsel %vm283, %v709, -inf
      %736 = vmax.xlane.f32.xlu0 %v735
      %v737 = vpop.xlane.xlu0 %736
      %v738 = vsel %vm283, %v710, -inf
      %739 = vmax.xlane.f32.xlu0 %v738
      %v740 = vpop.xlane.xlu0 %739
      %v741 = vsel %vm283, %v711, -inf
      %742 = vmax.xlane.f32.xlu0 %v741
      %v743 = vpop.xlane.xlu0 %742
      %v744 = vsel %vm283, %v712, -inf
      %745 = vmax.xlane.f32.xlu0 %v744
      %v746 = vpop.xlane.xlu0 %745
      %v747 = vsel %vm283, %v713, -inf
      %748 = vmax.xlane.f32.xlu0 %v747
      %v749 = vpop.xlane.xlu0 %748
      %v750 = vsel %vm283, %v714, -inf
      %751 = vmax.xlane.f32.xlu0 %v750
      %v752 = vpop.xlane.xlu0 %751
      %v753 = vsel %vm283, %v715, -inf
      %754 = vmax.xlane.f32.xlu0 %v753
      %v755 = vpop.xlane.xlu0 %754
      %v756 = vsel %vm283, %v716, -inf
      %757 = vmax.xlane.f32.xlu0 %v756
      %v758 = vpop.xlane.xlu0 %757
      %v759 = vsel %vm283, %v717, -inf
      %760 = vmax.xlane.f32.xlu0 %v759
      %v761 = vpop.xlane.xlu0 %760
      %v762 = vsel %vm283, %v718, -inf
      %763 = vmax.xlane.f32.xlu0 %v762
      %v764 = vpop.xlane.xlu0 %763
      %v765 = vsel %vm283, %v719, -inf
      %766 = vmax.xlane.f32.xlu0 %v765
      %v767 = vpop.xlane.xlu0 %766
      %v768 = vsel %vm283, %v720, -inf
      %769 = vmax.xlane.f32.xlu0 %v768
      %v770 = vpop.xlane.xlu0 %769
      %v771 = vsel %vm283, %v721, -inf
      %772 = vmax.xlane.f32.xlu0 %v771
      %v773 = vpop.xlane.xlu0 %772
      %v774 = vsel %vm283, %v722, -inf
      %775 = vmax.xlane.f32.xlu0 %v774
      %v776 = vpop.xlane.xlu0 %775
      %v777 = vsel %vm283, %v723, -inf
      %778 = vmax.xlane.f32.xlu0 %v777
      %v779 = vpop.xlane.xlu0 %778
      %v780 = vsel %vm283, %v724, -inf
      %781 = vmax.xlane.f32.xlu0 %v780
      %v782 = vpop.xlane.xlu0 %781
      %v783 = vsel %vm283, %v725, -inf
      %784 = vmax.xlane.f32.xlu0 %v783
      %v785 = vpop.xlane.xlu0 %784
      %v786 = vsel %vm283, %v726, -inf
      %787 = vmax.xlane.f32.xlu0 %v786
      %v788 = vpop.xlane.xlu0 %787
      %v789 = vsel %vm283, %v727, -inf
      %790 = vmax.xlane.f32.xlu0 %v789
      %v791 = vpop.xlane.xlu0 %790
      %v792 = vsel %vm283, %v728, -inf
      %793 = vmax.xlane.f32.xlu0 %v792
      %v794 = vpop.xlane.xlu0 %793
      %v795 = vsel %vm283, %v729, -inf
      %796 = vmax.xlane.f32.xlu0 %v795
      %v797 = vpop.xlane.xlu0 %796
      %v798 = vsel %vm283, %v730, -inf
      %799 = vmax.xlane.f32.xlu0 %v798
      %v800 = vpop.xlane.xlu0 %799
      %v801 = vsel %vm283, %v731, -inf
      %802 = vmax.xlane.f32.xlu0 %v801
      %v803 = vpop.xlane.xlu0 %802
      %v804 = vsub.f32 %v708, %v734
      %v805 = vsub.f32 %v709, %v737
      %v806 = vsub.f32 %v710, %v740
      %v807 = vsub.f32 %v711, %v743
      %v808 = vsub.f32 %v712, %v746
      %v809 = vsub.f32 %v713, %v749
      %v810 = vsub.f32 %v714, %v752
      %v811 = vsub.f32 %v715, %v755
      %v812 = vsub.f32 %v716, %v758
      %v813 = vsub.f32 %v717, %v761
      %v814 = vsub.f32 %v718, %v764
      %v815 = vsub.f32 %v719, %v767
      %v816 = vsub.f32 %v720, %v770
      %v817 = vsub.f32 %v721, %v773
      %v818 = vsub.f32 %v722, %v776
      %v819 = vsub.f32 %v723, %v779
      %v820 = vsub.f32 %v724, %v782
      %v821 = vsub.f32 %v725, %v785
      %v822 = vsub.f32 %v726, %v788
      %v823 = vsub.f32 %v727, %v791
      %v824 = vsub.f32 %v728, %v794
      %v825 = vsub.f32 %v729, %v797
      %v826 = vsub.f32 %v730, %v800
      %v827 = vsub.f32 %v731, %v803
      %v828 = vmul.f32 %v804, 1.442695
      %v829 = vpow.pop %v828
      %v830 = vmul.f32 %v805, 1.442695
      %v831 = vpow.pop %v830
      %v832 = vmul.f32 %v806, 1.442695
      %v833 = vpow.pop %v832
      %v834 = vmul.f32 %v807, 1.442695
      %v835 = vpow.pop %v834
      %v836 = vmul.f32 %v808, 1.442695
      %v837 = vpow.pop %v836
      %v838 = vmul.f32 %v809, 1.442695
      %v839 = vpow.pop %v838
      %v840 = vmul.f32 %v810, 1.442695
      %v841 = vpow.pop %v840
      %v842 = vmul.f32 %v811, 1.442695
      %v843 = vpow.pop %v842
      %v844 = vmul.f32 %v812, 1.442695
      %v845 = vpow.pop %v844
      %v846 = vmul.f32 %v813, 1.442695
      %v847 = vpow.pop %v846
      %v848 = vmul.f32 %v814, 1.442695
      %v849 = vpow.pop %v848
      %v850 = vmul.f32 %v815, 1.442695
      %v851 = vpow.pop %v850
      %v852 = vmul.f32 %v816, 1.442695
      %v853 = vpow.pop %v852
      %v854 = vmul.f32 %v817, 1.442695
      %v855 = vpow.pop %v854
      %v856 = vmul.f32 %v818, 1.442695
      %v857 = vpow.pop %v856
      %v858 = vmul.f32 %v819, 1.442695
      %v859 = vpow.pop %v858
      %v860 = vmul.f32 %v820, 1.442695
      %v861 = vpow.pop %v860
      %v862 = vmul.f32 %v821, 1.442695
      %v863 = vpow.pop %v862
      %v864 = vmul.f32 %v822, 1.442695
      %v865 = vpow.pop %v864
      %v866 = vmul.f32 %v823, 1.442695
      %v867 = vpow.pop %v866
      %v868 = vmul.f32 %v824, 1.442695
      %v869 = vpow.pop %v868
      %v870 = vmul.f32 %v825, 1.442695
      %v871 = vpow.pop %v870
      %v872 = vmul.f32 %v826, 1.442695
      %v873 = vpow.pop %v872
      %v874 = vmul.f32 %v827, 1.442695
      %v875 = vpow.pop %v874
      %v876 = vsel %vm283, %v829, 0.0
      %877 = vadd.xlane.f32.xlu0 %v876
      %v878 = vpop.xlane.xlu0 %877
      %v879 = vsel %vm283, %v831, 0.0
      %880 = vadd.xlane.f32.xlu0 %v879
      %v881 = vpop.xlane.xlu0 %880
      %v882 = vsel %vm283, %v833, 0.0
      %883 = vadd.xlane.f32.xlu0 %v882
      %v884 = vpop.xlane.xlu0 %883
      %v885 = vsel %vm283, %v835, 0.0
      %886 = vadd.xlane.f32.xlu0 %v885
      %v887 = vpop.xlane.xlu0 %886
      %v888 = vsel %vm283, %v837, 0.0
      %889 = vadd.xlane.f32.xlu0 %v888
      %v890 = vpop.xlane.xlu0 %889
      %v891 = vsel %vm283, %v839, 0.0
      %892 = vadd.xlane.f32.xlu0 %v891
      %v893 = vpop.xlane.xlu0 %892
      %v894 = vsel %vm283, %v841, 0.0
      %895 = vadd.xlane.f32.xlu0 %v894
      %v896 = vpop.xlane.xlu0 %895
      %v897 = vsel %vm283, %v843, 0.0
      %898 = vadd.xlane.f32.xlu0 %v897
      %v899 = vpop.xlane.xlu0 %898
      %v900 = vsel %vm283, %v845, 0.0
      %901 = vadd.xlane.f32.xlu0 %v900
      %v902 = vpop.xlane.xlu0 %901
      %v903 = vsel %vm283, %v847, 0.0
      %904 = vadd.xlane.f32.xlu0 %v903
      %v905 = vpop.xlane.xlu0 %904
      %v906 = vsel %vm283, %v849, 0.0
      %907 = vadd.xlane.f32.xlu0 %v906
      %v908 = vpop.xlane.xlu0 %907
      %v909 = vsel %vm283, %v851, 0.0
      %910 = vadd.xlane.f32.xlu0 %v909
      %v911 = vpop.xlane.xlu0 %910
      %v912 = vsel %vm283, %v853, 0.0
      %913 = vadd.xlane.f32.xlu0 %v912
      %v914 = vpop.xlane.xlu0 %913
      %v915 = vsel %vm283, %v855, 0.0
      %916 = vadd.xlane.f32.xlu0 %v915
      %v917 = vpop.xlane.xlu0 %916
      %v918 = vsel %vm283, %v857, 0.0
      %919 = vadd.xlane.f32.xlu0 %v918
      %v920 = vpop.xlane.xlu0 %919
      %v921 = vsel %vm283, %v859, 0.0
      %922 = vadd.xlane.f32.xlu0 %v921
      %v923 = vpop.xlane.xlu0 %922
      %v924 = vsel %vm283, %v861, 0.0
      %925 = vadd.xlane.f32.xlu0 %v924
      %v926 = vpop.xlane.xlu0 %925
      %v927 = vsel %vm283, %v863, 0.0
      %928 = vadd.xlane.f32.xlu0 %v927
      %v929 = vpop.xlane.xlu0 %928
      %v930 = vsel %vm283, %v865, 0.0
      %931 = vadd.xlane.f32.xlu0 %v930
      %v932 = vpop.xlane.xlu0 %931
      %v933 = vsel %vm283, %v867, 0.0
      %934 = vadd.xlane.f32.xlu0 %v933
      %v935 = vpop.xlane.xlu0 %934
      %v936 = vsel %vm283, %v869, 0.0
      %937 = vadd.xlane.f32.xlu0 %v936
      %v938 = vpop.xlane.xlu0 %937
      %v939 = vsel %vm283, %v871, 0.0
      %940 = vadd.xlane.f32.xlu0 %v939
      %v941 = vpop.xlane.xlu0 %940
      %v942 = vsel %vm283, %v873, 0.0
      %943 = vadd.xlane.f32.xlu0 %v942
      %v944 = vpop.xlane.xlu0 %943
      %v945 = vsel %vm283, %v875, 0.0
      %946 = vadd.xlane.f32.xlu0 %v945
      %v947 = vpop.xlane.xlu0 %946
      %v948 = vrcp.pop %v878
      %v949 = vmul.f32 %v829, %v948
      %v950 = vrcp.pop %v881
      %v951 = vmul.f32 %v831, %v950
      %v952 = vrcp.pop %v884
      %v953 = vmul.f32 %v833, %v952
      %v954 = vrcp.pop %v887
      %v955 = vmul.f32 %v835, %v954
      %v956 = vrcp.pop %v890
      %v957 = vmul.f32 %v837, %v956
      %v958 = vrcp.pop %v893
      %v959 = vmul.f32 %v839, %v958
      %v960 = vrcp.pop %v896
      %v961 = vmul.f32 %v841, %v960
      %v962 = vrcp.pop %v899
      %v963 = vmul.f32 %v843, %v962
      %v964 = vrcp.pop %v902
      %v965 = vmul.f32 %v845, %v964
      %v966 = vrcp.pop %v905
      %v967 = vmul.f32 %v847, %v966
      %v968 = vrcp.pop %v908
      %v969 = vmul.f32 %v849, %v968
      %v970 = vrcp.pop %v911
      %v971 = vmul.f32 %v851, %v970
      %v972 = vrcp.pop %v914
      %v973 = vmul.f32 %v853, %v972
      %v974 = vrcp.pop %v917
      %v975 = vmul.f32 %v855, %v974
      %v976 = vrcp.pop %v920
      %v977 = vmul.f32 %v857, %v976
      %v978 = vrcp.pop %v923
      %v979 = vmul.f32 %v859, %v978
      %v980 = vrcp.pop %v926
      %v981 = vmul.f32 %v861, %v980
      %v982 = vrcp.pop %v929
      %v983 = vmul.f32 %v863, %v982
      %v984 = vrcp.pop %v932
      %v985 = vmul.f32 %v865, %v984
      %v986 = vrcp.pop %v935
      %v987 = vmul.f32 %v867, %v986
      %v988 = vrcp.pop %v938
      %v989 = vmul.f32 %v869, %v988
      %v990 = vrcp.pop %v941
      %v991 = vmul.f32 %v871, %v990
      %v992 = vrcp.pop %v944
      %v993 = vmul.f32 %v873, %v992
      %v994 = vrcp.pop %v947
      %v995 = vmul.f32 %v875, %v994
      %v996 = vmul.f32 %v590, 10.0
      %v997 = vmul.f32 %v595, 10.0
      %v998 = vmul.f32 %v600, 10.0
      %v999 = vmul.f32 %v605, 10.0
      %v1000 = vmul.f32 %v610, 10.0
      %v1001 = vmul.f32 %v615, 10.0
      %v1002 = vmul.f32 %v620, 10.0
      %v1003 = vmul.f32 %v625, 10.0
      %v1004 = vmul.f32 %v630, 10.0
      %v1005 = vmul.f32 %v635, 10.0
      %v1006 = vmul.f32 %v640, 10.0
      %v1007 = vmul.f32 %v645, 10.0
      %v1008 = vmul.f32 %v650, 10.0
      %v1009 = vmul.f32 %v655, 10.0
      %v1010 = vmul.f32 %v660, 10.0
      %v1011 = vmul.f32 %v665, 10.0
      %v1012 = vmul.f32 %v670, 10.0
      %v1013 = vmul.f32 %v675, 10.0
      %v1014 = vmul.f32 %v680, 10.0
      %v1015 = vmul.f32 %v685, 10.0
      %v1016 = vmul.f32 %v690, 10.0
      %v1017 = vmul.f32 %v695, 10.0
      %v1018 = vmul.f32 %v700, 10.0
      %v1019 = vmul.f32 %v705, 10.0
      %v1020 = vsel %vm283, %v996, -inf
      %v1021 = vsel %vm283, %v997, -inf
      %v1022 = vmax.f32 %v1020, %v1021
      %v1023 = vrot.slane %v1022, 4
      %v1024 = vmax.f32 %v1022, %v1023
      %v1025 = vrot.slane %v1024, 2
      %v1026 = vmax.f32 %v1024, %v1025
      %v1027 = vrot.slane %v1026, 1
      %v1028 = vmax.f32 %v1026, %v1027
      %v1029 = vsel %vm283, %v998, -inf
      %v1030 = vsel %vm283, %v999, -inf
      %v1031 = vmax.f32 %v1029, %v1030
      %v1032 = vrot.slane %v1031, 4
      %v1033 = vmax.f32 %v1031, %v1032
      %v1034 = vrot.slane %v1033, 2
      %v1035 = vmax.f32 %v1033, %v1034
      %v1036 = vrot.slane %v1035, 1
      %v1037 = vmax.f32 %v1035, %v1036
      %v1038 = vsel %vm283, %v1000, -inf
      %v1039 = vsel %vm283, %v1001, -inf
      %v1040 = vmax.f32 %v1038, %v1039
      %v1041 = vrot.slane %v1040, 4
      %v1042 = vmax.f32 %v1040, %v1041
      %v1043 = vrot.slane %v1042, 2
      %v1044 = vmax.f32 %v1042, %v1043
      %v1045 = vrot.slane %v1044, 1
      %v1046 = vmax.f32 %v1044, %v1045
      %v1047 = vsel %vm283, %v1002, -inf
      %v1048 = vsel %vm283, %v1003, -inf
      %v1049 = vmax.f32 %v1047, %v1048
      %v1050 = vrot.slane %v1049, 4
      %v1051 = vmax.f32 %v1049, %v1050
      %v1052 = vrot.slane %v1051, 2
      %v1053 = vmax.f32 %v1051, %v1052
      %v1054 = vrot.slane %v1053, 1
      %v1055 = vmax.f32 %v1053, %v1054
      %v1056 = vsel %vm283, %v1004, -inf
      %v1057 = vsel %vm283, %v1005, -inf
      %v1058 = vmax.f32 %v1056, %v1057
      %v1059 = vrot.slane %v1058, 4
      %v1060 = vmax.f32 %v1058, %v1059
      %v1061 = vrot.slane %v1060, 2
      %v1062 = vmax.f32 %v1060, %v1061
      %v1063 = vrot.slane %v1062, 1
      %v1064 = vmax.f32 %v1062, %v1063
      %v1065 = vsel %vm283, %v1006, -inf
      %v1066 = vsel %vm283, %v1007, -inf
      %v1067 = vmax.f32 %v1065, %v1066
      %v1068 = vrot.slane %v1067, 4
      %v1069 = vmax.f32 %v1067, %v1068
      %v1070 = vrot.slane %v1069, 2
      %v1071 = vmax.f32 %v1069, %v1070
      %v1072 = vrot.slane %v1071, 1
      %v1073 = vmax.f32 %v1071, %v1072
      %v1074 = vsel %vm283, %v1008, -inf
      %v1075 = vsel %vm283, %v1009, -inf
      %v1076 = vmax.f32 %v1074, %v1075
      %v1077 = vrot.slane %v1076, 4
      %v1078 = vmax.f32 %v1076, %v1077
      %v1079 = vrot.slane %v1078, 2
      %v1080 = vmax.f32 %v1078, %v1079
      %v1081 = vrot.slane %v1080, 1
      %v1082 = vmax.f32 %v1080, %v1081
      %v1083 = vsel %vm283, %v1010, -inf
      %v1084 = vsel %vm283, %v1011, -inf
      %v1085 = vmax.f32 %v1083, %v1084
      %v1086 = vrot.slane %v1085, 4
      %v1087 = vmax.f32 %v1085, %v1086
      %v1088 = vrot.slane %v1087, 2
      %v1089 = vmax.f32 %v1087, %v1088
      %v1090 = vrot.slane %v1089, 1
      %v1091 = vmax.f32 %v1089, %v1090
      %v1092 = vsel %vm283, %v1012, -inf
      %v1093 = vsel %vm283, %v1013, -inf
      %v1094 = vmax.f32 %v1092, %v1093
      %v1095 = vrot.slane %v1094, 4
      %v1096 = vmax.f32 %v1094, %v1095
      %v1097 = vrot.slane %v1096, 2
      %v1098 = vmax.f32 %v1096, %v1097
      %v1099 = vrot.slane %v1098, 1
      %v1100 = vmax.f32 %v1098, %v1099
      %v1101 = vsel %vm283, %v1014, -inf
      %v1102 = vsel %vm283, %v1015, -inf
      %v1103 = vmax.f32 %v1101, %v1102
      %v1104 = vrot.slane %v1103, 4
      %v1105 = vmax.f32 %v1103, %v1104
      %v1106 = vrot.slane %v1105, 2
      %v1107 = vmax.f32 %v1105, %v1106
      %v1108 = vrot.slane %v1107, 1
      %v1109 = vmax.f32 %v1107, %v1108
      %v1110 = vsel %vm283, %v1016, -inf
      %v1111 = vsel %vm283, %v1017, -inf
      %v1112 = vmax.f32 %v1110, %v1111
      %v1113 = vrot.slane %v1112, 4
      %v1114 = vmax.f32 %v1112, %v1113
      %v1115 = vrot.slane %v1114, 2
      %v1116 = vmax.f32 %v1114, %v1115
      %v1117 = vrot.slane %v1116, 1
      %v1118 = vmax.f32 %v1116, %v1117
      %v1119 = vsel %vm283, %v1018, -inf
      %v1120 = vsel %vm283, %v1019, -inf
      %v1121 = vmax.f32 %v1119, %v1120
      %v1122 = vrot.slane %v1121, 4
      %v1123 = vmax.f32 %v1121, %v1122
      %v1124 = vrot.slane %v1123, 2
      %v1125 = vmax.f32 %v1123, %v1124
      %v1126 = vrot.slane %v1125, 1
      %v1127 = vmax.f32 %v1125, %v1126
      %v1128 = vsub.f32 %v996, %v1028
      %v1129 = vsub.f32 %v997, %v1028
      %v1130 = vsub.f32 %v998, %v1037
      %v1131 = vsub.f32 %v999, %v1037
      %v1132 = vsub.f32 %v1000, %v1046
      %v1133 = vsub.f32 %v1001, %v1046
      %v1134 = vsub.f32 %v1002, %v1055
      %v1135 = vsub.f32 %v1003, %v1055
      %v1136 = vsub.f32 %v1004, %v1064
      %v1137 = vsub.f32 %v1005, %v1064
      %v1138 = vsub.f32 %v1006, %v1073
      %v1139 = vsub.f32 %v1007, %v1073
      %v1140 = vsub.f32 %v1008, %v1082
      %v1141 = vsub.f32 %v1009, %v1082
      %v1142 = vsub.f32 %v1010, %v1091
      %v1143 = vsub.f32 %v1011, %v1091
      %v1144 = vsub.f32 %v1012, %v1100
      %v1145 = vsub.f32 %v1013, %v1100
      %v1146 = vsub.f32 %v1014, %v1109
      %v1147 = vsub.f32 %v1015, %v1109
      %v1148 = vsub.f32 %v1016, %v1118
      %v1149 = vsub.f32 %v1017, %v1118
      %v1150 = vsub.f32 %v1018, %v1127
      %v1151 = vsub.f32 %v1019, %v1127
      %v1152 = vmul.f32 %v1128, 1.442695
      %v1153 = vpow.pop %v1152
      %v1154 = vmul.f32 %v1129, 1.442695
      %v1155 = vpow.pop %v1154
      %v1156 = vmul.f32 %v1130, 1.442695
      %v1157 = vpow.pop %v1156
      %v1158 = vmul.f32 %v1131, 1.442695
      %v1159 = vpow.pop %v1158
      %v1160 = vmul.f32 %v1132, 1.442695
      %v1161 = vpow.pop %v1160
      %v1162 = vmul.f32 %v1133, 1.442695
      %v1163 = vpow.pop %v1162
      %v1164 = vmul.f32 %v1134, 1.442695
      %v1165 = vpow.pop %v1164
      %v1166 = vmul.f32 %v1135, 1.442695
      %v1167 = vpow.pop %v1166
      %v1168 = vmul.f32 %v1136, 1.442695
      %v1169 = vpow.pop %v1168
      %v1170 = vmul.f32 %v1137, 1.442695
      %v1171 = vpow.pop %v1170
      %v1172 = vmul.f32 %v1138, 1.442695
      %v1173 = vpow.pop %v1172
      %v1174 = vmul.f32 %v1139, 1.442695
      %v1175 = vpow.pop %v1174
      %v1176 = vmul.f32 %v1140, 1.442695
      %v1177 = vpow.pop %v1176
      %v1178 = vmul.f32 %v1141, 1.442695
      %v1179 = vpow.pop %v1178
      %v1180 = vmul.f32 %v1142, 1.442695
      %v1181 = vpow.pop %v1180
      %v1182 = vmul.f32 %v1143, 1.442695
      %v1183 = vpow.pop %v1182
      %v1184 = vmul.f32 %v1144, 1.442695
      %v1185 = vpow.pop %v1184
      %v1186 = vmul.f32 %v1145, 1.442695
      %v1187 = vpow.pop %v1186
      %v1188 = vmul.f32 %v1146, 1.442695
      %v1189 = vpow.pop %v1188
      %v1190 = vmul.f32 %v1147, 1.442695
      %v1191 = vpow.pop %v1190
      %v1192 = vmul.f32 %v1148, 1.442695
      %v1193 = vpow.pop %v1192
      %v1194 = vmul.f32 %v1149, 1.442695
      %v1195 = vpow.pop %v1194
      %v1196 = vmul.f32 %v1150, 1.442695
      %v1197 = vpow.pop %v1196
      %v1198 = vmul.f32 %v1151, 1.442695
      %v1199 = vpow.pop %v1198
      %v1200 = vsel %vm283, %v1153, 0.0
      %v1201 = vsel %vm283, %v1155, 0.0
      %v1202 = vadd.f32 %v1200, %v1201
      %v1203 = vrot.slane %v1202, 4
      %v1204 = vadd.f32 %v1202, %v1203
      %v1205 = vrot.slane %v1204, 2
      %v1206 = vadd.f32 %v1204, %v1205
      %v1207 = vrot.slane %v1206, 1
      %v1208 = vadd.f32 %v1206, %v1207
      %v1209 = vsel %vm283, %v1157, 0.0
      %v1210 = vsel %vm283, %v1159, 0.0
      %v1211 = vadd.f32 %v1209, %v1210
      %v1212 = vrot.slane %v1211, 4
      %v1213 = vadd.f32 %v1211, %v1212
      %v1214 = vrot.slane %v1213, 2
      %v1215 = vadd.f32 %v1213, %v1214
      %v1216 = vrot.slane %v1215, 1
      %v1217 = vadd.f32 %v1215, %v1216
      %v1218 = vsel %vm283, %v1161, 0.0
      %v1219 = vsel %vm283, %v1163, 0.0
      %v1220 = vadd.f32 %v1218, %v1219
      %v1221 = vrot.slane %v1220, 4
      %v1222 = vadd.f32 %v1220, %v1221
      %v1223 = vrot.slane %v1222, 2
      %v1224 = vadd.f32 %v1222, %v1223
      %v1225 = vrot.slane %v1224, 1
      %v1226 = vadd.f32 %v1224, %v1225
      %v1227 = vsel %vm283, %v1165, 0.0
      %v1228 = vsel %vm283, %v1167, 0.0
      %v1229 = vadd.f32 %v1227, %v1228
      %v1230 = vrot.slane %v1229, 4
      %v1231 = vadd.f32 %v1229, %v1230
      %v1232 = vrot.slane %v1231, 2
      %v1233 = vadd.f32 %v1231, %v1232
      %v1234 = vrot.slane %v1233, 1
      %v1235 = vadd.f32 %v1233, %v1234
      %v1236 = vsel %vm283, %v1169, 0.0
      %v1237 = vsel %vm283, %v1171, 0.0
      %v1238 = vadd.f32 %v1236, %v1237
      %v1239 = vrot.slane %v1238, 4
      %v1240 = vadd.f32 %v1238, %v1239
      %v1241 = vrot.slane %v1240, 2
      %v1242 = vadd.f32 %v1240, %v1241
      %v1243 = vrot.slane %v1242, 1
      %v1244 = vadd.f32 %v1242, %v1243
      %v1245 = vsel %vm283, %v1173, 0.0
      %v1246 = vsel %vm283, %v1175, 0.0
      %v1247 = vadd.f32 %v1245, %v1246
      %v1248 = vrot.slane %v1247, 4
      %v1249 = vadd.f32 %v1247, %v1248
      %v1250 = vrot.slane %v1249, 2
      %v1251 = vadd.f32 %v1249, %v1250
      %v1252 = vrot.slane %v1251, 1
      %v1253 = vadd.f32 %v1251, %v1252
      %v1254 = vsel %vm283, %v1177, 0.0
      %v1255 = vsel %vm283, %v1179, 0.0
      %v1256 = vadd.f32 %v1254, %v1255
      %v1257 = vrot.slane %v1256, 4
      %v1258 = vadd.f32 %v1256, %v1257
      %v1259 = vrot.slane %v1258, 2
      %v1260 = vadd.f32 %v1258, %v1259
      %v1261 = vrot.slane %v1260, 1
      %v1262 = vadd.f32 %v1260, %v1261
      %v1263 = vsel %vm283, %v1181, 0.0
      %v1264 = vsel %vm283, %v1183, 0.0
      %v1265 = vadd.f32 %v1263, %v1264
      %v1266 = vrot.slane %v1265, 4
      %v1267 = vadd.f32 %v1265, %v1266
      %v1268 = vrot.slane %v1267, 2
      %v1269 = vadd.f32 %v1267, %v1268
      %v1270 = vrot.slane %v1269, 1
      %v1271 = vadd.f32 %v1269, %v1270
      %v1272 = vsel %vm283, %v1185, 0.0
      %v1273 = vsel %vm283, %v1187, 0.0
      %v1274 = vadd.f32 %v1272, %v1273
      %v1275 = vrot.slane %v1274, 4
      %v1276 = vadd.f32 %v1274, %v1275
      %v1277 = vrot.slane %v1276, 2
      %v1278 = vadd.f32 %v1276, %v1277
      %v1279 = vrot.slane %v1278, 1
      %v1280 = vadd.f32 %v1278, %v1279
      %v1281 = vsel %vm283, %v1189, 0.0
      %v1282 = vsel %vm283, %v1191, 0.0
      %v1283 = vadd.f32 %v1281, %v1282
      %v1284 = vrot.slane %v1283, 4
      %v1285 = vadd.f32 %v1283, %v1284
      %v1286 = vrot.slane %v1285, 2
      %v1287 = vadd.f32 %v1285, %v1286
      %v1288 = vrot.slane %v1287, 1
      %v1289 = vadd.f32 %v1287, %v1288
      %v1290 = vsel %vm283, %v1193, 0.0
      %v1291 = vsel %vm283, %v1195, 0.0
      %v1292 = vadd.f32 %v1290, %v1291
      %v1293 = vrot.slane %v1292, 4
      %v1294 = vadd.f32 %v1292, %v1293
      %v1295 = vrot.slane %v1294, 2
      %v1296 = vadd.f32 %v1294, %v1295
      %v1297 = vrot.slane %v1296, 1
      %v1298 = vadd.f32 %v1296, %v1297
      %v1299 = vsel %vm283, %v1197, 0.0
      %v1300 = vsel %vm283, %v1199, 0.0
      %v1301 = vadd.f32 %v1299, %v1300
      %v1302 = vrot.slane %v1301, 4
      %v1303 = vadd.f32 %v1301, %v1302
      %v1304 = vrot.slane %v1303, 2
      %v1305 = vadd.f32 %v1303, %v1304
      %v1306 = vrot.slane %v1305, 1
      %v1307 = vadd.f32 %v1305, %v1306
      %v1308 = vrcp.pop %v1208
      %v1309 = vmul.f32 %v1153, %v1308
      %v1310 = vmul.f32 %v1155, %v1308
      %v1311 = vrcp.pop %v1217
      %v1312 = vmul.f32 %v1157, %v1311
      %v1313 = vmul.f32 %v1159, %v1311
      %v1314 = vrcp.pop %v1226
      %v1315 = vmul.f32 %v1161, %v1314
      %v1316 = vmul.f32 %v1163, %v1314
      %v1317 = vrcp.pop %v1235
      %v1318 = vmul.f32 %v1165, %v1317
      %v1319 = vmul.f32 %v1167, %v1317
      %v1320 = vrcp.pop %v1244
      %v1321 = vmul.f32 %v1169, %v1320
      %v1322 = vmul.f32 %v1171, %v1320
      %v1323 = vrcp.pop %v1253
      %v1324 = vmul.f32 %v1173, %v1323
      %v1325 = vmul.f32 %v1175, %v1323
      %v1326 = vrcp.pop %v1262
      %v1327 = vmul.f32 %v1177, %v1326
      %v1328 = vmul.f32 %v1179, %v1326
      %v1329 = vrcp.pop %v1271
      %v1330 = vmul.f32 %v1181, %v1329
      %v1331 = vmul.f32 %v1183, %v1329
      %v1332 = vrcp.pop %v1280
      %v1333 = vmul.f32 %v1185, %v1332
      %v1334 = vmul.f32 %v1187, %v1332
      %v1335 = vrcp.pop %v1289
      %v1336 = vmul.f32 %v1189, %v1335
      %v1337 = vmul.f32 %v1191, %v1335
      %v1338 = vrcp.pop %v1298
      %v1339 = vmul.f32 %v1193, %v1338
      %v1340 = vmul.f32 %v1195, %v1338
      %v1341 = vrcp.pop %v1307
      %v1342 = vmul.f32 %v1197, %v1341
      %v1343 = vmul.f32 %v1199, %v1341
      %v1344 = vpack.c.bf16 %v951, %v949
      %v1345 = vpack.c.bf16 %v955, %v953
      %v1346 = vpack.c.bf16 %v959, %v957
      %v1347 = vpack.c.bf16 %v963, %v961
      %v1348 = vpack.c.bf16 %v967, %v965
      %v1349 = vpack.c.bf16 %v971, %v969
      %v1350 = vpack.c.bf16 %v975, %v973
      %v1351 = vpack.c.bf16 %v979, %v977
      %v1352 = vpack.c.bf16 %v983, %v981
      %v1353 = vpack.c.bf16 %v987, %v985
      %v1354 = vpack.c.bf16 %v991, %v989
      %v1355 = vpack.c.bf16 %v995, %v993
      %v1356 = vpack.c.bf16 %v1310, %v1309
      %v1357 = vpack.c.bf16 %v1313, %v1312
      %v1358 = vpack.c.bf16 %v1316, %v1315
      %v1359 = vpack.c.bf16 %v1319, %v1318
      %v1360 = vpack.c.bf16 %v1322, %v1321
      %v1361 = vpack.c.bf16 %v1325, %v1324
      %v1362 = vpack.c.bf16 %v1328, %v1327
      %v1363 = vpack.c.bf16 %v1331, %v1330
      %v1364 = vpack.c.bf16 %v1334, %v1333
      %v1365 = vpack.c.bf16 %v1337, %v1336
      %v1366 = vpack.c.bf16 %v1340, %v1339
      %v1367 = vpack.c.bf16 %v1343, %v1342
      %v1369 = vsel %vm283, %v1344, 0
      %v1372 = vsel %vm283, %v1356, 0
      %1374 = vmatprep.subr.bf16.mxu0 0
      %1375 = vmatpush1.bf16.xpose.msra.mxu0 %v1372
      %1376 = vmatprep.subr.bf16.mxu0 0
      %1377 = vmatpush1.bf16.xpose.msra.mxu0 0
      %1378 = vmatprep.subr.bf16.mxu0 0
      %1379 = vmatpush1.bf16.xpose.msra.mxu0 0
      %1380 = vmatprep.subr.bf16.mxu0 0
      %1381 = vmatpush1.bf16.xpose.msra.mxu0 0
      %1382 = vmatprep.subr.bf16.mxu0 0
      %1383 = vmatpush1.bf16.xpose.msra.mxu0 0
      %1384 = vmatprep.subr.bf16.mxu0 0
      %1385 = vmatpush1.bf16.xpose.msra.mxu0 0
      %1386 = vmatprep.subr.bf16.mxu0 0
      %1387 = vmatpush1.bf16.xpose.msra.mxu0 0
      %1388 = vmatprep.subr.bf16.mxu0 0
      %1389 = vmatpush1.bf16.xpose.msra.mxu0 0
      %1390 = vmatprep.subr.bf16.mxu0 0
      %1391 = vmatpush1.bf16.xpose.msra.mxu0 0
      %1392 = vmatprep.subr.bf16.mxu0 0
      %1393 = vmatpush1.bf16.xpose.msra.mxu0 0
      %1394 = vmatprep.subr.bf16.mxu0 0
      %1395 = vmatpush1.bf16.xpose.msra.mxu0 0
      %1396 = vmatprep.subr.bf16.mxu0 0
      %1397 = vmatpush1.bf16.xpose.msra.mxu0 0
      %1398 = vmatprep.subr.bf16.mxu0 0
      %1399 = vmatpush1.bf16.xpose.msra.mxu0 0
      %1400 = vmatprep.subr.bf16.mxu0 0
      %1401 = vmatpush1.bf16.xpose.msra.mxu0 0
      %1402 = vmatprep.subr.bf16.mxu0 0
      %1403 = vmatpush1.bf16.xpose.msra.mxu0 0
      %1404 = vmatprep.subr.bf16.mxu0 0
      %1405 = vmatpush1.bf16.xpose.msra.mxu0 0
      %1406 = vmatprep.mubr.bf16.mxu0 0
      %1407 = vmatmul.mubr.bf16.gmra.mrb[0].mxu0 %v1369
      %v1408 = vpop.f32.mrb[0].mxu0
      %v1409 = vadd.f32 0.0, %v1408
      %v1410 = vpop.f32.mrb[0].mxu0
      %v1411 = vpop.f32.mrb[0].mxu0
      %v1412 = vadd.f32 0.0, %v1411
      %v1413 = vpop.f32.mrb[0].mxu0
      %1414 = vdwg.mxu0
      %v1416 = vsel %vm283, %v1345, 0
      %v1419 = vsel %vm283, %v1357, 0
      %1421 = vmatprep.subr.bf16.mxu0 0
      %1422 = vmatpush1.bf16.xpose.msra.mxu0 %v1419
      %1423 = vmatprep.subr.bf16.mxu0 0
      %1424 = vmatpush1.bf16.xpose.msra.mxu0 0
      %1425 = vmatprep.subr.bf16.mxu0 0
      %1426 = vmatpush1.bf16.xpose.msra.mxu0 0
      %1427 = vmatprep.subr.bf16.mxu0 0
      %1428 = vmatpush1.bf16.xpose.msra.mxu0 0
      %1429 = vmatprep.subr.bf16.mxu0 0
      %1430 = vmatpush1.bf16.xpose.msra.mxu0 0
      %1431 = vmatprep.subr.bf16.mxu0 0
      %1432 = vmatpush1.bf16.xpose.msra.mxu0 0
      %1433 = vmatprep.subr.bf16.mxu0 0
      %1434 = vmatpush1.bf16.xpose.msra.mxu0 0
      %1435 = vmatprep.subr.bf16.mxu0 0
      %1436 = vmatpush1.bf16.xpose.msra.mxu0 0
      %1437 = vmatprep.subr.bf16.mxu0 0
      %1438 = vmatpush1.bf16.xpose.msra.mxu0 0
      %1439 = vmatprep.subr.bf16.mxu0 0
      %1440 = vmatpush1.bf16.xpose.msra.mxu0 0
      %1441 = vmatprep.subr.bf16.mxu0 0
      %1442 = vmatpush1.bf16.xpose.msra.mxu0 0
      %1443 = vmatprep.subr.bf16.mxu0 0
      %1444 = vmatpush1.bf16.xpose.msra.mxu0 0
      %1445 = vmatprep.subr.bf16.mxu0 0
      %1446 = vmatpush1.bf16.xpose.msra.mxu0 0
      %1447 = vmatprep.subr.bf16.mxu0 0
      %1448 = vmatpush1.bf16.xpose.msra.mxu0 0
      %1449 = vmatprep.subr.bf16.mxu0 0
      %1450 = vmatpush1.bf16.xpose.msra.mxu0 0
      %1451 = vmatprep.subr.bf16.mxu0 0
      %1452 = vmatpush1.bf16.xpose.msra.mxu0 0
      %1453 = vmatprep.mubr.bf16.mxu0 0
      %1454 = vmatmul.mubr.bf16.gmra.mrb[0].mxu0 %v1416
      %v1455 = vpop.f32.mrb[0].mxu0
      %v1456 = vadd.f32 0.0, %v1455
      %v1457 = vpop.f32.mrb[0].mxu0
      %v1458 = vpop.f32.mrb[0].mxu0
      %v1459 = vadd.f32 0.0, %v1458
      %v1460 = vpop.f32.mrb[0].mxu0
      %1461 = vdwg.mxu0
      %v1463 = vsel %vm283, %v1346, 0
      %v1466 = vsel %vm283, %v1358, 0
      %1468 = vmatprep.subr.bf16.mxu0 0
      %1469 = vmatpush1.bf16.xpose.msra.mxu0 %v1466
      %1470 = vmatprep.subr.bf16.mxu0 0
      %1471 = vmatpush1.bf16.xpose.msra.mxu0 0
      %1472 = vmatprep.subr.bf16.mxu0 0
      %1473 = vmatpush1.bf16.xpose.msra.mxu0 0
      %1474 = vmatprep.subr.bf16.mxu0 0
      %1475 = vmatpush1.bf16.xpose.msra.mxu0 0
      %1476 = vmatprep.subr.bf16.mxu0 0
      %1477 = vmatpush1.bf16.xpose.msra.mxu0 0
      %1478 = vmatprep.subr.bf16.mxu0 0
      %1479 = vmatpush1.bf16.xpose.msra.mxu0 0
      %1480 = vmatprep.subr.bf16.mxu0 0
      %1481 = vmatpush1.bf16.xpose.msra.mxu0 0
      %1482 = vmatprep.subr.bf16.mxu0 0
      %1483 = vmatpush1.bf16.xpose.msra.mxu0 0
      %1484 = vmatprep.subr.bf16.mxu0 0
      %1485 = vmatpush1.bf16.xpose.msra.mxu0 0
      %1486 = vmatprep.subr.bf16.mxu0 0
      %1487 = vmatpush1.bf16.xpose.msra.mxu0 0
      %1488 = vmatprep.subr.bf16.mxu0 0
      %1489 = vmatpush1.bf16.xpose.msra.mxu0 0
      %1490 = vmatprep.subr.bf16.mxu0 0
      %1491 = vmatpush1.bf16.xpose.msra.mxu0 0
      %1492 = vmatprep.subr.bf16.mxu0 0
      %1493 = vmatpush1.bf16.xpose.msra.mxu0 0
      %1494 = vmatprep.subr.bf16.mxu0 0
      %1495 = vmatpush1.bf16.xpose.msra.mxu0 0
      %1496 = vmatprep.subr.bf16.mxu0 0
      %1497 = vmatpush1.bf16.xpose.msra.mxu0 0
      %1498 = vmatprep.subr.bf16.mxu0 0
      %1499 = vmatpush1.bf16.xpose.msra.mxu0 0
      %1500 = vmatprep.mubr.bf16.mxu0 0
      %1501 = vmatmul.mubr.bf16.gmra.mrb[0].mxu0 %v1463
      %v1502 = vpop.f32.mrb[0].mxu0
      %v1503 = vadd.f32 0.0, %v1502
      %v1504 = vpop.f32.mrb[0].mxu0
      %v1505 = vpop.f32.mrb[0].mxu0
      %v1506 = vadd.f32 0.0, %v1505
      %v1507 = vpop.f32.mrb[0].mxu0
      %1508 = vdwg.mxu0
      %v1510 = vsel %vm283, %v1347, 0
      %v1513 = vsel %vm283, %v1359, 0
      %1515 = vmatprep.subr.bf16.mxu0 0
      %1516 = vmatpush1.bf16.xpose.msra.mxu0 %v1513
      %1517 = vmatprep.subr.bf16.mxu0 0
      %1518 = vmatpush1.bf16.xpose.msra.mxu0 0
      %1519 = vmatprep.subr.bf16.mxu0 0
      %1520 = vmatpush1.bf16.xpose.msra.mxu0 0
      %1521 = vmatprep.subr.bf16.mxu0 0
      %1522 = vmatpush1.bf16.xpose.msra.mxu0 0
      %1523 = vmatprep.subr.bf16.mxu0 0
      %1524 = vmatpush1.bf16.xpose.msra.mxu0 0
      %1525 = vmatprep.subr.bf16.mxu0 0
      %1526 = vmatpush1.bf16.xpose.msra.mxu0 0
      %1527 = vmatprep.subr.bf16.mxu0 0
      %1528 = vmatpush1.bf16.xpose.msra.mxu0 0
      %1529 = vmatprep.subr.bf16.mxu0 0
      %1530 = vmatpush1.bf16.xpose.msra.mxu0 0
      %1531 = vmatprep.subr.bf16.mxu0 0
      %1532 = vmatpush1.bf16.xpose.msra.mxu0 0
      %1533 = vmatprep.subr.bf16.mxu0 0
      %1534 = vmatpush1.bf16.xpose.msra.mxu0 0
      %1535 = vmatprep.subr.bf16.mxu0 0
      %1536 = vmatpush1.bf16.xpose.msra.mxu0 0
      %1537 = vmatprep.subr.bf16.mxu0 0
      %1538 = vmatpush1.bf16.xpose.msra.mxu0 0
      %1539 = vmatprep.subr.bf16.mxu0 0
      %1540 = vmatpush1.bf16.xpose.msra.mxu0 0
      %1541 = vmatprep.subr.bf16.mxu0 0
      %1542 = vmatpush1.bf16.xpose.msra.mxu0 0
      %1543 = vmatprep.subr.bf16.mxu0 0
      %1544 = vmatpush1.bf16.xpose.msra.mxu0 0
      %1545 = vmatprep.subr.bf16.mxu0 0
      %1546 = vmatpush1.bf16.xpose.msra.mxu0 0
      %1547 = vmatprep.mubr.bf16.mxu0 0
      %1548 = vmatmul.mubr.bf16.gmra.mrb[0].mxu0 %v1510
      %v1549 = vpop.f32.mrb[0].mxu0
      %v1550 = vadd.f32 0.0, %v1549
      %v1551 = vpop.f32.mrb[0].mxu0
      %v1552 = vpop.f32.mrb[0].mxu0
      %v1553 = vadd.f32 0.0, %v1552
      %v1554 = vpop.f32.mrb[0].mxu0
      %1555 = vdwg.mxu0
      %v1557 = vsel %vm283, %v1348, 0
      %v1560 = vsel %vm283, %v1360, 0
      %1562 = vmatprep.subr.bf16.mxu0 0
      %1563 = vmatpush1.bf16.xpose.msra.mxu0 %v1560
      %1564 = vmatprep.subr.bf16.mxu0 0
      %1565 = vmatpush1.bf16.xpose.msra.mxu0 0
      %1566 = vmatprep.subr.bf16.mxu0 0
      %1567 = vmatpush1.bf16.xpose.msra.mxu0 0
      %1568 = vmatprep.subr.bf16.mxu0 0
      %1569 = vmatpush1.bf16.xpose.msra.mxu0 0
      %1570 = vmatprep.subr.bf16.mxu0 0
      %1571 = vmatpush1.bf16.xpose.msra.mxu0 0
      %1572 = vmatprep.subr.bf16.mxu0 0
      %1573 = vmatpush1.bf16.xpose.msra.mxu0 0
      %1574 = vmatprep.subr.bf16.mxu0 0
      %1575 = vmatpush1.bf16.xpose.msra.mxu0 0
      %1576 = vmatprep.subr.bf16.mxu0 0
      %1577 = vmatpush1.bf16.xpose.msra.mxu0 0
      %1578 = vmatprep.subr.bf16.mxu0 0
      %1579 = vmatpush1.bf16.xpose.msra.mxu0 0
      %1580 = vmatprep.subr.bf16.mxu0 0
      %1581 = vmatpush1.bf16.xpose.msra.mxu0 0
      %1582 = vmatprep.subr.bf16.mxu0 0
      %1583 = vmatpush1.bf16.xpose.msra.mxu0 0
      %1584 = vmatprep.subr.bf16.mxu0 0
      %1585 = vmatpush1.bf16.xpose.msra.mxu0 0
      %1586 = vmatprep.subr.bf16.mxu0 0
      %1587 = vmatpush1.bf16.xpose.msra.mxu0 0
      %1588 = vmatprep.subr.bf16.mxu0 0
      %1589 = vmatpush1.bf16.xpose.msra.mxu0 0
      %1590 = vmatprep.subr.bf16.mxu0 0
      %1591 = vmatpush1.bf16.xpose.msra.mxu0 0
      %1592 = vmatprep.subr.bf16.mxu0 0
      %1593 = vmatpush1.bf16.xpose.msra.mxu0 0
      %1594 = vmatprep.mubr.bf16.mxu0 0
      %1595 = vmatmul.mubr.bf16.gmra.mrb[0].mxu0 %v1557
      %v1596 = vpop.f32.mrb[0].mxu0
      %v1597 = vadd.f32 0.0, %v1596
      %v1598 = vpop.f32.mrb[0].mxu0
      %v1599 = vpop.f32.mrb[0].mxu0
      %v1600 = vadd.f32 0.0, %v1599
      %v1601 = vpop.f32.mrb[0].mxu0
      %1602 = vdwg.mxu0
      %v1604 = vsel %vm283, %v1349, 0
      %v1607 = vsel %vm283, %v1361, 0
      %1609 = vmatprep.subr.bf16.mxu0 0
      %1610 = vmatpush1.bf16.xpose.msra.mxu0 %v1607
      %1611 = vmatprep.subr.bf16.mxu0 0
      %1612 = vmatpush1.bf16.xpose.msra.mxu0 0
      %1613 = vmatprep.subr.bf16.mxu0 0
      %1614 = vmatpush1.bf16.xpose.msra.mxu0 0
      %1615 = vmatprep.subr.bf16.mxu0 0
      %1616 = vmatpush1.bf16.xpose.msra.mxu0 0
      %1617 = vmatprep.subr.bf16.mxu0 0
      %1618 = vmatpush1.bf16.xpose.msra.mxu0 0
      %1619 = vmatprep.subr.bf16.mxu0 0
      %1620 = vmatpush1.bf16.xpose.msra.mxu0 0
      %1621 = vmatprep.subr.bf16.mxu0 0
      %1622 = vmatpush1.bf16.xpose.msra.mxu0 0
      %1623 = vmatprep.subr.bf16.mxu0 0
      %1624 = vmatpush1.bf16.xpose.msra.mxu0 0
      %1625 = vmatprep.subr.bf16.mxu0 0
      %1626 = vmatpush1.bf16.xpose.msra.mxu0 0
      %1627 = vmatprep.subr.bf16.mxu0 0
      %1628 = vmatpush1.bf16.xpose.msra.mxu0 0
      %1629 = vmatprep.subr.bf16.mxu0 0
      %1630 = vmatpush1.bf16.xpose.msra.mxu0 0
      %1631 = vmatprep.subr.bf16.mxu0 0
      %1632 = vmatpush1.bf16.xpose.msra.mxu0 0
      %1633 = vmatprep.subr.bf16.mxu0 0
      %1634 = vmatpush1.bf16.xpose.msra.mxu0 0
      %1635 = vmatprep.subr.bf16.mxu0 0
      %1636 = vmatpush1.bf16.xpose.msra.mxu0 0
      %1637 = vmatprep.subr.bf16.mxu0 0
      %1638 = vmatpush1.bf16.xpose.msra.mxu0 0
      %1639 = vmatprep.subr.bf16.mxu0 0
      %1640 = vmatpush1.bf16.xpose.msra.mxu0 0
      %1641 = vmatprep.mubr.bf16.mxu0 0
      %1642 = vmatmul.mubr.bf16.gmra.mrb[0].mxu0 %v1604
      %v1643 = vpop.f32.mrb[0].mxu0
      %v1644 = vadd.f32 0.0, %v1643
      %v1645 = vpop.f32.mrb[0].mxu0
      %v1646 = vpop.f32.mrb[0].mxu0
      %v1647 = vadd.f32 0.0, %v1646
      %v1648 = vpop.f32.mrb[0].mxu0
      %1649 = vdwg.mxu0
      %v1651 = vsel %vm283, %v1350, 0
      %v1654 = vsel %vm283, %v1362, 0
      %1656 = vmatprep.subr.bf16.mxu0 0
      %1657 = vmatpush1.bf16.xpose.msra.mxu0 %v1654
      %1658 = vmatprep.subr.bf16.mxu0 0
      %1659 = vmatpush1.bf16.xpose.msra.mxu0 0
      %1660 = vmatprep.subr.bf16.mxu0 0
      %1661 = vmatpush1.bf16.xpose.msra.mxu0 0
      %1662 = vmatprep.subr.bf16.mxu0 0
      %1663 = vmatpush1.bf16.xpose.msra.mxu0 0
      %1664 = vmatprep.subr.bf16.mxu0 0
      %1665 = vmatpush1.bf16.xpose.msra.mxu0 0
      %1666 = vmatprep.subr.bf16.mxu0 0
      %1667 = vmatpush1.bf16.xpose.msra.mxu0 0
      %1668 = vmatprep.subr.bf16.mxu0 0
      %1669 = vmatpush1.bf16.xpose.msra.mxu0 0
      %1670 = vmatprep.subr.bf16.mxu0 0
      %1671 = vmatpush1.bf16.xpose.msra.mxu0 0
      %1672 = vmatprep.subr.bf16.mxu0 0
      %1673 = vmatpush1.bf16.xpose.msra.mxu0 0
      %1674 = vmatprep.subr.bf16.mxu0 0
      %1675 = vmatpush1.bf16.xpose.msra.mxu0 0
      %1676 = vmatprep.subr.bf16.mxu0 0
      %1677 = vmatpush1.bf16.xpose.msra.mxu0 0
      %1678 = vmatprep.subr.bf16.mxu0 0
      %1679 = vmatpush1.bf16.xpose.msra.mxu0 0
      %1680 = vmatprep.subr.bf16.mxu0 0
      %1681 = vmatpush1.bf16.xpose.msra.mxu0 0
      %1682 = vmatprep.subr.bf16.mxu0 0
      %1683 = vmatpush1.bf16.xpose.msra.mxu0 0
      %1684 = vmatprep.subr.bf16.mxu0 0
      %1685 = vmatpush1.bf16.xpose.msra.mxu0 0
      %1686 = vmatprep.subr.bf16.mxu0 0
      %1687 = vmatpush1.bf16.xpose.msra.mxu0 0
      %1688 = vmatprep.mubr.bf16.mxu0 0
      %1689 = vmatmul.mubr.bf16.gmra.mrb[0].mxu0 %v1651
      %v1690 = vpop.f32.mrb[0].mxu0
      %v1691 = vadd.f32 0.0, %v1690
      %v1692 = vpop.f32.mrb[0].mxu0
      %v1693 = vpop.f32.mrb[0].mxu0
      %v1694 = vadd.f32 0.0, %v1693
      %v1695 = vpop.f32.mrb[0].mxu0
      %1696 = vdwg.mxu0
      %v1698 = vsel %vm283, %v1351, 0
      %v1701 = vsel %vm283, %v1363, 0
      %1703 = vmatprep.subr.bf16.mxu0 0
      %1704 = vmatpush1.bf16.xpose.msra.mxu0 %v1701
      %1705 = vmatprep.subr.bf16.mxu0 0
      %1706 = vmatpush1.bf16.xpose.msra.mxu0 0
      %1707 = vmatprep.subr.bf16.mxu0 0
      %1708 = vmatpush1.bf16.xpose.msra.mxu0 0
      %1709 = vmatprep.subr.bf16.mxu0 0
      %1710 = vmatpush1.bf16.xpose.msra.mxu0 0
      %1711 = vmatprep.subr.bf16.mxu0 0
      %1712 = vmatpush1.bf16.xpose.msra.mxu0 0
      %1713 = vmatprep.subr.bf16.mxu0 0
      %1714 = vmatpush1.bf16.xpose.msra.mxu0 0
      %1715 = vmatprep.subr.bf16.mxu0 0
      %1716 = vmatpush1.bf16.xpose.msra.mxu0 0
      %1717 = vmatprep.subr.bf16.mxu0 0
      %1718 = vmatpush1.bf16.xpose.msra.mxu0 0
      %1719 = vmatprep.subr.bf16.mxu0 0
      %1720 = vmatpush1.bf16.xpose.msra.mxu0 0
      %1721 = vmatprep.subr.bf16.mxu0 0
      %1722 = vmatpush1.bf16.xpose.msra.mxu0 0
      %1723 = vmatprep.subr.bf16.mxu0 0
      %1724 = vmatpush1.bf16.xpose.msra.mxu0 0
      %1725 = vmatprep.subr.bf16.mxu0 0
      %1726 = vmatpush1.bf16.xpose.msra.mxu0 0
      %1727 = vmatprep.subr.bf16.mxu0 0
      %1728 = vmatpush1.bf16.xpose.msra.mxu0 0
      %1729 = vmatprep.subr.bf16.mxu0 0
      %1730 = vmatpush1.bf16.xpose.msra.mxu0 0
      %1731 = vmatprep.subr.bf16.mxu0 0
      %1732 = vmatpush1.bf16.xpose.msra.mxu0 0
      %1733 = vmatprep.subr.bf16.mxu0 0
      %1734 = vmatpush1.bf16.xpose.msra.mxu0 0
      %1735 = vmatprep.mubr.bf16.mxu0 0
      %1736 = vmatmul.mubr.bf16.gmra.mrb[0].mxu0 %v1698
      %v1737 = vpop.f32.mrb[0].mxu0
      %v1738 = vadd.f32 0.0, %v1737
      %v1739 = vpop.f32.mrb[0].mxu0
      %v1740 = vpop.f32.mrb[0].mxu0
      %v1741 = vadd.f32 0.0, %v1740
      %v1742 = vpop.f32.mrb[0].mxu0
      %1743 = vdwg.mxu0
      %v1745 = vsel %vm283, %v1352, 0
      %v1748 = vsel %vm283, %v1364, 0
      %1750 = vmatprep.subr.bf16.mxu0 0
      %1751 = vmatpush1.bf16.xpose.msra.mxu0 %v1748
      %1752 = vmatprep.subr.bf16.mxu0 0
      %1753 = vmatpush1.bf16.xpose.msra.mxu0 0
      %1754 = vmatprep.subr.bf16.mxu0 0
      %1755 = vmatpush1.bf16.xpose.msra.mxu0 0
      %1756 = vmatprep.subr.bf16.mxu0 0
      %1757 = vmatpush1.bf16.xpose.msra.mxu0 0
      %1758 = vmatprep.subr.bf16.mxu0 0
      %1759 = vmatpush1.bf16.xpose.msra.mxu0 0
      %1760 = vmatprep.subr.bf16.mxu0 0
      %1761 = vmatpush1.bf16.xpose.msra.mxu0 0
      %1762 = vmatprep.subr.bf16.mxu0 0
      %1763 = vmatpush1.bf16.xpose.msra.mxu0 0
      %1764 = vmatprep.subr.bf16.mxu0 0
      %1765 = vmatpush1.bf16.xpose.msra.mxu0 0
      %1766 = vmatprep.subr.bf16.mxu0 0
      %1767 = vmatpush1.bf16.xpose.msra.mxu0 0
      %1768 = vmatprep.subr.bf16.mxu0 0
      %1769 = vmatpush1.bf16.xpose.msra.mxu0 0
      %1770 = vmatprep.subr.bf16.mxu0 0
      %1771 = vmatpush1.bf16.xpose.msra.mxu0 0
      %1772 = vmatprep.subr.bf16.mxu0 0
      %1773 = vmatpush1.bf16.xpose.msra.mxu0 0
      %1774 = vmatprep.subr.bf16.mxu0 0
      %1775 = vmatpush1.bf16.xpose.msra.mxu0 0
      %1776 = vmatprep.subr.bf16.mxu0 0
      %1777 = vmatpush1.bf16.xpose.msra.mxu0 0
      %1778 = vmatprep.subr.bf16.mxu0 0
      %1779 = vmatpush1.bf16.xpose.msra.mxu0 0
      %1780 = vmatprep.subr.bf16.mxu0 0
      %1781 = vmatpush1.bf16.xpose.msra.mxu0 0
      %1782 = vmatprep.mubr.bf16.mxu0 0
      %1783 = vmatmul.mubr.bf16.gmra.mrb[0].mxu0 %v1745
      %v1784 = vpop.f32.mrb[0].mxu0
      %v1785 = vadd.f32 0.0, %v1784
      %v1786 = vpop.f32.mrb[0].mxu0
      %v1787 = vpop.f32.mrb[0].mxu0
      %v1788 = vadd.f32 0.0, %v1787
      %v1789 = vpop.f32.mrb[0].mxu0
      %1790 = vdwg.mxu0
      %v1792 = vsel %vm283, %v1353, 0
      %v1795 = vsel %vm283, %v1365, 0
      %1797 = vmatprep.subr.bf16.mxu0 0
      %1798 = vmatpush1.bf16.xpose.msra.mxu0 %v1795
      %1799 = vmatprep.subr.bf16.mxu0 0
      %1800 = vmatpush1.bf16.xpose.msra.mxu0 0
      %1801 = vmatprep.subr.bf16.mxu0 0
      %1802 = vmatpush1.bf16.xpose.msra.mxu0 0
      %1803 = vmatprep.subr.bf16.mxu0 0
      %1804 = vmatpush1.bf16.xpose.msra.mxu0 0
      %1805 = vmatprep.subr.bf16.mxu0 0
      %1806 = vmatpush1.bf16.xpose.msra.mxu0 0
      %1807 = vmatprep.subr.bf16.mxu0 0
      %1808 = vmatpush1.bf16.xpose.msra.mxu0 0
      %1809 = vmatprep.subr.bf16.mxu0 0
      %1810 = vmatpush1.bf16.xpose.msra.mxu0 0
      %1811 = vmatprep.subr.bf16.mxu0 0
      %1812 = vmatpush1.bf16.xpose.msra.mxu0 0
      %1813 = vmatprep.subr.bf16.mxu0 0
      %1814 = vmatpush1.bf16.xpose.msra.mxu0 0
      %1815 = vmatprep.subr.bf16.mxu0 0
      %1816 = vmatpush1.bf16.xpose.msra.mxu0 0
      %1817 = vmatprep.subr.bf16.mxu0 0
      %1818 = vmatpush1.bf16.xpose.msra.mxu0 0
      %1819 = vmatprep.subr.bf16.mxu0 0
      %1820 = vmatpush1.bf16.xpose.msra.mxu0 0
      %1821 = vmatprep.subr.bf16.mxu0 0
      %1822 = vmatpush1.bf16.xpose.msra.mxu0 0
      %1823 = vmatprep.subr.bf16.mxu0 0
      %1824 = vmatpush1.bf16.xpose.msra.mxu0 0
      %1825 = vmatprep.subr.bf16.mxu0 0
      %1826 = vmatpush1.bf16.xpose.msra.mxu0 0
      %1827 = vmatprep.subr.bf16.mxu0 0
      %1828 = vmatpush1.bf16.xpose.msra.mxu0 0
      %1829 = vmatprep.mubr.bf16.mxu0 0
      %1830 = vmatmul.mubr.bf16.gmra.mrb[0].mxu0 %v1792
      %v1831 = vpop.f32.mrb[0].mxu0
      %v1832 = vadd.f32 0.0, %v1831
      %v1833 = vpop.f32.mrb[0].mxu0
      %v1834 = vpop.f32.mrb[0].mxu0
      %v1835 = vadd.f32 0.0, %v1834
      %v1836 = vpop.f32.mrb[0].mxu0
      %1837 = vdwg.mxu0
      %v1839 = vsel %vm283, %v1354, 0
      %v1842 = vsel %vm283, %v1366, 0
      %1844 = vmatprep.subr.bf16.mxu0 0
      %1845 = vmatpush1.bf16.xpose.msra.mxu0 %v1842
      %1846 = vmatprep.subr.bf16.mxu0 0
      %1847 = vmatpush1.bf16.xpose.msra.mxu0 0
      %1848 = vmatprep.subr.bf16.mxu0 0
      %1849 = vmatpush1.bf16.xpose.msra.mxu0 0
      %1850 = vmatprep.subr.bf16.mxu0 0
      %1851 = vmatpush1.bf16.xpose.msra.mxu0 0
      %1852 = vmatprep.subr.bf16.mxu0 0
      %1853 = vmatpush1.bf16.xpose.msra.mxu0 0
      %1854 = vmatprep.subr.bf16.mxu0 0
      %1855 = vmatpush1.bf16.xpose.msra.mxu0 0
      %1856 = vmatprep.subr.bf16.mxu0 0
      %1857 = vmatpush1.bf16.xpose.msra.mxu0 0
      %1858 = vmatprep.subr.bf16.mxu0 0
      %1859 = vmatpush1.bf16.xpose.msra.mxu0 0
      %1860 = vmatprep.subr.bf16.mxu0 0
      %1861 = vmatpush1.bf16.xpose.msra.mxu0 0
      %1862 = vmatprep.subr.bf16.mxu0 0
      %1863 = vmatpush1.bf16.xpose.msra.mxu0 0
      %1864 = vmatprep.subr.bf16.mxu0 0
      %1865 = vmatpush1.bf16.xpose.msra.mxu0 0
      %1866 = vmatprep.subr.bf16.mxu0 0
      %1867 = vmatpush1.bf16.xpose.msra.mxu0 0
      %1868 = vmatprep.subr.bf16.mxu0 0
      %1869 = vmatpush1.bf16.xpose.msra.mxu0 0
      %1870 = vmatprep.subr.bf16.mxu0 0
      %1871 = vmatpush1.bf16.xpose.msra.mxu0 0
      %1872 = vmatprep.subr.bf16.mxu0 0
      %1873 = vmatpush1.bf16.xpose.msra.mxu0 0
      %1874 = vmatprep.subr.bf16.mxu0 0
      %1875 = vmatpush1.bf16.xpose.msra.mxu0 0
      %1876 = vmatprep.mubr.bf16.mxu0 0
      %1877 = vmatmul.mubr.bf16.gmra.mrb[0].mxu0 %v1839
      %v1878 = vpop.f32.mrb[0].mxu0
      %v1879 = vadd.f32 0.0, %v1878
      %v1880 = vpop.f32.mrb[0].mxu0
      %v1881 = vpop.f32.mrb[0].mxu0
      %v1882 = vadd.f32 0.0, %v1881
      %v1883 = vpop.f32.mrb[0].mxu0
      %1884 = vdwg.mxu0
      %v1886 = vsel %vm283, %v1355, 0
      %v1889 = vsel %vm283, %v1367, 0
      %1891 = vmatprep.subr.bf16.mxu0 0
      %1892 = vmatpush1.bf16.xpose.msra.mxu0 %v1889
      %1893 = vmatprep.subr.bf16.mxu0 0
      %1894 = vmatpush1.bf16.xpose.msra.mxu0 0
      %1895 = vmatprep.subr.bf16.mxu0 0
      %1896 = vmatpush1.bf16.xpose.msra.mxu0 0
      %1897 = vmatprep.subr.bf16.mxu0 0
      %1898 = vmatpush1.bf16.xpose.msra.mxu0 0
      %1899 = vmatprep.subr.bf16.mxu0 0
      %1900 = vmatpush1.bf16.xpose.msra.mxu0 0
      %1901 = vmatprep.subr.bf16.mxu0 0
      %1902 = vmatpush1.bf16.xpose.msra.mxu0 0
      %1903 = vmatprep.subr.bf16.mxu0 0
      %1904 = vmatpush1.bf16.xpose.msra.mxu0 0
      %1905 = vmatprep.subr.bf16.mxu0 0
      %1906 = vmatpush1.bf16.xpose.msra.mxu0 0
      %1907 = vmatprep.subr.bf16.mxu0 0
      %1908 = vmatpush1.bf16.xpose.msra.mxu0 0
      %1909 = vmatprep.subr.bf16.mxu0 0
      %1910 = vmatpush1.bf16.xpose.msra.mxu0 0
      %1911 = vmatprep.subr.bf16.mxu0 0
      %1912 = vmatpush1.bf16.xpose.msra.mxu0 0
      %1913 = vmatprep.subr.bf16.mxu0 0
      %1914 = vmatpush1.bf16.xpose.msra.mxu0 0
      %1915 = vmatprep.subr.bf16.mxu0 0
      %1916 = vmatpush1.bf16.xpose.msra.mxu0 0
      %1917 = vmatprep.subr.bf16.mxu0 0
      %1918 = vmatpush1.bf16.xpose.msra.mxu0 0
      %1919 = vmatprep.subr.bf16.mxu0 0
      %1920 = vmatpush1.bf16.xpose.msra.mxu0 0
      %1921 = vmatprep.subr.bf16.mxu0 0
      %1922 = vmatpush1.bf16.xpose.msra.mxu0 0
      %1923 = vmatprep.mubr.bf16.mxu0 0
      %1924 = vmatmul.mubr.bf16.gmra.mrb[0].mxu0 %v1886
      %v1925 = vpop.f32.mrb[0].mxu0
      %v1926 = vadd.f32 0.0, %v1925
      %v1927 = vpop.f32.mrb[0].mxu0
      %v1928 = vpop.f32.mrb[0].mxu0
      %v1929 = vadd.f32 0.0, %v1928
      %v1930 = vpop.f32.mrb[0].mxu0
      %1931 = vdwg.mxu0
      %v1932 = vmul.f32 %v1409, 0.25
      %v1933 = vmul.f32 %v1412, 0.25
      %v1934 = vmul.f32 %v1456, 0.25
      %v1935 = vmul.f32 %v1459, 0.25
      %v1936 = vmul.f32 %v1503, 0.25
      %v1937 = vmul.f32 %v1506, 0.25
      %v1938 = vmul.f32 %v1550, 0.25
      %v1939 = vmul.f32 %v1553, 0.25
      %v1940 = vmul.f32 %v1597, 0.25
      %v1941 = vmul.f32 %v1600, 0.25
      %v1942 = vmul.f32 %v1644, 0.25
      %v1943 = vmul.f32 %v1647, 0.25
      %v1944 = vmul.f32 %v1691, 0.25
      %v1945 = vmul.f32 %v1694, 0.25
      %v1946 = vmul.f32 %v1738, 0.25
      %v1947 = vmul.f32 %v1741, 0.25
      %v1948 = vmul.f32 %v1785, 0.25
      %v1949 = vmul.f32 %v1788, 0.25
      %v1950 = vmul.f32 %v1832, 0.25
      %v1951 = vmul.f32 %v1835, 0.25
      %v1952 = vmul.f32 %v1879, 0.25
      %v1953 = vmul.f32 %v1882, 0.25
      %v1954 = vmul.f32 %v1926, 0.25
      %v1955 = vmul.f32 %v1929, 0.25
      %v1956 = vpack.c.bf16 %v1933, %v1932
      %v1957 = vpack.c.bf16 %v1935, %v1934
      %v1958 = vpack.c.bf16 %v1937, %v1936
      %v1959 = vpack.c.bf16 %v1939, %v1938
      %v1960 = vpack.c.bf16 %v1941, %v1940
      %v1961 = vpack.c.bf16 %v1943, %v1942
      %v1962 = vpack.c.bf16 %v1945, %v1944
      %v1963 = vpack.c.bf16 %v1947, %v1946
      %v1964 = vpack.c.bf16 %v1949, %v1948
      %v1965 = vpack.c.bf16 %v1951, %v1950
      %v1966 = vpack.c.bf16 %v1953, %v1952
      %v1967 = vpack.c.bf16 %v1955, %v1954
      %v1968 = vsel %vm283, %v1309, 0.0
      %1969 = vadd.xlane.f32.xlu0 %v1968
      %v1970 = vpop.xlane.xlu0 %1969
      %v1971 = vsel %vm283, %v1310, 0.0
      %1972 = vadd.xlane.f32.xlu0 %v1971
      %v1973 = vpop.xlane.xlu0 %1972
      %v1974 = vsel %vm283, %v1312, 0.0
      %1975 = vadd.xlane.f32.xlu0 %v1974
      %v1976 = vpop.xlane.xlu0 %1975
      %v1977 = vsel %vm283, %v1313, 0.0
      %1978 = vadd.xlane.f32.xlu0 %v1977
      %v1979 = vpop.xlane.xlu0 %1978
      %v1980 = vsel %vm283, %v1315, 0.0
      %1981 = vadd.xlane.f32.xlu0 %v1980
      %v1982 = vpop.xlane.xlu0 %1981
      %v1983 = vsel %vm283, %v1316, 0.0
      %1984 = vadd.xlane.f32.xlu0 %v1983
      %v1985 = vpop.xlane.xlu0 %1984
      %v1986 = vsel %vm283, %v1318, 0.0
      %1987 = vadd.xlane.f32.xlu0 %v1986
      %v1988 = vpop.xlane.xlu0 %1987
      %v1989 = vsel %vm283, %v1319, 0.0
      %1990 = vadd.xlane.f32.xlu0 %v1989
      %v1991 = vpop.xlane.xlu0 %1990
      %v1992 = vsel %vm283, %v1321, 0.0
      %1993 = vadd.xlane.f32.xlu0 %v1992
      %v1994 = vpop.xlane.xlu0 %1993
      %v1995 = vsel %vm283, %v1322, 0.0
      %1996 = vadd.xlane.f32.xlu0 %v1995
      %v1997 = vpop.xlane.xlu0 %1996
      %v1998 = vsel %vm283, %v1324, 0.0
      %1999 = vadd.xlane.f32.xlu0 %v1998
      %v2000 = vpop.xlane.xlu0 %1999
      %v2001 = vsel %vm283, %v1325, 0.0
      %2002 = vadd.xlane.f32.xlu0 %v2001
      %v2003 = vpop.xlane.xlu0 %2002
      %v2004 = vsel %vm283, %v1327, 0.0
      %2005 = vadd.xlane.f32.xlu0 %v2004
      %v2006 = vpop.xlane.xlu0 %2005
      %v2007 = vsel %vm283, %v1328, 0.0
      %2008 = vadd.xlane.f32.xlu0 %v2007
      %v2009 = vpop.xlane.xlu0 %2008
      %v2010 = vsel %vm283, %v1330, 0.0
      %2011 = vadd.xlane.f32.xlu0 %v2010
      %v2012 = vpop.xlane.xlu0 %2011
      %v2013 = vsel %vm283, %v1331, 0.0
      %2014 = vadd.xlane.f32.xlu0 %v2013
      %v2015 = vpop.xlane.xlu0 %2014
      %v2016 = vsel %vm283, %v1333, 0.0
      %2017 = vadd.xlane.f32.xlu0 %v2016
      %v2018 = vpop.xlane.xlu0 %2017
      %v2019 = vsel %vm283, %v1334, 0.0
      %2020 = vadd.xlane.f32.xlu0 %v2019
      %v2021 = vpop.xlane.xlu0 %2020
      %v2022 = vsel %vm283, %v1336, 0.0
      %2023 = vadd.xlane.f32.xlu0 %v2022
      %v2024 = vpop.xlane.xlu0 %2023
      %v2025 = vsel %vm283, %v1337, 0.0
      %2026 = vadd.xlane.f32.xlu0 %v2025
      %v2027 = vpop.xlane.xlu0 %2026
      %v2028 = vsel %vm283, %v1339, 0.0
      %2029 = vadd.xlane.f32.xlu0 %v2028
      %v2030 = vpop.xlane.xlu0 %2029
      %v2031 = vsel %vm283, %v1340, 0.0
      %2032 = vadd.xlane.f32.xlu0 %v2031
      %v2033 = vpop.xlane.xlu0 %2032
      %v2034 = vsel %vm283, %v1342, 0.0
      %2035 = vadd.xlane.f32.xlu0 %v2034
      %v2036 = vpop.xlane.xlu0 %2035
      %v2037 = vsel %vm283, %v1343, 0.0
      %2038 = vadd.xlane.f32.xlu0 %v2037
      %v2039 = vpop.xlane.xlu0 %2038
      %v2040 = vmul.f32 %v1970, 0.5
      %v2041 = vmul.f32 %v1973, 0.5
      %v2042 = vmul.f32 %v1976, 0.5
      %v2043 = vmul.f32 %v1979, 0.5
      %v2044 = vmul.f32 %v1982, 0.5
      %v2045 = vmul.f32 %v1985, 0.5
      %v2046 = vmul.f32 %v1988, 0.5
      %v2047 = vmul.f32 %v1991, 0.5
      %v2048 = vmul.f32 %v1994, 0.5
      %v2049 = vmul.f32 %v1997, 0.5
      %v2050 = vmul.f32 %v2000, 0.5
      %v2051 = vmul.f32 %v2003, 0.5
      %v2052 = vmul.f32 %v2006, 0.5
      %v2053 = vmul.f32 %v2009, 0.5
      %v2054 = vmul.f32 %v2012, 0.5
      %v2055 = vmul.f32 %v2015, 0.5
      %v2056 = vmul.f32 %v2018, 0.5
      %v2057 = vmul.f32 %v2021, 0.5
      %v2058 = vmul.f32 %v2024, 0.5
      %v2059 = vmul.f32 %v2027, 0.5
      %v2060 = vmul.f32 %v2030, 0.5
      %v2061 = vmul.f32 %v2033, 0.5
      %v2062 = vmul.f32 %v2036, 0.5
      %v2063 = vmul.f32 %v2039, 0.5
      %v2064 = vadd.f32 %v2040, 1.0
      %v2065 = vadd.f32 %v2041, 1.0
      %v2066 = vadd.f32 %v2042, 1.0
      %v2067 = vadd.f32 %v2043, 1.0
      %v2068 = vadd.f32 %v2044, 1.0
      %v2069 = vadd.f32 %v2045, 1.0
      %v2070 = vadd.f32 %v2046, 1.0
      %v2071 = vadd.f32 %v2047, 1.0
      %v2072 = vadd.f32 %v2048, 1.0
      %v2073 = vadd.f32 %v2049, 1.0
      %v2074 = vadd.f32 %v2050, 1.0
      %v2075 = vadd.f32 %v2051, 1.0
      %v2076 = vadd.f32 %v2052, 1.0
      %v2077 = vadd.f32 %v2053, 1.0
      %v2078 = vadd.f32 %v2054, 1.0
      %v2079 = vadd.f32 %v2055, 1.0
      %v2080 = vadd.f32 %v2056, 1.0
      %v2081 = vadd.f32 %v2057, 1.0
      %v2082 = vadd.f32 %v2058, 1.0
      %v2083 = vadd.f32 %v2059, 1.0
      %v2084 = vadd.f32 %v2060, 1.0
      %v2085 = vadd.f32 %v2061, 1.0
      %v2086 = vadd.f32 %v2062, 1.0
      %v2087 = vadd.f32 %v2063, 1.0
      %v2088 = vpack.c.bf16 %v2065, %v2064
      %v2089 = vpack.c.bf16 %v2067, %v2066
      %v2090 = vpack.c.bf16 %v2069, %v2068
      %v2091 = vpack.c.bf16 %v2071, %v2070
      %v2092 = vpack.c.bf16 %v2073, %v2072
      %v2093 = vpack.c.bf16 %v2075, %v2074
      %v2094 = vpack.c.bf16 %v2077, %v2076
      %v2095 = vpack.c.bf16 %v2079, %v2078
      %v2096 = vpack.c.bf16 %v2081, %v2080
      %v2097 = vpack.c.bf16 %v2083, %v2082
      %v2098 = vpack.c.bf16 %v2085, %v2084
      %v2099 = vpack.c.bf16 %v2087, %v2086
      %v2101 = vunpack.c.l.b16 %v2088
      %v2102 = vunpack.c.h.b16 %v2088
      %v2103 = vlaneseq
      %v2104 = vand.u32 %v2103, 127
      %v2105 = vlaneseq
      %v2106 = vshrl.u32 %v2105, 7
      %v2107 = vsub.s32 %v2104, %v2106
      %v2108 = vrot.slane %v2101, %v2107
      %v2109 = vadd.s32 %v2104, 4294967288
      %v2110 = vlaneseq
      %v2111 = vshrl.u32 %v2110, 7
      %v2112 = vsub.s32 %v2109, %v2111
      %v2113 = vrot.slane %v2102, %v2112
      %vm2114 = vcmask 130112
      %v2115 = vsel %vm2114, %v2113, %v2108
      %v2116 = vpack.c.b16 %v2115, %v2115
      %vm2117 = vcmask 130048
      %v2119 = vsel %vm2117, %v2116, 0
      %2121 = vmatprep.subr.bf16.mxu0 0
      %2122 = vmatpush1.bf16.msra.mxu0 %v1956
      %2123 = vmatprep.subr.bf16.mxu0 0
      %2124 = vmatpush1.bf16.msra.mxu0 0
      %2125 = vmatprep.subr.bf16.mxu0 0
      %2126 = vmatpush1.bf16.msra.mxu0 0
      %2127 = vmatprep.subr.bf16.mxu0 0
      %2128 = vmatpush1.bf16.msra.mxu0 0
      %2129 = vmatprep.subr.bf16.mxu0 0
      %2130 = vmatpush1.bf16.msra.mxu0 0
      %2131 = vmatprep.subr.bf16.mxu0 0
      %2132 = vmatpush1.bf16.msra.mxu0 0
      %2133 = vmatprep.subr.bf16.mxu0 0
      %2134 = vmatpush1.bf16.msra.mxu0 0
      %2135 = vmatprep.subr.bf16.mxu0 0
      %2136 = vmatpush1.bf16.msra.mxu0 0
      %2137 = vmatprep.subr.bf16.mxu0 0
      %2138 = vmatpush1.bf16.msra.mxu0 0
      %2139 = vmatprep.subr.bf16.mxu0 0
      %2140 = vmatpush1.bf16.msra.mxu0 0
      %2141 = vmatprep.subr.bf16.mxu0 0
      %2142 = vmatpush1.bf16.msra.mxu0 0
      %2143 = vmatprep.subr.bf16.mxu0 0
      %2144 = vmatpush1.bf16.msra.mxu0 0
      %2145 = vmatprep.subr.bf16.mxu0 0
      %2146 = vmatpush1.bf16.msra.mxu0 0
      %2147 = vmatprep.subr.bf16.mxu0 0
      %2148 = vmatpush1.bf16.msra.mxu0 0
      %2149 = vmatprep.subr.bf16.mxu0 0
      %2150 = vmatpush1.bf16.msra.mxu0 0
      %2151 = vmatprep.subr.bf16.mxu0 0
      %2152 = vmatpush1.bf16.msra.mxu0 0
      %2153 = vmatprep.mubr.bf16.mxu0 0
      %2154 = vmatmul.mubr.bf16.gmra.mrb[0].mxu0 %v2119
      %v2155 = vpop.f32.mrb[0].mxu0
      %v2156 = vadd.f32 0.0, %v2155
      %v2157 = vpop.f32.mrb[0].mxu0
      %v2158 = vpop.f32.mrb[0].mxu0
      %v2159 = vpop.f32.mrb[0].mxu0
      %2160 = vdwg.mxu0
      %v2162 = vunpack.c.l.b16 %v2089
      %v2163 = vunpack.c.h.b16 %v2089
      %v2164 = vlaneseq
      %v2165 = vshrl.u32 %v2164, 7
      %v2166 = vsub.s32 %v2104, %v2165
      %v2167 = vrot.slane %v2162, %v2166
      %v2168 = vlaneseq
      %v2169 = vshrl.u32 %v2168, 7
      %v2170 = vsub.s32 %v2109, %v2169
      %v2171 = vrot.slane %v2163, %v2170
      %v2172 = vsel %vm2114, %v2171, %v2167
      %v2173 = vpack.c.b16 %v2172, %v2172
      %v2175 = vsel %vm2117, %v2173, 0
      %2177 = vmatprep.subr.bf16.mxu0 0
      %2178 = vmatpush1.bf16.msra.mxu0 %v1957
      %2179 = vmatprep.subr.bf16.mxu0 0
      %2180 = vmatpush1.bf16.msra.mxu0 0
      %2181 = vmatprep.subr.bf16.mxu0 0
      %2182 = vmatpush1.bf16.msra.mxu0 0
      %2183 = vmatprep.subr.bf16.mxu0 0
      %2184 = vmatpush1.bf16.msra.mxu0 0
      %2185 = vmatprep.subr.bf16.mxu0 0
      %2186 = vmatpush1.bf16.msra.mxu0 0
      %2187 = vmatprep.subr.bf16.mxu0 0
      %2188 = vmatpush1.bf16.msra.mxu0 0
      %2189 = vmatprep.subr.bf16.mxu0 0
      %2190 = vmatpush1.bf16.msra.mxu0 0
      %2191 = vmatprep.subr.bf16.mxu0 0
      %2192 = vmatpush1.bf16.msra.mxu0 0
      %2193 = vmatprep.subr.bf16.mxu0 0
      %2194 = vmatpush1.bf16.msra.mxu0 0
      %2195 = vmatprep.subr.bf16.mxu0 0
      %2196 = vmatpush1.bf16.msra.mxu0 0
      %2197 = vmatprep.subr.bf16.mxu0 0
      %2198 = vmatpush1.bf16.msra.mxu0 0
      %2199 = vmatprep.subr.bf16.mxu0 0
      %2200 = vmatpush1.bf16.msra.mxu0 0
      %2201 = vmatprep.subr.bf16.mxu0 0
      %2202 = vmatpush1.bf16.msra.mxu0 0
      %2203 = vmatprep.subr.bf16.mxu0 0
      %2204 = vmatpush1.bf16.msra.mxu0 0
      %2205 = vmatprep.subr.bf16.mxu0 0
      %2206 = vmatpush1.bf16.msra.mxu0 0
      %2207 = vmatprep.subr.bf16.mxu0 0
      %2208 = vmatpush1.bf16.msra.mxu0 0
      %2209 = vmatprep.mubr.bf16.mxu0 0
      %2210 = vmatmul.mubr.bf16.gmra.mrb[0].mxu0 %v2175
      %v2211 = vpop.f32.mrb[0].mxu0
      %v2212 = vadd.f32 0.0, %v2211
      %v2213 = vpop.f32.mrb[0].mxu0
      %v2214 = vpop.f32.mrb[0].mxu0
      %v2215 = vpop.f32.mrb[0].mxu0
      %2216 = vdwg.mxu0
      %v2218 = vunpack.c.l.b16 %v2090
      %v2219 = vunpack.c.h.b16 %v2090
      %v2220 = vlaneseq
      %v2221 = vshrl.u32 %v2220, 7
      %v2222 = vsub.s32 %v2104, %v2221
      %v2223 = vrot.slane %v2218, %v2222
      %v2224 = vlaneseq
      %v2225 = vshrl.u32 %v2224, 7
      %v2226 = vsub.s32 %v2109, %v2225
      %v2227 = vrot.slane %v2219, %v2226
      %v2228 = vsel %vm2114, %v2227, %v2223
      %v2229 = vpack.c.b16 %v2228, %v2228
      %v2231 = vsel %vm2117, %v2229, 0
      %2233 = vmatprep.subr.bf16.mxu0 0
      %2234 = vmatpush1.bf16.msra.mxu0 %v1958
      %2235 = vmatprep.subr.bf16.mxu0 0
      %2236 = vmatpush1.bf16.msra.mxu0 0
      %2237 = vmatprep.subr.bf16.mxu0 0
      %2238 = vmatpush1.bf16.msra.mxu0 0
      %2239 = vmatprep.subr.bf16.mxu0 0
      %2240 = vmatpush1.bf16.msra.mxu0 0
      %2241 = vmatprep.subr.bf16.mxu0 0
      %2242 = vmatpush1.bf16.msra.mxu0 0
      %2243 = vmatprep.subr.bf16.mxu0 0
      %2244 = vmatpush1.bf16.msra.mxu0 0
      %2245 = vmatprep.subr.bf16.mxu0 0
      %2246 = vmatpush1.bf16.msra.mxu0 0
      %2247 = vmatprep.subr.bf16.mxu0 0
      %2248 = vmatpush1.bf16.msra.mxu0 0
      %2249 = vmatprep.subr.bf16.mxu0 0
      %2250 = vmatpush1.bf16.msra.mxu0 0
      %2251 = vmatprep.subr.bf16.mxu0 0
      %2252 = vmatpush1.bf16.msra.mxu0 0
      %2253 = vmatprep.subr.bf16.mxu0 0
      %2254 = vmatpush1.bf16.msra.mxu0 0
      %2255 = vmatprep.subr.bf16.mxu0 0
      %2256 = vmatpush1.bf16.msra.mxu0 0
      %2257 = vmatprep.subr.bf16.mxu0 0
      %2258 = vmatpush1.bf16.msra.mxu0 0
      %2259 = vmatprep.subr.bf16.mxu0 0
      %2260 = vmatpush1.bf16.msra.mxu0 0
      %2261 = vmatprep.subr.bf16.mxu0 0
      %2262 = vmatpush1.bf16.msra.mxu0 0
      %2263 = vmatprep.subr.bf16.mxu0 0
      %2264 = vmatpush1.bf16.msra.mxu0 0
      %2265 = vmatprep.mubr.bf16.mxu0 0
      %2266 = vmatmul.mubr.bf16.gmra.mrb[0].mxu0 %v2231
      %v2267 = vpop.f32.mrb[0].mxu0
      %v2268 = vadd.f32 0.0, %v2267
      %v2269 = vpop.f32.mrb[0].mxu0
      %v2270 = vpop.f32.mrb[0].mxu0
      %v2271 = vpop.f32.mrb[0].mxu0
      %2272 = vdwg.mxu0
      %v2274 = vunpack.c.l.b16 %v2091
      %v2275 = vunpack.c.h.b16 %v2091
      %v2276 = vlaneseq
      %v2277 = vshrl.u32 %v2276, 7
      %v2278 = vsub.s32 %v2104, %v2277
      %v2279 = vrot.slane %v2274, %v2278
      %v2280 = vlaneseq
      %v2281 = vshrl.u32 %v2280, 7
      %v2282 = vsub.s32 %v2109, %v2281
      %v2283 = vrot.slane %v2275, %v2282
      %v2284 = vsel %vm2114, %v2283, %v2279
      %v2285 = vpack.c.b16 %v2284, %v2284
      %v2287 = vsel %vm2117, %v2285, 0
      %2289 = vmatprep.subr.bf16.mxu0 0
      %2290 = vmatpush1.bf16.msra.mxu0 %v1959
      %2291 = vmatprep.subr.bf16.mxu0 0
      %2292 = vmatpush1.bf16.msra.mxu0 0
      %2293 = vmatprep.subr.bf16.mxu0 0
      %2294 = vmatpush1.bf16.msra.mxu0 0
      %2295 = vmatprep.subr.bf16.mxu0 0
      %2296 = vmatpush1.bf16.msra.mxu0 0
      %2297 = vmatprep.subr.bf16.mxu0 0
      %2298 = vmatpush1.bf16.msra.mxu0 0
      %2299 = vmatprep.subr.bf16.mxu0 0
      %2300 = vmatpush1.bf16.msra.mxu0 0
      %2301 = vmatprep.subr.bf16.mxu0 0
      %2302 = vmatpush1.bf16.msra.mxu0 0
      %2303 = vmatprep.subr.bf16.mxu0 0
      %2304 = vmatpush1.bf16.msra.mxu0 0
      %2305 = vmatprep.subr.bf16.mxu0 0
      %2306 = vmatpush1.bf16.msra.mxu0 0
      %2307 = vmatprep.subr.bf16.mxu0 0
      %2308 = vmatpush1.bf16.msra.mxu0 0
      %2309 = vmatprep.subr.bf16.mxu0 0
      %2310 = vmatpush1.bf16.msra.mxu0 0
      %2311 = vmatprep.subr.bf16.mxu0 0
      %2312 = vmatpush1.bf16.msra.mxu0 0
      %2313 = vmatprep.subr.bf16.mxu0 0
      %2314 = vmatpush1.bf16.msra.mxu0 0
      %2315 = vmatprep.subr.bf16.mxu0 0
      %2316 = vmatpush1.bf16.msra.mxu0 0
      %2317 = vmatprep.subr.bf16.mxu0 0
      %2318 = vmatpush1.bf16.msra.mxu0 0
      %2319 = vmatprep.subr.bf16.mxu0 0
      %2320 = vmatpush1.bf16.msra.mxu0 0
      %2321 = vmatprep.mubr.bf16.mxu0 0
      %2322 = vmatmul.mubr.bf16.gmra.mrb[0].mxu0 %v2287
      %v2323 = vpop.f32.mrb[0].mxu0
      %v2324 = vadd.f32 0.0, %v2323
      %v2325 = vpop.f32.mrb[0].mxu0
      %v2326 = vpop.f32.mrb[0].mxu0
      %v2327 = vpop.f32.mrb[0].mxu0
      %2328 = vdwg.mxu0
      %v2330 = vunpack.c.l.b16 %v2092
      %v2331 = vunpack.c.h.b16 %v2092
      %v2332 = vlaneseq
      %v2333 = vshrl.u32 %v2332, 7
      %v2334 = vsub.s32 %v2104, %v2333
      %v2335 = vrot.slane %v2330, %v2334
      %v2336 = vlaneseq
      %v2337 = vshrl.u32 %v2336, 7
      %v2338 = vsub.s32 %v2109, %v2337
      %v2339 = vrot.slane %v2331, %v2338
      %v2340 = vsel %vm2114, %v2339, %v2335
      %v2341 = vpack.c.b16 %v2340, %v2340
      %v2343 = vsel %vm2117, %v2341, 0
      %2345 = vmatprep.subr.bf16.mxu0 0
      %2346 = vmatpush1.bf16.msra.mxu0 %v1960
      %2347 = vmatprep.subr.bf16.mxu0 0
      %2348 = vmatpush1.bf16.msra.mxu0 0
      %2349 = vmatprep.subr.bf16.mxu0 0
      %2350 = vmatpush1.bf16.msra.mxu0 0
      %2351 = vmatprep.subr.bf16.mxu0 0
      %2352 = vmatpush1.bf16.msra.mxu0 0
      %2353 = vmatprep.subr.bf16.mxu0 0
      %2354 = vmatpush1.bf16.msra.mxu0 0
      %2355 = vmatprep.subr.bf16.mxu0 0
      %2356 = vmatpush1.bf16.msra.mxu0 0
      %2357 = vmatprep.subr.bf16.mxu0 0
      %2358 = vmatpush1.bf16.msra.mxu0 0
      %2359 = vmatprep.subr.bf16.mxu0 0
      %2360 = vmatpush1.bf16.msra.mxu0 0
      %2361 = vmatprep.subr.bf16.mxu0 0
      %2362 = vmatpush1.bf16.msra.mxu0 0
      %2363 = vmatprep.subr.bf16.mxu0 0
      %2364 = vmatpush1.bf16.msra.mxu0 0
      %2365 = vmatprep.subr.bf16.mxu0 0
      %2366 = vmatpush1.bf16.msra.mxu0 0
      %2367 = vmatprep.subr.bf16.mxu0 0
      %2368 = vmatpush1.bf16.msra.mxu0 0
      %2369 = vmatprep.subr.bf16.mxu0 0
      %2370 = vmatpush1.bf16.msra.mxu0 0
      %2371 = vmatprep.subr.bf16.mxu0 0
      %2372 = vmatpush1.bf16.msra.mxu0 0
      %2373 = vmatprep.subr.bf16.mxu0 0
      %2374 = vmatpush1.bf16.msra.mxu0 0
      %2375 = vmatprep.subr.bf16.mxu0 0
      %2376 = vmatpush1.bf16.msra.mxu0 0
      %2377 = vmatprep.mubr.bf16.mxu0 0
      %2378 = vmatmul.mubr.bf16.gmra.mrb[0].mxu0 %v2343
      %v2379 = vpop.f32.mrb[0].mxu0
      %v2380 = vadd.f32 0.0, %v2379
      %v2381 = vpop.f32.mrb[0].mxu0
      %v2382 = vpop.f32.mrb[0].mxu0
      %v2383 = vpop.f32.mrb[0].mxu0
      %2384 = vdwg.mxu0
      %v2386 = vunpack.c.l.b16 %v2093
      %v2387 = vunpack.c.h.b16 %v2093
      %v2388 = vlaneseq
      %v2389 = vshrl.u32 %v2388, 7
      %v2390 = vsub.s32 %v2104, %v2389
      %v2391 = vrot.slane %v2386, %v2390
      %v2392 = vlaneseq
      %v2393 = vshrl.u32 %v2392, 7
      %v2394 = vsub.s32 %v2109, %v2393
      %v2395 = vrot.slane %v2387, %v2394
      %v2396 = vsel %vm2114, %v2395, %v2391
      %v2397 = vpack.c.b16 %v2396, %v2396
      %v2399 = vsel %vm2117, %v2397, 0
      %2401 = vmatprep.subr.bf16.mxu0 0
      %2402 = vmatpush1.bf16.msra.mxu0 %v1961
      %2403 = vmatprep.subr.bf16.mxu0 0
      %2404 = vmatpush1.bf16.msra.mxu0 0
      %2405 = vmatprep.subr.bf16.mxu0 0
      %2406 = vmatpush1.bf16.msra.mxu0 0
      %2407 = vmatprep.subr.bf16.mxu0 0
      %2408 = vmatpush1.bf16.msra.mxu0 0
      %2409 = vmatprep.subr.bf16.mxu0 0
      %2410 = vmatpush1.bf16.msra.mxu0 0
      %2411 = vmatprep.subr.bf16.mxu0 0
      %2412 = vmatpush1.bf16.msra.mxu0 0
      %2413 = vmatprep.subr.bf16.mxu0 0
      %2414 = vmatpush1.bf16.msra.mxu0 0
      %2415 = vmatprep.subr.bf16.mxu0 0
      %2416 = vmatpush1.bf16.msra.mxu0 0
      %2417 = vmatprep.subr.bf16.mxu0 0
      %2418 = vmatpush1.bf16.msra.mxu0 0
      %2419 = vmatprep.subr.bf16.mxu0 0
      %2420 = vmatpush1.bf16.msra.mxu0 0
      %2421 = vmatprep.subr.bf16.mxu0 0
      %2422 = vmatpush1.bf16.msra.mxu0 0
      %2423 = vmatprep.subr.bf16.mxu0 0
      %2424 = vmatpush1.bf16.msra.mxu0 0
      %2425 = vmatprep.subr.bf16.mxu0 0
      %2426 = vmatpush1.bf16.msra.mxu0 0
      %2427 = vmatprep.subr.bf16.mxu0 0
      %2428 = vmatpush1.bf16.msra.mxu0 0
      %2429 = vmatprep.subr.bf16.mxu0 0
      %2430 = vmatpush1.bf16.msra.mxu0 0
      %2431 = vmatprep.subr.bf16.mxu0 0
      %2432 = vmatpush1.bf16.msra.mxu0 0
      %2433 = vmatprep.mubr.bf16.mxu0 0
      %2434 = vmatmul.mubr.bf16.gmra.mrb[0].mxu0 %v2399
      %v2435 = vpop.f32.mrb[0].mxu0
      %v2436 = vadd.f32 0.0, %v2435
      %v2437 = vpop.f32.mrb[0].mxu0
      %v2438 = vpop.f32.mrb[0].mxu0
      %v2439 = vpop.f32.mrb[0].mxu0
      %2440 = vdwg.mxu0
      %v2442 = vunpack.c.l.b16 %v2094
      %v2443 = vunpack.c.h.b16 %v2094
      %v2444 = vlaneseq
      %v2445 = vshrl.u32 %v2444, 7
      %v2446 = vsub.s32 %v2104, %v2445
      %v2447 = vrot.slane %v2442, %v2446
      %v2448 = vlaneseq
      %v2449 = vshrl.u32 %v2448, 7
      %v2450 = vsub.s32 %v2109, %v2449
      %v2451 = vrot.slane %v2443, %v2450
      %v2452 = vsel %vm2114, %v2451, %v2447
      %v2453 = vpack.c.b16 %v2452, %v2452
      %v2455 = vsel %vm2117, %v2453, 0
      %2457 = vmatprep.subr.bf16.mxu0 0
      %2458 = vmatpush1.bf16.msra.mxu0 %v1962
      %2459 = vmatprep.subr.bf16.mxu0 0
      %2460 = vmatpush1.bf16.msra.mxu0 0
      %2461 = vmatprep.subr.bf16.mxu0 0
      %2462 = vmatpush1.bf16.msra.mxu0 0
      %2463 = vmatprep.subr.bf16.mxu0 0
      %2464 = vmatpush1.bf16.msra.mxu0 0
      %2465 = vmatprep.subr.bf16.mxu0 0
      %2466 = vmatpush1.bf16.msra.mxu0 0
      %2467 = vmatprep.subr.bf16.mxu0 0
      %2468 = vmatpush1.bf16.msra.mxu0 0
      %2469 = vmatprep.subr.bf16.mxu0 0
      %2470 = vmatpush1.bf16.msra.mxu0 0
      %2471 = vmatprep.subr.bf16.mxu0 0
      %2472 = vmatpush1.bf16.msra.mxu0 0
      %2473 = vmatprep.subr.bf16.mxu0 0
      %2474 = vmatpush1.bf16.msra.mxu0 0
      %2475 = vmatprep.subr.bf16.mxu0 0
      %2476 = vmatpush1.bf16.msra.mxu0 0
      %2477 = vmatprep.subr.bf16.mxu0 0
      %2478 = vmatpush1.bf16.msra.mxu0 0
      %2479 = vmatprep.subr.bf16.mxu0 0
      %2480 = vmatpush1.bf16.msra.mxu0 0
      %2481 = vmatprep.subr.bf16.mxu0 0
      %2482 = vmatpush1.bf16.msra.mxu0 0
      %2483 = vmatprep.subr.bf16.mxu0 0
      %2484 = vmatpush1.bf16.msra.mxu0 0
      %2485 = vmatprep.subr.bf16.mxu0 0
      %2486 = vmatpush1.bf16.msra.mxu0 0
      %2487 = vmatprep.subr.bf16.mxu0 0
      %2488 = vmatpush1.bf16.msra.mxu0 0
      %2489 = vmatprep.mubr.bf16.mxu0 0
      %2490 = vmatmul.mubr.bf16.gmra.mrb[0].mxu0 %v2455
      %v2491 = vpop.f32.mrb[0].mxu0
      %v2492 = vadd.f32 0.0, %v2491
      %v2493 = vpop.f32.mrb[0].mxu0
      %v2494 = vpop.f32.mrb[0].mxu0
      %v2495 = vpop.f32.mrb[0].mxu0
      %2496 = vdwg.mxu0
      %v2498 = vunpack.c.l.b16 %v2095
      %v2499 = vunpack.c.h.b16 %v2095
      %v2500 = vlaneseq
      %v2501 = vshrl.u32 %v2500, 7
      %v2502 = vsub.s32 %v2104, %v2501
      %v2503 = vrot.slane %v2498, %v2502
      %v2504 = vlaneseq
      %v2505 = vshrl.u32 %v2504, 7
      %v2506 = vsub.s32 %v2109, %v2505
      %v2507 = vrot.slane %v2499, %v2506
      %v2508 = vsel %vm2114, %v2507, %v2503
      %v2509 = vpack.c.b16 %v2508, %v2508
      %v2511 = vsel %vm2117, %v2509, 0
      %2513 = vmatprep.subr.bf16.mxu0 0
      %2514 = vmatpush1.bf16.msra.mxu0 %v1963
      %2515 = vmatprep.subr.bf16.mxu0 0
      %2516 = vmatpush1.bf16.msra.mxu0 0
      %2517 = vmatprep.subr.bf16.mxu0 0
      %2518 = vmatpush1.bf16.msra.mxu0 0
      %2519 = vmatprep.subr.bf16.mxu0 0
      %2520 = vmatpush1.bf16.msra.mxu0 0
      %2521 = vmatprep.subr.bf16.mxu0 0
      %2522 = vmatpush1.bf16.msra.mxu0 0
      %2523 = vmatprep.subr.bf16.mxu0 0
      %2524 = vmatpush1.bf16.msra.mxu0 0
      %2525 = vmatprep.subr.bf16.mxu0 0
      %2526 = vmatpush1.bf16.msra.mxu0 0
      %2527 = vmatprep.subr.bf16.mxu0 0
      %2528 = vmatpush1.bf16.msra.mxu0 0
      %2529 = vmatprep.subr.bf16.mxu0 0
      %2530 = vmatpush1.bf16.msra.mxu0 0
      %2531 = vmatprep.subr.bf16.mxu0 0
      %2532 = vmatpush1.bf16.msra.mxu0 0
      %2533 = vmatprep.subr.bf16.mxu0 0
      %2534 = vmatpush1.bf16.msra.mxu0 0
      %2535 = vmatprep.subr.bf16.mxu0 0
      %2536 = vmatpush1.bf16.msra.mxu0 0
      %2537 = vmatprep.subr.bf16.mxu0 0
      %2538 = vmatpush1.bf16.msra.mxu0 0
      %2539 = vmatprep.subr.bf16.mxu0 0
      %2540 = vmatpush1.bf16.msra.mxu0 0
      %2541 = vmatprep.subr.bf16.mxu0 0
      %2542 = vmatpush1.bf16.msra.mxu0 0
      %2543 = vmatprep.subr.bf16.mxu0 0
      %2544 = vmatpush1.bf16.msra.mxu0 0
      %2545 = vmatprep.mubr.bf16.mxu0 0
      %2546 = vmatmul.mubr.bf16.gmra.mrb[0].mxu0 %v2511
      %v2547 = vpop.f32.mrb[0].mxu0
      %v2548 = vadd.f32 0.0, %v2547
      %v2549 = vpop.f32.mrb[0].mxu0
      %v2550 = vpop.f32.mrb[0].mxu0
      %v2551 = vpop.f32.mrb[0].mxu0
      %2552 = vdwg.mxu0
      %v2554 = vunpack.c.l.b16 %v2096
      %v2555 = vunpack.c.h.b16 %v2096
      %v2556 = vlaneseq
      %v2557 = vshrl.u32 %v2556, 7
      %v2558 = vsub.s32 %v2104, %v2557
      %v2559 = vrot.slane %v2554, %v2558
      %v2560 = vlaneseq
      %v2561 = vshrl.u32 %v2560, 7
      %v2562 = vsub.s32 %v2109, %v2561
      %v2563 = vrot.slane %v2555, %v2562
      %v2564 = vsel %vm2114, %v2563, %v2559
      %v2565 = vpack.c.b16 %v2564, %v2564
      %v2567 = vsel %vm2117, %v2565, 0
      %2569 = vmatprep.subr.bf16.mxu0 0
      %2570 = vmatpush1.bf16.msra.mxu0 %v1964
      %2571 = vmatprep.subr.bf16.mxu0 0
      %2572 = vmatpush1.bf16.msra.mxu0 0
      %2573 = vmatprep.subr.bf16.mxu0 0
      %2574 = vmatpush1.bf16.msra.mxu0 0
      %2575 = vmatprep.subr.bf16.mxu0 0
      %2576 = vmatpush1.bf16.msra.mxu0 0
      %2577 = vmatprep.subr.bf16.mxu0 0
      %2578 = vmatpush1.bf16.msra.mxu0 0
      %2579 = vmatprep.subr.bf16.mxu0 0
      %2580 = vmatpush1.bf16.msra.mxu0 0
      %2581 = vmatprep.subr.bf16.mxu0 0
      %2582 = vmatpush1.bf16.msra.mxu0 0
      %2583 = vmatprep.subr.bf16.mxu0 0
      %2584 = vmatpush1.bf16.msra.mxu0 0
      %2585 = vmatprep.subr.bf16.mxu0 0
      %2586 = vmatpush1.bf16.msra.mxu0 0
      %2587 = vmatprep.subr.bf16.mxu0 0
      %2588 = vmatpush1.bf16.msra.mxu0 0
      %2589 = vmatprep.subr.bf16.mxu0 0
      %2590 = vmatpush1.bf16.msra.mxu0 0
      %2591 = vmatprep.subr.bf16.mxu0 0
      %2592 = vmatpush1.bf16.msra.mxu0 0
      %2593 = vmatprep.subr.bf16.mxu0 0
      %2594 = vmatpush1.bf16.msra.mxu0 0
      %2595 = vmatprep.subr.bf16.mxu0 0
      %2596 = vmatpush1.bf16.msra.mxu0 0
      %2597 = vmatprep.subr.bf16.mxu0 0
      %2598 = vmatpush1.bf16.msra.mxu0 0
      %2599 = vmatprep.subr.bf16.mxu0 0
      %2600 = vmatpush1.bf16.msra.mxu0 0
      %2601 = vmatprep.mubr.bf16.mxu0 0
      %2602 = vmatmul.mubr.bf16.gmra.mrb[0].mxu0 %v2567
      %v2603 = vpop.f32.mrb[0].mxu0
      %v2604 = vadd.f32 0.0, %v2603
      %v2605 = vpop.f32.mrb[0].mxu0
      %v2606 = vpop.f32.mrb[0].mxu0
      %v2607 = vpop.f32.mrb[0].mxu0
      %2608 = vdwg.mxu0
      %v2610 = vunpack.c.l.b16 %v2097
      %v2611 = vunpack.c.h.b16 %v2097
      %v2612 = vlaneseq
      %v2613 = vshrl.u32 %v2612, 7
      %v2614 = vsub.s32 %v2104, %v2613
      %v2615 = vrot.slane %v2610, %v2614
      %v2616 = vlaneseq
      %v2617 = vshrl.u32 %v2616, 7
      %v2618 = vsub.s32 %v2109, %v2617
      %v2619 = vrot.slane %v2611, %v2618
      %v2620 = vsel %vm2114, %v2619, %v2615
      %v2621 = vpack.c.b16 %v2620, %v2620
      %v2623 = vsel %vm2117, %v2621, 0
      %2625 = vmatprep.subr.bf16.mxu0 0
      %2626 = vmatpush1.bf16.msra.mxu0 %v1965
      %2627 = vmatprep.subr.bf16.mxu0 0
      %2628 = vmatpush1.bf16.msra.mxu0 0
      %2629 = vmatprep.subr.bf16.mxu0 0
      %2630 = vmatpush1.bf16.msra.mxu0 0
      %2631 = vmatprep.subr.bf16.mxu0 0
      %2632 = vmatpush1.bf16.msra.mxu0 0
      %2633 = vmatprep.subr.bf16.mxu0 0
      %2634 = vmatpush1.bf16.msra.mxu0 0
      %2635 = vmatprep.subr.bf16.mxu0 0
      %2636 = vmatpush1.bf16.msra.mxu0 0
      %2637 = vmatprep.subr.bf16.mxu0 0
      %2638 = vmatpush1.bf16.msra.mxu0 0
      %2639 = vmatprep.subr.bf16.mxu0 0
      %2640 = vmatpush1.bf16.msra.mxu0 0
      %2641 = vmatprep.subr.bf16.mxu0 0
      %2642 = vmatpush1.bf16.msra.mxu0 0
      %2643 = vmatprep.subr.bf16.mxu0 0
      %2644 = vmatpush1.bf16.msra.mxu0 0
      %2645 = vmatprep.subr.bf16.mxu0 0
      %2646 = vmatpush1.bf16.msra.mxu0 0
      %2647 = vmatprep.subr.bf16.mxu0 0
      %2648 = vmatpush1.bf16.msra.mxu0 0
      %2649 = vmatprep.subr.bf16.mxu0 0
      %2650 = vmatpush1.bf16.msra.mxu0 0
      %2651 = vmatprep.subr.bf16.mxu0 0
      %2652 = vmatpush1.bf16.msra.mxu0 0
      %2653 = vmatprep.subr.bf16.mxu0 0
      %2654 = vmatpush1.bf16.msra.mxu0 0
      %2655 = vmatprep.subr.bf16.mxu0 0
      %2656 = vmatpush1.bf16.msra.mxu0 0
      %2657 = vmatprep.mubr.bf16.mxu0 0
      %2658 = vmatmul.mubr.bf16.gmra.mrb[0].mxu0 %v2623
      %v2659 = vpop.f32.mrb[0].mxu0
      %v2660 = vadd.f32 0.0, %v2659
      %v2661 = vpop.f32.mrb[0].mxu0
      %v2662 = vpop.f32.mrb[0].mxu0
      %v2663 = vpop.f32.mrb[0].mxu0
      %2664 = vdwg.mxu0
      %v2666 = vunpack.c.l.b16 %v2098
      %v2667 = vunpack.c.h.b16 %v2098
      %v2668 = vlaneseq
      %v2669 = vshrl.u32 %v2668, 7
      %v2670 = vsub.s32 %v2104, %v2669
      %v2671 = vrot.slane %v2666, %v2670
      %v2672 = vlaneseq
      %v2673 = vshrl.u32 %v2672, 7
      %v2674 = vsub.s32 %v2109, %v2673
      %v2675 = vrot.slane %v2667, %v2674
      %v2676 = vsel %vm2114, %v2675, %v2671
      %v2677 = vpack.c.b16 %v2676, %v2676
      %v2679 = vsel %vm2117, %v2677, 0
      %2681 = vmatprep.subr.bf16.mxu0 0
      %2682 = vmatpush1.bf16.msra.mxu0 %v1966
      %2683 = vmatprep.subr.bf16.mxu0 0
      %2684 = vmatpush1.bf16.msra.mxu0 0
      %2685 = vmatprep.subr.bf16.mxu0 0
      %2686 = vmatpush1.bf16.msra.mxu0 0
      %2687 = vmatprep.subr.bf16.mxu0 0
      %2688 = vmatpush1.bf16.msra.mxu0 0
      %2689 = vmatprep.subr.bf16.mxu0 0
      %2690 = vmatpush1.bf16.msra.mxu0 0
      %2691 = vmatprep.subr.bf16.mxu0 0
      %2692 = vmatpush1.bf16.msra.mxu0 0
      %2693 = vmatprep.subr.bf16.mxu0 0
      %2694 = vmatpush1.bf16.msra.mxu0 0
      %2695 = vmatprep.subr.bf16.mxu0 0
      %2696 = vmatpush1.bf16.msra.mxu0 0
      %2697 = vmatprep.subr.bf16.mxu0 0
      %2698 = vmatpush1.bf16.msra.mxu0 0
      %2699 = vmatprep.subr.bf16.mxu0 0
      %2700 = vmatpush1.bf16.msra.mxu0 0
      %2701 = vmatprep.subr.bf16.mxu0 0
      %2702 = vmatpush1.bf16.msra.mxu0 0
      %2703 = vmatprep.subr.bf16.mxu0 0
      %2704 = vmatpush1.bf16.msra.mxu0 0
      %2705 = vmatprep.subr.bf16.mxu0 0
      %2706 = vmatpush1.bf16.msra.mxu0 0
      %2707 = vmatprep.subr.bf16.mxu0 0
      %2708 = vmatpush1.bf16.msra.mxu0 0
      %2709 = vmatprep.subr.bf16.mxu0 0
      %2710 = vmatpush1.bf16.msra.mxu0 0
      %2711 = vmatprep.subr.bf16.mxu0 0
      %2712 = vmatpush1.bf16.msra.mxu0 0
      %2713 = vmatprep.mubr.bf16.mxu0 0
      %2714 = vmatmul.mubr.bf16.gmra.mrb[0].mxu0 %v2679
      %v2715 = vpop.f32.mrb[0].mxu0
      %v2716 = vadd.f32 0.0, %v2715
      %v2717 = vpop.f32.mrb[0].mxu0
      %v2718 = vpop.f32.mrb[0].mxu0
      %v2719 = vpop.f32.mrb[0].mxu0
      %2720 = vdwg.mxu0
      %v2722 = vunpack.c.l.b16 %v2099
      %v2723 = vunpack.c.h.b16 %v2099
      %v2724 = vlaneseq
      %v2725 = vshrl.u32 %v2724, 7
      %v2726 = vsub.s32 %v2104, %v2725
      %v2727 = vrot.slane %v2722, %v2726
      %v2728 = vlaneseq
      %v2729 = vshrl.u32 %v2728, 7
      %v2730 = vsub.s32 %v2109, %v2729
      %v2731 = vrot.slane %v2723, %v2730
      %v2732 = vsel %vm2114, %v2731, %v2727
      %v2733 = vpack.c.b16 %v2732, %v2732
      %v2735 = vsel %vm2117, %v2733, 0
      %2737 = vmatprep.subr.bf16.mxu0 0
      %2738 = vmatpush1.bf16.msra.mxu0 %v1967
      %2739 = vmatprep.subr.bf16.mxu0 0
      %2740 = vmatpush1.bf16.msra.mxu0 0
      %2741 = vmatprep.subr.bf16.mxu0 0
      %2742 = vmatpush1.bf16.msra.mxu0 0
      %2743 = vmatprep.subr.bf16.mxu0 0
      %2744 = vmatpush1.bf16.msra.mxu0 0
      %2745 = vmatprep.subr.bf16.mxu0 0
      %2746 = vmatpush1.bf16.msra.mxu0 0
      %2747 = vmatprep.subr.bf16.mxu0 0
      %2748 = vmatpush1.bf16.msra.mxu0 0
      %2749 = vmatprep.subr.bf16.mxu0 0
      %2750 = vmatpush1.bf16.msra.mxu0 0
      %2751 = vmatprep.subr.bf16.mxu0 0
      %2752 = vmatpush1.bf16.msra.mxu0 0
      %2753 = vmatprep.subr.bf16.mxu0 0
      %2754 = vmatpush1.bf16.msra.mxu0 0
      %2755 = vmatprep.subr.bf16.mxu0 0
      %2756 = vmatpush1.bf16.msra.mxu0 0
      %2757 = vmatprep.subr.bf16.mxu0 0
      %2758 = vmatpush1.bf16.msra.mxu0 0
      %2759 = vmatprep.subr.bf16.mxu0 0
      %2760 = vmatpush1.bf16.msra.mxu0 0
      %2761 = vmatprep.subr.bf16.mxu0 0
      %2762 = vmatpush1.bf16.msra.mxu0 0
      %2763 = vmatprep.subr.bf16.mxu0 0
      %2764 = vmatpush1.bf16.msra.mxu0 0
      %2765 = vmatprep.subr.bf16.mxu0 0
      %2766 = vmatpush1.bf16.msra.mxu0 0
      %2767 = vmatprep.subr.bf16.mxu0 0
      %2768 = vmatpush1.bf16.msra.mxu0 0
      %2769 = vmatprep.mubr.bf16.mxu0 0
      %2770 = vmatmul.mubr.bf16.gmra.mrb[0].mxu0 %v2735
      %v2771 = vpop.f32.mrb[0].mxu0
      %v2772 = vadd.f32 0.0, %v2771
      %v2773 = vpop.f32.mrb[0].mxu0
      %v2774 = vpop.f32.mrb[0].mxu0
      %v2775 = vpop.f32.mrb[0].mxu0
      %2776 = vdwg.mxu0
      %v2789 = vlaneseq
      %v2790 = vshrl.u32 %v2789, 7
      %v2791 = vsub.s32 0, %v2790
      %v2792 = vrot.slane %v2156, %v2791
      %2794 = vbcast.lane.b32.xlu0 %v2792, 256
      %v2795 = vpop.permute.xlu0 %2794
      %s2797 = sor.u32 256, 8
      %2798 = vbcast.lane.b32.xlu0 %v2792, %s2797
      %v2799 = vpop.permute.xlu0 %2798
      %v2800 = vlaneseq
      %v2801 = vshrl.u32 %v2800, 7
      %v2802 = vsub.s32 0, %v2801
      %v2803 = vrot.slane %v2212, %v2802
      %2805 = vbcast.lane.b32.xlu0 %v2803, 256
      %v2806 = vpop.permute.xlu0 %2805
      %s2808 = sor.u32 256, 8
      %2809 = vbcast.lane.b32.xlu0 %v2803, %s2808
      %v2810 = vpop.permute.xlu0 %2809
      %v2811 = vlaneseq
      %v2812 = vshrl.u32 %v2811, 7
      %v2813 = vsub.s32 0, %v2812
      %v2814 = vrot.slane %v2268, %v2813
      %2816 = vbcast.lane.b32.xlu0 %v2814, 256
      %v2817 = vpop.permute.xlu0 %2816
      %s2819 = sor.u32 256, 8
      %2820 = vbcast.lane.b32.xlu0 %v2814, %s2819
      %v2821 = vpop.permute.xlu0 %2820
      %v2822 = vlaneseq
      %v2823 = vshrl.u32 %v2822, 7
      %v2824 = vsub.s32 0, %v2823
      %v2825 = vrot.slane %v2324, %v2824
      %2827 = vbcast.lane.b32.xlu0 %v2825, 256
      %v2828 = vpop.permute.xlu0 %2827
      %s2830 = sor.u32 256, 8
      %2831 = vbcast.lane.b32.xlu0 %v2825, %s2830
      %v2832 = vpop.permute.xlu0 %2831
      %v2833 = vlaneseq
      %v2834 = vshrl.u32 %v2833, 7
      %v2835 = vsub.s32 0, %v2834
      %v2836 = vrot.slane %v2380, %v2835
      %2838 = vbcast.lane.b32.xlu0 %v2836, 256
      %v2839 = vpop.permute.xlu0 %2838
      %s2841 = sor.u32 256, 8
      %2842 = vbcast.lane.b32.xlu0 %v2836, %s2841
      %v2843 = vpop.permute.xlu0 %2842
      %v2844 = vlaneseq
      %v2845 = vshrl.u32 %v2844, 7
      %v2846 = vsub.s32 0, %v2845
      %v2847 = vrot.slane %v2436, %v2846
      %2849 = vbcast.lane.b32.xlu0 %v2847, 256
      %v2850 = vpop.permute.xlu0 %2849
      %s2852 = sor.u32 256, 8
      %2853 = vbcast.lane.b32.xlu0 %v2847, %s2852
      %v2854 = vpop.permute.xlu0 %2853
      %v2855 = vlaneseq
      %v2856 = vshrl.u32 %v2855, 7
      %v2857 = vsub.s32 0, %v2856
      %v2858 = vrot.slane %v2492, %v2857
      %2860 = vbcast.lane.b32.xlu0 %v2858, 256
      %v2861 = vpop.permute.xlu0 %2860
      %s2863 = sor.u32 256, 8
      %2864 = vbcast.lane.b32.xlu0 %v2858, %s2863
      %v2865 = vpop.permute.xlu0 %2864
      %v2866 = vlaneseq
      %v2867 = vshrl.u32 %v2866, 7
      %v2868 = vsub.s32 0, %v2867
      %v2869 = vrot.slane %v2548, %v2868
      %2871 = vbcast.lane.b32.xlu0 %v2869, 256
      %v2872 = vpop.permute.xlu0 %2871
      %s2874 = sor.u32 256, 8
      %2875 = vbcast.lane.b32.xlu0 %v2869, %s2874
      %v2876 = vpop.permute.xlu0 %2875
      %v2877 = vlaneseq
      %v2878 = vshrl.u32 %v2877, 7
      %v2879 = vsub.s32 0, %v2878
      %v2880 = vrot.slane %v2604, %v2879
      %2882 = vbcast.lane.b32.xlu0 %v2880, 256
      %v2883 = vpop.permute.xlu0 %2882
      %s2885 = sor.u32 256, 8
      %2886 = vbcast.lane.b32.xlu0 %v2880, %s2885
      %v2887 = vpop.permute.xlu0 %2886
      %v2888 = vlaneseq
      %v2889 = vshrl.u32 %v2888, 7
      %v2890 = vsub.s32 0, %v2889
      %v2891 = vrot.slane %v2660, %v2890
      %2893 = vbcast.lane.b32.xlu0 %v2891, 256
      %v2894 = vpop.permute.xlu0 %2893
      %s2896 = sor.u32 256, 8
      %2897 = vbcast.lane.b32.xlu0 %v2891, %s2896
      %v2898 = vpop.permute.xlu0 %2897
      %v2899 = vlaneseq
      %v2900 = vshrl.u32 %v2899, 7
      %v2901 = vsub.s32 0, %v2900
      %v2902 = vrot.slane %v2716, %v2901
      %2904 = vbcast.lane.b32.xlu0 %v2902, 256
      %v2905 = vpop.permute.xlu0 %2904
      %s2907 = sor.u32 256, 8
      %2908 = vbcast.lane.b32.xlu0 %v2902, %s2907
      %v2909 = vpop.permute.xlu0 %2908
      %v2910 = vlaneseq
      %v2911 = vshrl.u32 %v2910, 7
      %v2912 = vsub.s32 0, %v2911
      %v2913 = vrot.slane %v2772, %v2912
      %2915 = vbcast.lane.b32.xlu0 %v2913, 256
      %v2916 = vpop.permute.xlu0 %2915
      %s2918 = sor.u32 256, 8
      %2919 = vbcast.lane.b32.xlu0 %v2913, %s2918
      %v2920 = vpop.permute.xlu0 %2919
      %v2945 = vadd.f32 %v2064, %v2795
      %v2946 = vadd.f32 %v2065, %v2799
      %v2947 = vadd.f32 %v2066, %v2806
      %v2948 = vadd.f32 %v2067, %v2810
      %v2949 = vadd.f32 %v2068, %v2817
      %v2950 = vadd.f32 %v2069, %v2821
      %v2951 = vadd.f32 %v2070, %v2828
      %v2952 = vadd.f32 %v2071, %v2832
      %v2953 = vadd.f32 %v2072, %v2839
      %v2954 = vadd.f32 %v2073, %v2843
      %v2955 = vadd.f32 %v2074, %v2850
      %v2956 = vadd.f32 %v2075, %v2854
      %v2957 = vadd.f32 %v2076, %v2861
      %v2958 = vadd.f32 %v2077, %v2865
      %v2959 = vadd.f32 %v2078, %v2872
      %v2960 = vadd.f32 %v2079, %v2876
      %v2961 = vadd.f32 %v2080, %v2883
      %v2962 = vadd.f32 %v2081, %v2887
      %v2963 = vadd.f32 %v2082, %v2894
      %v2964 = vadd.f32 %v2083, %v2898
      %v2965 = vadd.f32 %v2084, %v2905
      %v2966 = vadd.f32 %v2085, %v2909
      %v2967 = vadd.f32 %v2086, %v2916
      %v2968 = vadd.f32 %v2087, %v2920
      %v2970 = vsel %vm2117, %v1956, 0
      %2972 = vmatprep.subr.bf16.mxu0 0
      %2973 = vmatpush1.bf16.msra.mxu0 %v1956
      %2974 = vmatprep.subr.bf16.mxu0 0
      %2975 = vmatpush1.bf16.msra.mxu0 0
      %2976 = vmatprep.subr.bf16.mxu0 0
      %2977 = vmatpush1.bf16.msra.mxu0 0
      %2978 = vmatprep.subr.bf16.mxu0 0
      %2979 = vmatpush1.bf16.msra.mxu0 0
      %2980 = vmatprep.subr.bf16.mxu0 0
      %2981 = vmatpush1.bf16.msra.mxu0 0
      %2982 = vmatprep.subr.bf16.mxu0 0
      %2983 = vmatpush1.bf16.msra.mxu0 0
      %2984 = vmatprep.subr.bf16.mxu0 0
      %2985 = vmatpush1.bf16.msra.mxu0 0
      %2986 = vmatprep.subr.bf16.mxu0 0
      %2987 = vmatpush1.bf16.msra.mxu0 0
      %2988 = vmatprep.subr.bf16.mxu0 0
      %2989 = vmatpush1.bf16.msra.mxu0 0
      %2990 = vmatprep.subr.bf16.mxu0 0
      %2991 = vmatpush1.bf16.msra.mxu0 0
      %2992 = vmatprep.subr.bf16.mxu0 0
      %2993 = vmatpush1.bf16.msra.mxu0 0
      %2994 = vmatprep.subr.bf16.mxu0 0
      %2995 = vmatpush1.bf16.msra.mxu0 0
      %2996 = vmatprep.subr.bf16.mxu0 0
      %2997 = vmatpush1.bf16.msra.mxu0 0
      %2998 = vmatprep.subr.bf16.mxu0 0
      %2999 = vmatpush1.bf16.msra.mxu0 0
      %3000 = vmatprep.subr.bf16.mxu0 0
      %3001 = vmatpush1.bf16.msra.mxu0 0
      %3002 = vmatprep.subr.bf16.mxu0 0
      %3003 = vmatpush1.bf16.msra.mxu0 0
      %3004 = vmatprep.mubr.bf16.mxu0 0
      %3005 = vmatmul.mubr.bf16.gmra.mrb[0].mxu0 %v2970
      %v3006 = vpop.f32.mrb[0].mxu0
      %v3007 = vadd.f32 0.0, %v3006
      %v3008 = vpop.f32.mrb[0].mxu0
      %v3009 = vpop.f32.mrb[0].mxu0
      %v3010 = vadd.f32 0.0, %v3009
      %v3011 = vpop.f32.mrb[0].mxu0
      %3012 = vdwg.mxu0
      %v3014 = vsel %vm2117, %v1957, 0
      %3016 = vmatprep.subr.bf16.mxu0 0
      %3017 = vmatpush1.bf16.msra.mxu0 %v1957
      %3018 = vmatprep.subr.bf16.mxu0 0
      %3019 = vmatpush1.bf16.msra.mxu0 0
      %3020 = vmatprep.subr.bf16.mxu0 0
      %3021 = vmatpush1.bf16.msra.mxu0 0
      %3022 = vmatprep.subr.bf16.mxu0 0
      %3023 = vmatpush1.bf16.msra.mxu0 0
      %3024 = vmatprep.subr.bf16.mxu0 0
      %3025 = vmatpush1.bf16.msra.mxu0 0
      %3026 = vmatprep.subr.bf16.mxu0 0
      %3027 = vmatpush1.bf16.msra.mxu0 0
      %3028 = vmatprep.subr.bf16.mxu0 0
      %3029 = vmatpush1.bf16.msra.mxu0 0
      %3030 = vmatprep.subr.bf16.mxu0 0
      %3031 = vmatpush1.bf16.msra.mxu0 0
      %3032 = vmatprep.subr.bf16.mxu0 0
      %3033 = vmatpush1.bf16.msra.mxu0 0
      %3034 = vmatprep.subr.bf16.mxu0 0
      %3035 = vmatpush1.bf16.msra.mxu0 0
      %3036 = vmatprep.subr.bf16.mxu0 0
      %3037 = vmatpush1.bf16.msra.mxu0 0
      %3038 = vmatprep.subr.bf16.mxu0 0
      %3039 = vmatpush1.bf16.msra.mxu0 0
      %3040 = vmatprep.subr.bf16.mxu0 0
      %3041 = vmatpush1.bf16.msra.mxu0 0
      %3042 = vmatprep.subr.bf16.mxu0 0
      %3043 = vmatpush1.bf16.msra.mxu0 0
      %3044 = vmatprep.subr.bf16.mxu0 0
      %3045 = vmatpush1.bf16.msra.mxu0 0
      %3046 = vmatprep.subr.bf16.mxu0 0
      %3047 = vmatpush1.bf16.msra.mxu0 0
      %3048 = vmatprep.mubr.bf16.mxu0 0
      %3049 = vmatmul.mubr.bf16.gmra.mrb[0].mxu0 %v3014
      %v3050 = vpop.f32.mrb[0].mxu0
      %v3051 = vadd.f32 0.0, %v3050
      %v3052 = vpop.f32.mrb[0].mxu0
      %v3053 = vpop.f32.mrb[0].mxu0
      %v3054 = vadd.f32 0.0, %v3053
      %v3055 = vpop.f32.mrb[0].mxu0
      %3056 = vdwg.mxu0
      %v3058 = vsel %vm2117, %v1958, 0
      %3060 = vmatprep.subr.bf16.mxu0 0
      %3061 = vmatpush1.bf16.msra.mxu0 %v1958
      %3062 = vmatprep.subr.bf16.mxu0 0
      %3063 = vmatpush1.bf16.msra.mxu0 0
      %3064 = vmatprep.subr.bf16.mxu0 0
      %3065 = vmatpush1.bf16.msra.mxu0 0
      %3066 = vmatprep.subr.bf16.mxu0 0
      %3067 = vmatpush1.bf16.msra.mxu0 0
      %3068 = vmatprep.subr.bf16.mxu0 0
      %3069 = vmatpush1.bf16.msra.mxu0 0
      %3070 = vmatprep.subr.bf16.mxu0 0
      %3071 = vmatpush1.bf16.msra.mxu0 0
      %3072 = vmatprep.subr.bf16.mxu0 0
      %3073 = vmatpush1.bf16.msra.mxu0 0
      %3074 = vmatprep.subr.bf16.mxu0 0
      %3075 = vmatpush1.bf16.msra.mxu0 0
      %3076 = vmatprep.subr.bf16.mxu0 0
      %3077 = vmatpush1.bf16.msra.mxu0 0
      %3078 = vmatprep.subr.bf16.mxu0 0
      %3079 = vmatpush1.bf16.msra.mxu0 0
      %3080 = vmatprep.subr.bf16.mxu0 0
      %3081 = vmatpush1.bf16.msra.mxu0 0
      %3082 = vmatprep.subr.bf16.mxu0 0
      %3083 = vmatpush1.bf16.msra.mxu0 0
      %3084 = vmatprep.subr.bf16.mxu0 0
      %3085 = vmatpush1.bf16.msra.mxu0 0
      %3086 = vmatprep.subr.bf16.mxu0 0
      %3087 = vmatpush1.bf16.msra.mxu0 0
      %3088 = vmatprep.subr.bf16.mxu0 0
      %3089 = vmatpush1.bf16.msra.mxu0 0
      %3090 = vmatprep.subr.bf16.mxu0 0
      %3091 = vmatpush1.bf16.msra.mxu0 0
      %3092 = vmatprep.mubr.bf16.mxu0 0
      %3093 = vmatmul.mubr.bf16.gmra.mrb[0].mxu0 %v3058
      %v3094 = vpop.f32.mrb[0].mxu0
      %v3095 = vadd.f32 0.0, %v3094
      %v3096 = vpop.f32.mrb[0].mxu0
      %v3097 = vpop.f32.mrb[0].mxu0
      %v3098 = vadd.f32 0.0, %v3097
      %v3099 = vpop.f32.mrb[0].mxu0
      %3100 = vdwg.mxu0
      %v3102 = vsel %vm2117, %v1959, 0
      %3104 = vmatprep.subr.bf16.mxu0 0
      %3105 = vmatpush1.bf16.msra.mxu0 %v1959
      %3106 = vmatprep.subr.bf16.mxu0 0
      %3107 = vmatpush1.bf16.msra.mxu0 0
      %3108 = vmatprep.subr.bf16.mxu0 0
      %3109 = vmatpush1.bf16.msra.mxu0 0
      %3110 = vmatprep.subr.bf16.mxu0 0
      %3111 = vmatpush1.bf16.msra.mxu0 0
      %3112 = vmatprep.subr.bf16.mxu0 0
      %3113 = vmatpush1.bf16.msra.mxu0 0
      %3114 = vmatprep.subr.bf16.mxu0 0
      %3115 = vmatpush1.bf16.msra.mxu0 0
      %3116 = vmatprep.subr.bf16.mxu0 0
      %3117 = vmatpush1.bf16.msra.mxu0 0
      %3118 = vmatprep.subr.bf16.mxu0 0
      %3119 = vmatpush1.bf16.msra.mxu0 0
      %3120 = vmatprep.subr.bf16.mxu0 0
      %3121 = vmatpush1.bf16.msra.mxu0 0
      %3122 = vmatprep.subr.bf16.mxu0 0
      %3123 = vmatpush1.bf16.msra.mxu0 0
      %3124 = vmatprep.subr.bf16.mxu0 0
      %3125 = vmatpush1.bf16.msra.mxu0 0
      %3126 = vmatprep.subr.bf16.mxu0 0
      %3127 = vmatpush1.bf16.msra.mxu0 0
      %3128 = vmatprep.subr.bf16.mxu0 0
      %3129 = vmatpush1.bf16.msra.mxu0 0
      %3130 = vmatprep.subr.bf16.mxu0 0
      %3131 = vmatpush1.bf16.msra.mxu0 0
      %3132 = vmatprep.subr.bf16.mxu0 0
      %3133 = vmatpush1.bf16.msra.mxu0 0
      %3134 = vmatprep.subr.bf16.mxu0 0
      %3135 = vmatpush1.bf16.msra.mxu0 0
      %3136 = vmatprep.mubr.bf16.mxu0 0
      %3137 = vmatmul.mubr.bf16.gmra.mrb[0].mxu0 %v3102
      %v3138 = vpop.f32.mrb[0].mxu0
      %v3139 = vadd.f32 0.0, %v3138
      %v3140 = vpop.f32.mrb[0].mxu0
      %v3141 = vpop.f32.mrb[0].mxu0
      %v3142 = vadd.f32 0.0, %v3141
      %v3143 = vpop.f32.mrb[0].mxu0
      %3144 = vdwg.mxu0
      %v3146 = vsel %vm2117, %v1960, 0
      %3148 = vmatprep.subr.bf16.mxu0 0
      %3149 = vmatpush1.bf16.msra.mxu0 %v1960
      %3150 = vmatprep.subr.bf16.mxu0 0
      %3151 = vmatpush1.bf16.msra.mxu0 0
      %3152 = vmatprep.subr.bf16.mxu0 0
      %3153 = vmatpush1.bf16.msra.mxu0 0
      %3154 = vmatprep.subr.bf16.mxu0 0
      %3155 = vmatpush1.bf16.msra.mxu0 0
      %3156 = vmatprep.subr.bf16.mxu0 0
      %3157 = vmatpush1.bf16.msra.mxu0 0
      %3158 = vmatprep.subr.bf16.mxu0 0
      %3159 = vmatpush1.bf16.msra.mxu0 0
      %3160 = vmatprep.subr.bf16.mxu0 0
      %3161 = vmatpush1.bf16.msra.mxu0 0
      %3162 = vmatprep.subr.bf16.mxu0 0
      %3163 = vmatpush1.bf16.msra.mxu0 0
      %3164 = vmatprep.subr.bf16.mxu0 0
      %3165 = vmatpush1.bf16.msra.mxu0 0
      %3166 = vmatprep.subr.bf16.mxu0 0
      %3167 = vmatpush1.bf16.msra.mxu0 0
      %3168 = vmatprep.subr.bf16.mxu0 0
      %3169 = vmatpush1.bf16.msra.mxu0 0
      %3170 = vmatprep.subr.bf16.mxu0 0
      %3171 = vmatpush1.bf16.msra.mxu0 0
      %3172 = vmatprep.subr.bf16.mxu0 0
      %3173 = vmatpush1.bf16.msra.mxu0 0
      %3174 = vmatprep.subr.bf16.mxu0 0
      %3175 = vmatpush1.bf16.msra.mxu0 0
      %3176 = vmatprep.subr.bf16.mxu0 0
      %3177 = vmatpush1.bf16.msra.mxu0 0
      %3178 = vmatprep.subr.bf16.mxu0 0
      %3179 = vmatpush1.bf16.msra.mxu0 0
      %3180 = vmatprep.mubr.bf16.mxu0 0
      %3181 = vmatmul.mubr.bf16.gmra.mrb[0].mxu0 %v3146
      %v3182 = vpop.f32.mrb[0].mxu0
      %v3183 = vadd.f32 0.0, %v3182
      %v3184 = vpop.f32.mrb[0].mxu0
      %v3185 = vpop.f32.mrb[0].mxu0
      %v3186 = vadd.f32 0.0, %v3185
      %v3187 = vpop.f32.mrb[0].mxu0
      %3188 = vdwg.mxu0
      %v3190 = vsel %vm2117, %v1961, 0
      %3192 = vmatprep.subr.bf16.mxu0 0
      %3193 = vmatpush1.bf16.msra.mxu0 %v1961
      %3194 = vmatprep.subr.bf16.mxu0 0
      %3195 = vmatpush1.bf16.msra.mxu0 0
      %3196 = vmatprep.subr.bf16.mxu0 0
      %3197 = vmatpush1.bf16.msra.mxu0 0
      %3198 = vmatprep.subr.bf16.mxu0 0
      %3199 = vmatpush1.bf16.msra.mxu0 0
      %3200 = vmatprep.subr.bf16.mxu0 0
      %3201 = vmatpush1.bf16.msra.mxu0 0
      %3202 = vmatprep.subr.bf16.mxu0 0
      %3203 = vmatpush1.bf16.msra.mxu0 0
      %3204 = vmatprep.subr.bf16.mxu0 0
      %3205 = vmatpush1.bf16.msra.mxu0 0
      %3206 = vmatprep.subr.bf16.mxu0 0
      %3207 = vmatpush1.bf16.msra.mxu0 0
      %3208 = vmatprep.subr.bf16.mxu0 0
      %3209 = vmatpush1.bf16.msra.mxu0 0
      %3210 = vmatprep.subr.bf16.mxu0 0
      %3211 = vmatpush1.bf16.msra.mxu0 0
      %3212 = vmatprep.subr.bf16.mxu0 0
      %3213 = vmatpush1.bf16.msra.mxu0 0
      %3214 = vmatprep.subr.bf16.mxu0 0
      %3215 = vmatpush1.bf16.msra.mxu0 0
      %3216 = vmatprep.subr.bf16.mxu0 0
      %3217 = vmatpush1.bf16.msra.mxu0 0
      %3218 = vmatprep.subr.bf16.mxu0 0
      %3219 = vmatpush1.bf16.msra.mxu0 0
      %3220 = vmatprep.subr.bf16.mxu0 0
      %3221 = vmatpush1.bf16.msra.mxu0 0
      %3222 = vmatprep.subr.bf16.mxu0 0
      %3223 = vmatpush1.bf16.msra.mxu0 0
      %3224 = vmatprep.mubr.bf16.mxu0 0
      %3225 = vmatmul.mubr.bf16.gmra.mrb[0].mxu0 %v3190
      %v3226 = vpop.f32.mrb[0].mxu0
      %v3227 = vadd.f32 0.0, %v3226
      %v3228 = vpop.f32.mrb[0].mxu0
      %v3229 = vpop.f32.mrb[0].mxu0
      %v3230 = vadd.f32 0.0, %v3229
      %v3231 = vpop.f32.mrb[0].mxu0
      %3232 = vdwg.mxu0
      %v3234 = vsel %vm2117, %v1962, 0
      %3236 = vmatprep.subr.bf16.mxu0 0
      %3237 = vmatpush1.bf16.msra.mxu0 %v1962
      %3238 = vmatprep.subr.bf16.mxu0 0
      %3239 = vmatpush1.bf16.msra.mxu0 0
      %3240 = vmatprep.subr.bf16.mxu0 0
      %3241 = vmatpush1.bf16.msra.mxu0 0
      %3242 = vmatprep.subr.bf16.mxu0 0
      %3243 = vmatpush1.bf16.msra.mxu0 0
      %3244 = vmatprep.subr.bf16.mxu0 0
      %3245 = vmatpush1.bf16.msra.mxu0 0
      %3246 = vmatprep.subr.bf16.mxu0 0
      %3247 = vmatpush1.bf16.msra.mxu0 0
      %3248 = vmatprep.subr.bf16.mxu0 0
      %3249 = vmatpush1.bf16.msra.mxu0 0
      %3250 = vmatprep.subr.bf16.mxu0 0
      %3251 = vmatpush1.bf16.msra.mxu0 0
      %3252 = vmatprep.subr.bf16.mxu0 0
      %3253 = vmatpush1.bf16.msra.mxu0 0
      %3254 = vmatprep.subr.bf16.mxu0 0
      %3255 = vmatpush1.bf16.msra.mxu0 0
      %3256 = vmatprep.subr.bf16.mxu0 0
      %3257 = vmatpush1.bf16.msra.mxu0 0
      %3258 = vmatprep.subr.bf16.mxu0 0
      %3259 = vmatpush1.bf16.msra.mxu0 0
      %3260 = vmatprep.subr.bf16.mxu0 0
      %3261 = vmatpush1.bf16.msra.mxu0 0
      %3262 = vmatprep.subr.bf16.mxu0 0
      %3263 = vmatpush1.bf16.msra.mxu0 0
      %3264 = vmatprep.subr.bf16.mxu0 0
      %3265 = vmatpush1.bf16.msra.mxu0 0
      %3266 = vmatprep.subr.bf16.mxu0 0
      %3267 = vmatpush1.bf16.msra.mxu0 0
      %3268 = vmatprep.mubr.bf16.mxu0 0
      %3269 = vmatmul.mubr.bf16.gmra.mrb[0].mxu0 %v3234
      %v3270 = vpop.f32.mrb[0].mxu0
      %v3271 = vadd.f32 0.0, %v3270
      %v3272 = vpop.f32.mrb[0].mxu0
      %v3273 = vpop.f32.mrb[0].mxu0
      %v3274 = vadd.f32 0.0, %v3273
      %v3275 = vpop.f32.mrb[0].mxu0
      %3276 = vdwg.mxu0
      %v3278 = vsel %vm2117, %v1963, 0
      %3280 = vmatprep.subr.bf16.mxu0 0
      %3281 = vmatpush1.bf16.msra.mxu0 %v1963
      %3282 = vmatprep.subr.bf16.mxu0 0
      %3283 = vmatpush1.bf16.msra.mxu0 0
      %3284 = vmatprep.subr.bf16.mxu0 0
      %3285 = vmatpush1.bf16.msra.mxu0 0
      %3286 = vmatprep.subr.bf16.mxu0 0
      %3287 = vmatpush1.bf16.msra.mxu0 0
      %3288 = vmatprep.subr.bf16.mxu0 0
      %3289 = vmatpush1.bf16.msra.mxu0 0
      %3290 = vmatprep.subr.bf16.mxu0 0
      %3291 = vmatpush1.bf16.msra.mxu0 0
      %3292 = vmatprep.subr.bf16.mxu0 0
      %3293 = vmatpush1.bf16.msra.mxu0 0
      %3294 = vmatprep.subr.bf16.mxu0 0
      %3295 = vmatpush1.bf16.msra.mxu0 0
      %3296 = vmatprep.subr.bf16.mxu0 0
      %3297 = vmatpush1.bf16.msra.mxu0 0
      %3298 = vmatprep.subr.bf16.mxu0 0
      %3299 = vmatpush1.bf16.msra.mxu0 0
      %3300 = vmatprep.subr.bf16.mxu0 0
      %3301 = vmatpush1.bf16.msra.mxu0 0
      %3302 = vmatprep.subr.bf16.mxu0 0
      %3303 = vmatpush1.bf16.msra.mxu0 0
      %3304 = vmatprep.subr.bf16.mxu0 0
      %3305 = vmatpush1.bf16.msra.mxu0 0
      %3306 = vmatprep.subr.bf16.mxu0 0
      %3307 = vmatpush1.bf16.msra.mxu0 0
      %3308 = vmatprep.subr.bf16.mxu0 0
      %3309 = vmatpush1.bf16.msra.mxu0 0
      %3310 = vmatprep.subr.bf16.mxu0 0
      %3311 = vmatpush1.bf16.msra.mxu0 0
      %3312 = vmatprep.mubr.bf16.mxu0 0
      %3313 = vmatmul.mubr.bf16.gmra.mrb[0].mxu0 %v3278
      %v3314 = vpop.f32.mrb[0].mxu0
      %v3315 = vadd.f32 0.0, %v3314
      %v3316 = vpop.f32.mrb[0].mxu0
      %v3317 = vpop.f32.mrb[0].mxu0
      %v3318 = vadd.f32 0.0, %v3317
      %v3319 = vpop.f32.mrb[0].mxu0
      %3320 = vdwg.mxu0
      %v3322 = vsel %vm2117, %v1964, 0
      %3324 = vmatprep.subr.bf16.mxu0 0
      %3325 = vmatpush1.bf16.msra.mxu0 %v1964
      %3326 = vmatprep.subr.bf16.mxu0 0
      %3327 = vmatpush1.bf16.msra.mxu0 0
      %3328 = vmatprep.subr.bf16.mxu0 0
      %3329 = vmatpush1.bf16.msra.mxu0 0
      %3330 = vmatprep.subr.bf16.mxu0 0
      %3331 = vmatpush1.bf16.msra.mxu0 0
      %3332 = vmatprep.subr.bf16.mxu0 0
      %3333 = vmatpush1.bf16.msra.mxu0 0
      %3334 = vmatprep.subr.bf16.mxu0 0
      %3335 = vmatpush1.bf16.msra.mxu0 0
      %3336 = vmatprep.subr.bf16.mxu0 0
      %3337 = vmatpush1.bf16.msra.mxu0 0
      %3338 = vmatprep.subr.bf16.mxu0 0
      %3339 = vmatpush1.bf16.msra.mxu0 0
      %3340 = vmatprep.subr.bf16.mxu0 0
      %3341 = vmatpush1.bf16.msra.mxu0 0
      %3342 = vmatprep.subr.bf16.mxu0 0
      %3343 = vmatpush1.bf16.msra.mxu0 0
      %3344 = vmatprep.subr.bf16.mxu0 0
      %3345 = vmatpush1.bf16.msra.mxu0 0
      %3346 = vmatprep.subr.bf16.mxu0 0
      %3347 = vmatpush1.bf16.msra.mxu0 0
      %3348 = vmatprep.subr.bf16.mxu0 0
      %3349 = vmatpush1.bf16.msra.mxu0 0
      %3350 = vmatprep.subr.bf16.mxu0 0
      %3351 = vmatpush1.bf16.msra.mxu0 0
      %3352 = vmatprep.subr.bf16.mxu0 0
      %3353 = vmatpush1.bf16.msra.mxu0 0
      %3354 = vmatprep.subr.bf16.mxu0 0
      %3355 = vmatpush1.bf16.msra.mxu0 0
      %3356 = vmatprep.mubr.bf16.mxu0 0
      %3357 = vmatmul.mubr.bf16.gmra.mrb[0].mxu0 %v3322
      %v3358 = vpop.f32.mrb[0].mxu0
      %v3359 = vadd.f32 0.0, %v3358
      %v3360 = vpop.f32.mrb[0].mxu0
      %v3361 = vpop.f32.mrb[0].mxu0
      %v3362 = vadd.f32 0.0, %v3361
      %v3363 = vpop.f32.mrb[0].mxu0
      %3364 = vdwg.mxu0
      %v3366 = vsel %vm2117, %v1965, 0
      %3368 = vmatprep.subr.bf16.mxu0 0
      %3369 = vmatpush1.bf16.msra.mxu0 %v1965
      %3370 = vmatprep.subr.bf16.mxu0 0
      %3371 = vmatpush1.bf16.msra.mxu0 0
      %3372 = vmatprep.subr.bf16.mxu0 0
      %3373 = vmatpush1.bf16.msra.mxu0 0
      %3374 = vmatprep.subr.bf16.mxu0 0
      %3375 = vmatpush1.bf16.msra.mxu0 0
      %3376 = vmatprep.subr.bf16.mxu0 0
      %3377 = vmatpush1.bf16.msra.mxu0 0
      %3378 = vmatprep.subr.bf16.mxu0 0
      %3379 = vmatpush1.bf16.msra.mxu0 0
      %3380 = vmatprep.subr.bf16.mxu0 0
      %3381 = vmatpush1.bf16.msra.mxu0 0
      %3382 = vmatprep.subr.bf16.mxu0 0
      %3383 = vmatpush1.bf16.msra.mxu0 0
      %3384 = vmatprep.subr.bf16.mxu0 0
      %3385 = vmatpush1.bf16.msra.mxu0 0
      %3386 = vmatprep.subr.bf16.mxu0 0
      %3387 = vmatpush1.bf16.msra.mxu0 0
      %3388 = vmatprep.subr.bf16.mxu0 0
      %3389 = vmatpush1.bf16.msra.mxu0 0
      %3390 = vmatprep.subr.bf16.mxu0 0
      %3391 = vmatpush1.bf16.msra.mxu0 0
      %3392 = vmatprep.subr.bf16.mxu0 0
      %3393 = vmatpush1.bf16.msra.mxu0 0
      %3394 = vmatprep.subr.bf16.mxu0 0
      %3395 = vmatpush1.bf16.msra.mxu0 0
      %3396 = vmatprep.subr.bf16.mxu0 0
      %3397 = vmatpush1.bf16.msra.mxu0 0
      %3398 = vmatprep.subr.bf16.mxu0 0
      %3399 = vmatpush1.bf16.msra.mxu0 0
      %3400 = vmatprep.mubr.bf16.mxu0 0
      %3401 = vmatmul.mubr.bf16.gmra.mrb[0].mxu0 %v3366
      %v3402 = vpop.f32.mrb[0].mxu0
      %v3403 = vadd.f32 0.0, %v3402
      %v3404 = vpop.f32.mrb[0].mxu0
      %v3405 = vpop.f32.mrb[0].mxu0
      %v3406 = vadd.f32 0.0, %v3405
      %v3407 = vpop.f32.mrb[0].mxu0
      %3408 = vdwg.mxu0
      %v3410 = vsel %vm2117, %v1966, 0
      %3412 = vmatprep.subr.bf16.mxu0 0
      %3413 = vmatpush1.bf16.msra.mxu0 %v1966
      %3414 = vmatprep.subr.bf16.mxu0 0
      %3415 = vmatpush1.bf16.msra.mxu0 0
      %3416 = vmatprep.subr.bf16.mxu0 0
      %3417 = vmatpush1.bf16.msra.mxu0 0
      %3418 = vmatprep.subr.bf16.mxu0 0
      %3419 = vmatpush1.bf16.msra.mxu0 0
      %3420 = vmatprep.subr.bf16.mxu0 0
      %3421 = vmatpush1.bf16.msra.mxu0 0
      %3422 = vmatprep.subr.bf16.mxu0 0
      %3423 = vmatpush1.bf16.msra.mxu0 0
      %3424 = vmatprep.subr.bf16.mxu0 0
      %3425 = vmatpush1.bf16.msra.mxu0 0
      %3426 = vmatprep.subr.bf16.mxu0 0
      %3427 = vmatpush1.bf16.msra.mxu0 0
      %3428 = vmatprep.subr.bf16.mxu0 0
      %3429 = vmatpush1.bf16.msra.mxu0 0
      %3430 = vmatprep.subr.bf16.mxu0 0
      %3431 = vmatpush1.bf16.msra.mxu0 0
      %3432 = vmatprep.subr.bf16.mxu0 0
      %3433 = vmatpush1.bf16.msra.mxu0 0
      %3434 = vmatprep.subr.bf16.mxu0 0
      %3435 = vmatpush1.bf16.msra.mxu0 0
      %3436 = vmatprep.subr.bf16.mxu0 0
      %3437 = vmatpush1.bf16.msra.mxu0 0
      %3438 = vmatprep.subr.bf16.mxu0 0
      %3439 = vmatpush1.bf16.msra.mxu0 0
      %3440 = vmatprep.subr.bf16.mxu0 0
      %3441 = vmatpush1.bf16.msra.mxu0 0
      %3442 = vmatprep.subr.bf16.mxu0 0
      %3443 = vmatpush1.bf16.msra.mxu0 0
      %3444 = vmatprep.mubr.bf16.mxu0 0
      %3445 = vmatmul.mubr.bf16.gmra.mrb[0].mxu0 %v3410
      %v3446 = vpop.f32.mrb[0].mxu0
      %v3447 = vadd.f32 0.0, %v3446
      %v3448 = vpop.f32.mrb[0].mxu0
      %v3449 = vpop.f32.mrb[0].mxu0
      %v3450 = vadd.f32 0.0, %v3449
      %v3451 = vpop.f32.mrb[0].mxu0
      %3452 = vdwg.mxu0
      %v3454 = vsel %vm2117, %v1967, 0
      %3456 = vmatprep.subr.bf16.mxu0 0
      %3457 = vmatpush1.bf16.msra.mxu0 %v1967
      %3458 = vmatprep.subr.bf16.mxu0 0
      %3459 = vmatpush1.bf16.msra.mxu0 0
      %3460 = vmatprep.subr.bf16.mxu0 0
      %3461 = vmatpush1.bf16.msra.mxu0 0
      %3462 = vmatprep.subr.bf16.mxu0 0
      %3463 = vmatpush1.bf16.msra.mxu0 0
      %3464 = vmatprep.subr.bf16.mxu0 0
      %3465 = vmatpush1.bf16.msra.mxu0 0
      %3466 = vmatprep.subr.bf16.mxu0 0
      %3467 = vmatpush1.bf16.msra.mxu0 0
      %3468 = vmatprep.subr.bf16.mxu0 0
      %3469 = vmatpush1.bf16.msra.mxu0 0
      %3470 = vmatprep.subr.bf16.mxu0 0
      %3471 = vmatpush1.bf16.msra.mxu0 0
      %3472 = vmatprep.subr.bf16.mxu0 0
      %3473 = vmatpush1.bf16.msra.mxu0 0
      %3474 = vmatprep.subr.bf16.mxu0 0
      %3475 = vmatpush1.bf16.msra.mxu0 0
      %3476 = vmatprep.subr.bf16.mxu0 0
      %3477 = vmatpush1.bf16.msra.mxu0 0
      %3478 = vmatprep.subr.bf16.mxu0 0
      %3479 = vmatpush1.bf16.msra.mxu0 0
      %3480 = vmatprep.subr.bf16.mxu0 0
      %3481 = vmatpush1.bf16.msra.mxu0 0
      %3482 = vmatprep.subr.bf16.mxu0 0
      %3483 = vmatpush1.bf16.msra.mxu0 0
      %3484 = vmatprep.subr.bf16.mxu0 0
      %3485 = vmatpush1.bf16.msra.mxu0 0
      %3486 = vmatprep.subr.bf16.mxu0 0
      %3487 = vmatpush1.bf16.msra.mxu0 0
      %3488 = vmatprep.mubr.bf16.mxu0 0
      %3489 = vmatmul.mubr.bf16.gmra.mrb[0].mxu0 %v3454
      %v3490 = vpop.f32.mrb[0].mxu0
      %v3491 = vadd.f32 0.0, %v3490
      %v3492 = vpop.f32.mrb[0].mxu0
      %v3493 = vpop.f32.mrb[0].mxu0
      %v3494 = vadd.f32 0.0, %v3493
      %v3495 = vpop.f32.mrb[0].mxu0
      %3496 = vdwg.mxu0
      %v3497 = vpack.c.bf16 %v3010, %v3007
      %v3498 = vpack.c.bf16 %v3054, %v3051
      %v3499 = vpack.c.bf16 %v3098, %v3095
      %v3500 = vpack.c.bf16 %v3142, %v3139
      %v3501 = vpack.c.bf16 %v3186, %v3183
      %v3502 = vpack.c.bf16 %v3230, %v3227
      %v3503 = vpack.c.bf16 %v3274, %v3271
      %v3504 = vpack.c.bf16 %v3318, %v3315
      %v3505 = vpack.c.bf16 %v3362, %v3359
      %v3506 = vpack.c.bf16 %v3406, %v3403
      %v3507 = vpack.c.bf16 %v3450, %v3447
      %v3508 = vpack.c.bf16 %v3494, %v3491
      %v3509 = vpack.c.bf16 %v2946, %v2945
      %v3510 = vpack.c.bf16 %v2948, %v2947
      %v3511 = vpack.c.bf16 %v2950, %v2949
      %v3512 = vpack.c.bf16 %v2952, %v2951
      %v3513 = vpack.c.bf16 %v2954, %v2953
      %v3514 = vpack.c.bf16 %v2956, %v2955
      %v3515 = vpack.c.bf16 %v2958, %v2957
      %v3516 = vpack.c.bf16 %v2960, %v2959
      %v3517 = vpack.c.bf16 %v2962, %v2961
      %v3518 = vpack.c.bf16 %v2964, %v2963
      %v3519 = vpack.c.bf16 %v2966, %v2965
      %v3520 = vpack.c.bf16 %v2968, %v2967
      %v3522 = vunpack.c.l.b16 %v3509
      %v3523 = vunpack.c.h.b16 %v3509
      %3524 = vset.pattern.permute.xlu0 0
      %3525 = vperm.xlu0 %3524, %v3522
      %v3526 = vpop.permute.xlu0 %3525
      %3527 = vset.pattern.permute.xlu0 0
      %3528 = vperm.xlu0 %3527, %v3523
      %v3529 = vpop.permute.xlu0 %3528
      %v3530 = vlaneseq
      %v3531 = vshrl.u32 %v3530, 7
      %v3532 = vsub.s32 %v2104, %v3531
      %v3533 = vrot.slane %v3526, %v3532
      %v3534 = vlaneseq
      %v3535 = vshrl.u32 %v3534, 7
      %v3536 = vsub.s32 %v2109, %v3535
      %v3537 = vrot.slane %v3529, %v3536
      %v3538 = vsel %vm2114, %v3537, %v3533
      %v3539 = vpack.c.b16 %v3538, %v3538
      %v3541 = vsel %vm2117, %v3539, 0
      %3543 = vmatprep.subr.bf16.mxu0 0
      %3544 = vmatpush1.bf16.msra.mxu0 %v3497
      %3545 = vmatprep.subr.bf16.mxu0 0
      %3546 = vmatpush1.bf16.msra.mxu0 0
      %3547 = vmatprep.subr.bf16.mxu0 0
      %3548 = vmatpush1.bf16.msra.mxu0 0
      %3549 = vmatprep.subr.bf16.mxu0 0
      %3550 = vmatpush1.bf16.msra.mxu0 0
      %3551 = vmatprep.subr.bf16.mxu0 0
      %3552 = vmatpush1.bf16.msra.mxu0 0
      %3553 = vmatprep.subr.bf16.mxu0 0
      %3554 = vmatpush1.bf16.msra.mxu0 0
      %3555 = vmatprep.subr.bf16.mxu0 0
      %3556 = vmatpush1.bf16.msra.mxu0 0
      %3557 = vmatprep.subr.bf16.mxu0 0
      %3558 = vmatpush1.bf16.msra.mxu0 0
      %3559 = vmatprep.subr.bf16.mxu0 0
      %3560 = vmatpush1.bf16.msra.mxu0 0
      %3561 = vmatprep.subr.bf16.mxu0 0
      %3562 = vmatpush1.bf16.msra.mxu0 0
      %3563 = vmatprep.subr.bf16.mxu0 0
      %3564 = vmatpush1.bf16.msra.mxu0 0
      %3565 = vmatprep.subr.bf16.mxu0 0
      %3566 = vmatpush1.bf16.msra.mxu0 0
      %3567 = vmatprep.subr.bf16.mxu0 0
      %3568 = vmatpush1.bf16.msra.mxu0 0
      %3569 = vmatprep.subr.bf16.mxu0 0
      %3570 = vmatpush1.bf16.msra.mxu0 0
      %3571 = vmatprep.subr.bf16.mxu0 0
      %3572 = vmatpush1.bf16.msra.mxu0 0
      %3573 = vmatprep.subr.bf16.mxu0 0
      %3574 = vmatpush1.bf16.msra.mxu0 0
      %3575 = vmatprep.mubr.bf16.mxu0 0
      %3576 = vmatmul.mubr.bf16.gmra.mrb[0].mxu0 %v3541
      %v3577 = vpop.f32.mrb[0].mxu0
      %v3578 = vadd.f32 0.0, %v3577
      %v3579 = vpop.f32.mrb[0].mxu0
      %v3580 = vpop.f32.mrb[0].mxu0
      %v3581 = vpop.f32.mrb[0].mxu0
      %3582 = vdwg.mxu0
      %v3584 = vunpack.c.l.b16 %v3510
      %v3585 = vunpack.c.h.b16 %v3510
      %3586 = vset.pattern.permute.xlu0 0
      %3587 = vperm.xlu0 %3586, %v3584
      %v3588 = vpop.permute.xlu0 %3587
      %3589 = vset.pattern.permute.xlu0 0
      %3590 = vperm.xlu0 %3589, %v3585
      %v3591 = vpop.permute.xlu0 %3590
      %v3592 = vlaneseq
      %v3593 = vshrl.u32 %v3592, 7
      %v3594 = vsub.s32 %v2104, %v3593
      %v3595 = vrot.slane %v3588, %v3594
      %v3596 = vlaneseq
      %v3597 = vshrl.u32 %v3596, 7
      %v3598 = vsub.s32 %v2109, %v3597
      %v3599 = vrot.slane %v3591, %v3598
      %v3600 = vsel %vm2114, %v3599, %v3595
      %v3601 = vpack.c.b16 %v3600, %v3600
      %v3603 = vsel %vm2117, %v3601, 0
      %3605 = vmatprep.subr.bf16.mxu0 0
      %3606 = vmatpush1.bf16.msra.mxu0 %v3498
      %3607 = vmatprep.subr.bf16.mxu0 0
      %3608 = vmatpush1.bf16.msra.mxu0 0
      %3609 = vmatprep.subr.bf16.mxu0 0
      %3610 = vmatpush1.bf16.msra.mxu0 0
      %3611 = vmatprep.subr.bf16.mxu0 0
      %3612 = vmatpush1.bf16.msra.mxu0 0
      %3613 = vmatprep.subr.bf16.mxu0 0
      %3614 = vmatpush1.bf16.msra.mxu0 0
      %3615 = vmatprep.subr.bf16.mxu0 0
      %3616 = vmatpush1.bf16.msra.mxu0 0
      %3617 = vmatprep.subr.bf16.mxu0 0
      %3618 = vmatpush1.bf16.msra.mxu0 0
      %3619 = vmatprep.subr.bf16.mxu0 0
      %3620 = vmatpush1.bf16.msra.mxu0 0
      %3621 = vmatprep.subr.bf16.mxu0 0
      %3622 = vmatpush1.bf16.msra.mxu0 0
      %3623 = vmatprep.subr.bf16.mxu0 0
      %3624 = vmatpush1.bf16.msra.mxu0 0
      %3625 = vmatprep.subr.bf16.mxu0 0
      %3626 = vmatpush1.bf16.msra.mxu0 0
      %3627 = vmatprep.subr.bf16.mxu0 0
      %3628 = vmatpush1.bf16.msra.mxu0 0
      %3629 = vmatprep.subr.bf16.mxu0 0
      %3630 = vmatpush1.bf16.msra.mxu0 0
      %3631 = vmatprep.subr.bf16.mxu0 0
      %3632 = vmatpush1.bf16.msra.mxu0 0
      %3633 = vmatprep.subr.bf16.mxu0 0
      %3634 = vmatpush1.bf16.msra.mxu0 0
      %3635 = vmatprep.subr.bf16.mxu0 0
      %3636 = vmatpush1.bf16.msra.mxu0 0
      %3637 = vmatprep.mubr.bf16.mxu0 0
      %3638 = vmatmul.mubr.bf16.gmra.mrb[0].mxu0 %v3603
      %v3639 = vpop.f32.mrb[0].mxu0
      %v3640 = vadd.f32 0.0, %v3639
      %v3641 = vpop.f32.mrb[0].mxu0
      %v3642 = vpop.f32.mrb[0].mxu0
      %v3643 = vpop.f32.mrb[0].mxu0
      %3644 = vdwg.mxu0
      %v3646 = vunpack.c.l.b16 %v3511
      %v3647 = vunpack.c.h.b16 %v3511
      %3648 = vset.pattern.permute.xlu0 0
      %3649 = vperm.xlu0 %3648, %v3646
      %v3650 = vpop.permute.xlu0 %3649
      %3651 = vset.pattern.permute.xlu0 0
      %3652 = vperm.xlu0 %3651, %v3647
      %v3653 = vpop.permute.xlu0 %3652
      %v3654 = vlaneseq
      %v3655 = vshrl.u32 %v3654, 7
      %v3656 = vsub.s32 %v2104, %v3655
      %v3657 = vrot.slane %v3650, %v3656
      %v3658 = vlaneseq
      %v3659 = vshrl.u32 %v3658, 7
      %v3660 = vsub.s32 %v2109, %v3659
      %v3661 = vrot.slane %v3653, %v3660
      %v3662 = vsel %vm2114, %v3661, %v3657
      %v3663 = vpack.c.b16 %v3662, %v3662
      %v3665 = vsel %vm2117, %v3663, 0
      %3667 = vmatprep.subr.bf16.mxu0 0
      %3668 = vmatpush1.bf16.msra.mxu0 %v3499
      %3669 = vmatprep.subr.bf16.mxu0 0
      %3670 = vmatpush1.bf16.msra.mxu0 0
      %3671 = vmatprep.subr.bf16.mxu0 0
      %3672 = vmatpush1.bf16.msra.mxu0 0
      %3673 = vmatprep.subr.bf16.mxu0 0
      %3674 = vmatpush1.bf16.msra.mxu0 0
      %3675 = vmatprep.subr.bf16.mxu0 0
      %3676 = vmatpush1.bf16.msra.mxu0 0
      %3677 = vmatprep.subr.bf16.mxu0 0
      %3678 = vmatpush1.bf16.msra.mxu0 0
      %3679 = vmatprep.subr.bf16.mxu0 0
      %3680 = vmatpush1.bf16.msra.mxu0 0
      %3681 = vmatprep.subr.bf16.mxu0 0
      %3682 = vmatpush1.bf16.msra.mxu0 0
      %3683 = vmatprep.subr.bf16.mxu0 0
      %3684 = vmatpush1.bf16.msra.mxu0 0
      %3685 = vmatprep.subr.bf16.mxu0 0
      %3686 = vmatpush1.bf16.msra.mxu0 0
      %3687 = vmatprep.subr.bf16.mxu0 0
      %3688 = vmatpush1.bf16.msra.mxu0 0
      %3689 = vmatprep.subr.bf16.mxu0 0
      %3690 = vmatpush1.bf16.msra.mxu0 0
      %3691 = vmatprep.subr.bf16.mxu0 0
      %3692 = vmatpush1.bf16.msra.mxu0 0
      %3693 = vmatprep.subr.bf16.mxu0 0
      %3694 = vmatpush1.bf16.msra.mxu0 0
      %3695 = vmatprep.subr.bf16.mxu0 0
      %3696 = vmatpush1.bf16.msra.mxu0 0
      %3697 = vmatprep.subr.bf16.mxu0 0
      %3698 = vmatpush1.bf16.msra.mxu0 0
      %3699 = vmatprep.mubr.bf16.mxu0 0
      %3700 = vmatmul.mubr.bf16.gmra.mrb[0].mxu0 %v3665
      %v3701 = vpop.f32.mrb[0].mxu0
      %v3702 = vadd.f32 0.0, %v3701
      %v3703 = vpop.f32.mrb[0].mxu0
      %v3704 = vpop.f32.mrb[0].mxu0
      %v3705 = vpop.f32.mrb[0].mxu0
      %3706 = vdwg.mxu0
      %v3708 = vunpack.c.l.b16 %v3512
      %v3709 = vunpack.c.h.b16 %v3512
      %3710 = vset.pattern.permute.xlu0 0
      %3711 = vperm.xlu0 %3710, %v3708
      %v3712 = vpop.permute.xlu0 %3711
      %3713 = vset.pattern.permute.xlu0 0
      %3714 = vperm.xlu0 %3713, %v3709
      %v3715 = vpop.permute.xlu0 %3714
      %v3716 = vlaneseq
      %v3717 = vshrl.u32 %v3716, 7
      %v3718 = vsub.s32 %v2104, %v3717
      %v3719 = vrot.slane %v3712, %v3718
      %v3720 = vlaneseq
      %v3721 = vshrl.u32 %v3720, 7
      %v3722 = vsub.s32 %v2109, %v3721
      %v3723 = vrot.slane %v3715, %v3722
      %v3724 = vsel %vm2114, %v3723, %v3719
      %v3725 = vpack.c.b16 %v3724, %v3724
      %v3727 = vsel %vm2117, %v3725, 0
      %3729 = vmatprep.subr.bf16.mxu0 0
      %3730 = vmatpush1.bf16.msra.mxu0 %v3500
      %3731 = vmatprep.subr.bf16.mxu0 0
      %3732 = vmatpush1.bf16.msra.mxu0 0
      %3733 = vmatprep.subr.bf16.mxu0 0
      %3734 = vmatpush1.bf16.msra.mxu0 0
      %3735 = vmatprep.subr.bf16.mxu0 0
      %3736 = vmatpush1.bf16.msra.mxu0 0
      %3737 = vmatprep.subr.bf16.mxu0 0
      %3738 = vmatpush1.bf16.msra.mxu0 0
      %3739 = vmatprep.subr.bf16.mxu0 0
      %3740 = vmatpush1.bf16.msra.mxu0 0
      %3741 = vmatprep.subr.bf16.mxu0 0
      %3742 = vmatpush1.bf16.msra.mxu0 0
      %3743 = vmatprep.subr.bf16.mxu0 0
      %3744 = vmatpush1.bf16.msra.mxu0 0
      %3745 = vmatprep.subr.bf16.mxu0 0
      %3746 = vmatpush1.bf16.msra.mxu0 0
      %3747 = vmatprep.subr.bf16.mxu0 0
      %3748 = vmatpush1.bf16.msra.mxu0 0
      %3749 = vmatprep.subr.bf16.mxu0 0
      %3750 = vmatpush1.bf16.msra.mxu0 0
      %3751 = vmatprep.subr.bf16.mxu0 0
      %3752 = vmatpush1.bf16.msra.mxu0 0
      %3753 = vmatprep.subr.bf16.mxu0 0
      %3754 = vmatpush1.bf16.msra.mxu0 0
      %3755 = vmatprep.subr.bf16.mxu0 0
      %3756 = vmatpush1.bf16.msra.mxu0 0
      %3757 = vmatprep.subr.bf16.mxu0 0
      %3758 = vmatpush1.bf16.msra.mxu0 0
      %3759 = vmatprep.subr.bf16.mxu0 0
      %3760 = vmatpush1.bf16.msra.mxu0 0
      %3761 = vmatprep.mubr.bf16.mxu0 0
      %3762 = vmatmul.mubr.bf16.gmra.mrb[0].mxu0 %v3727
      %v3763 = vpop.f32.mrb[0].mxu0
      %v3764 = vadd.f32 0.0, %v3763
      %v3765 = vpop.f32.mrb[0].mxu0
      %v3766 = vpop.f32.mrb[0].mxu0
      %v3767 = vpop.f32.mrb[0].mxu0
      %3768 = vdwg.mxu0
      %v3770 = vunpack.c.l.b16 %v3513
      %v3771 = vunpack.c.h.b16 %v3513
      %3772 = vset.pattern.permute.xlu0 0
      %3773 = vperm.xlu0 %3772, %v3770
      %v3774 = vpop.permute.xlu0 %3773
      %3775 = vset.pattern.permute.xlu0 0
      %3776 = vperm.xlu0 %3775, %v3771
      %v3777 = vpop.permute.xlu0 %3776
      %v3778 = vlaneseq
      %v3779 = vshrl.u32 %v3778, 7
      %v3780 = vsub.s32 %v2104, %v3779
      %v3781 = vrot.slane %v3774, %v3780
      %v3782 = vlaneseq
      %v3783 = vshrl.u32 %v3782, 7
      %v3784 = vsub.s32 %v2109, %v3783
      %v3785 = vrot.slane %v3777, %v3784
      %v3786 = vsel %vm2114, %v3785, %v3781
      %v3787 = vpack.c.b16 %v3786, %v3786
      %v3789 = vsel %vm2117, %v3787, 0
      %3791 = vmatprep.subr.bf16.mxu0 0
      %3792 = vmatpush1.bf16.msra.mxu0 %v3501
      %3793 = vmatprep.subr.bf16.mxu0 0
      %3794 = vmatpush1.bf16.msra.mxu0 0
      %3795 = vmatprep.subr.bf16.mxu0 0
      %3796 = vmatpush1.bf16.msra.mxu0 0
      %3797 = vmatprep.subr.bf16.mxu0 0
      %3798 = vmatpush1.bf16.msra.mxu0 0
      %3799 = vmatprep.subr.bf16.mxu0 0
      %3800 = vmatpush1.bf16.msra.mxu0 0
      %3801 = vmatprep.subr.bf16.mxu0 0
      %3802 = vmatpush1.bf16.msra.mxu0 0
      %3803 = vmatprep.subr.bf16.mxu0 0
      %3804 = vmatpush1.bf16.msra.mxu0 0
      %3805 = vmatprep.subr.bf16.mxu0 0
      %3806 = vmatpush1.bf16.msra.mxu0 0
      %3807 = vmatprep.subr.bf16.mxu0 0
      %3808 = vmatpush1.bf16.msra.mxu0 0
      %3809 = vmatprep.subr.bf16.mxu0 0
      %3810 = vmatpush1.bf16.msra.mxu0 0
      %3811 = vmatprep.subr.bf16.mxu0 0
      %3812 = vmatpush1.bf16.msra.mxu0 0
      %3813 = vmatprep.subr.bf16.mxu0 0
      %3814 = vmatpush1.bf16.msra.mxu0 0
      %3815 = vmatprep.subr.bf16.mxu0 0
      %3816 = vmatpush1.bf16.msra.mxu0 0
      %3817 = vmatprep.subr.bf16.mxu0 0
      %3818 = vmatpush1.bf16.msra.mxu0 0
      %3819 = vmatprep.subr.bf16.mxu0 0
      %3820 = vmatpush1.bf16.msra.mxu0 0
      %3821 = vmatprep.subr.bf16.mxu0 0
      %3822 = vmatpush1.bf16.msra.mxu0 0
      %3823 = vmatprep.mubr.bf16.mxu0 0
      %3824 = vmatmul.mubr.bf16.gmra.mrb[0].mxu0 %v3789
      %v3825 = vpop.f32.mrb[0].mxu0
      %v3826 = vadd.f32 0.0, %v3825
      %v3827 = vpop.f32.mrb[0].mxu0
      %v3828 = vpop.f32.mrb[0].mxu0
      %v3829 = vpop.f32.mrb[0].mxu0
      %3830 = vdwg.mxu0
      %v3832 = vunpack.c.l.b16 %v3514
      %v3833 = vunpack.c.h.b16 %v3514
      %3834 = vset.pattern.permute.xlu0 0
      %3835 = vperm.xlu0 %3834, %v3832
      %v3836 = vpop.permute.xlu0 %3835
      %3837 = vset.pattern.permute.xlu0 0
      %3838 = vperm.xlu0 %3837, %v3833
      %v3839 = vpop.permute.xlu0 %3838
      %v3840 = vlaneseq
      %v3841 = vshrl.u32 %v3840, 7
      %v3842 = vsub.s32 %v2104, %v3841
      %v3843 = vrot.slane %v3836, %v3842
      %v3844 = vlaneseq
      %v3845 = vshrl.u32 %v3844, 7
      %v3846 = vsub.s32 %v2109, %v3845
      %v3847 = vrot.slane %v3839, %v3846
      %v3848 = vsel %vm2114, %v3847, %v3843
      %v3849 = vpack.c.b16 %v3848, %v3848
      %v3851 = vsel %vm2117, %v3849, 0
      %3853 = vmatprep.subr.bf16.mxu0 0
      %3854 = vmatpush1.bf16.msra.mxu0 %v3502
      %3855 = vmatprep.subr.bf16.mxu0 0
      %3856 = vmatpush1.bf16.msra.mxu0 0
      %3857 = vmatprep.subr.bf16.mxu0 0
      %3858 = vmatpush1.bf16.msra.mxu0 0
      %3859 = vmatprep.subr.bf16.mxu0 0
      %3860 = vmatpush1.bf16.msra.mxu0 0
      %3861 = vmatprep.subr.bf16.mxu0 0
      %3862 = vmatpush1.bf16.msra.mxu0 0
      %3863 = vmatprep.subr.bf16.mxu0 0
      %3864 = vmatpush1.bf16.msra.mxu0 0
      %3865 = vmatprep.subr.bf16.mxu0 0
      %3866 = vmatpush1.bf16.msra.mxu0 0
      %3867 = vmatprep.subr.bf16.mxu0 0
      %3868 = vmatpush1.bf16.msra.mxu0 0
      %3869 = vmatprep.subr.bf16.mxu0 0
      %3870 = vmatpush1.bf16.msra.mxu0 0
      %3871 = vmatprep.subr.bf16.mxu0 0
      %3872 = vmatpush1.bf16.msra.mxu0 0
      %3873 = vmatprep.subr.bf16.mxu0 0
      %3874 = vmatpush1.bf16.msra.mxu0 0
      %3875 = vmatprep.subr.bf16.mxu0 0
      %3876 = vmatpush1.bf16.msra.mxu0 0
      %3877 = vmatprep.subr.bf16.mxu0 0
      %3878 = vmatpush1.bf16.msra.mxu0 0
      %3879 = vmatprep.subr.bf16.mxu0 0
      %3880 = vmatpush1.bf16.msra.mxu0 0
      %3881 = vmatprep.subr.bf16.mxu0 0
      %3882 = vmatpush1.bf16.msra.mxu0 0
      %3883 = vmatprep.subr.bf16.mxu0 0
      %3884 = vmatpush1.bf16.msra.mxu0 0
      %3885 = vmatprep.mubr.bf16.mxu0 0
      %3886 = vmatmul.mubr.bf16.gmra.mrb[0].mxu0 %v3851
      %v3887 = vpop.f32.mrb[0].mxu0
      %v3888 = vadd.f32 0.0, %v3887
      %v3889 = vpop.f32.mrb[0].mxu0
      %v3890 = vpop.f32.mrb[0].mxu0
      %v3891 = vpop.f32.mrb[0].mxu0
      %3892 = vdwg.mxu0
      %v3894 = vunpack.c.l.b16 %v3515
      %v3895 = vunpack.c.h.b16 %v3515
      %3896 = vset.pattern.permute.xlu0 0
      %3897 = vperm.xlu0 %3896, %v3894
      %v3898 = vpop.permute.xlu0 %3897
      %3899 = vset.pattern.permute.xlu0 0
      %3900 = vperm.xlu0 %3899, %v3895
      %v3901 = vpop.permute.xlu0 %3900
      %v3902 = vlaneseq
      %v3903 = vshrl.u32 %v3902, 7
      %v3904 = vsub.s32 %v2104, %v3903
      %v3905 = vrot.slane %v3898, %v3904
      %v3906 = vlaneseq
      %v3907 = vshrl.u32 %v3906, 7
      %v3908 = vsub.s32 %v2109, %v3907
      %v3909 = vrot.slane %v3901, %v3908
      %v3910 = vsel %vm2114, %v3909, %v3905
      %v3911 = vpack.c.b16 %v3910, %v3910
      %v3913 = vsel %vm2117, %v3911, 0
      %3915 = vmatprep.subr.bf16.mxu0 0
      %3916 = vmatpush1.bf16.msra.mxu0 %v3503
      %3917 = vmatprep.subr.bf16.mxu0 0
      %3918 = vmatpush1.bf16.msra.mxu0 0
      %3919 = vmatprep.subr.bf16.mxu0 0
      %3920 = vmatpush1.bf16.msra.mxu0 0
      %3921 = vmatprep.subr.bf16.mxu0 0
      %3922 = vmatpush1.bf16.msra.mxu0 0
      %3923 = vmatprep.subr.bf16.mxu0 0
      %3924 = vmatpush1.bf16.msra.mxu0 0
      %3925 = vmatprep.subr.bf16.mxu0 0
      %3926 = vmatpush1.bf16.msra.mxu0 0
      %3927 = vmatprep.subr.bf16.mxu0 0
      %3928 = vmatpush1.bf16.msra.mxu0 0
      %3929 = vmatprep.subr.bf16.mxu0 0
      %3930 = vmatpush1.bf16.msra.mxu0 0
      %3931 = vmatprep.subr.bf16.mxu0 0
      %3932 = vmatpush1.bf16.msra.mxu0 0
      %3933 = vmatprep.subr.bf16.mxu0 0
      %3934 = vmatpush1.bf16.msra.mxu0 0
      %3935 = vmatprep.subr.bf16.mxu0 0
      %3936 = vmatpush1.bf16.msra.mxu0 0
      %3937 = vmatprep.subr.bf16.mxu0 0
      %3938 = vmatpush1.bf16.msra.mxu0 0
      %3939 = vmatprep.subr.bf16.mxu0 0
      %3940 = vmatpush1.bf16.msra.mxu0 0
      %3941 = vmatprep.subr.bf16.mxu0 0
      %3942 = vmatpush1.bf16.msra.mxu0 0
      %3943 = vmatprep.subr.bf16.mxu0 0
      %3944 = vmatpush1.bf16.msra.mxu0 0
      %3945 = vmatprep.subr.bf16.mxu0 0
      %3946 = vmatpush1.bf16.msra.mxu0 0
      %3947 = vmatprep.mubr.bf16.mxu0 0
      %3948 = vmatmul.mubr.bf16.gmra.mrb[0].mxu0 %v3913
      %v3949 = vpop.f32.mrb[0].mxu0
      %v3950 = vadd.f32 0.0, %v3949
      %v3951 = vpop.f32.mrb[0].mxu0
      %v3952 = vpop.f32.mrb[0].mxu0
      %v3953 = vpop.f32.mrb[0].mxu0
      %3954 = vdwg.mxu0
      %v3956 = vunpack.c.l.b16 %v3516
      %v3957 = vunpack.c.h.b16 %v3516
      %3958 = vset.pattern.permute.xlu0 0
      %3959 = vperm.xlu0 %3958, %v3956
      %v3960 = vpop.permute.xlu0 %3959
      %3961 = vset.pattern.permute.xlu0 0
      %3962 = vperm.xlu0 %3961, %v3957
      %v3963 = vpop.permute.xlu0 %3962
      %v3964 = vlaneseq
      %v3965 = vshrl.u32 %v3964, 7
      %v3966 = vsub.s32 %v2104, %v3965
      %v3967 = vrot.slane %v3960, %v3966
      %v3968 = vlaneseq
      %v3969 = vshrl.u32 %v3968, 7
      %v3970 = vsub.s32 %v2109, %v3969
      %v3971 = vrot.slane %v3963, %v3970
      %v3972 = vsel %vm2114, %v3971, %v3967
      %v3973 = vpack.c.b16 %v3972, %v3972
      %v3975 = vsel %vm2117, %v3973, 0
      %3977 = vmatprep.subr.bf16.mxu0 0
      %3978 = vmatpush1.bf16.msra.mxu0 %v3504
      %3979 = vmatprep.subr.bf16.mxu0 0
      %3980 = vmatpush1.bf16.msra.mxu0 0
      %3981 = vmatprep.subr.bf16.mxu0 0
      %3982 = vmatpush1.bf16.msra.mxu0 0
      %3983 = vmatprep.subr.bf16.mxu0 0
      %3984 = vmatpush1.bf16.msra.mxu0 0
      %3985 = vmatprep.subr.bf16.mxu0 0
      %3986 = vmatpush1.bf16.msra.mxu0 0
      %3987 = vmatprep.subr.bf16.mxu0 0
      %3988 = vmatpush1.bf16.msra.mxu0 0
      %3989 = vmatprep.subr.bf16.mxu0 0
      %3990 = vmatpush1.bf16.msra.mxu0 0
      %3991 = vmatprep.subr.bf16.mxu0 0
      %3992 = vmatpush1.bf16.msra.mxu0 0
      %3993 = vmatprep.subr.bf16.mxu0 0
      %3994 = vmatpush1.bf16.msra.mxu0 0
      %3995 = vmatprep.subr.bf16.mxu0 0
      %3996 = vmatpush1.bf16.msra.mxu0 0
      %3997 = vmatprep.subr.bf16.mxu0 0
      %3998 = vmatpush1.bf16.msra.mxu0 0
      %3999 = vmatprep.subr.bf16.mxu0 0
      %4000 = vmatpush1.bf16.msra.mxu0 0
      %4001 = vmatprep.subr.bf16.mxu0 0
      %4002 = vmatpush1.bf16.msra.mxu0 0
      %4003 = vmatprep.subr.bf16.mxu0 0
      %4004 = vmatpush1.bf16.msra.mxu0 0
      %4005 = vmatprep.subr.bf16.mxu0 0
      %4006 = vmatpush1.bf16.msra.mxu0 0
      %4007 = vmatprep.subr.bf16.mxu0 0
      %4008 = vmatpush1.bf16.msra.mxu0 0
      %4009 = vmatprep.mubr.bf16.mxu0 0
      %4010 = vmatmul.mubr.bf16.gmra.mrb[0].mxu0 %v3975
      %v4011 = vpop.f32.mrb[0].mxu0
      %v4012 = vadd.f32 0.0, %v4011
      %v4013 = vpop.f32.mrb[0].mxu0
      %v4014 = vpop.f32.mrb[0].mxu0
      %v4015 = vpop.f32.mrb[0].mxu0
      %4016 = vdwg.mxu0
      %v4018 = vunpack.c.l.b16 %v3517
      %v4019 = vunpack.c.h.b16 %v3517
      %4020 = vset.pattern.permute.xlu0 0
      %4021 = vperm.xlu0 %4020, %v4018
      %v4022 = vpop.permute.xlu0 %4021
      %4023 = vset.pattern.permute.xlu0 0
      %4024 = vperm.xlu0 %4023, %v4019
      %v4025 = vpop.permute.xlu0 %4024
      %v4026 = vlaneseq
      %v4027 = vshrl.u32 %v4026, 7
      %v4028 = vsub.s32 %v2104, %v4027
      %v4029 = vrot.slane %v4022, %v4028
      %v4030 = vlaneseq
      %v4031 = vshrl.u32 %v4030, 7
      %v4032 = vsub.s32 %v2109, %v4031
      %v4033 = vrot.slane %v4025, %v4032
      %v4034 = vsel %vm2114, %v4033, %v4029
      %v4035 = vpack.c.b16 %v4034, %v4034
      %v4037 = vsel %vm2117, %v4035, 0
      %4039 = vmatprep.subr.bf16.mxu0 0
      %4040 = vmatpush1.bf16.msra.mxu0 %v3505
      %4041 = vmatprep.subr.bf16.mxu0 0
      %4042 = vmatpush1.bf16.msra.mxu0 0
      %4043 = vmatprep.subr.bf16.mxu0 0
      %4044 = vmatpush1.bf16.msra.mxu0 0
      %4045 = vmatprep.subr.bf16.mxu0 0
      %4046 = vmatpush1.bf16.msra.mxu0 0
      %4047 = vmatprep.subr.bf16.mxu0 0
      %4048 = vmatpush1.bf16.msra.mxu0 0
      %4049 = vmatprep.subr.bf16.mxu0 0
      %4050 = vmatpush1.bf16.msra.mxu0 0
      %4051 = vmatprep.subr.bf16.mxu0 0
      %4052 = vmatpush1.bf16.msra.mxu0 0
      %4053 = vmatprep.subr.bf16.mxu0 0
      %4054 = vmatpush1.bf16.msra.mxu0 0
      %4055 = vmatprep.subr.bf16.mxu0 0
      %4056 = vmatpush1.bf16.msra.mxu0 0
      %4057 = vmatprep.subr.bf16.mxu0 0
      %4058 = vmatpush1.bf16.msra.mxu0 0
      %4059 = vmatprep.subr.bf16.mxu0 0
      %4060 = vmatpush1.bf16.msra.mxu0 0
      %4061 = vmatprep.subr.bf16.mxu0 0
      %4062 = vmatpush1.bf16.msra.mxu0 0
      %4063 = vmatprep.subr.bf16.mxu0 0
      %4064 = vmatpush1.bf16.msra.mxu0 0
      %4065 = vmatprep.subr.bf16.mxu0 0
      %4066 = vmatpush1.bf16.msra.mxu0 0
      %4067 = vmatprep.subr.bf16.mxu0 0
      %4068 = vmatpush1.bf16.msra.mxu0 0
      %4069 = vmatprep.subr.bf16.mxu0 0
      %4070 = vmatpush1.bf16.msra.mxu0 0
      %4071 = vmatprep.mubr.bf16.mxu0 0
      %4072 = vmatmul.mubr.bf16.gmra.mrb[0].mxu0 %v4037
      %v4073 = vpop.f32.mrb[0].mxu0
      %v4074 = vadd.f32 0.0, %v4073
      %v4075 = vpop.f32.mrb[0].mxu0
      %v4076 = vpop.f32.mrb[0].mxu0
      %v4077 = vpop.f32.mrb[0].mxu0
      %4078 = vdwg.mxu0
      %v4080 = vunpack.c.l.b16 %v3518
      %v4081 = vunpack.c.h.b16 %v3518
      %4082 = vset.pattern.permute.xlu0 0
      %4083 = vperm.xlu0 %4082, %v4080
      %v4084 = vpop.permute.xlu0 %4083
      %4085 = vset.pattern.permute.xlu0 0
      %4086 = vperm.xlu0 %4085, %v4081
      %v4087 = vpop.permute.xlu0 %4086
      %v4088 = vlaneseq
      %v4089 = vshrl.u32 %v4088, 7
      %v4090 = vsub.s32 %v2104, %v4089
      %v4091 = vrot.slane %v4084, %v4090
      %v4092 = vlaneseq
      %v4093 = vshrl.u32 %v4092, 7
      %v4094 = vsub.s32 %v2109, %v4093
      %v4095 = vrot.slane %v4087, %v4094
      %v4096 = vsel %vm2114, %v4095, %v4091
      %v4097 = vpack.c.b16 %v4096, %v4096
      %v4099 = vsel %vm2117, %v4097, 0
      %4101 = vmatprep.subr.bf16.mxu0 0
      %4102 = vmatpush1.bf16.msra.mxu0 %v3506
      %4103 = vmatprep.subr.bf16.mxu0 0
      %4104 = vmatpush1.bf16.msra.mxu0 0
      %4105 = vmatprep.subr.bf16.mxu0 0
      %4106 = vmatpush1.bf16.msra.mxu0 0
      %4107 = vmatprep.subr.bf16.mxu0 0
      %4108 = vmatpush1.bf16.msra.mxu0 0
      %4109 = vmatprep.subr.bf16.mxu0 0
      %4110 = vmatpush1.bf16.msra.mxu0 0
      %4111 = vmatprep.subr.bf16.mxu0 0
      %4112 = vmatpush1.bf16.msra.mxu0 0
      %4113 = vmatprep.subr.bf16.mxu0 0
      %4114 = vmatpush1.bf16.msra.mxu0 0
      %4115 = vmatprep.subr.bf16.mxu0 0
      %4116 = vmatpush1.bf16.msra.mxu0 0
      %4117 = vmatprep.subr.bf16.mxu0 0
      %4118 = vmatpush1.bf16.msra.mxu0 0
      %4119 = vmatprep.subr.bf16.mxu0 0
      %4120 = vmatpush1.bf16.msra.mxu0 0
      %4121 = vmatprep.subr.bf16.mxu0 0
      %4122 = vmatpush1.bf16.msra.mxu0 0
      %4123 = vmatprep.subr.bf16.mxu0 0
      %4124 = vmatpush1.bf16.msra.mxu0 0
      %4125 = vmatprep.subr.bf16.mxu0 0
      %4126 = vmatpush1.bf16.msra.mxu0 0
      %4127 = vmatprep.subr.bf16.mxu0 0
      %4128 = vmatpush1.bf16.msra.mxu0 0
      %4129 = vmatprep.subr.bf16.mxu0 0
      %4130 = vmatpush1.bf16.msra.mxu0 0
      %4131 = vmatprep.subr.bf16.mxu0 0
      %4132 = vmatpush1.bf16.msra.mxu0 0
      %4133 = vmatprep.mubr.bf16.mxu0 0
      %4134 = vmatmul.mubr.bf16.gmra.mrb[0].mxu0 %v4099
      %v4135 = vpop.f32.mrb[0].mxu0
      %v4136 = vadd.f32 0.0, %v4135
      %v4137 = vpop.f32.mrb[0].mxu0
      %v4138 = vpop.f32.mrb[0].mxu0
      %v4139 = vpop.f32.mrb[0].mxu0
      %4140 = vdwg.mxu0
      %v4142 = vunpack.c.l.b16 %v3519
      %v4143 = vunpack.c.h.b16 %v3519
      %4144 = vset.pattern.permute.xlu0 0
      %4145 = vperm.xlu0 %4144, %v4142
      %v4146 = vpop.permute.xlu0 %4145
      %4147 = vset.pattern.permute.xlu0 0
      %4148 = vperm.xlu0 %4147, %v4143
      %v4149 = vpop.permute.xlu0 %4148
      %v4150 = vlaneseq
      %v4151 = vshrl.u32 %v4150, 7
      %v4152 = vsub.s32 %v2104, %v4151
      %v4153 = vrot.slane %v4146, %v4152
      %v4154 = vlaneseq
      %v4155 = vshrl.u32 %v4154, 7
      %v4156 = vsub.s32 %v2109, %v4155
      %v4157 = vrot.slane %v4149, %v4156
      %v4158 = vsel %vm2114, %v4157, %v4153
      %v4159 = vpack.c.b16 %v4158, %v4158
      %v4161 = vsel %vm2117, %v4159, 0
      %4163 = vmatprep.subr.bf16.mxu0 0
      %4164 = vmatpush1.bf16.msra.mxu0 %v3507
      %4165 = vmatprep.subr.bf16.mxu0 0
      %4166 = vmatpush1.bf16.msra.mxu0 0
      %4167 = vmatprep.subr.bf16.mxu0 0
      %4168 = vmatpush1.bf16.msra.mxu0 0
      %4169 = vmatprep.subr.bf16.mxu0 0
      %4170 = vmatpush1.bf16.msra.mxu0 0
      %4171 = vmatprep.subr.bf16.mxu0 0
      %4172 = vmatpush1.bf16.msra.mxu0 0
      %4173 = vmatprep.subr.bf16.mxu0 0
      %4174 = vmatpush1.bf16.msra.mxu0 0
      %4175 = vmatprep.subr.bf16.mxu0 0
      %4176 = vmatpush1.bf16.msra.mxu0 0
      %4177 = vmatprep.subr.bf16.mxu0 0
      %4178 = vmatpush1.bf16.msra.mxu0 0
      %4179 = vmatprep.subr.bf16.mxu0 0
      %4180 = vmatpush1.bf16.msra.mxu0 0
      %4181 = vmatprep.subr.bf16.mxu0 0
      %4182 = vmatpush1.bf16.msra.mxu0 0
      %4183 = vmatprep.subr.bf16.mxu0 0
      %4184 = vmatpush1.bf16.msra.mxu0 0
      %4185 = vmatprep.subr.bf16.mxu0 0
      %4186 = vmatpush1.bf16.msra.mxu0 0
      %4187 = vmatprep.subr.bf16.mxu0 0
      %4188 = vmatpush1.bf16.msra.mxu0 0
      %4189 = vmatprep.subr.bf16.mxu0 0
      %4190 = vmatpush1.bf16.msra.mxu0 0
      %4191 = vmatprep.subr.bf16.mxu0 0
      %4192 = vmatpush1.bf16.msra.mxu0 0
      %4193 = vmatprep.subr.bf16.mxu0 0
      %4194 = vmatpush1.bf16.msra.mxu0 0
      %4195 = vmatprep.mubr.bf16.mxu0 0
      %4196 = vmatmul.mubr.bf16.gmra.mrb[0].mxu0 %v4161
      %v4197 = vpop.f32.mrb[0].mxu0
      %v4198 = vadd.f32 0.0, %v4197
      %v4199 = vpop.f32.mrb[0].mxu0
      %v4200 = vpop.f32.mrb[0].mxu0
      %v4201 = vpop.f32.mrb[0].mxu0
      %4202 = vdwg.mxu0
      %v4204 = vunpack.c.l.b16 %v3520
      %v4205 = vunpack.c.h.b16 %v3520
      %4206 = vset.pattern.permute.xlu0 0
      %4207 = vperm.xlu0 %4206, %v4204
      %v4208 = vpop.permute.xlu0 %4207
      %4209 = vset.pattern.permute.xlu0 0
      %4210 = vperm.xlu0 %4209, %v4205
      %v4211 = vpop.permute.xlu0 %4210
      %v4212 = vlaneseq
      %v4213 = vshrl.u32 %v4212, 7
      %v4214 = vsub.s32 %v2104, %v4213
      %v4215 = vrot.slane %v4208, %v4214
      %v4216 = vlaneseq
      %v4217 = vshrl.u32 %v4216, 7
      %v4218 = vsub.s32 %v2109, %v4217
      %v4219 = vrot.slane %v4211, %v4218
      %v4220 = vsel %vm2114, %v4219, %v4215
      %v4221 = vpack.c.b16 %v4220, %v4220
      %v4223 = vsel %vm2117, %v4221, 0
      %4225 = vmatprep.subr.bf16.mxu0 0
      %4226 = vmatpush1.bf16.msra.mxu0 %v3508
      %4227 = vmatprep.subr.bf16.mxu0 0
      %4228 = vmatpush1.bf16.msra.mxu0 0
      %4229 = vmatprep.subr.bf16.mxu0 0
      %4230 = vmatpush1.bf16.msra.mxu0 0
      %4231 = vmatprep.subr.bf16.mxu0 0
      %4232 = vmatpush1.bf16.msra.mxu0 0
      %4233 = vmatprep.subr.bf16.mxu0 0
      %4234 = vmatpush1.bf16.msra.mxu0 0
      %4235 = vmatprep.subr.bf16.mxu0 0
      %4236 = vmatpush1.bf16.msra.mxu0 0
      %4237 = vmatprep.subr.bf16.mxu0 0
      %4238 = vmatpush1.bf16.msra.mxu0 0
      %4239 = vmatprep.subr.bf16.mxu0 0
      %4240 = vmatpush1.bf16.msra.mxu0 0
      %4241 = vmatprep.subr.bf16.mxu0 0
      %4242 = vmatpush1.bf16.msra.mxu0 0
      %4243 = vmatprep.subr.bf16.mxu0 0
      %4244 = vmatpush1.bf16.msra.mxu0 0
      %4245 = vmatprep.subr.bf16.mxu0 0
      %4246 = vmatpush1.bf16.msra.mxu0 0
      %4247 = vmatprep.subr.bf16.mxu0 0
      %4248 = vmatpush1.bf16.msra.mxu0 0
      %4249 = vmatprep.subr.bf16.mxu0 0
      %4250 = vmatpush1.bf16.msra.mxu0 0
      %4251 = vmatprep.subr.bf16.mxu0 0
      %4252 = vmatpush1.bf16.msra.mxu0 0
      %4253 = vmatprep.subr.bf16.mxu0 0
      %4254 = vmatpush1.bf16.msra.mxu0 0
      %4255 = vmatprep.subr.bf16.mxu0 0
      %4256 = vmatpush1.bf16.msra.mxu0 0
      %4257 = vmatprep.mubr.bf16.mxu0 0
      %4258 = vmatmul.mubr.bf16.gmra.mrb[0].mxu0 %v4223
      %v4259 = vpop.f32.mrb[0].mxu0
      %v4260 = vadd.f32 0.0, %v4259
      %v4261 = vpop.f32.mrb[0].mxu0
      %v4262 = vpop.f32.mrb[0].mxu0
      %v4263 = vpop.f32.mrb[0].mxu0
      %4264 = vdwg.mxu0
      %v4277 = vlaneseq
      %v4278 = vshrl.u32 %v4277, 7
      %v4279 = vsub.s32 0, %v4278
      %v4280 = vrot.slane %v3578, %v4279
      %4282 = vbcast.lane.b32.xlu0 %v4280, 256
      %v4283 = vpop.permute.xlu0 %4282
      %s4285 = sor.u32 256, 8
      %4286 = vbcast.lane.b32.xlu0 %v4280, %s4285
      %v4287 = vpop.permute.xlu0 %4286
      %v4288 = vlaneseq
      %v4289 = vshrl.u32 %v4288, 7
      %v4290 = vsub.s32 0, %v4289
      %v4291 = vrot.slane %v3640, %v4290
      %4293 = vbcast.lane.b32.xlu0 %v4291, 256
      %v4294 = vpop.permute.xlu0 %4293
      %s4296 = sor.u32 256, 8
      %4297 = vbcast.lane.b32.xlu0 %v4291, %s4296
      %v4298 = vpop.permute.xlu0 %4297
      %v4299 = vlaneseq
      %v4300 = vshrl.u32 %v4299, 7
      %v4301 = vsub.s32 0, %v4300
      %v4302 = vrot.slane %v3702, %v4301
      %4304 = vbcast.lane.b32.xlu0 %v4302, 256
      %v4305 = vpop.permute.xlu0 %4304
      %s4307 = sor.u32 256, 8
      %4308 = vbcast.lane.b32.xlu0 %v4302, %s4307
      %v4309 = vpop.permute.xlu0 %4308
      %v4310 = vlaneseq
      %v4311 = vshrl.u32 %v4310, 7
      %v4312 = vsub.s32 0, %v4311
      %v4313 = vrot.slane %v3764, %v4312
      %4315 = vbcast.lane.b32.xlu0 %v4313, 256
      %v4316 = vpop.permute.xlu0 %4315
      %s4318 = sor.u32 256, 8
      %4319 = vbcast.lane.b32.xlu0 %v4313, %s4318
      %v4320 = vpop.permute.xlu0 %4319
      %v4321 = vlaneseq
      %v4322 = vshrl.u32 %v4321, 7
      %v4323 = vsub.s32 0, %v4322
      %v4324 = vrot.slane %v3826, %v4323
      %4326 = vbcast.lane.b32.xlu0 %v4324, 256
      %v4327 = vpop.permute.xlu0 %4326
      %s4329 = sor.u32 256, 8
      %4330 = vbcast.lane.b32.xlu0 %v4324, %s4329
      %v4331 = vpop.permute.xlu0 %4330
      %v4332 = vlaneseq
      %v4333 = vshrl.u32 %v4332, 7
      %v4334 = vsub.s32 0, %v4333
      %v4335 = vrot.slane %v3888, %v4334
      %4337 = vbcast.lane.b32.xlu0 %v4335, 256
      %v4338 = vpop.permute.xlu0 %4337
      %s4340 = sor.u32 256, 8
      %4341 = vbcast.lane.b32.xlu0 %v4335, %s4340
      %v4342 = vpop.permute.xlu0 %4341
      %v4343 = vlaneseq
      %v4344 = vshrl.u32 %v4343, 7
      %v4345 = vsub.s32 0, %v4344
      %v4346 = vrot.slane %v3950, %v4345
      %4348 = vbcast.lane.b32.xlu0 %v4346, 256
      %v4349 = vpop.permute.xlu0 %4348
      %s4351 = sor.u32 256, 8
      %4352 = vbcast.lane.b32.xlu0 %v4346, %s4351
      %v4353 = vpop.permute.xlu0 %4352
      %v4354 = vlaneseq
      %v4355 = vshrl.u32 %v4354, 7
      %v4356 = vsub.s32 0, %v4355
      %v4357 = vrot.slane %v4012, %v4356
      %4359 = vbcast.lane.b32.xlu0 %v4357, 256
      %v4360 = vpop.permute.xlu0 %4359
      %s4362 = sor.u32 256, 8
      %4363 = vbcast.lane.b32.xlu0 %v4357, %s4362
      %v4364 = vpop.permute.xlu0 %4363
      %v4365 = vlaneseq
      %v4366 = vshrl.u32 %v4365, 7
      %v4367 = vsub.s32 0, %v4366
      %v4368 = vrot.slane %v4074, %v4367
      %4370 = vbcast.lane.b32.xlu0 %v4368, 256
      %v4371 = vpop.permute.xlu0 %4370
      %s4373 = sor.u32 256, 8
      %4374 = vbcast.lane.b32.xlu0 %v4368, %s4373
      %v4375 = vpop.permute.xlu0 %4374
      %v4376 = vlaneseq
      %v4377 = vshrl.u32 %v4376, 7
      %v4378 = vsub.s32 0, %v4377
      %v4379 = vrot.slane %v4136, %v4378
      %4381 = vbcast.lane.b32.xlu0 %v4379, 256
      %v4382 = vpop.permute.xlu0 %4381
      %s4384 = sor.u32 256, 8
      %4385 = vbcast.lane.b32.xlu0 %v4379, %s4384
      %v4386 = vpop.permute.xlu0 %4385
      %v4387 = vlaneseq
      %v4388 = vshrl.u32 %v4387, 7
      %v4389 = vsub.s32 0, %v4388
      %v4390 = vrot.slane %v4198, %v4389
      %4392 = vbcast.lane.b32.xlu0 %v4390, 256
      %v4393 = vpop.permute.xlu0 %4392
      %s4395 = sor.u32 256, 8
      %4396 = vbcast.lane.b32.xlu0 %v4390, %s4395
      %v4397 = vpop.permute.xlu0 %4396
      %v4398 = vlaneseq
      %v4399 = vshrl.u32 %v4398, 7
      %v4400 = vsub.s32 0, %v4399
      %v4401 = vrot.slane %v4260, %v4400
      %4403 = vbcast.lane.b32.xlu0 %v4401, 256
      %v4404 = vpop.permute.xlu0 %4403
      %s4406 = sor.u32 256, 8
      %4407 = vbcast.lane.b32.xlu0 %v4401, %s4406
      %v4408 = vpop.permute.xlu0 %4407
      %v4433 = vadd.f32 %v2945, %v4283
      %v4434 = vadd.f32 %v2946, %v4287
      %v4435 = vadd.f32 %v2947, %v4294
      %v4436 = vadd.f32 %v2948, %v4298
      %v4437 = vadd.f32 %v2949, %v4305
      %v4438 = vadd.f32 %v2950, %v4309
      %v4439 = vadd.f32 %v2951, %v4316
      %v4440 = vadd.f32 %v2952, %v4320
      %v4441 = vadd.f32 %v2953, %v4327
      %v4442 = vadd.f32 %v2954, %v4331
      %v4443 = vadd.f32 %v2955, %v4338
      %v4444 = vadd.f32 %v2956, %v4342
      %v4445 = vadd.f32 %v2957, %v4349
      %v4446 = vadd.f32 %v2958, %v4353
      %v4447 = vadd.f32 %v2959, %v4360
      %v4448 = vadd.f32 %v2960, %v4364
      %v4449 = vadd.f32 %v2961, %v4371
      %v4450 = vadd.f32 %v2962, %v4375
      %v4451 = vadd.f32 %v2963, %v4382
      %v4452 = vadd.f32 %v2964, %v4386
      %v4453 = vadd.f32 %v2965, %v4393
      %v4454 = vadd.f32 %v2966, %v4397
      %v4455 = vadd.f32 %v2967, %v4404
      %v4456 = vadd.f32 %v2968, %v4408
      %v4458 = vsel %vm2117, %v3497, 0
      %4460 = vmatprep.subr.bf16.mxu0 0
      %4461 = vmatpush1.bf16.msra.mxu0 %v3497
      %4462 = vmatprep.subr.bf16.mxu0 0
      %4463 = vmatpush1.bf16.msra.mxu0 0
      %4464 = vmatprep.subr.bf16.mxu0 0
      %4465 = vmatpush1.bf16.msra.mxu0 0
      %4466 = vmatprep.subr.bf16.mxu0 0
      %4467 = vmatpush1.bf16.msra.mxu0 0
      %4468 = vmatprep.subr.bf16.mxu0 0
      %4469 = vmatpush1.bf16.msra.mxu0 0
      %4470 = vmatprep.subr.bf16.mxu0 0
      %4471 = vmatpush1.bf16.msra.mxu0 0
      %4472 = vmatprep.subr.bf16.mxu0 0
      %4473 = vmatpush1.bf16.msra.mxu0 0
      %4474 = vmatprep.subr.bf16.mxu0 0
      %4475 = vmatpush1.bf16.msra.mxu0 0
      %4476 = vmatprep.subr.bf16.mxu0 0
      %4477 = vmatpush1.bf16.msra.mxu0 0
      %4478 = vmatprep.subr.bf16.mxu0 0
      %4479 = vmatpush1.bf16.msra.mxu0 0
      %4480 = vmatprep.subr.bf16.mxu0 0
      %4481 = vmatpush1.bf16.msra.mxu0 0
      %4482 = vmatprep.subr.bf16.mxu0 0
      %4483 = vmatpush1.bf16.msra.mxu0 0
      %4484 = vmatprep.subr.bf16.mxu0 0
      %4485 = vmatpush1.bf16.msra.mxu0 0
      %4486 = vmatprep.subr.bf16.mxu0 0
      %4487 = vmatpush1.bf16.msra.mxu0 0
      %4488 = vmatprep.subr.bf16.mxu0 0
      %4489 = vmatpush1.bf16.msra.mxu0 0
      %4490 = vmatprep.subr.bf16.mxu0 0
      %4491 = vmatpush1.bf16.msra.mxu0 0
      %4492 = vmatprep.mubr.bf16.mxu0 0
      %4493 = vmatmul.mubr.bf16.gmra.mrb[0].mxu0 %v4458
      %v4494 = vpop.f32.mrb[0].mxu0
      %v4495 = vadd.f32 0.0, %v4494
      %v4496 = vpop.f32.mrb[0].mxu0
      %v4497 = vpop.f32.mrb[0].mxu0
      %v4498 = vadd.f32 0.0, %v4497
      %v4499 = vpop.f32.mrb[0].mxu0
      %4500 = vdwg.mxu0
      %v4502 = vsel %vm2117, %v3498, 0
      %4504 = vmatprep.subr.bf16.mxu0 0
      %4505 = vmatpush1.bf16.msra.mxu0 %v3498
      %4506 = vmatprep.subr.bf16.mxu0 0
      %4507 = vmatpush1.bf16.msra.mxu0 0
      %4508 = vmatprep.subr.bf16.mxu0 0
      %4509 = vmatpush1.bf16.msra.mxu0 0
      %4510 = vmatprep.subr.bf16.mxu0 0
      %4511 = vmatpush1.bf16.msra.mxu0 0
      %4512 = vmatprep.subr.bf16.mxu0 0
      %4513 = vmatpush1.bf16.msra.mxu0 0
      %4514 = vmatprep.subr.bf16.mxu0 0
      %4515 = vmatpush1.bf16.msra.mxu0 0
      %4516 = vmatprep.subr.bf16.mxu0 0
      %4517 = vmatpush1.bf16.msra.mxu0 0
      %4518 = vmatprep.subr.bf16.mxu0 0
      %4519 = vmatpush1.bf16.msra.mxu0 0
      %4520 = vmatprep.subr.bf16.mxu0 0
      %4521 = vmatpush1.bf16.msra.mxu0 0
      %4522 = vmatprep.subr.bf16.mxu0 0
      %4523 = vmatpush1.bf16.msra.mxu0 0
      %4524 = vmatprep.subr.bf16.mxu0 0
      %4525 = vmatpush1.bf16.msra.mxu0 0
      %4526 = vmatprep.subr.bf16.mxu0 0
      %4527 = vmatpush1.bf16.msra.mxu0 0
      %4528 = vmatprep.subr.bf16.mxu0 0
      %4529 = vmatpush1.bf16.msra.mxu0 0
      %4530 = vmatprep.subr.bf16.mxu0 0
      %4531 = vmatpush1.bf16.msra.mxu0 0
      %4532 = vmatprep.subr.bf16.mxu0 0
      %4533 = vmatpush1.bf16.msra.mxu0 0
      %4534 = vmatprep.subr.bf16.mxu0 0
      %4535 = vmatpush1.bf16.msra.mxu0 0
      %4536 = vmatprep.mubr.bf16.mxu0 0
      %4537 = vmatmul.mubr.bf16.gmra.mrb[0].mxu0 %v4502
      %v4538 = vpop.f32.mrb[0].mxu0
      %v4539 = vadd.f32 0.0, %v4538
      %v4540 = vpop.f32.mrb[0].mxu0
      %v4541 = vpop.f32.mrb[0].mxu0
      %v4542 = vadd.f32 0.0, %v4541
      %v4543 = vpop.f32.mrb[0].mxu0
      %4544 = vdwg.mxu0
      %v4546 = vsel %vm2117, %v3499, 0
      %4548 = vmatprep.subr.bf16.mxu0 0
      %4549 = vmatpush1.bf16.msra.mxu0 %v3499
      %4550 = vmatprep.subr.bf16.mxu0 0
      %4551 = vmatpush1.bf16.msra.mxu0 0
      %4552 = vmatprep.subr.bf16.mxu0 0
      %4553 = vmatpush1.bf16.msra.mxu0 0
      %4554 = vmatprep.subr.bf16.mxu0 0
      %4555 = vmatpush1.bf16.msra.mxu0 0
      %4556 = vmatprep.subr.bf16.mxu0 0
      %4557 = vmatpush1.bf16.msra.mxu0 0
      %4558 = vmatprep.subr.bf16.mxu0 0
      %4559 = vmatpush1.bf16.msra.mxu0 0
      %4560 = vmatprep.subr.bf16.mxu0 0
      %4561 = vmatpush1.bf16.msra.mxu0 0
      %4562 = vmatprep.subr.bf16.mxu0 0
      %4563 = vmatpush1.bf16.msra.mxu0 0
      %4564 = vmatprep.subr.bf16.mxu0 0
      %4565 = vmatpush1.bf16.msra.mxu0 0
      %4566 = vmatprep.subr.bf16.mxu0 0
      %4567 = vmatpush1.bf16.msra.mxu0 0
      %4568 = vmatprep.subr.bf16.mxu0 0
      %4569 = vmatpush1.bf16.msra.mxu0 0
      %4570 = vmatprep.subr.bf16.mxu0 0
      %4571 = vmatpush1.bf16.msra.mxu0 0
      %4572 = vmatprep.subr.bf16.mxu0 0
      %4573 = vmatpush1.bf16.msra.mxu0 0
      %4574 = vmatprep.subr.bf16.mxu0 0
      %4575 = vmatpush1.bf16.msra.mxu0 0
      %4576 = vmatprep.subr.bf16.mxu0 0
      %4577 = vmatpush1.bf16.msra.mxu0 0
      %4578 = vmatprep.subr.bf16.mxu0 0
      %4579 = vmatpush1.bf16.msra.mxu0 0
      %4580 = vmatprep.mubr.bf16.mxu0 0
      %4581 = vmatmul.mubr.bf16.gmra.mrb[0].mxu0 %v4546
      %v4582 = vpop.f32.mrb[0].mxu0
      %v4583 = vadd.f32 0.0, %v4582
      %v4584 = vpop.f32.mrb[0].mxu0
      %v4585 = vpop.f32.mrb[0].mxu0
      %v4586 = vadd.f32 0.0, %v4585
      %v4587 = vpop.f32.mrb[0].mxu0
      %4588 = vdwg.mxu0
      %v4590 = vsel %vm2117, %v3500, 0
      %4592 = vmatprep.subr.bf16.mxu0 0
      %4593 = vmatpush1.bf16.msra.mxu0 %v3500
      %4594 = vmatprep.subr.bf16.mxu0 0
      %4595 = vmatpush1.bf16.msra.mxu0 0
      %4596 = vmatprep.subr.bf16.mxu0 0
      %4597 = vmatpush1.bf16.msra.mxu0 0
      %4598 = vmatprep.subr.bf16.mxu0 0
      %4599 = vmatpush1.bf16.msra.mxu0 0
      %4600 = vmatprep.subr.bf16.mxu0 0
      %4601 = vmatpush1.bf16.msra.mxu0 0
      %4602 = vmatprep.subr.bf16.mxu0 0
      %4603 = vmatpush1.bf16.msra.mxu0 0
      %4604 = vmatprep.subr.bf16.mxu0 0
      %4605 = vmatpush1.bf16.msra.mxu0 0
      %4606 = vmatprep.subr.bf16.mxu0 0
      %4607 = vmatpush1.bf16.msra.mxu0 0
      %4608 = vmatprep.subr.bf16.mxu0 0
      %4609 = vmatpush1.bf16.msra.mxu0 0
      %4610 = vmatprep.subr.bf16.mxu0 0
      %4611 = vmatpush1.bf16.msra.mxu0 0
      %4612 = vmatprep.subr.bf16.mxu0 0
      %4613 = vmatpush1.bf16.msra.mxu0 0
      %4614 = vmatprep.subr.bf16.mxu0 0
      %4615 = vmatpush1.bf16.msra.mxu0 0
      %4616 = vmatprep.subr.bf16.mxu0 0
      %4617 = vmatpush1.bf16.msra.mxu0 0
      %4618 = vmatprep.subr.bf16.mxu0 0
      %4619 = vmatpush1.bf16.msra.mxu0 0
      %4620 = vmatprep.subr.bf16.mxu0 0
      %4621 = vmatpush1.bf16.msra.mxu0 0
      %4622 = vmatprep.subr.bf16.mxu0 0
      %4623 = vmatpush1.bf16.msra.mxu0 0
      %4624 = vmatprep.mubr.bf16.mxu0 0
      %4625 = vmatmul.mubr.bf16.gmra.mrb[0].mxu0 %v4590
      %v4626 = vpop.f32.mrb[0].mxu0
      %v4627 = vadd.f32 0.0, %v4626
      %v4628 = vpop.f32.mrb[0].mxu0
      %v4629 = vpop.f32.mrb[0].mxu0
      %v4630 = vadd.f32 0.0, %v4629
      %v4631 = vpop.f32.mrb[0].mxu0
      %4632 = vdwg.mxu0
      %v4634 = vsel %vm2117, %v3501, 0
      %4636 = vmatprep.subr.bf16.mxu0 0
      %4637 = vmatpush1.bf16.msra.mxu0 %v3501
      %4638 = vmatprep.subr.bf16.mxu0 0
      %4639 = vmatpush1.bf16.msra.mxu0 0
      %4640 = vmatprep.subr.bf16.mxu0 0
      %4641 = vmatpush1.bf16.msra.mxu0 0
      %4642 = vmatprep.subr.bf16.mxu0 0
      %4643 = vmatpush1.bf16.msra.mxu0 0
      %4644 = vmatprep.subr.bf16.mxu0 0
      %4645 = vmatpush1.bf16.msra.mxu0 0
      %4646 = vmatprep.subr.bf16.mxu0 0
      %4647 = vmatpush1.bf16.msra.mxu0 0
      %4648 = vmatprep.subr.bf16.mxu0 0
      %4649 = vmatpush1.bf16.msra.mxu0 0
      %4650 = vmatprep.subr.bf16.mxu0 0
      %4651 = vmatpush1.bf16.msra.mxu0 0
      %4652 = vmatprep.subr.bf16.mxu0 0
      %4653 = vmatpush1.bf16.msra.mxu0 0
      %4654 = vmatprep.subr.bf16.mxu0 0
      %4655 = vmatpush1.bf16.msra.mxu0 0
      %4656 = vmatprep.subr.bf16.mxu0 0
      %4657 = vmatpush1.bf16.msra.mxu0 0
      %4658 = vmatprep.subr.bf16.mxu0 0
      %4659 = vmatpush1.bf16.msra.mxu0 0
      %4660 = vmatprep.subr.bf16.mxu0 0
      %4661 = vmatpush1.bf16.msra.mxu0 0
      %4662 = vmatprep.subr.bf16.mxu0 0
      %4663 = vmatpush1.bf16.msra.mxu0 0
      %4664 = vmatprep.subr.bf16.mxu0 0
      %4665 = vmatpush1.bf16.msra.mxu0 0
      %4666 = vmatprep.subr.bf16.mxu0 0
      %4667 = vmatpush1.bf16.msra.mxu0 0
      %4668 = vmatprep.mubr.bf16.mxu0 0
      %4669 = vmatmul.mubr.bf16.gmra.mrb[0].mxu0 %v4634
      %v4670 = vpop.f32.mrb[0].mxu0
      %v4671 = vadd.f32 0.0, %v4670
      %v4672 = vpop.f32.mrb[0].mxu0
      %v4673 = vpop.f32.mrb[0].mxu0
      %v4674 = vadd.f32 0.0, %v4673
      %v4675 = vpop.f32.mrb[0].mxu0
      %4676 = vdwg.mxu0
      %v4678 = vsel %vm2117, %v3502, 0
      %4680 = vmatprep.subr.bf16.mxu0 0
      %4681 = vmatpush1.bf16.msra.mxu0 %v3502
      %4682 = vmatprep.subr.bf16.mxu0 0
      %4683 = vmatpush1.bf16.msra.mxu0 0
      %4684 = vmatprep.subr.bf16.mxu0 0
      %4685 = vmatpush1.bf16.msra.mxu0 0
      %4686 = vmatprep.subr.bf16.mxu0 0
      %4687 = vmatpush1.bf16.msra.mxu0 0
      %4688 = vmatprep.subr.bf16.mxu0 0
      %4689 = vmatpush1.bf16.msra.mxu0 0
      %4690 = vmatprep.subr.bf16.mxu0 0
      %4691 = vmatpush1.bf16.msra.mxu0 0
      %4692 = vmatprep.subr.bf16.mxu0 0
      %4693 = vmatpush1.bf16.msra.mxu0 0
      %4694 = vmatprep.subr.bf16.mxu0 0
      %4695 = vmatpush1.bf16.msra.mxu0 0
      %4696 = vmatprep.subr.bf16.mxu0 0
      %4697 = vmatpush1.bf16.msra.mxu0 0
      %4698 = vmatprep.subr.bf16.mxu0 0
      %4699 = vmatpush1.bf16.msra.mxu0 0
      %4700 = vmatprep.subr.bf16.mxu0 0
      %4701 = vmatpush1.bf16.msra.mxu0 0
      %4702 = vmatprep.subr.bf16.mxu0 0
      %4703 = vmatpush1.bf16.msra.mxu0 0
      %4704 = vmatprep.subr.bf16.mxu0 0
      %4705 = vmatpush1.bf16.msra.mxu0 0
      %4706 = vmatprep.subr.bf16.mxu0 0
      %4707 = vmatpush1.bf16.msra.mxu0 0
      %4708 = vmatprep.subr.bf16.mxu0 0
      %4709 = vmatpush1.bf16.msra.mxu0 0
      %4710 = vmatprep.subr.bf16.mxu0 0
      %4711 = vmatpush1.bf16.msra.mxu0 0
      %4712 = vmatprep.mubr.bf16.mxu0 0
      %4713 = vmatmul.mubr.bf16.gmra.mrb[0].mxu0 %v4678
      %v4714 = vpop.f32.mrb[0].mxu0
      %v4715 = vadd.f32 0.0, %v4714
      %v4716 = vpop.f32.mrb[0].mxu0
      %v4717 = vpop.f32.mrb[0].mxu0
      %v4718 = vadd.f32 0.0, %v4717
      %v4719 = vpop.f32.mrb[0].mxu0
      %4720 = vdwg.mxu0
      %v4722 = vsel %vm2117, %v3503, 0
      %4724 = vmatprep.subr.bf16.mxu0 0
      %4725 = vmatpush1.bf16.msra.mxu0 %v3503
      %4726 = vmatprep.subr.bf16.mxu0 0
      %4727 = vmatpush1.bf16.msra.mxu0 0
      %4728 = vmatprep.subr.bf16.mxu0 0
      %4729 = vmatpush1.bf16.msra.mxu0 0
      %4730 = vmatprep.subr.bf16.mxu0 0
      %4731 = vmatpush1.bf16.msra.mxu0 0
      %4732 = vmatprep.subr.bf16.mxu0 0
      %4733 = vmatpush1.bf16.msra.mxu0 0
      %4734 = vmatprep.subr.bf16.mxu0 0
      %4735 = vmatpush1.bf16.msra.mxu0 0
      %4736 = vmatprep.subr.bf16.mxu0 0
      %4737 = vmatpush1.bf16.msra.mxu0 0
      %4738 = vmatprep.subr.bf16.mxu0 0
      %4739 = vmatpush1.bf16.msra.mxu0 0
      %4740 = vmatprep.subr.bf16.mxu0 0
      %4741 = vmatpush1.bf16.msra.mxu0 0
      %4742 = vmatprep.subr.bf16.mxu0 0
      %4743 = vmatpush1.bf16.msra.mxu0 0
      %4744 = vmatprep.subr.bf16.mxu0 0
      %4745 = vmatpush1.bf16.msra.mxu0 0
      %4746 = vmatprep.subr.bf16.mxu0 0
      %4747 = vmatpush1.bf16.msra.mxu0 0
      %4748 = vmatprep.subr.bf16.mxu0 0
      %4749 = vmatpush1.bf16.msra.mxu0 0
      %4750 = vmatprep.subr.bf16.mxu0 0
      %4751 = vmatpush1.bf16.msra.mxu0 0
      %4752 = vmatprep.subr.bf16.mxu0 0
      %4753 = vmatpush1.bf16.msra.mxu0 0
      %4754 = vmatprep.subr.bf16.mxu0 0
      %4755 = vmatpush1.bf16.msra.mxu0 0
      %4756 = vmatprep.mubr.bf16.mxu0 0
      %4757 = vmatmul.mubr.bf16.gmra.mrb[0].mxu0 %v4722
      %v4758 = vpop.f32.mrb[0].mxu0
      %v4759 = vadd.f32 0.0, %v4758
      %v4760 = vpop.f32.mrb[0].mxu0
      %v4761 = vpop.f32.mrb[0].mxu0
      %v4762 = vadd.f32 0.0, %v4761
      %v4763 = vpop.f32.mrb[0].mxu0
      %4764 = vdwg.mxu0
      %v4766 = vsel %vm2117, %v3504, 0
      %4768 = vmatprep.subr.bf16.mxu0 0
      %4769 = vmatpush1.bf16.msra.mxu0 %v3504
      %4770 = vmatprep.subr.bf16.mxu0 0
      %4771 = vmatpush1.bf16.msra.mxu0 0
      %4772 = vmatprep.subr.bf16.mxu0 0
      %4773 = vmatpush1.bf16.msra.mxu0 0
      %4774 = vmatprep.subr.bf16.mxu0 0
      %4775 = vmatpush1.bf16.msra.mxu0 0
      %4776 = vmatprep.subr.bf16.mxu0 0
      %4777 = vmatpush1.bf16.msra.mxu0 0
      %4778 = vmatprep.subr.bf16.mxu0 0
      %4779 = vmatpush1.bf16.msra.mxu0 0
      %4780 = vmatprep.subr.bf16.mxu0 0
      %4781 = vmatpush1.bf16.msra.mxu0 0
      %4782 = vmatprep.subr.bf16.mxu0 0
      %4783 = vmatpush1.bf16.msra.mxu0 0
      %4784 = vmatprep.subr.bf16.mxu0 0
      %4785 = vmatpush1.bf16.msra.mxu0 0
      %4786 = vmatprep.subr.bf16.mxu0 0
      %4787 = vmatpush1.bf16.msra.mxu0 0
      %4788 = vmatprep.subr.bf16.mxu0 0
      %4789 = vmatpush1.bf16.msra.mxu0 0
      %4790 = vmatprep.subr.bf16.mxu0 0
      %4791 = vmatpush1.bf16.msra.mxu0 0
      %4792 = vmatprep.subr.bf16.mxu0 0
      %4793 = vmatpush1.bf16.msra.mxu0 0
      %4794 = vmatprep.subr.bf16.mxu0 0
      %4795 = vmatpush1.bf16.msra.mxu0 0
      %4796 = vmatprep.subr.bf16.mxu0 0
      %4797 = vmatpush1.bf16.msra.mxu0 0
      %4798 = vmatprep.subr.bf16.mxu0 0
      %4799 = vmatpush1.bf16.msra.mxu0 0
      %4800 = vmatprep.mubr.bf16.mxu0 0
      %4801 = vmatmul.mubr.bf16.gmra.mrb[0].mxu0 %v4766
      %v4802 = vpop.f32.mrb[0].mxu0
      %v4803 = vadd.f32 0.0, %v4802
      %v4804 = vpop.f32.mrb[0].mxu0
      %v4805 = vpop.f32.mrb[0].mxu0
      %v4806 = vadd.f32 0.0, %v4805
      %v4807 = vpop.f32.mrb[0].mxu0
      %4808 = vdwg.mxu0
      %v4810 = vsel %vm2117, %v3505, 0
      %4812 = vmatprep.subr.bf16.mxu0 0
      %4813 = vmatpush1.bf16.msra.mxu0 %v3505
      %4814 = vmatprep.subr.bf16.mxu0 0
      %4815 = vmatpush1.bf16.msra.mxu0 0
      %4816 = vmatprep.subr.bf16.mxu0 0
      %4817 = vmatpush1.bf16.msra.mxu0 0
      %4818 = vmatprep.subr.bf16.mxu0 0
      %4819 = vmatpush1.bf16.msra.mxu0 0
      %4820 = vmatprep.subr.bf16.mxu0 0
      %4821 = vmatpush1.bf16.msra.mxu0 0
      %4822 = vmatprep.subr.bf16.mxu0 0
      %4823 = vmatpush1.bf16.msra.mxu0 0
      %4824 = vmatprep.subr.bf16.mxu0 0
      %4825 = vmatpush1.bf16.msra.mxu0 0
      %4826 = vmatprep.subr.bf16.mxu0 0
      %4827 = vmatpush1.bf16.msra.mxu0 0
      %4828 = vmatprep.subr.bf16.mxu0 0
      %4829 = vmatpush1.bf16.msra.mxu0 0
      %4830 = vmatprep.subr.bf16.mxu0 0
      %4831 = vmatpush1.bf16.msra.mxu0 0
      %4832 = vmatprep.subr.bf16.mxu0 0
      %4833 = vmatpush1.bf16.msra.mxu0 0
      %4834 = vmatprep.subr.bf16.mxu0 0
      %4835 = vmatpush1.bf16.msra.mxu0 0
      %4836 = vmatprep.subr.bf16.mxu0 0
      %4837 = vmatpush1.bf16.msra.mxu0 0
      %4838 = vmatprep.subr.bf16.mxu0 0
      %4839 = vmatpush1.bf16.msra.mxu0 0
      %4840 = vmatprep.subr.bf16.mxu0 0
      %4841 = vmatpush1.bf16.msra.mxu0 0
      %4842 = vmatprep.subr.bf16.mxu0 0
      %4843 = vmatpush1.bf16.msra.mxu0 0
      %4844 = vmatprep.mubr.bf16.mxu0 0
      %4845 = vmatmul.mubr.bf16.gmra.mrb[0].mxu0 %v4810
      %v4846 = vpop.f32.mrb[0].mxu0
      %v4847 = vadd.f32 0.0, %v4846
      %v4848 = vpop.f32.mrb[0].mxu0
      %v4849 = vpop.f32.mrb[0].mxu0
      %v4850 = vadd.f32 0.0, %v4849
      %v4851 = vpop.f32.mrb[0].mxu0
      %4852 = vdwg.mxu0
      %v4854 = vsel %vm2117, %v3506, 0
      %4856 = vmatprep.subr.bf16.mxu0 0
      %4857 = vmatpush1.bf16.msra.mxu0 %v3506
      %4858 = vmatprep.subr.bf16.mxu0 0
      %4859 = vmatpush1.bf16.msra.mxu0 0
      %4860 = vmatprep.subr.bf16.mxu0 0
      %4861 = vmatpush1.bf16.msra.mxu0 0
      %4862 = vmatprep.subr.bf16.mxu0 0
      %4863 = vmatpush1.bf16.msra.mxu0 0
      %4864 = vmatprep.subr.bf16.mxu0 0
      %4865 = vmatpush1.bf16.msra.mxu0 0
      %4866 = vmatprep.subr.bf16.mxu0 0
      %4867 = vmatpush1.bf16.msra.mxu0 0
      %4868 = vmatprep.subr.bf16.mxu0 0
      %4869 = vmatpush1.bf16.msra.mxu0 0
      %4870 = vmatprep.subr.bf16.mxu0 0
      %4871 = vmatpush1.bf16.msra.mxu0 0
      %4872 = vmatprep.subr.bf16.mxu0 0
      %4873 = vmatpush1.bf16.msra.mxu0 0
      %4874 = vmatprep.subr.bf16.mxu0 0
      %4875 = vmatpush1.bf16.msra.mxu0 0
      %4876 = vmatprep.subr.bf16.mxu0 0
      %4877 = vmatpush1.bf16.msra.mxu0 0
      %4878 = vmatprep.subr.bf16.mxu0 0
      %4879 = vmatpush1.bf16.msra.mxu0 0
      %4880 = vmatprep.subr.bf16.mxu0 0
      %4881 = vmatpush1.bf16.msra.mxu0 0
      %4882 = vmatprep.subr.bf16.mxu0 0
      %4883 = vmatpush1.bf16.msra.mxu0 0
      %4884 = vmatprep.subr.bf16.mxu0 0
      %4885 = vmatpush1.bf16.msra.mxu0 0
      %4886 = vmatprep.subr.bf16.mxu0 0
      %4887 = vmatpush1.bf16.msra.mxu0 0
      %4888 = vmatprep.mubr.bf16.mxu0 0
      %4889 = vmatmul.mubr.bf16.gmra.mrb[0].mxu0 %v4854
      %v4890 = vpop.f32.mrb[0].mxu0
      %v4891 = vadd.f32 0.0, %v4890
      %v4892 = vpop.f32.mrb[0].mxu0
      %v4893 = vpop.f32.mrb[0].mxu0
      %v4894 = vadd.f32 0.0, %v4893
      %v4895 = vpop.f32.mrb[0].mxu0
      %4896 = vdwg.mxu0
      %v4898 = vsel %vm2117, %v3507, 0
      %4900 = vmatprep.subr.bf16.mxu0 0
      %4901 = vmatpush1.bf16.msra.mxu0 %v3507
      %4902 = vmatprep.subr.bf16.mxu0 0
      %4903 = vmatpush1.bf16.msra.mxu0 0
      %4904 = vmatprep.subr.bf16.mxu0 0
      %4905 = vmatpush1.bf16.msra.mxu0 0
      %4906 = vmatprep.subr.bf16.mxu0 0
      %4907 = vmatpush1.bf16.msra.mxu0 0
      %4908 = vmatprep.subr.bf16.mxu0 0
      %4909 = vmatpush1.bf16.msra.mxu0 0
      %4910 = vmatprep.subr.bf16.mxu0 0
      %4911 = vmatpush1.bf16.msra.mxu0 0
      %4912 = vmatprep.subr.bf16.mxu0 0
      %4913 = vmatpush1.bf16.msra.mxu0 0
      %4914 = vmatprep.subr.bf16.mxu0 0
      %4915 = vmatpush1.bf16.msra.mxu0 0
      %4916 = vmatprep.subr.bf16.mxu0 0
      %4917 = vmatpush1.bf16.msra.mxu0 0
      %4918 = vmatprep.subr.bf16.mxu0 0
      %4919 = vmatpush1.bf16.msra.mxu0 0
      %4920 = vmatprep.subr.bf16.mxu0 0
      %4921 = vmatpush1.bf16.msra.mxu0 0
      %4922 = vmatprep.subr.bf16.mxu0 0
      %4923 = vmatpush1.bf16.msra.mxu0 0
      %4924 = vmatprep.subr.bf16.mxu0 0
      %4925 = vmatpush1.bf16.msra.mxu0 0
      %4926 = vmatprep.subr.bf16.mxu0 0
      %4927 = vmatpush1.bf16.msra.mxu0 0
      %4928 = vmatprep.subr.bf16.mxu0 0
      %4929 = vmatpush1.bf16.msra.mxu0 0
      %4930 = vmatprep.subr.bf16.mxu0 0
      %4931 = vmatpush1.bf16.msra.mxu0 0
      %4932 = vmatprep.mubr.bf16.mxu0 0
      %4933 = vmatmul.mubr.bf16.gmra.mrb[0].mxu0 %v4898
      %v4934 = vpop.f32.mrb[0].mxu0
      %v4935 = vadd.f32 0.0, %v4934
      %v4936 = vpop.f32.mrb[0].mxu0
      %v4937 = vpop.f32.mrb[0].mxu0
      %v4938 = vadd.f32 0.0, %v4937
      %v4939 = vpop.f32.mrb[0].mxu0
      %4940 = vdwg.mxu0
      %v4942 = vsel %vm2117, %v3508, 0
      %4944 = vmatprep.subr.bf16.mxu0 0
      %4945 = vmatpush1.bf16.msra.mxu0 %v3508
      %4946 = vmatprep.subr.bf16.mxu0 0
      %4947 = vmatpush1.bf16.msra.mxu0 0
      %4948 = vmatprep.subr.bf16.mxu0 0
      %4949 = vmatpush1.bf16.msra.mxu0 0
      %4950 = vmatprep.subr.bf16.mxu0 0
      %4951 = vmatpush1.bf16.msra.mxu0 0
      %4952 = vmatprep.subr.bf16.mxu0 0
      %4953 = vmatpush1.bf16.msra.mxu0 0
      %4954 = vmatprep.subr.bf16.mxu0 0
      %4955 = vmatpush1.bf16.msra.mxu0 0
      %4956 = vmatprep.subr.bf16.mxu0 0
      %4957 = vmatpush1.bf16.msra.mxu0 0
      %4958 = vmatprep.subr.bf16.mxu0 0
      %4959 = vmatpush1.bf16.msra.mxu0 0
      %4960 = vmatprep.subr.bf16.mxu0 0
      %4961 = vmatpush1.bf16.msra.mxu0 0
      %4962 = vmatprep.subr.bf16.mxu0 0
      %4963 = vmatpush1.bf16.msra.mxu0 0
      %4964 = vmatprep.subr.bf16.mxu0 0
      %4965 = vmatpush1.bf16.msra.mxu0 0
      %4966 = vmatprep.subr.bf16.mxu0 0
      %4967 = vmatpush1.bf16.msra.mxu0 0
      %4968 = vmatprep.subr.bf16.mxu0 0
      %4969 = vmatpush1.bf16.msra.mxu0 0
      %4970 = vmatprep.subr.bf16.mxu0 0
      %4971 = vmatpush1.bf16.msra.mxu0 0
      %4972 = vmatprep.subr.bf16.mxu0 0
      %4973 = vmatpush1.bf16.msra.mxu0 0
      %4974 = vmatprep.subr.bf16.mxu0 0
      %4975 = vmatpush1.bf16.msra.mxu0 0
      %4976 = vmatprep.mubr.bf16.mxu0 0
      %4977 = vmatmul.mubr.bf16.gmra.mrb[0].mxu0 %v4942
      %v4978 = vpop.f32.mrb[0].mxu0
      %v4979 = vadd.f32 0.0, %v4978
      %v4980 = vpop.f32.mrb[0].mxu0
      %v4981 = vpop.f32.mrb[0].mxu0
      %v4982 = vadd.f32 0.0, %v4981
      %v4983 = vpop.f32.mrb[0].mxu0
      %4984 = vdwg.mxu0
      %v4985 = vpack.c.bf16 %v4498, %v4495
      %v4986 = vpack.c.bf16 %v4542, %v4539
      %v4987 = vpack.c.bf16 %v4586, %v4583
      %v4988 = vpack.c.bf16 %v4630, %v4627
      %v4989 = vpack.c.bf16 %v4674, %v4671
      %v4990 = vpack.c.bf16 %v4718, %v4715
      %v4991 = vpack.c.bf16 %v4762, %v4759
      %v4992 = vpack.c.bf16 %v4806, %v4803
      %v4993 = vpack.c.bf16 %v4850, %v4847
      %v4994 = vpack.c.bf16 %v4894, %v4891
      %v4995 = vpack.c.bf16 %v4938, %v4935
      %v4996 = vpack.c.bf16 %v4982, %v4979
      %v4997 = vpack.c.bf16 %v4434, %v4433
      %v4998 = vpack.c.bf16 %v4436, %v4435
      %v4999 = vpack.c.bf16 %v4438, %v4437
      %v5000 = vpack.c.bf16 %v4440, %v4439
      %v5001 = vpack.c.bf16 %v4442, %v4441
      %v5002 = vpack.c.bf16 %v4444, %v4443
      %v5003 = vpack.c.bf16 %v4446, %v4445
      %v5004 = vpack.c.bf16 %v4448, %v4447
      %v5005 = vpack.c.bf16 %v4450, %v4449
      %v5006 = vpack.c.bf16 %v4452, %v4451
      %v5007 = vpack.c.bf16 %v4454, %v4453
      %v5008 = vpack.c.bf16 %v4456, %v4455
      %v5010 = vunpack.c.l.b16 %v4997
      %v5011 = vunpack.c.h.b16 %v4997
      %5012 = vset.pattern.permute.xlu0 0
      %5013 = vperm.xlu0 %5012, %v5010
      %v5014 = vpop.permute.xlu0 %5013
      %5015 = vset.pattern.permute.xlu0 0
      %5016 = vperm.xlu0 %5015, %v5011
      %v5017 = vpop.permute.xlu0 %5016
      %v5018 = vlaneseq
      %v5019 = vshrl.u32 %v5018, 7
      %v5020 = vsub.s32 %v2104, %v5019
      %v5021 = vrot.slane %v5014, %v5020
      %v5022 = vlaneseq
      %v5023 = vshrl.u32 %v5022, 7
      %v5024 = vsub.s32 %v2109, %v5023
      %v5025 = vrot.slane %v5017, %v5024
      %v5026 = vsel %vm2114, %v5025, %v5021
      %v5027 = vpack.c.b16 %v5026, %v5026
      %v5029 = vsel %vm2117, %v5027, 0
      %5031 = vmatprep.subr.bf16.mxu0 0
      %5032 = vmatpush1.bf16.msra.mxu0 %v4985
      %5033 = vmatprep.subr.bf16.mxu0 0
      %5034 = vmatpush1.bf16.msra.mxu0 0
      %5035 = vmatprep.subr.bf16.mxu0 0
      %5036 = vmatpush1.bf16.msra.mxu0 0
      %5037 = vmatprep.subr.bf16.mxu0 0
      %5038 = vmatpush1.bf16.msra.mxu0 0
      %5039 = vmatprep.subr.bf16.mxu0 0
      %5040 = vmatpush1.bf16.msra.mxu0 0
      %5041 = vmatprep.subr.bf16.mxu0 0
      %5042 = vmatpush1.bf16.msra.mxu0 0
      %5043 = vmatprep.subr.bf16.mxu0 0
      %5044 = vmatpush1.bf16.msra.mxu0 0
      %5045 = vmatprep.subr.bf16.mxu0 0
      %5046 = vmatpush1.bf16.msra.mxu0 0
      %5047 = vmatprep.subr.bf16.mxu0 0
      %5048 = vmatpush1.bf16.msra.mxu0 0
      %5049 = vmatprep.subr.bf16.mxu0 0
      %5050 = vmatpush1.bf16.msra.mxu0 0
      %5051 = vmatprep.subr.bf16.mxu0 0
      %5052 = vmatpush1.bf16.msra.mxu0 0
      %5053 = vmatprep.subr.bf16.mxu0 0
      %5054 = vmatpush1.bf16.msra.mxu0 0
      %5055 = vmatprep.subr.bf16.mxu0 0
      %5056 = vmatpush1.bf16.msra.mxu0 0
      %5057 = vmatprep.subr.bf16.mxu0 0
      %5058 = vmatpush1.bf16.msra.mxu0 0
      %5059 = vmatprep.subr.bf16.mxu0 0
      %5060 = vmatpush1.bf16.msra.mxu0 0
      %5061 = vmatprep.subr.bf16.mxu0 0
      %5062 = vmatpush1.bf16.msra.mxu0 0
      %5063 = vmatprep.mubr.bf16.mxu0 0
      %5064 = vmatmul.mubr.bf16.gmra.mrb[0].mxu0 %v5029
      %v5065 = vpop.f32.mrb[0].mxu0
      %v5066 = vadd.f32 0.0, %v5065
      %v5067 = vpop.f32.mrb[0].mxu0
      %v5068 = vpop.f32.mrb[0].mxu0
      %v5069 = vpop.f32.mrb[0].mxu0
      %5070 = vdwg.mxu0
      %v5072 = vunpack.c.l.b16 %v4998
      %v5073 = vunpack.c.h.b16 %v4998
      %5074 = vset.pattern.permute.xlu0 0
      %5075 = vperm.xlu0 %5074, %v5072
      %v5076 = vpop.permute.xlu0 %5075
      %5077 = vset.pattern.permute.xlu0 0
      %5078 = vperm.xlu0 %5077, %v5073
      %v5079 = vpop.permute.xlu0 %5078
      %v5080 = vlaneseq
      %v5081 = vshrl.u32 %v5080, 7
      %v5082 = vsub.s32 %v2104, %v5081
      %v5083 = vrot.slane %v5076, %v5082
      %v5084 = vlaneseq
      %v5085 = vshrl.u32 %v5084, 7
      %v5086 = vsub.s32 %v2109, %v5085
      %v5087 = vrot.slane %v5079, %v5086
      %v5088 = vsel %vm2114, %v5087, %v5083
      %v5089 = vpack.c.b16 %v5088, %v5088
      %v5091 = vsel %vm2117, %v5089, 0
      %5093 = vmatprep.subr.bf16.mxu0 0
      %5094 = vmatpush1.bf16.msra.mxu0 %v4986
      %5095 = vmatprep.subr.bf16.mxu0 0
      %5096 = vmatpush1.bf16.msra.mxu0 0
      %5097 = vmatprep.subr.bf16.mxu0 0
      %5098 = vmatpush1.bf16.msra.mxu0 0
      %5099 = vmatprep.subr.bf16.mxu0 0
      %5100 = vmatpush1.bf16.msra.mxu0 0
      %5101 = vmatprep.subr.bf16.mxu0 0
      %5102 = vmatpush1.bf16.msra.mxu0 0
      %5103 = vmatprep.subr.bf16.mxu0 0
      %5104 = vmatpush1.bf16.msra.mxu0 0
      %5105 = vmatprep.subr.bf16.mxu0 0
      %5106 = vmatpush1.bf16.msra.mxu0 0
      %5107 = vmatprep.subr.bf16.mxu0 0
      %5108 = vmatpush1.bf16.msra.mxu0 0
      %5109 = vmatprep.subr.bf16.mxu0 0
      %5110 = vmatpush1.bf16.msra.mxu0 0
      %5111 = vmatprep.subr.bf16.mxu0 0
      %5112 = vmatpush1.bf16.msra.mxu0 0
      %5113 = vmatprep.subr.bf16.mxu0 0
      %5114 = vmatpush1.bf16.msra.mxu0 0
      %5115 = vmatprep.subr.bf16.mxu0 0
      %5116 = vmatpush1.bf16.msra.mxu0 0
      %5117 = vmatprep.subr.bf16.mxu0 0
      %5118 = vmatpush1.bf16.msra.mxu0 0
      %5119 = vmatprep.subr.bf16.mxu0 0
      %5120 = vmatpush1.bf16.msra.mxu0 0
      %5121 = vmatprep.subr.bf16.mxu0 0
      %5122 = vmatpush1.bf16.msra.mxu0 0
      %5123 = vmatprep.subr.bf16.mxu0 0
      %5124 = vmatpush1.bf16.msra.mxu0 0
      %5125 = vmatprep.mubr.bf16.mxu0 0
      %5126 = vmatmul.mubr.bf16.gmra.mrb[0].mxu0 %v5091
      %v5127 = vpop.f32.mrb[0].mxu0
      %v5128 = vadd.f32 0.0, %v5127
      %v5129 = vpop.f32.mrb[0].mxu0
      %v5130 = vpop.f32.mrb[0].mxu0
      %v5131 = vpop.f32.mrb[0].mxu0
      %5132 = vdwg.mxu0
      %v5134 = vunpack.c.l.b16 %v4999
      %v5135 = vunpack.c.h.b16 %v4999
      %5136 = vset.pattern.permute.xlu0 0
      %5137 = vperm.xlu0 %5136, %v5134
      %v5138 = vpop.permute.xlu0 %5137
      %5139 = vset.pattern.permute.xlu0 0
      %5140 = vperm.xlu0 %5139, %v5135
      %v5141 = vpop.permute.xlu0 %5140
      %v5142 = vlaneseq
      %v5143 = vshrl.u32 %v5142, 7
      %v5144 = vsub.s32 %v2104, %v5143
      %v5145 = vrot.slane %v5138, %v5144
      %v5146 = vlaneseq
      %v5147 = vshrl.u32 %v5146, 7
      %v5148 = vsub.s32 %v2109, %v5147
      %v5149 = vrot.slane %v5141, %v5148
      %v5150 = vsel %vm2114, %v5149, %v5145
      %v5151 = vpack.c.b16 %v5150, %v5150
      %v5153 = vsel %vm2117, %v5151, 0
      %5155 = vmatprep.subr.bf16.mxu0 0
      %5156 = vmatpush1.bf16.msra.mxu0 %v4987
      %5157 = vmatprep.subr.bf16.mxu0 0
      %5158 = vmatpush1.bf16.msra.mxu0 0
      %5159 = vmatprep.subr.bf16.mxu0 0
      %5160 = vmatpush1.bf16.msra.mxu0 0
      %5161 = vmatprep.subr.bf16.mxu0 0
      %5162 = vmatpush1.bf16.msra.mxu0 0
      %5163 = vmatprep.subr.bf16.mxu0 0
      %5164 = vmatpush1.bf16.msra.mxu0 0
      %5165 = vmatprep.subr.bf16.mxu0 0
      %5166 = vmatpush1.bf16.msra.mxu0 0
      %5167 = vmatprep.subr.bf16.mxu0 0
      %5168 = vmatpush1.bf16.msra.mxu0 0
      %5169 = vmatprep.subr.bf16.mxu0 0
      %5170 = vmatpush1.bf16.msra.mxu0 0
      %5171 = vmatprep.subr.bf16.mxu0 0
      %5172 = vmatpush1.bf16.msra.mxu0 0
      %5173 = vmatprep.subr.bf16.mxu0 0
      %5174 = vmatpush1.bf16.msra.mxu0 0
      %5175 = vmatprep.subr.bf16.mxu0 0
      %5176 = vmatpush1.bf16.msra.mxu0 0
      %5177 = vmatprep.subr.bf16.mxu0 0
      %5178 = vmatpush1.bf16.msra.mxu0 0
      %5179 = vmatprep.subr.bf16.mxu0 0
      %5180 = vmatpush1.bf16.msra.mxu0 0
      %5181 = vmatprep.subr.bf16.mxu0 0
      %5182 = vmatpush1.bf16.msra.mxu0 0
      %5183 = vmatprep.subr.bf16.mxu0 0
      %5184 = vmatpush1.bf16.msra.mxu0 0
      %5185 = vmatprep.subr.bf16.mxu0 0
      %5186 = vmatpush1.bf16.msra.mxu0 0
      %5187 = vmatprep.mubr.bf16.mxu0 0
      %5188 = vmatmul.mubr.bf16.gmra.mrb[0].mxu0 %v5153
      %v5189 = vpop.f32.mrb[0].mxu0
      %v5190 = vadd.f32 0.0, %v5189
      %v5191 = vpop.f32.mrb[0].mxu0
      %v5192 = vpop.f32.mrb[0].mxu0
      %v5193 = vpop.f32.mrb[0].mxu0
      %5194 = vdwg.mxu0
      %v5196 = vunpack.c.l.b16 %v5000
      %v5197 = vunpack.c.h.b16 %v5000
      %5198 = vset.pattern.permute.xlu0 0
      %5199 = vperm.xlu0 %5198, %v5196
      %v5200 = vpop.permute.xlu0 %5199
      %5201 = vset.pattern.permute.xlu0 0
      %5202 = vperm.xlu0 %5201, %v5197
      %v5203 = vpop.permute.xlu0 %5202
      %v5204 = vlaneseq
      %v5205 = vshrl.u32 %v5204, 7
      %v5206 = vsub.s32 %v2104, %v5205
      %v5207 = vrot.slane %v5200, %v5206
      %v5208 = vlaneseq
      %v5209 = vshrl.u32 %v5208, 7
      %v5210 = vsub.s32 %v2109, %v5209
      %v5211 = vrot.slane %v5203, %v5210
      %v5212 = vsel %vm2114, %v5211, %v5207
      %v5213 = vpack.c.b16 %v5212, %v5212
      %v5215 = vsel %vm2117, %v5213, 0
      %5217 = vmatprep.subr.bf16.mxu0 0
      %5218 = vmatpush1.bf16.msra.mxu0 %v4988
      %5219 = vmatprep.subr.bf16.mxu0 0
      %5220 = vmatpush1.bf16.msra.mxu0 0
      %5221 = vmatprep.subr.bf16.mxu0 0
      %5222 = vmatpush1.bf16.msra.mxu0 0
      %5223 = vmatprep.subr.bf16.mxu0 0
      %5224 = vmatpush1.bf16.msra.mxu0 0
      %5225 = vmatprep.subr.bf16.mxu0 0
      %5226 = vmatpush1.bf16.msra.mxu0 0
      %5227 = vmatprep.subr.bf16.mxu0 0
      %5228 = vmatpush1.bf16.msra.mxu0 0
      %5229 = vmatprep.subr.bf16.mxu0 0
      %5230 = vmatpush1.bf16.msra.mxu0 0
      %5231 = vmatprep.subr.bf16.mxu0 0
      %5232 = vmatpush1.bf16.msra.mxu0 0
      %5233 = vmatprep.subr.bf16.mxu0 0
      %5234 = vmatpush1.bf16.msra.mxu0 0
      %5235 = vmatprep.subr.bf16.mxu0 0
      %5236 = vmatpush1.bf16.msra.mxu0 0
      %5237 = vmatprep.subr.bf16.mxu0 0
      %5238 = vmatpush1.bf16.msra.mxu0 0
      %5239 = vmatprep.subr.bf16.mxu0 0
      %5240 = vmatpush1.bf16.msra.mxu0 0
      %5241 = vmatprep.subr.bf16.mxu0 0
      %5242 = vmatpush1.bf16.msra.mxu0 0
      %5243 = vmatprep.subr.bf16.mxu0 0
      %5244 = vmatpush1.bf16.msra.mxu0 0
      %5245 = vmatprep.subr.bf16.mxu0 0
      %5246 = vmatpush1.bf16.msra.mxu0 0
      %5247 = vmatprep.subr.bf16.mxu0 0
      %5248 = vmatpush1.bf16.msra.mxu0 0
      %5249 = vmatprep.mubr.bf16.mxu0 0
      %5250 = vmatmul.mubr.bf16.gmra.mrb[0].mxu0 %v5215
      %v5251 = vpop.f32.mrb[0].mxu0
      %v5252 = vadd.f32 0.0, %v5251
      %v5253 = vpop.f32.mrb[0].mxu0
      %v5254 = vpop.f32.mrb[0].mxu0
      %v5255 = vpop.f32.mrb[0].mxu0
      %5256 = vdwg.mxu0
      %v5258 = vunpack.c.l.b16 %v5001
      %v5259 = vunpack.c.h.b16 %v5001
      %5260 = vset.pattern.permute.xlu0 0
      %5261 = vperm.xlu0 %5260, %v5258
      %v5262 = vpop.permute.xlu0 %5261
      %5263 = vset.pattern.permute.xlu0 0
      %5264 = vperm.xlu0 %5263, %v5259
      %v5265 = vpop.permute.xlu0 %5264
      %v5266 = vlaneseq
      %v5267 = vshrl.u32 %v5266, 7
      %v5268 = vsub.s32 %v2104, %v5267
      %v5269 = vrot.slane %v5262, %v5268
      %v5270 = vlaneseq
      %v5271 = vshrl.u32 %v5270, 7
      %v5272 = vsub.s32 %v2109, %v5271
      %v5273 = vrot.slane %v5265, %v5272
      %v5274 = vsel %vm2114, %v5273, %v5269
      %v5275 = vpack.c.b16 %v5274, %v5274
      %v5277 = vsel %vm2117, %v5275, 0
      %5279 = vmatprep.subr.bf16.mxu0 0
      %5280 = vmatpush1.bf16.msra.mxu0 %v4989
      %5281 = vmatprep.subr.bf16.mxu0 0
      %5282 = vmatpush1.bf16.msra.mxu0 0
      %5283 = vmatprep.subr.bf16.mxu0 0
      %5284 = vmatpush1.bf16.msra.mxu0 0
      %5285 = vmatprep.subr.bf16.mxu0 0
      %5286 = vmatpush1.bf16.msra.mxu0 0
      %5287 = vmatprep.subr.bf16.mxu0 0
      %5288 = vmatpush1.bf16.msra.mxu0 0
      %5289 = vmatprep.subr.bf16.mxu0 0
      %5290 = vmatpush1.bf16.msra.mxu0 0
      %5291 = vmatprep.subr.bf16.mxu0 0
      %5292 = vmatpush1.bf16.msra.mxu0 0
      %5293 = vmatprep.subr.bf16.mxu0 0
      %5294 = vmatpush1.bf16.msra.mxu0 0
      %5295 = vmatprep.subr.bf16.mxu0 0
      %5296 = vmatpush1.bf16.msra.mxu0 0
      %5297 = vmatprep.subr.bf16.mxu0 0
      %5298 = vmatpush1.bf16.msra.mxu0 0
      %5299 = vmatprep.subr.bf16.mxu0 0
      %5300 = vmatpush1.bf16.msra.mxu0 0
      %5301 = vmatprep.subr.bf16.mxu0 0
      %5302 = vmatpush1.bf16.msra.mxu0 0
      %5303 = vmatprep.subr.bf16.mxu0 0
      %5304 = vmatpush1.bf16.msra.mxu0 0
      %5305 = vmatprep.subr.bf16.mxu0 0
      %5306 = vmatpush1.bf16.msra.mxu0 0
      %5307 = vmatprep.subr.bf16.mxu0 0
      %5308 = vmatpush1.bf16.msra.mxu0 0
      %5309 = vmatprep.subr.bf16.mxu0 0
      %5310 = vmatpush1.bf16.msra.mxu0 0
      %5311 = vmatprep.mubr.bf16.mxu0 0
      %5312 = vmatmul.mubr.bf16.gmra.mrb[0].mxu0 %v5277
      %v5313 = vpop.f32.mrb[0].mxu0
      %v5314 = vadd.f32 0.0, %v5313
      %v5315 = vpop.f32.mrb[0].mxu0
      %v5316 = vpop.f32.mrb[0].mxu0
      %v5317 = vpop.f32.mrb[0].mxu0
      %5318 = vdwg.mxu0
      %v5320 = vunpack.c.l.b16 %v5002
      %v5321 = vunpack.c.h.b16 %v5002
      %5322 = vset.pattern.permute.xlu0 0
      %5323 = vperm.xlu0 %5322, %v5320
      %v5324 = vpop.permute.xlu0 %5323
      %5325 = vset.pattern.permute.xlu0 0
      %5326 = vperm.xlu0 %5325, %v5321
      %v5327 = vpop.permute.xlu0 %5326
      %v5328 = vlaneseq
      %v5329 = vshrl.u32 %v5328, 7
      %v5330 = vsub.s32 %v2104, %v5329
      %v5331 = vrot.slane %v5324, %v5330
      %v5332 = vlaneseq
      %v5333 = vshrl.u32 %v5332, 7
      %v5334 = vsub.s32 %v2109, %v5333
      %v5335 = vrot.slane %v5327, %v5334
      %v5336 = vsel %vm2114, %v5335, %v5331
      %v5337 = vpack.c.b16 %v5336, %v5336
      %v5339 = vsel %vm2117, %v5337, 0
      %5341 = vmatprep.subr.bf16.mxu0 0
      %5342 = vmatpush1.bf16.msra.mxu0 %v4990
      %5343 = vmatprep.subr.bf16.mxu0 0
      %5344 = vmatpush1.bf16.msra.mxu0 0
      %5345 = vmatprep.subr.bf16.mxu0 0
      %5346 = vmatpush1.bf16.msra.mxu0 0
      %5347 = vmatprep.subr.bf16.mxu0 0
      %5348 = vmatpush1.bf16.msra.mxu0 0
      %5349 = vmatprep.subr.bf16.mxu0 0
      %5350 = vmatpush1.bf16.msra.mxu0 0
      %5351 = vmatprep.subr.bf16.mxu0 0
      %5352 = vmatpush1.bf16.msra.mxu0 0
      %5353 = vmatprep.subr.bf16.mxu0 0
      %5354 = vmatpush1.bf16.msra.mxu0 0
      %5355 = vmatprep.subr.bf16.mxu0 0
      %5356 = vmatpush1.bf16.msra.mxu0 0
      %5357 = vmatprep.subr.bf16.mxu0 0
      %5358 = vmatpush1.bf16.msra.mxu0 0
      %5359 = vmatprep.subr.bf16.mxu0 0
      %5360 = vmatpush1.bf16.msra.mxu0 0
      %5361 = vmatprep.subr.bf16.mxu0 0
      %5362 = vmatpush1.bf16.msra.mxu0 0
      %5363 = vmatprep.subr.bf16.mxu0 0
      %5364 = vmatpush1.bf16.msra.mxu0 0
      %5365 = vmatprep.subr.bf16.mxu0 0
      %5366 = vmatpush1.bf16.msra.mxu0 0
      %5367 = vmatprep.subr.bf16.mxu0 0
      %5368 = vmatpush1.bf16.msra.mxu0 0
      %5369 = vmatprep.subr.bf16.mxu0 0
      %5370 = vmatpush1.bf16.msra.mxu0 0
      %5371 = vmatprep.subr.bf16.mxu0 0
      %5372 = vmatpush1.bf16.msra.mxu0 0
      %5373 = vmatprep.mubr.bf16.mxu0 0
      %5374 = vmatmul.mubr.bf16.gmra.mrb[0].mxu0 %v5339
      %v5375 = vpop.f32.mrb[0].mxu0
      %v5376 = vadd.f32 0.0, %v5375
      %v5377 = vpop.f32.mrb[0].mxu0
      %v5378 = vpop.f32.mrb[0].mxu0
      %v5379 = vpop.f32.mrb[0].mxu0
      %5380 = vdwg.mxu0
      %v5382 = vunpack.c.l.b16 %v5003
      %v5383 = vunpack.c.h.b16 %v5003
      %5384 = vset.pattern.permute.xlu0 0
      %5385 = vperm.xlu0 %5384, %v5382
      %v5386 = vpop.permute.xlu0 %5385
      %5387 = vset.pattern.permute.xlu0 0
      %5388 = vperm.xlu0 %5387, %v5383
      %v5389 = vpop.permute.xlu0 %5388
      %v5390 = vlaneseq
      %v5391 = vshrl.u32 %v5390, 7
      %v5392 = vsub.s32 %v2104, %v5391
      %v5393 = vrot.slane %v5386, %v5392
      %v5394 = vlaneseq
      %v5395 = vshrl.u32 %v5394, 7
      %v5396 = vsub.s32 %v2109, %v5395
      %v5397 = vrot.slane %v5389, %v5396
      %v5398 = vsel %vm2114, %v5397, %v5393
      %v5399 = vpack.c.b16 %v5398, %v5398
      %v5401 = vsel %vm2117, %v5399, 0
      %5403 = vmatprep.subr.bf16.mxu0 0
      %5404 = vmatpush1.bf16.msra.mxu0 %v4991
      %5405 = vmatprep.subr.bf16.mxu0 0
      %5406 = vmatpush1.bf16.msra.mxu0 0
      %5407 = vmatprep.subr.bf16.mxu0 0
      %5408 = vmatpush1.bf16.msra.mxu0 0
      %5409 = vmatprep.subr.bf16.mxu0 0
      %5410 = vmatpush1.bf16.msra.mxu0 0
      %5411 = vmatprep.subr.bf16.mxu0 0
      %5412 = vmatpush1.bf16.msra.mxu0 0
      %5413 = vmatprep.subr.bf16.mxu0 0
      %5414 = vmatpush1.bf16.msra.mxu0 0
      %5415 = vmatprep.subr.bf16.mxu0 0
      %5416 = vmatpush1.bf16.msra.mxu0 0
      %5417 = vmatprep.subr.bf16.mxu0 0
      %5418 = vmatpush1.bf16.msra.mxu0 0
      %5419 = vmatprep.subr.bf16.mxu0 0
      %5420 = vmatpush1.bf16.msra.mxu0 0
      %5421 = vmatprep.subr.bf16.mxu0 0
      %5422 = vmatpush1.bf16.msra.mxu0 0
      %5423 = vmatprep.subr.bf16.mxu0 0
      %5424 = vmatpush1.bf16.msra.mxu0 0
      %5425 = vmatprep.subr.bf16.mxu0 0
      %5426 = vmatpush1.bf16.msra.mxu0 0
      %5427 = vmatprep.subr.bf16.mxu0 0
      %5428 = vmatpush1.bf16.msra.mxu0 0
      %5429 = vmatprep.subr.bf16.mxu0 0
      %5430 = vmatpush1.bf16.msra.mxu0 0
      %5431 = vmatprep.subr.bf16.mxu0 0
      %5432 = vmatpush1.bf16.msra.mxu0 0
      %5433 = vmatprep.subr.bf16.mxu0 0
      %5434 = vmatpush1.bf16.msra.mxu0 0
      %5435 = vmatprep.mubr.bf16.mxu0 0
      %5436 = vmatmul.mubr.bf16.gmra.mrb[0].mxu0 %v5401
      %v5437 = vpop.f32.mrb[0].mxu0
      %v5438 = vadd.f32 0.0, %v5437
      %v5439 = vpop.f32.mrb[0].mxu0
      %v5440 = vpop.f32.mrb[0].mxu0
      %v5441 = vpop.f32.mrb[0].mxu0
      %5442 = vdwg.mxu0
      %v5444 = vunpack.c.l.b16 %v5004
      %v5445 = vunpack.c.h.b16 %v5004
      %5446 = vset.pattern.permute.xlu0 0
      %5447 = vperm.xlu0 %5446, %v5444
      %v5448 = vpop.permute.xlu0 %5447
      %5449 = vset.pattern.permute.xlu0 0
      %5450 = vperm.xlu0 %5449, %v5445
      %v5451 = vpop.permute.xlu0 %5450
      %v5452 = vlaneseq
      %v5453 = vshrl.u32 %v5452, 7
      %v5454 = vsub.s32 %v2104, %v5453
      %v5455 = vrot.slane %v5448, %v5454
      %v5456 = vlaneseq
      %v5457 = vshrl.u32 %v5456, 7
      %v5458 = vsub.s32 %v2109, %v5457
      %v5459 = vrot.slane %v5451, %v5458
      %v5460 = vsel %vm2114, %v5459, %v5455
      %v5461 = vpack.c.b16 %v5460, %v5460
      %v5463 = vsel %vm2117, %v5461, 0
      %5465 = vmatprep.subr.bf16.mxu0 0
      %5466 = vmatpush1.bf16.msra.mxu0 %v4992
      %5467 = vmatprep.subr.bf16.mxu0 0
      %5468 = vmatpush1.bf16.msra.mxu0 0
      %5469 = vmatprep.subr.bf16.mxu0 0
      %5470 = vmatpush1.bf16.msra.mxu0 0
      %5471 = vmatprep.subr.bf16.mxu0 0
      %5472 = vmatpush1.bf16.msra.mxu0 0
      %5473 = vmatprep.subr.bf16.mxu0 0
      %5474 = vmatpush1.bf16.msra.mxu0 0
      %5475 = vmatprep.subr.bf16.mxu0 0
      %5476 = vmatpush1.bf16.msra.mxu0 0
      %5477 = vmatprep.subr.bf16.mxu0 0
      %5478 = vmatpush1.bf16.msra.mxu0 0
      %5479 = vmatprep.subr.bf16.mxu0 0
      %5480 = vmatpush1.bf16.msra.mxu0 0
      %5481 = vmatprep.subr.bf16.mxu0 0
      %5482 = vmatpush1.bf16.msra.mxu0 0
      %5483 = vmatprep.subr.bf16.mxu0 0
      %5484 = vmatpush1.bf16.msra.mxu0 0
      %5485 = vmatprep.subr.bf16.mxu0 0
      %5486 = vmatpush1.bf16.msra.mxu0 0
      %5487 = vmatprep.subr.bf16.mxu0 0
      %5488 = vmatpush1.bf16.msra.mxu0 0
      %5489 = vmatprep.subr.bf16.mxu0 0
      %5490 = vmatpush1.bf16.msra.mxu0 0
      %5491 = vmatprep.subr.bf16.mxu0 0
      %5492 = vmatpush1.bf16.msra.mxu0 0
      %5493 = vmatprep.subr.bf16.mxu0 0
      %5494 = vmatpush1.bf16.msra.mxu0 0
      %5495 = vmatprep.subr.bf16.mxu0 0
      %5496 = vmatpush1.bf16.msra.mxu0 0
      %5497 = vmatprep.mubr.bf16.mxu0 0
      %5498 = vmatmul.mubr.bf16.gmra.mrb[0].mxu0 %v5463
      %v5499 = vpop.f32.mrb[0].mxu0
      %v5500 = vadd.f32 0.0, %v5499
      %v5501 = vpop.f32.mrb[0].mxu0
      %v5502 = vpop.f32.mrb[0].mxu0
      %v5503 = vpop.f32.mrb[0].mxu0
      %5504 = vdwg.mxu0
      %v5506 = vunpack.c.l.b16 %v5005
      %v5507 = vunpack.c.h.b16 %v5005
      %5508 = vset.pattern.permute.xlu0 0
      %5509 = vperm.xlu0 %5508, %v5506
      %v5510 = vpop.permute.xlu0 %5509
      %5511 = vset.pattern.permute.xlu0 0
      %5512 = vperm.xlu0 %5511, %v5507
      %v5513 = vpop.permute.xlu0 %5512
      %v5514 = vlaneseq
      %v5515 = vshrl.u32 %v5514, 7
      %v5516 = vsub.s32 %v2104, %v5515
      %v5517 = vrot.slane %v5510, %v5516
      %v5518 = vlaneseq
      %v5519 = vshrl.u32 %v5518, 7
      %v5520 = vsub.s32 %v2109, %v5519
      %v5521 = vrot.slane %v5513, %v5520
      %v5522 = vsel %vm2114, %v5521, %v5517
      %v5523 = vpack.c.b16 %v5522, %v5522
      %v5525 = vsel %vm2117, %v5523, 0
      %5527 = vmatprep.subr.bf16.mxu0 0
      %5528 = vmatpush1.bf16.msra.mxu0 %v4993
      %5529 = vmatprep.subr.bf16.mxu0 0
      %5530 = vmatpush1.bf16.msra.mxu0 0
      %5531 = vmatprep.subr.bf16.mxu0 0
      %5532 = vmatpush1.bf16.msra.mxu0 0
      %5533 = vmatprep.subr.bf16.mxu0 0
      %5534 = vmatpush1.bf16.msra.mxu0 0
      %5535 = vmatprep.subr.bf16.mxu0 0
      %5536 = vmatpush1.bf16.msra.mxu0 0
      %5537 = vmatprep.subr.bf16.mxu0 0
      %5538 = vmatpush1.bf16.msra.mxu0 0
      %5539 = vmatprep.subr.bf16.mxu0 0
      %5540 = vmatpush1.bf16.msra.mxu0 0
      %5541 = vmatprep.subr.bf16.mxu0 0
      %5542 = vmatpush1.bf16.msra.mxu0 0
      %5543 = vmatprep.subr.bf16.mxu0 0
      %5544 = vmatpush1.bf16.msra.mxu0 0
      %5545 = vmatprep.subr.bf16.mxu0 0
      %5546 = vmatpush1.bf16.msra.mxu0 0
      %5547 = vmatprep.subr.bf16.mxu0 0
      %5548 = vmatpush1.bf16.msra.mxu0 0
      %5549 = vmatprep.subr.bf16.mxu0 0
      %5550 = vmatpush1.bf16.msra.mxu0 0
      %5551 = vmatprep.subr.bf16.mxu0 0
      %5552 = vmatpush1.bf16.msra.mxu0 0
      %5553 = vmatprep.subr.bf16.mxu0 0
      %5554 = vmatpush1.bf16.msra.mxu0 0
      %5555 = vmatprep.subr.bf16.mxu0 0
      %5556 = vmatpush1.bf16.msra.mxu0 0
      %5557 = vmatprep.subr.bf16.mxu0 0
      %5558 = vmatpush1.bf16.msra.mxu0 0
      %5559 = vmatprep.mubr.bf16.mxu0 0
      %5560 = vmatmul.mubr.bf16.gmra.mrb[0].mxu0 %v5525
      %v5561 = vpop.f32.mrb[0].mxu0
      %v5562 = vadd.f32 0.0, %v5561
      %v5563 = vpop.f32.mrb[0].mxu0
      %v5564 = vpop.f32.mrb[0].mxu0
      %v5565 = vpop.f32.mrb[0].mxu0
      %5566 = vdwg.mxu0
      %v5568 = vunpack.c.l.b16 %v5006
      %v5569 = vunpack.c.h.b16 %v5006
      %5570 = vset.pattern.permute.xlu0 0
      %5571 = vperm.xlu0 %5570, %v5568
      %v5572 = vpop.permute.xlu0 %5571
      %5573 = vset.pattern.permute.xlu0 0
      %5574 = vperm.xlu0 %5573, %v5569
      %v5575 = vpop.permute.xlu0 %5574
      %v5576 = vlaneseq
      %v5577 = vshrl.u32 %v5576, 7
      %v5578 = vsub.s32 %v2104, %v5577
      %v5579 = vrot.slane %v5572, %v5578
      %v5580 = vlaneseq
      %v5581 = vshrl.u32 %v5580, 7
      %v5582 = vsub.s32 %v2109, %v5581
      %v5583 = vrot.slane %v5575, %v5582
      %v5584 = vsel %vm2114, %v5583, %v5579
      %v5585 = vpack.c.b16 %v5584, %v5584
      %v5587 = vsel %vm2117, %v5585, 0
      %5589 = vmatprep.subr.bf16.mxu0 0
      %5590 = vmatpush1.bf16.msra.mxu0 %v4994
      %5591 = vmatprep.subr.bf16.mxu0 0
      %5592 = vmatpush1.bf16.msra.mxu0 0
      %5593 = vmatprep.subr.bf16.mxu0 0
      %5594 = vmatpush1.bf16.msra.mxu0 0
      %5595 = vmatprep.subr.bf16.mxu0 0
      %5596 = vmatpush1.bf16.msra.mxu0 0
      %5597 = vmatprep.subr.bf16.mxu0 0
      %5598 = vmatpush1.bf16.msra.mxu0 0
      %5599 = vmatprep.subr.bf16.mxu0 0
      %5600 = vmatpush1.bf16.msra.mxu0 0
      %5601 = vmatprep.subr.bf16.mxu0 0
      %5602 = vmatpush1.bf16.msra.mxu0 0
      %5603 = vmatprep.subr.bf16.mxu0 0
      %5604 = vmatpush1.bf16.msra.mxu0 0
      %5605 = vmatprep.subr.bf16.mxu0 0
      %5606 = vmatpush1.bf16.msra.mxu0 0
      %5607 = vmatprep.subr.bf16.mxu0 0
      %5608 = vmatpush1.bf16.msra.mxu0 0
      %5609 = vmatprep.subr.bf16.mxu0 0
      %5610 = vmatpush1.bf16.msra.mxu0 0
      %5611 = vmatprep.subr.bf16.mxu0 0
      %5612 = vmatpush1.bf16.msra.mxu0 0
      %5613 = vmatprep.subr.bf16.mxu0 0
      %5614 = vmatpush1.bf16.msra.mxu0 0
      %5615 = vmatprep.subr.bf16.mxu0 0
      %5616 = vmatpush1.bf16.msra.mxu0 0
      %5617 = vmatprep.subr.bf16.mxu0 0
      %5618 = vmatpush1.bf16.msra.mxu0 0
      %5619 = vmatprep.subr.bf16.mxu0 0
      %5620 = vmatpush1.bf16.msra.mxu0 0
      %5621 = vmatprep.mubr.bf16.mxu0 0
      %5622 = vmatmul.mubr.bf16.gmra.mrb[0].mxu0 %v5587
      %v5623 = vpop.f32.mrb[0].mxu0
      %v5624 = vadd.f32 0.0, %v5623
      %v5625 = vpop.f32.mrb[0].mxu0
      %v5626 = vpop.f32.mrb[0].mxu0
      %v5627 = vpop.f32.mrb[0].mxu0
      %5628 = vdwg.mxu0
      %v5630 = vunpack.c.l.b16 %v5007
      %v5631 = vunpack.c.h.b16 %v5007
      %5632 = vset.pattern.permute.xlu0 0
      %5633 = vperm.xlu0 %5632, %v5630
      %v5634 = vpop.permute.xlu0 %5633
      %5635 = vset.pattern.permute.xlu0 0
      %5636 = vperm.xlu0 %5635, %v5631
      %v5637 = vpop.permute.xlu0 %5636
      %v5638 = vlaneseq
      %v5639 = vshrl.u32 %v5638, 7
      %v5640 = vsub.s32 %v2104, %v5639
      %v5641 = vrot.slane %v5634, %v5640
      %v5642 = vlaneseq
      %v5643 = vshrl.u32 %v5642, 7
      %v5644 = vsub.s32 %v2109, %v5643
      %v5645 = vrot.slane %v5637, %v5644
      %v5646 = vsel %vm2114, %v5645, %v5641
      %v5647 = vpack.c.b16 %v5646, %v5646
      %v5649 = vsel %vm2117, %v5647, 0
      %5651 = vmatprep.subr.bf16.mxu0 0
      %5652 = vmatpush1.bf16.msra.mxu0 %v4995
      %5653 = vmatprep.subr.bf16.mxu0 0
      %5654 = vmatpush1.bf16.msra.mxu0 0
      %5655 = vmatprep.subr.bf16.mxu0 0
      %5656 = vmatpush1.bf16.msra.mxu0 0
      %5657 = vmatprep.subr.bf16.mxu0 0
      %5658 = vmatpush1.bf16.msra.mxu0 0
      %5659 = vmatprep.subr.bf16.mxu0 0
      %5660 = vmatpush1.bf16.msra.mxu0 0
      %5661 = vmatprep.subr.bf16.mxu0 0
      %5662 = vmatpush1.bf16.msra.mxu0 0
      %5663 = vmatprep.subr.bf16.mxu0 0
      %5664 = vmatpush1.bf16.msra.mxu0 0
      %5665 = vmatprep.subr.bf16.mxu0 0
      %5666 = vmatpush1.bf16.msra.mxu0 0
      %5667 = vmatprep.subr.bf16.mxu0 0
      %5668 = vmatpush1.bf16.msra.mxu0 0
      %5669 = vmatprep.subr.bf16.mxu0 0
      %5670 = vmatpush1.bf16.msra.mxu0 0
      %5671 = vmatprep.subr.bf16.mxu0 0
      %5672 = vmatpush1.bf16.msra.mxu0 0
      %5673 = vmatprep.subr.bf16.mxu0 0
      %5674 = vmatpush1.bf16.msra.mxu0 0
      %5675 = vmatprep.subr.bf16.mxu0 0
      %5676 = vmatpush1.bf16.msra.mxu0 0
      %5677 = vmatprep.subr.bf16.mxu0 0
      %5678 = vmatpush1.bf16.msra.mxu0 0
      %5679 = vmatprep.subr.bf16.mxu0 0
      %5680 = vmatpush1.bf16.msra.mxu0 0
      %5681 = vmatprep.subr.bf16.mxu0 0
      %5682 = vmatpush1.bf16.msra.mxu0 0
      %5683 = vmatprep.mubr.bf16.mxu0 0
      %5684 = vmatmul.mubr.bf16.gmra.mrb[0].mxu0 %v5649
      %v5685 = vpop.f32.mrb[0].mxu0
      %v5686 = vadd.f32 0.0, %v5685
      %v5687 = vpop.f32.mrb[0].mxu0
      %v5688 = vpop.f32.mrb[0].mxu0
      %v5689 = vpop.f32.mrb[0].mxu0
      %5690 = vdwg.mxu0
      %v5692 = vunpack.c.l.b16 %v5008
      %v5693 = vunpack.c.h.b16 %v5008
      %5694 = vset.pattern.permute.xlu0 0
      %5695 = vperm.xlu0 %5694, %v5692
      %v5696 = vpop.permute.xlu0 %5695
      %5697 = vset.pattern.permute.xlu0 0
      %5698 = vperm.xlu0 %5697, %v5693
      %v5699 = vpop.permute.xlu0 %5698
      %v5700 = vlaneseq
      %v5701 = vshrl.u32 %v5700, 7
      %v5702 = vsub.s32 %v2104, %v5701
      %v5703 = vrot.slane %v5696, %v5702
      %v5704 = vlaneseq
      %v5705 = vshrl.u32 %v5704, 7
      %v5706 = vsub.s32 %v2109, %v5705
      %v5707 = vrot.slane %v5699, %v5706
      %v5708 = vsel %vm2114, %v5707, %v5703
      %v5709 = vpack.c.b16 %v5708, %v5708
      %v5711 = vsel %vm2117, %v5709, 0
      %5713 = vmatprep.subr.bf16.mxu0 0
      %5714 = vmatpush1.bf16.msra.mxu0 %v4996
      %5715 = vmatprep.subr.bf16.mxu0 0
      %5716 = vmatpush1.bf16.msra.mxu0 0
      %5717 = vmatprep.subr.bf16.mxu0 0
      %5718 = vmatpush1.bf16.msra.mxu0 0
      %5719 = vmatprep.subr.bf16.mxu0 0
      %5720 = vmatpush1.bf16.msra.mxu0 0
      %5721 = vmatprep.subr.bf16.mxu0 0
      %5722 = vmatpush1.bf16.msra.mxu0 0
      %5723 = vmatprep.subr.bf16.mxu0 0
      %5724 = vmatpush1.bf16.msra.mxu0 0
      %5725 = vmatprep.subr.bf16.mxu0 0
      %5726 = vmatpush1.bf16.msra.mxu0 0
      %5727 = vmatprep.subr.bf16.mxu0 0
      %5728 = vmatpush1.bf16.msra.mxu0 0
      %5729 = vmatprep.subr.bf16.mxu0 0
      %5730 = vmatpush1.bf16.msra.mxu0 0
      %5731 = vmatprep.subr.bf16.mxu0 0
      %5732 = vmatpush1.bf16.msra.mxu0 0
      %5733 = vmatprep.subr.bf16.mxu0 0
      %5734 = vmatpush1.bf16.msra.mxu0 0
      %5735 = vmatprep.subr.bf16.mxu0 0
      %5736 = vmatpush1.bf16.msra.mxu0 0
      %5737 = vmatprep.subr.bf16.mxu0 0
      %5738 = vmatpush1.bf16.msra.mxu0 0
      %5739 = vmatprep.subr.bf16.mxu0 0
      %5740 = vmatpush1.bf16.msra.mxu0 0
      %5741 = vmatprep.subr.bf16.mxu0 0
      %5742 = vmatpush1.bf16.msra.mxu0 0
      %5743 = vmatprep.subr.bf16.mxu0 0
      %5744 = vmatpush1.bf16.msra.mxu0 0
      %5745 = vmatprep.mubr.bf16.mxu0 0
      %5746 = vmatmul.mubr.bf16.gmra.mrb[0].mxu0 %v5711
      %v5747 = vpop.f32.mrb[0].mxu0
      %v5748 = vadd.f32 0.0, %v5747
      %v5749 = vpop.f32.mrb[0].mxu0
      %v5750 = vpop.f32.mrb[0].mxu0
      %v5751 = vpop.f32.mrb[0].mxu0
      %5752 = vdwg.mxu0
      %v5765 = vlaneseq
      %v5766 = vshrl.u32 %v5765, 7
      %v5767 = vsub.s32 0, %v5766
      %v5768 = vrot.slane %v5066, %v5767
      %5770 = vbcast.lane.b32.xlu0 %v5768, 256
      %v5771 = vpop.permute.xlu0 %5770
      %s5773 = sor.u32 256, 8
      %5774 = vbcast.lane.b32.xlu0 %v5768, %s5773
      %v5775 = vpop.permute.xlu0 %5774
      %v5776 = vlaneseq
      %v5777 = vshrl.u32 %v5776, 7
      %v5778 = vsub.s32 0, %v5777
      %v5779 = vrot.slane %v5128, %v5778
      %5781 = vbcast.lane.b32.xlu0 %v5779, 256
      %v5782 = vpop.permute.xlu0 %5781
      %s5784 = sor.u32 256, 8
      %5785 = vbcast.lane.b32.xlu0 %v5779, %s5784
      %v5786 = vpop.permute.xlu0 %5785
      %v5787 = vlaneseq
      %v5788 = vshrl.u32 %v5787, 7
      %v5789 = vsub.s32 0, %v5788
      %v5790 = vrot.slane %v5190, %v5789
      %5792 = vbcast.lane.b32.xlu0 %v5790, 256
      %v5793 = vpop.permute.xlu0 %5792
      %s5795 = sor.u32 256, 8
      %5796 = vbcast.lane.b32.xlu0 %v5790, %s5795
      %v5797 = vpop.permute.xlu0 %5796
      %v5798 = vlaneseq
      %v5799 = vshrl.u32 %v5798, 7
      %v5800 = vsub.s32 0, %v5799
      %v5801 = vrot.slane %v5252, %v5800
      %5803 = vbcast.lane.b32.xlu0 %v5801, 256
      %v5804 = vpop.permute.xlu0 %5803
      %s5806 = sor.u32 256, 8
      %5807 = vbcast.lane.b32.xlu0 %v5801, %s5806
      %v5808 = vpop.permute.xlu0 %5807
      %v5809 = vlaneseq
      %v5810 = vshrl.u32 %v5809, 7
      %v5811 = vsub.s32 0, %v5810
      %v5812 = vrot.slane %v5314, %v5811
      %5814 = vbcast.lane.b32.xlu0 %v5812, 256
      %v5815 = vpop.permute.xlu0 %5814
      %s5817 = sor.u32 256, 8
      %5818 = vbcast.lane.b32.xlu0 %v5812, %s5817
      %v5819 = vpop.permute.xlu0 %5818
      %v5820 = vlaneseq
      %v5821 = vshrl.u32 %v5820, 7
      %v5822 = vsub.s32 0, %v5821
      %v5823 = vrot.slane %v5376, %v5822
      %5825 = vbcast.lane.b32.xlu0 %v5823, 256
      %v5826 = vpop.permute.xlu0 %5825
      %s5828 = sor.u32 256, 8
      %5829 = vbcast.lane.b32.xlu0 %v5823, %s5828
      %v5830 = vpop.permute.xlu0 %5829
      %v5831 = vlaneseq
      %v5832 = vshrl.u32 %v5831, 7
      %v5833 = vsub.s32 0, %v5832
      %v5834 = vrot.slane %v5438, %v5833
      %5836 = vbcast.lane.b32.xlu0 %v5834, 256
      %v5837 = vpop.permute.xlu0 %5836
      %s5839 = sor.u32 256, 8
      %5840 = vbcast.lane.b32.xlu0 %v5834, %s5839
      %v5841 = vpop.permute.xlu0 %5840
      %v5842 = vlaneseq
      %v5843 = vshrl.u32 %v5842, 7
      %v5844 = vsub.s32 0, %v5843
      %v5845 = vrot.slane %v5500, %v5844
      %5847 = vbcast.lane.b32.xlu0 %v5845, 256
      %v5848 = vpop.permute.xlu0 %5847
      %s5850 = sor.u32 256, 8
      %5851 = vbcast.lane.b32.xlu0 %v5845, %s5850
      %v5852 = vpop.permute.xlu0 %5851
      %v5853 = vlaneseq
      %v5854 = vshrl.u32 %v5853, 7
      %v5855 = vsub.s32 0, %v5854
      %v5856 = vrot.slane %v5562, %v5855
      %5858 = vbcast.lane.b32.xlu0 %v5856, 256
      %v5859 = vpop.permute.xlu0 %5858
      %s5861 = sor.u32 256, 8
      %5862 = vbcast.lane.b32.xlu0 %v5856, %s5861
      %v5863 = vpop.permute.xlu0 %5862
      %v5864 = vlaneseq
      %v5865 = vshrl.u32 %v5864, 7
      %v5866 = vsub.s32 0, %v5865
      %v5867 = vrot.slane %v5624, %v5866
      %5869 = vbcast.lane.b32.xlu0 %v5867, 256
      %v5870 = vpop.permute.xlu0 %5869
      %s5872 = sor.u32 256, 8
      %5873 = vbcast.lane.b32.xlu0 %v5867, %s5872
      %v5874 = vpop.permute.xlu0 %5873
      %v5875 = vlaneseq
      %v5876 = vshrl.u32 %v5875, 7
      %v5877 = vsub.s32 0, %v5876
      %v5878 = vrot.slane %v5686, %v5877
      %5880 = vbcast.lane.b32.xlu0 %v5878, 256
      %v5881 = vpop.permute.xlu0 %5880
      %s5883 = sor.u32 256, 8
      %5884 = vbcast.lane.b32.xlu0 %v5878, %s5883
      %v5885 = vpop.permute.xlu0 %5884
      %v5886 = vlaneseq
      %v5887 = vshrl.u32 %v5886, 7
      %v5888 = vsub.s32 0, %v5887
      %v5889 = vrot.slane %v5748, %v5888
      %5891 = vbcast.lane.b32.xlu0 %v5889, 256
      %v5892 = vpop.permute.xlu0 %5891
      %s5894 = sor.u32 256, 8
      %5895 = vbcast.lane.b32.xlu0 %v5889, %s5894
      %v5896 = vpop.permute.xlu0 %5895
      %v5921 = vadd.f32 %v4433, %v5771
      %v5922 = vadd.f32 %v4434, %v5775
      %v5923 = vadd.f32 %v4435, %v5782
      %v5924 = vadd.f32 %v4436, %v5786
      %v5925 = vadd.f32 %v4437, %v5793
      %v5926 = vadd.f32 %v4438, %v5797
      %v5927 = vadd.f32 %v4439, %v5804
      %v5928 = vadd.f32 %v4440, %v5808
      %v5929 = vadd.f32 %v4441, %v5815
      %v5930 = vadd.f32 %v4442, %v5819
      %v5931 = vadd.f32 %v4443, %v5826
      %v5932 = vadd.f32 %v4444, %v5830
      %v5933 = vadd.f32 %v4445, %v5837
      %v5934 = vadd.f32 %v4446, %v5841
      %v5935 = vadd.f32 %v4447, %v5848
      %v5936 = vadd.f32 %v4448, %v5852
      %v5937 = vadd.f32 %v4449, %v5859
      %v5938 = vadd.f32 %v4450, %v5863
      %v5939 = vadd.f32 %v4451, %v5870
      %v5940 = vadd.f32 %v4452, %v5874
      %v5941 = vadd.f32 %v4453, %v5881
      %v5942 = vadd.f32 %v4454, %v5885
      %v5943 = vadd.f32 %v4455, %v5892
      %v5944 = vadd.f32 %v4456, %v5896
      %v5946 = vsel %vm2117, %v4985, 0
      %5948 = vmatprep.subr.bf16.mxu0 0
      %5949 = vmatpush1.bf16.msra.mxu0 %v4985
      %5950 = vmatprep.subr.bf16.mxu0 0
      %5951 = vmatpush1.bf16.msra.mxu0 0
      %5952 = vmatprep.subr.bf16.mxu0 0
      %5953 = vmatpush1.bf16.msra.mxu0 0
      %5954 = vmatprep.subr.bf16.mxu0 0
      %5955 = vmatpush1.bf16.msra.mxu0 0
      %5956 = vmatprep.subr.bf16.mxu0 0
      %5957 = vmatpush1.bf16.msra.mxu0 0
      %5958 = vmatprep.subr.bf16.mxu0 0
      %5959 = vmatpush1.bf16.msra.mxu0 0
      %5960 = vmatprep.subr.bf16.mxu0 0
      %5961 = vmatpush1.bf16.msra.mxu0 0
      %5962 = vmatprep.subr.bf16.mxu0 0
      %5963 = vmatpush1.bf16.msra.mxu0 0
      %5964 = vmatprep.subr.bf16.mxu0 0
      %5965 = vmatpush1.bf16.msra.mxu0 0
      %5966 = vmatprep.subr.bf16.mxu0 0
      %5967 = vmatpush1.bf16.msra.mxu0 0
      %5968 = vmatprep.subr.bf16.mxu0 0
      %5969 = vmatpush1.bf16.msra.mxu0 0
      %5970 = vmatprep.subr.bf16.mxu0 0
      %5971 = vmatpush1.bf16.msra.mxu0 0
      %5972 = vmatprep.subr.bf16.mxu0 0
      %5973 = vmatpush1.bf16.msra.mxu0 0
      %5974 = vmatprep.subr.bf16.mxu0 0
      %5975 = vmatpush1.bf16.msra.mxu0 0
      %5976 = vmatprep.subr.bf16.mxu0 0
      %5977 = vmatpush1.bf16.msra.mxu0 0
      %5978 = vmatprep.subr.bf16.mxu0 0
      %5979 = vmatpush1.bf16.msra.mxu0 0
      %5980 = vmatprep.mubr.bf16.mxu0 0
      %5981 = vmatmul.mubr.bf16.gmra.mrb[0].mxu0 %v5946
      %v5982 = vpop.f32.mrb[0].mxu0
      %v5983 = vadd.f32 0.0, %v5982
      %v5984 = vpop.f32.mrb[0].mxu0
      %v5985 = vpop.f32.mrb[0].mxu0
      %v5986 = vadd.f32 0.0, %v5985
      %v5987 = vpop.f32.mrb[0].mxu0
      %5988 = vdwg.mxu0
      %v5990 = vsel %vm2117, %v4986, 0
      %5992 = vmatprep.subr.bf16.mxu0 0
      %5993 = vmatpush1.bf16.msra.mxu0 %v4986
      %5994 = vmatprep.subr.bf16.mxu0 0
      %5995 = vmatpush1.bf16.msra.mxu0 0
      %5996 = vmatprep.subr.bf16.mxu0 0
      %5997 = vmatpush1.bf16.msra.mxu0 0
      %5998 = vmatprep.subr.bf16.mxu0 0
      %5999 = vmatpush1.bf16.msra.mxu0 0
      %6000 = vmatprep.subr.bf16.mxu0 0
      %6001 = vmatpush1.bf16.msra.mxu0 0
      %6002 = vmatprep.subr.bf16.mxu0 0
      %6003 = vmatpush1.bf16.msra.mxu0 0
      %6004 = vmatprep.subr.bf16.mxu0 0
      %6005 = vmatpush1.bf16.msra.mxu0 0
      %6006 = vmatprep.subr.bf16.mxu0 0
      %6007 = vmatpush1.bf16.msra.mxu0 0
      %6008 = vmatprep.subr.bf16.mxu0 0
      %6009 = vmatpush1.bf16.msra.mxu0 0
      %6010 = vmatprep.subr.bf16.mxu0 0
      %6011 = vmatpush1.bf16.msra.mxu0 0
      %6012 = vmatprep.subr.bf16.mxu0 0
      %6013 = vmatpush1.bf16.msra.mxu0 0
      %6014 = vmatprep.subr.bf16.mxu0 0
      %6015 = vmatpush1.bf16.msra.mxu0 0
      %6016 = vmatprep.subr.bf16.mxu0 0
      %6017 = vmatpush1.bf16.msra.mxu0 0
      %6018 = vmatprep.subr.bf16.mxu0 0
      %6019 = vmatpush1.bf16.msra.mxu0 0
      %6020 = vmatprep.subr.bf16.mxu0 0
      %6021 = vmatpush1.bf16.msra.mxu0 0
      %6022 = vmatprep.subr.bf16.mxu0 0
      %6023 = vmatpush1.bf16.msra.mxu0 0
      %6024 = vmatprep.mubr.bf16.mxu0 0
      %6025 = vmatmul.mubr.bf16.gmra.mrb[0].mxu0 %v5990
      %v6026 = vpop.f32.mrb[0].mxu0
      %v6027 = vadd.f32 0.0, %v6026
      %v6028 = vpop.f32.mrb[0].mxu0
      %v6029 = vpop.f32.mrb[0].mxu0
      %v6030 = vadd.f32 0.0, %v6029
      %v6031 = vpop.f32.mrb[0].mxu0
      %6032 = vdwg.mxu0
      %v6034 = vsel %vm2117, %v4987, 0
      %6036 = vmatprep.subr.bf16.mxu0 0
      %6037 = vmatpush1.bf16.msra.mxu0 %v4987
      %6038 = vmatprep.subr.bf16.mxu0 0
      %6039 = vmatpush1.bf16.msra.mxu0 0
      %6040 = vmatprep.subr.bf16.mxu0 0
      %6041 = vmatpush1.bf16.msra.mxu0 0
      %6042 = vmatprep.subr.bf16.mxu0 0
      %6043 = vmatpush1.bf16.msra.mxu0 0
      %6044 = vmatprep.subr.bf16.mxu0 0
      %6045 = vmatpush1.bf16.msra.mxu0 0
      %6046 = vmatprep.subr.bf16.mxu0 0
      %6047 = vmatpush1.bf16.msra.mxu0 0
      %6048 = vmatprep.subr.bf16.mxu0 0
      %6049 = vmatpush1.bf16.msra.mxu0 0
      %6050 = vmatprep.subr.bf16.mxu0 0
      %6051 = vmatpush1.bf16.msra.mxu0 0
      %6052 = vmatprep.subr.bf16.mxu0 0
      %6053 = vmatpush1.bf16.msra.mxu0 0
      %6054 = vmatprep.subr.bf16.mxu0 0
      %6055 = vmatpush1.bf16.msra.mxu0 0
      %6056 = vmatprep.subr.bf16.mxu0 0
      %6057 = vmatpush1.bf16.msra.mxu0 0
      %6058 = vmatprep.subr.bf16.mxu0 0
      %6059 = vmatpush1.bf16.msra.mxu0 0
      %6060 = vmatprep.subr.bf16.mxu0 0
      %6061 = vmatpush1.bf16.msra.mxu0 0
      %6062 = vmatprep.subr.bf16.mxu0 0
      %6063 = vmatpush1.bf16.msra.mxu0 0
      %6064 = vmatprep.subr.bf16.mxu0 0
      %6065 = vmatpush1.bf16.msra.mxu0 0
      %6066 = vmatprep.subr.bf16.mxu0 0
      %6067 = vmatpush1.bf16.msra.mxu0 0
      %6068 = vmatprep.mubr.bf16.mxu0 0
      %6069 = vmatmul.mubr.bf16.gmra.mrb[0].mxu0 %v6034
      %v6070 = vpop.f32.mrb[0].mxu0
      %v6071 = vadd.f32 0.0, %v6070
      %v6072 = vpop.f32.mrb[0].mxu0
      %v6073 = vpop.f32.mrb[0].mxu0
      %v6074 = vadd.f32 0.0, %v6073
      %v6075 = vpop.f32.mrb[0].mxu0
      %6076 = vdwg.mxu0
      %v6078 = vsel %vm2117, %v4988, 0
      %6080 = vmatprep.subr.bf16.mxu0 0
      %6081 = vmatpush1.bf16.msra.mxu0 %v4988
      %6082 = vmatprep.subr.bf16.mxu0 0
      %6083 = vmatpush1.bf16.msra.mxu0 0
      %6084 = vmatprep.subr.bf16.mxu0 0
      %6085 = vmatpush1.bf16.msra.mxu0 0
      %6086 = vmatprep.subr.bf16.mxu0 0
      %6087 = vmatpush1.bf16.msra.mxu0 0
      %6088 = vmatprep.subr.bf16.mxu0 0
      %6089 = vmatpush1.bf16.msra.mxu0 0
      %6090 = vmatprep.subr.bf16.mxu0 0
      %6091 = vmatpush1.bf16.msra.mxu0 0
      %6092 = vmatprep.subr.bf16.mxu0 0
      %6093 = vmatpush1.bf16.msra.mxu0 0
      %6094 = vmatprep.subr.bf16.mxu0 0
      %6095 = vmatpush1.bf16.msra.mxu0 0
      %6096 = vmatprep.subr.bf16.mxu0 0
      %6097 = vmatpush1.bf16.msra.mxu0 0
      %6098 = vmatprep.subr.bf16.mxu0 0
      %6099 = vmatpush1.bf16.msra.mxu0 0
      %6100 = vmatprep.subr.bf16.mxu0 0
      %6101 = vmatpush1.bf16.msra.mxu0 0
      %6102 = vmatprep.subr.bf16.mxu0 0
      %6103 = vmatpush1.bf16.msra.mxu0 0
      %6104 = vmatprep.subr.bf16.mxu0 0
      %6105 = vmatpush1.bf16.msra.mxu0 0
      %6106 = vmatprep.subr.bf16.mxu0 0
      %6107 = vmatpush1.bf16.msra.mxu0 0
      %6108 = vmatprep.subr.bf16.mxu0 0
      %6109 = vmatpush1.bf16.msra.mxu0 0
      %6110 = vmatprep.subr.bf16.mxu0 0
      %6111 = vmatpush1.bf16.msra.mxu0 0
      %6112 = vmatprep.mubr.bf16.mxu0 0
      %6113 = vmatmul.mubr.bf16.gmra.mrb[0].mxu0 %v6078
      %v6114 = vpop.f32.mrb[0].mxu0
      %v6115 = vadd.f32 0.0, %v6114
      %v6116 = vpop.f32.mrb[0].mxu0
      %v6117 = vpop.f32.mrb[0].mxu0
      %v6118 = vadd.f32 0.0, %v6117
      %v6119 = vpop.f32.mrb[0].mxu0
      %6120 = vdwg.mxu0
      %v6122 = vsel %vm2117, %v4989, 0
      %6124 = vmatprep.subr.bf16.mxu0 0
      %6125 = vmatpush1.bf16.msra.mxu0 %v4989
      %6126 = vmatprep.subr.bf16.mxu0 0
      %6127 = vmatpush1.bf16.msra.mxu0 0
      %6128 = vmatprep.subr.bf16.mxu0 0
      %6129 = vmatpush1.bf16.msra.mxu0 0
      %6130 = vmatprep.subr.bf16.mxu0 0
      %6131 = vmatpush1.bf16.msra.mxu0 0
      %6132 = vmatprep.subr.bf16.mxu0 0
      %6133 = vmatpush1.bf16.msra.mxu0 0
      %6134 = vmatprep.subr.bf16.mxu0 0
      %6135 = vmatpush1.bf16.msra.mxu0 0
      %6136 = vmatprep.subr.bf16.mxu0 0
      %6137 = vmatpush1.bf16.msra.mxu0 0
      %6138 = vmatprep.subr.bf16.mxu0 0
      %6139 = vmatpush1.bf16.msra.mxu0 0
      %6140 = vmatprep.subr.bf16.mxu0 0
      %6141 = vmatpush1.bf16.msra.mxu0 0
      %6142 = vmatprep.subr.bf16.mxu0 0
      %6143 = vmatpush1.bf16.msra.mxu0 0
      %6144 = vmatprep.subr.bf16.mxu0 0
      %6145 = vmatpush1.bf16.msra.mxu0 0
      %6146 = vmatprep.subr.bf16.mxu0 0
      %6147 = vmatpush1.bf16.msra.mxu0 0
      %6148 = vmatprep.subr.bf16.mxu0 0
      %6149 = vmatpush1.bf16.msra.mxu0 0
      %6150 = vmatprep.subr.bf16.mxu0 0
      %6151 = vmatpush1.bf16.msra.mxu0 0
      %6152 = vmatprep.subr.bf16.mxu0 0
      %6153 = vmatpush1.bf16.msra.mxu0 0
      %6154 = vmatprep.subr.bf16.mxu0 0
      %6155 = vmatpush1.bf16.msra.mxu0 0
      %6156 = vmatprep.mubr.bf16.mxu0 0
      %6157 = vmatmul.mubr.bf16.gmra.mrb[0].mxu0 %v6122
      %v6158 = vpop.f32.mrb[0].mxu0
      %v6159 = vadd.f32 0.0, %v6158
      %v6160 = vpop.f32.mrb[0].mxu0
      %v6161 = vpop.f32.mrb[0].mxu0
      %v6162 = vadd.f32 0.0, %v6161
      %v6163 = vpop.f32.mrb[0].mxu0
      %6164 = vdwg.mxu0
      %v6166 = vsel %vm2117, %v4990, 0
      %6168 = vmatprep.subr.bf16.mxu0 0
      %6169 = vmatpush1.bf16.msra.mxu0 %v4990
      %6170 = vmatprep.subr.bf16.mxu0 0
      %6171 = vmatpush1.bf16.msra.mxu0 0
      %6172 = vmatprep.subr.bf16.mxu0 0
      %6173 = vmatpush1.bf16.msra.mxu0 0
      %6174 = vmatprep.subr.bf16.mxu0 0
      %6175 = vmatpush1.bf16.msra.mxu0 0
      %6176 = vmatprep.subr.bf16.mxu0 0
      %6177 = vmatpush1.bf16.msra.mxu0 0
      %6178 = vmatprep.subr.bf16.mxu0 0
      %6179 = vmatpush1.bf16.msra.mxu0 0
      %6180 = vmatprep.subr.bf16.mxu0 0
      %6181 = vmatpush1.bf16.msra.mxu0 0
      %6182 = vmatprep.subr.bf16.mxu0 0
      %6183 = vmatpush1.bf16.msra.mxu0 0
      %6184 = vmatprep.subr.bf16.mxu0 0
      %6185 = vmatpush1.bf16.msra.mxu0 0
      %6186 = vmatprep.subr.bf16.mxu0 0
      %6187 = vmatpush1.bf16.msra.mxu0 0
      %6188 = vmatprep.subr.bf16.mxu0 0
      %6189 = vmatpush1.bf16.msra.mxu0 0
      %6190 = vmatprep.subr.bf16.mxu0 0
      %6191 = vmatpush1.bf16.msra.mxu0 0
      %6192 = vmatprep.subr.bf16.mxu0 0
      %6193 = vmatpush1.bf16.msra.mxu0 0
      %6194 = vmatprep.subr.bf16.mxu0 0
      %6195 = vmatpush1.bf16.msra.mxu0 0
      %6196 = vmatprep.subr.bf16.mxu0 0
      %6197 = vmatpush1.bf16.msra.mxu0 0
      %6198 = vmatprep.subr.bf16.mxu0 0
      %6199 = vmatpush1.bf16.msra.mxu0 0
      %6200 = vmatprep.mubr.bf16.mxu0 0
      %6201 = vmatmul.mubr.bf16.gmra.mrb[0].mxu0 %v6166
      %v6202 = vpop.f32.mrb[0].mxu0
      %v6203 = vadd.f32 0.0, %v6202
      %v6204 = vpop.f32.mrb[0].mxu0
      %v6205 = vpop.f32.mrb[0].mxu0
      %v6206 = vadd.f32 0.0, %v6205
      %v6207 = vpop.f32.mrb[0].mxu0
      %6208 = vdwg.mxu0
      %v6210 = vsel %vm2117, %v4991, 0
      %6212 = vmatprep.subr.bf16.mxu0 0
      %6213 = vmatpush1.bf16.msra.mxu0 %v4991
      %6214 = vmatprep.subr.bf16.mxu0 0
      %6215 = vmatpush1.bf16.msra.mxu0 0
      %6216 = vmatprep.subr.bf16.mxu0 0
      %6217 = vmatpush1.bf16.msra.mxu0 0
      %6218 = vmatprep.subr.bf16.mxu0 0
      %6219 = vmatpush1.bf16.msra.mxu0 0
      %6220 = vmatprep.subr.bf16.mxu0 0
      %6221 = vmatpush1.bf16.msra.mxu0 0
      %6222 = vmatprep.subr.bf16.mxu0 0
      %6223 = vmatpush1.bf16.msra.mxu0 0
      %6224 = vmatprep.subr.bf16.mxu0 0
      %6225 = vmatpush1.bf16.msra.mxu0 0
      %6226 = vmatprep.subr.bf16.mxu0 0
      %6227 = vmatpush1.bf16.msra.mxu0 0
      %6228 = vmatprep.subr.bf16.mxu0 0
      %6229 = vmatpush1.bf16.msra.mxu0 0
      %6230 = vmatprep.subr.bf16.mxu0 0
      %6231 = vmatpush1.bf16.msra.mxu0 0
      %6232 = vmatprep.subr.bf16.mxu0 0
      %6233 = vmatpush1.bf16.msra.mxu0 0
      %6234 = vmatprep.subr.bf16.mxu0 0
      %6235 = vmatpush1.bf16.msra.mxu0 0
      %6236 = vmatprep.subr.bf16.mxu0 0
      %6237 = vmatpush1.bf16.msra.mxu0 0
      %6238 = vmatprep.subr.bf16.mxu0 0
      %6239 = vmatpush1.bf16.msra.mxu0 0
      %6240 = vmatprep.subr.bf16.mxu0 0
      %6241 = vmatpush1.bf16.msra.mxu0 0
      %6242 = vmatprep.subr.bf16.mxu0 0
      %6243 = vmatpush1.bf16.msra.mxu0 0
      %6244 = vmatprep.mubr.bf16.mxu0 0
      %6245 = vmatmul.mubr.bf16.gmra.mrb[0].mxu0 %v6210
      %v6246 = vpop.f32.mrb[0].mxu0
      %v6247 = vadd.f32 0.0, %v6246
      %v6248 = vpop.f32.mrb[0].mxu0
      %v6249 = vpop.f32.mrb[0].mxu0
      %v6250 = vadd.f32 0.0, %v6249
      %v6251 = vpop.f32.mrb[0].mxu0
      %6252 = vdwg.mxu0
      %v6254 = vsel %vm2117, %v4992, 0
      %6256 = vmatprep.subr.bf16.mxu0 0
      %6257 = vmatpush1.bf16.msra.mxu0 %v4992
      %6258 = vmatprep.subr.bf16.mxu0 0
      %6259 = vmatpush1.bf16.msra.mxu0 0
      %6260 = vmatprep.subr.bf16.mxu0 0
      %6261 = vmatpush1.bf16.msra.mxu0 0
      %6262 = vmatprep.subr.bf16.mxu0 0
      %6263 = vmatpush1.bf16.msra.mxu0 0
      %6264 = vmatprep.subr.bf16.mxu0 0
      %6265 = vmatpush1.bf16.msra.mxu0 0
      %6266 = vmatprep.subr.bf16.mxu0 0
      %6267 = vmatpush1.bf16.msra.mxu0 0
      %6268 = vmatprep.subr.bf16.mxu0 0
      %6269 = vmatpush1.bf16.msra.mxu0 0
      %6270 = vmatprep.subr.bf16.mxu0 0
      %6271 = vmatpush1.bf16.msra.mxu0 0
      %6272 = vmatprep.subr.bf16.mxu0 0
      %6273 = vmatpush1.bf16.msra.mxu0 0
      %6274 = vmatprep.subr.bf16.mxu0 0
      %6275 = vmatpush1.bf16.msra.mxu0 0
      %6276 = vmatprep.subr.bf16.mxu0 0
      %6277 = vmatpush1.bf16.msra.mxu0 0
      %6278 = vmatprep.subr.bf16.mxu0 0
      %6279 = vmatpush1.bf16.msra.mxu0 0
      %6280 = vmatprep.subr.bf16.mxu0 0
      %6281 = vmatpush1.bf16.msra.mxu0 0
      %6282 = vmatprep.subr.bf16.mxu0 0
      %6283 = vmatpush1.bf16.msra.mxu0 0
      %6284 = vmatprep.subr.bf16.mxu0 0
      %6285 = vmatpush1.bf16.msra.mxu0 0
      %6286 = vmatprep.subr.bf16.mxu0 0
      %6287 = vmatpush1.bf16.msra.mxu0 0
      %6288 = vmatprep.mubr.bf16.mxu0 0
      %6289 = vmatmul.mubr.bf16.gmra.mrb[0].mxu0 %v6254
      %v6290 = vpop.f32.mrb[0].mxu0
      %v6291 = vadd.f32 0.0, %v6290
      %v6292 = vpop.f32.mrb[0].mxu0
      %v6293 = vpop.f32.mrb[0].mxu0
      %v6294 = vadd.f32 0.0, %v6293
      %v6295 = vpop.f32.mrb[0].mxu0
      %6296 = vdwg.mxu0
      %v6298 = vsel %vm2117, %v4993, 0
      %6300 = vmatprep.subr.bf16.mxu0 0
      %6301 = vmatpush1.bf16.msra.mxu0 %v4993
      %6302 = vmatprep.subr.bf16.mxu0 0
      %6303 = vmatpush1.bf16.msra.mxu0 0
      %6304 = vmatprep.subr.bf16.mxu0 0
      %6305 = vmatpush1.bf16.msra.mxu0 0
      %6306 = vmatprep.subr.bf16.mxu0 0
      %6307 = vmatpush1.bf16.msra.mxu0 0
      %6308 = vmatprep.subr.bf16.mxu0 0
      %6309 = vmatpush1.bf16.msra.mxu0 0
      %6310 = vmatprep.subr.bf16.mxu0 0
      %6311 = vmatpush1.bf16.msra.mxu0 0
      %6312 = vmatprep.subr.bf16.mxu0 0
      %6313 = vmatpush1.bf16.msra.mxu0 0
      %6314 = vmatprep.subr.bf16.mxu0 0
      %6315 = vmatpush1.bf16.msra.mxu0 0
      %6316 = vmatprep.subr.bf16.mxu0 0
      %6317 = vmatpush1.bf16.msra.mxu0 0
      %6318 = vmatprep.subr.bf16.mxu0 0
      %6319 = vmatpush1.bf16.msra.mxu0 0
      %6320 = vmatprep.subr.bf16.mxu0 0
      %6321 = vmatpush1.bf16.msra.mxu0 0
      %6322 = vmatprep.subr.bf16.mxu0 0
      %6323 = vmatpush1.bf16.msra.mxu0 0
      %6324 = vmatprep.subr.bf16.mxu0 0
      %6325 = vmatpush1.bf16.msra.mxu0 0
      %6326 = vmatprep.subr.bf16.mxu0 0
      %6327 = vmatpush1.bf16.msra.mxu0 0
      %6328 = vmatprep.subr.bf16.mxu0 0
      %6329 = vmatpush1.bf16.msra.mxu0 0
      %6330 = vmatprep.subr.bf16.mxu0 0
      %6331 = vmatpush1.bf16.msra.mxu0 0
      %6332 = vmatprep.mubr.bf16.mxu0 0
      %6333 = vmatmul.mubr.bf16.gmra.mrb[0].mxu0 %v6298
      %v6334 = vpop.f32.mrb[0].mxu0
      %v6335 = vadd.f32 0.0, %v6334
      %v6336 = vpop.f32.mrb[0].mxu0
      %v6337 = vpop.f32.mrb[0].mxu0
      %v6338 = vadd.f32 0.0, %v6337
      %v6339 = vpop.f32.mrb[0].mxu0
      %6340 = vdwg.mxu0
      %v6342 = vsel %vm2117, %v4994, 0
      %6344 = vmatprep.subr.bf16.mxu0 0
      %6345 = vmatpush1.bf16.msra.mxu0 %v4994
      %6346 = vmatprep.subr.bf16.mxu0 0
      %6347 = vmatpush1.bf16.msra.mxu0 0
      %6348 = vmatprep.subr.bf16.mxu0 0
      %6349 = vmatpush1.bf16.msra.mxu0 0
      %6350 = vmatprep.subr.bf16.mxu0 0
      %6351 = vmatpush1.bf16.msra.mxu0 0
      %6352 = vmatprep.subr.bf16.mxu0 0
      %6353 = vmatpush1.bf16.msra.mxu0 0
      %6354 = vmatprep.subr.bf16.mxu0 0
      %6355 = vmatpush1.bf16.msra.mxu0 0
      %6356 = vmatprep.subr.bf16.mxu0 0
      %6357 = vmatpush1.bf16.msra.mxu0 0
      %6358 = vmatprep.subr.bf16.mxu0 0
      %6359 = vmatpush1.bf16.msra.mxu0 0
      %6360 = vmatprep.subr.bf16.mxu0 0
      %6361 = vmatpush1.bf16.msra.mxu0 0
      %6362 = vmatprep.subr.bf16.mxu0 0
      %6363 = vmatpush1.bf16.msra.mxu0 0
      %6364 = vmatprep.subr.bf16.mxu0 0
      %6365 = vmatpush1.bf16.msra.mxu0 0
      %6366 = vmatprep.subr.bf16.mxu0 0
      %6367 = vmatpush1.bf16.msra.mxu0 0
      %6368 = vmatprep.subr.bf16.mxu0 0
      %6369 = vmatpush1.bf16.msra.mxu0 0
      %6370 = vmatprep.subr.bf16.mxu0 0
      %6371 = vmatpush1.bf16.msra.mxu0 0
      %6372 = vmatprep.subr.bf16.mxu0 0
      %6373 = vmatpush1.bf16.msra.mxu0 0
      %6374 = vmatprep.subr.bf16.mxu0 0
      %6375 = vmatpush1.bf16.msra.mxu0 0
      %6376 = vmatprep.mubr.bf16.mxu0 0
      %6377 = vmatmul.mubr.bf16.gmra.mrb[0].mxu0 %v6342
      %v6378 = vpop.f32.mrb[0].mxu0
      %v6379 = vadd.f32 0.0, %v6378
      %v6380 = vpop.f32.mrb[0].mxu0
      %v6381 = vpop.f32.mrb[0].mxu0
      %v6382 = vadd.f32 0.0, %v6381
      %v6383 = vpop.f32.mrb[0].mxu0
      %6384 = vdwg.mxu0
      %v6386 = vsel %vm2117, %v4995, 0
      %6388 = vmatprep.subr.bf16.mxu0 0
      %6389 = vmatpush1.bf16.msra.mxu0 %v4995
      %6390 = vmatprep.subr.bf16.mxu0 0
      %6391 = vmatpush1.bf16.msra.mxu0 0
      %6392 = vmatprep.subr.bf16.mxu0 0
      %6393 = vmatpush1.bf16.msra.mxu0 0
      %6394 = vmatprep.subr.bf16.mxu0 0
      %6395 = vmatpush1.bf16.msra.mxu0 0
      %6396 = vmatprep.subr.bf16.mxu0 0
      %6397 = vmatpush1.bf16.msra.mxu0 0
      %6398 = vmatprep.subr.bf16.mxu0 0
      %6399 = vmatpush1.bf16.msra.mxu0 0
      %6400 = vmatprep.subr.bf16.mxu0 0
      %6401 = vmatpush1.bf16.msra.mxu0 0
      %6402 = vmatprep.subr.bf16.mxu0 0
      %6403 = vmatpush1.bf16.msra.mxu0 0
      %6404 = vmatprep.subr.bf16.mxu0 0
      %6405 = vmatpush1.bf16.msra.mxu0 0
      %6406 = vmatprep.subr.bf16.mxu0 0
      %6407 = vmatpush1.bf16.msra.mxu0 0
      %6408 = vmatprep.subr.bf16.mxu0 0
      %6409 = vmatpush1.bf16.msra.mxu0 0
      %6410 = vmatprep.subr.bf16.mxu0 0
      %6411 = vmatpush1.bf16.msra.mxu0 0
      %6412 = vmatprep.subr.bf16.mxu0 0
      %6413 = vmatpush1.bf16.msra.mxu0 0
      %6414 = vmatprep.subr.bf16.mxu0 0
      %6415 = vmatpush1.bf16.msra.mxu0 0
      %6416 = vmatprep.subr.bf16.mxu0 0
      %6417 = vmatpush1.bf16.msra.mxu0 0
      %6418 = vmatprep.subr.bf16.mxu0 0
      %6419 = vmatpush1.bf16.msra.mxu0 0
      %6420 = vmatprep.mubr.bf16.mxu0 0
      %6421 = vmatmul.mubr.bf16.gmra.mrb[0].mxu0 %v6386
      %v6422 = vpop.f32.mrb[0].mxu0
      %v6423 = vadd.f32 0.0, %v6422
      %v6424 = vpop.f32.mrb[0].mxu0
      %v6425 = vpop.f32.mrb[0].mxu0
      %v6426 = vadd.f32 0.0, %v6425
      %v6427 = vpop.f32.mrb[0].mxu0
      %6428 = vdwg.mxu0
      %v6430 = vsel %vm2117, %v4996, 0
      %6432 = vmatprep.subr.bf16.mxu0 0
      %6433 = vmatpush1.bf16.msra.mxu0 %v4996
      %6434 = vmatprep.subr.bf16.mxu0 0
      %6435 = vmatpush1.bf16.msra.mxu0 0
      %6436 = vmatprep.subr.bf16.mxu0 0
      %6437 = vmatpush1.bf16.msra.mxu0 0
      %6438 = vmatprep.subr.bf16.mxu0 0
      %6439 = vmatpush1.bf16.msra.mxu0 0
      %6440 = vmatprep.subr.bf16.mxu0 0
      %6441 = vmatpush1.bf16.msra.mxu0 0
      %6442 = vmatprep.subr.bf16.mxu0 0
      %6443 = vmatpush1.bf16.msra.mxu0 0
      %6444 = vmatprep.subr.bf16.mxu0 0
      %6445 = vmatpush1.bf16.msra.mxu0 0
      %6446 = vmatprep.subr.bf16.mxu0 0
      %6447 = vmatpush1.bf16.msra.mxu0 0
      %6448 = vmatprep.subr.bf16.mxu0 0
      %6449 = vmatpush1.bf16.msra.mxu0 0
      %6450 = vmatprep.subr.bf16.mxu0 0
      %6451 = vmatpush1.bf16.msra.mxu0 0
      %6452 = vmatprep.subr.bf16.mxu0 0
      %6453 = vmatpush1.bf16.msra.mxu0 0
      %6454 = vmatprep.subr.bf16.mxu0 0
      %6455 = vmatpush1.bf16.msra.mxu0 0
      %6456 = vmatprep.subr.bf16.mxu0 0
      %6457 = vmatpush1.bf16.msra.mxu0 0
      %6458 = vmatprep.subr.bf16.mxu0 0
      %6459 = vmatpush1.bf16.msra.mxu0 0
      %6460 = vmatprep.subr.bf16.mxu0 0
      %6461 = vmatpush1.bf16.msra.mxu0 0
      %6462 = vmatprep.subr.bf16.mxu0 0
      %6463 = vmatpush1.bf16.msra.mxu0 0
      %6464 = vmatprep.mubr.bf16.mxu0 0
      %6465 = vmatmul.mubr.bf16.gmra.mrb[0].mxu0 %v6430
      %v6466 = vpop.f32.mrb[0].mxu0
      %v6467 = vadd.f32 0.0, %v6466
      %v6468 = vpop.f32.mrb[0].mxu0
      %v6469 = vpop.f32.mrb[0].mxu0
      %v6470 = vadd.f32 0.0, %v6469
      %v6471 = vpop.f32.mrb[0].mxu0
      %6472 = vdwg.mxu0
      %v6473 = vpack.c.bf16 %v5986, %v5983
      %v6474 = vpack.c.bf16 %v6030, %v6027
      %v6475 = vpack.c.bf16 %v6074, %v6071
      %v6476 = vpack.c.bf16 %v6118, %v6115
      %v6477 = vpack.c.bf16 %v6162, %v6159
      %v6478 = vpack.c.bf16 %v6206, %v6203
      %v6479 = vpack.c.bf16 %v6250, %v6247
      %v6480 = vpack.c.bf16 %v6294, %v6291
      %v6481 = vpack.c.bf16 %v6338, %v6335
      %v6482 = vpack.c.bf16 %v6382, %v6379
      %v6483 = vpack.c.bf16 %v6426, %v6423
      %v6484 = vpack.c.bf16 %v6470, %v6467
      %v6485 = vpack.c.bf16 %v5922, %v5921
      %v6486 = vpack.c.bf16 %v5924, %v5923
      %v6487 = vpack.c.bf16 %v5926, %v5925
      %v6488 = vpack.c.bf16 %v5928, %v5927
      %v6489 = vpack.c.bf16 %v5930, %v5929
      %v6490 = vpack.c.bf16 %v5932, %v5931
      %v6491 = vpack.c.bf16 %v5934, %v5933
      %v6492 = vpack.c.bf16 %v5936, %v5935
      %v6493 = vpack.c.bf16 %v5938, %v5937
      %v6494 = vpack.c.bf16 %v5940, %v5939
      %v6495 = vpack.c.bf16 %v5942, %v5941
      %v6496 = vpack.c.bf16 %v5944, %v5943
      %v6498 = vunpack.c.l.b16 %v6485
      %v6499 = vunpack.c.h.b16 %v6485
      %6500 = vset.pattern.permute.xlu0 0
      %6501 = vperm.xlu0 %6500, %v6498
      %v6502 = vpop.permute.xlu0 %6501
      %6503 = vset.pattern.permute.xlu0 0
      %6504 = vperm.xlu0 %6503, %v6499
      %v6505 = vpop.permute.xlu0 %6504
      %v6506 = vlaneseq
      %v6507 = vshrl.u32 %v6506, 7
      %v6508 = vsub.s32 %v2104, %v6507
      %v6509 = vrot.slane %v6502, %v6508
      %v6510 = vlaneseq
      %v6511 = vshrl.u32 %v6510, 7
      %v6512 = vsub.s32 %v2109, %v6511
      %v6513 = vrot.slane %v6505, %v6512
      %v6514 = vsel %vm2114, %v6513, %v6509
      %v6515 = vpack.c.b16 %v6514, %v6514
      %v6517 = vsel %vm2117, %v6515, 0
      %6519 = vmatprep.subr.bf16.mxu0 0
      %6520 = vmatpush1.bf16.msra.mxu0 %v6473
      %6521 = vmatprep.subr.bf16.mxu0 0
      %6522 = vmatpush1.bf16.msra.mxu0 0
      %6523 = vmatprep.subr.bf16.mxu0 0
      %6524 = vmatpush1.bf16.msra.mxu0 0
      %6525 = vmatprep.subr.bf16.mxu0 0
      %6526 = vmatpush1.bf16.msra.mxu0 0
      %6527 = vmatprep.subr.bf16.mxu0 0
      %6528 = vmatpush1.bf16.msra.mxu0 0
      %6529 = vmatprep.subr.bf16.mxu0 0
      %6530 = vmatpush1.bf16.msra.mxu0 0
      %6531 = vmatprep.subr.bf16.mxu0 0
      %6532 = vmatpush1.bf16.msra.mxu0 0
      %6533 = vmatprep.subr.bf16.mxu0 0
      %6534 = vmatpush1.bf16.msra.mxu0 0
      %6535 = vmatprep.subr.bf16.mxu0 0
      %6536 = vmatpush1.bf16.msra.mxu0 0
      %6537 = vmatprep.subr.bf16.mxu0 0
      %6538 = vmatpush1.bf16.msra.mxu0 0
      %6539 = vmatprep.subr.bf16.mxu0 0
      %6540 = vmatpush1.bf16.msra.mxu0 0
      %6541 = vmatprep.subr.bf16.mxu0 0
      %6542 = vmatpush1.bf16.msra.mxu0 0
      %6543 = vmatprep.subr.bf16.mxu0 0
      %6544 = vmatpush1.bf16.msra.mxu0 0
      %6545 = vmatprep.subr.bf16.mxu0 0
      %6546 = vmatpush1.bf16.msra.mxu0 0
      %6547 = vmatprep.subr.bf16.mxu0 0
      %6548 = vmatpush1.bf16.msra.mxu0 0
      %6549 = vmatprep.subr.bf16.mxu0 0
      %6550 = vmatpush1.bf16.msra.mxu0 0
      %6551 = vmatprep.mubr.bf16.mxu0 0
      %6552 = vmatmul.mubr.bf16.gmra.mrb[0].mxu0 %v6517
      %v6553 = vpop.f32.mrb[0].mxu0
      %v6554 = vadd.f32 0.0, %v6553
      %v6555 = vpop.f32.mrb[0].mxu0
      %v6556 = vpop.f32.mrb[0].mxu0
      %v6557 = vpop.f32.mrb[0].mxu0
      %6558 = vdwg.mxu0
      %v6560 = vunpack.c.l.b16 %v6486
      %v6561 = vunpack.c.h.b16 %v6486
      %6562 = vset.pattern.permute.xlu0 0
      %6563 = vperm.xlu0 %6562, %v6560
      %v6564 = vpop.permute.xlu0 %6563
      %6565 = vset.pattern.permute.xlu0 0
      %6566 = vperm.xlu0 %6565, %v6561
      %v6567 = vpop.permute.xlu0 %6566
      %v6568 = vlaneseq
      %v6569 = vshrl.u32 %v6568, 7
      %v6570 = vsub.s32 %v2104, %v6569
      %v6571 = vrot.slane %v6564, %v6570
      %v6572 = vlaneseq
      %v6573 = vshrl.u32 %v6572, 7
      %v6574 = vsub.s32 %v2109, %v6573
      %v6575 = vrot.slane %v6567, %v6574
      %v6576 = vsel %vm2114, %v6575, %v6571
      %v6577 = vpack.c.b16 %v6576, %v6576
      %v6579 = vsel %vm2117, %v6577, 0
      %6581 = vmatprep.subr.bf16.mxu0 0
      %6582 = vmatpush1.bf16.msra.mxu0 %v6474
      %6583 = vmatprep.subr.bf16.mxu0 0
      %6584 = vmatpush1.bf16.msra.mxu0 0
      %6585 = vmatprep.subr.bf16.mxu0 0
      %6586 = vmatpush1.bf16.msra.mxu0 0
      %6587 = vmatprep.subr.bf16.mxu0 0
      %6588 = vmatpush1.bf16.msra.mxu0 0
      %6589 = vmatprep.subr.bf16.mxu0 0
      %6590 = vmatpush1.bf16.msra.mxu0 0
      %6591 = vmatprep.subr.bf16.mxu0 0
      %6592 = vmatpush1.bf16.msra.mxu0 0
      %6593 = vmatprep.subr.bf16.mxu0 0
      %6594 = vmatpush1.bf16.msra.mxu0 0
      %6595 = vmatprep.subr.bf16.mxu0 0
      %6596 = vmatpush1.bf16.msra.mxu0 0
      %6597 = vmatprep.subr.bf16.mxu0 0
      %6598 = vmatpush1.bf16.msra.mxu0 0
      %6599 = vmatprep.subr.bf16.mxu0 0
      %6600 = vmatpush1.bf16.msra.mxu0 0
      %6601 = vmatprep.subr.bf16.mxu0 0
      %6602 = vmatpush1.bf16.msra.mxu0 0
      %6603 = vmatprep.subr.bf16.mxu0 0
      %6604 = vmatpush1.bf16.msra.mxu0 0
      %6605 = vmatprep.subr.bf16.mxu0 0
      %6606 = vmatpush1.bf16.msra.mxu0 0
      %6607 = vmatprep.subr.bf16.mxu0 0
      %6608 = vmatpush1.bf16.msra.mxu0 0
      %6609 = vmatprep.subr.bf16.mxu0 0
      %6610 = vmatpush1.bf16.msra.mxu0 0
      %6611 = vmatprep.subr.bf16.mxu0 0
      %6612 = vmatpush1.bf16.msra.mxu0 0
      %6613 = vmatprep.mubr.bf16.mxu0 0
      %6614 = vmatmul.mubr.bf16.gmra.mrb[0].mxu0 %v6579
      %v6615 = vpop.f32.mrb[0].mxu0
      %v6616 = vadd.f32 0.0, %v6615
      %v6617 = vpop.f32.mrb[0].mxu0
      %v6618 = vpop.f32.mrb[0].mxu0
      %v6619 = vpop.f32.mrb[0].mxu0
      %6620 = vdwg.mxu0
      %v6622 = vunpack.c.l.b16 %v6487
      %v6623 = vunpack.c.h.b16 %v6487
      %6624 = vset.pattern.permute.xlu0 0
      %6625 = vperm.xlu0 %6624, %v6622
      %v6626 = vpop.permute.xlu0 %6625
      %6627 = vset.pattern.permute.xlu0 0
      %6628 = vperm.xlu0 %6627, %v6623
      %v6629 = vpop.permute.xlu0 %6628
      %v6630 = vlaneseq
      %v6631 = vshrl.u32 %v6630, 7
      %v6632 = vsub.s32 %v2104, %v6631
      %v6633 = vrot.slane %v6626, %v6632
      %v6634 = vlaneseq
      %v6635 = vshrl.u32 %v6634, 7
      %v6636 = vsub.s32 %v2109, %v6635
      %v6637 = vrot.slane %v6629, %v6636
      %v6638 = vsel %vm2114, %v6637, %v6633
      %v6639 = vpack.c.b16 %v6638, %v6638
      %v6641 = vsel %vm2117, %v6639, 0
      %6643 = vmatprep.subr.bf16.mxu0 0
      %6644 = vmatpush1.bf16.msra.mxu0 %v6475
      %6645 = vmatprep.subr.bf16.mxu0 0
      %6646 = vmatpush1.bf16.msra.mxu0 0
      %6647 = vmatprep.subr.bf16.mxu0 0
      %6648 = vmatpush1.bf16.msra.mxu0 0
      %6649 = vmatprep.subr.bf16.mxu0 0
      %6650 = vmatpush1.bf16.msra.mxu0 0
      %6651 = vmatprep.subr.bf16.mxu0 0
      %6652 = vmatpush1.bf16.msra.mxu0 0
      %6653 = vmatprep.subr.bf16.mxu0 0
      %6654 = vmatpush1.bf16.msra.mxu0 0
      %6655 = vmatprep.subr.bf16.mxu0 0
      %6656 = vmatpush1.bf16.msra.mxu0 0
      %6657 = vmatprep.subr.bf16.mxu0 0
      %6658 = vmatpush1.bf16.msra.mxu0 0
      %6659 = vmatprep.subr.bf16.mxu0 0
      %6660 = vmatpush1.bf16.msra.mxu0 0
      %6661 = vmatprep.subr.bf16.mxu0 0
      %6662 = vmatpush1.bf16.msra.mxu0 0
      %6663 = vmatprep.subr.bf16.mxu0 0
      %6664 = vmatpush1.bf16.msra.mxu0 0
      %6665 = vmatprep.subr.bf16.mxu0 0
      %6666 = vmatpush1.bf16.msra.mxu0 0
      %6667 = vmatprep.subr.bf16.mxu0 0
      %6668 = vmatpush1.bf16.msra.mxu0 0
      %6669 = vmatprep.subr.bf16.mxu0 0
      %6670 = vmatpush1.bf16.msra.mxu0 0
      %6671 = vmatprep.subr.bf16.mxu0 0
      %6672 = vmatpush1.bf16.msra.mxu0 0
      %6673 = vmatprep.subr.bf16.mxu0 0
      %6674 = vmatpush1.bf16.msra.mxu0 0
      %6675 = vmatprep.mubr.bf16.mxu0 0
      %6676 = vmatmul.mubr.bf16.gmra.mrb[0].mxu0 %v6641
      %v6677 = vpop.f32.mrb[0].mxu0
      %v6678 = vadd.f32 0.0, %v6677
      %v6679 = vpop.f32.mrb[0].mxu0
      %v6680 = vpop.f32.mrb[0].mxu0
      %v6681 = vpop.f32.mrb[0].mxu0
      %6682 = vdwg.mxu0
      %v6684 = vunpack.c.l.b16 %v6488
      %v6685 = vunpack.c.h.b16 %v6488
      %6686 = vset.pattern.permute.xlu0 0
      %6687 = vperm.xlu0 %6686, %v6684
      %v6688 = vpop.permute.xlu0 %6687
      %6689 = vset.pattern.permute.xlu0 0
      %6690 = vperm.xlu0 %6689, %v6685
      %v6691 = vpop.permute.xlu0 %6690
      %v6692 = vlaneseq
      %v6693 = vshrl.u32 %v6692, 7
      %v6694 = vsub.s32 %v2104, %v6693
      %v6695 = vrot.slane %v6688, %v6694
      %v6696 = vlaneseq
      %v6697 = vshrl.u32 %v6696, 7
      %v6698 = vsub.s32 %v2109, %v6697
      %v6699 = vrot.slane %v6691, %v6698
      %v6700 = vsel %vm2114, %v6699, %v6695
      %v6701 = vpack.c.b16 %v6700, %v6700
      %v6703 = vsel %vm2117, %v6701, 0
      %6705 = vmatprep.subr.bf16.mxu0 0
      %6706 = vmatpush1.bf16.msra.mxu0 %v6476
      %6707 = vmatprep.subr.bf16.mxu0 0
      %6708 = vmatpush1.bf16.msra.mxu0 0
      %6709 = vmatprep.subr.bf16.mxu0 0
      %6710 = vmatpush1.bf16.msra.mxu0 0
      %6711 = vmatprep.subr.bf16.mxu0 0
      %6712 = vmatpush1.bf16.msra.mxu0 0
      %6713 = vmatprep.subr.bf16.mxu0 0
      %6714 = vmatpush1.bf16.msra.mxu0 0
      %6715 = vmatprep.subr.bf16.mxu0 0
      %6716 = vmatpush1.bf16.msra.mxu0 0
      %6717 = vmatprep.subr.bf16.mxu0 0
      %6718 = vmatpush1.bf16.msra.mxu0 0
      %6719 = vmatprep.subr.bf16.mxu0 0
      %6720 = vmatpush1.bf16.msra.mxu0 0
      %6721 = vmatprep.subr.bf16.mxu0 0
      %6722 = vmatpush1.bf16.msra.mxu0 0
      %6723 = vmatprep.subr.bf16.mxu0 0
      %6724 = vmatpush1.bf16.msra.mxu0 0
      %6725 = vmatprep.subr.bf16.mxu0 0
      %6726 = vmatpush1.bf16.msra.mxu0 0
      %6727 = vmatprep.subr.bf16.mxu0 0
      %6728 = vmatpush1.bf16.msra.mxu0 0
      %6729 = vmatprep.subr.bf16.mxu0 0
      %6730 = vmatpush1.bf16.msra.mxu0 0
      %6731 = vmatprep.subr.bf16.mxu0 0
      %6732 = vmatpush1.bf16.msra.mxu0 0
      %6733 = vmatprep.subr.bf16.mxu0 0
      %6734 = vmatpush1.bf16.msra.mxu0 0
      %6735 = vmatprep.subr.bf16.mxu0 0
      %6736 = vmatpush1.bf16.msra.mxu0 0
      %6737 = vmatprep.mubr.bf16.mxu0 0
      %6738 = vmatmul.mubr.bf16.gmra.mrb[0].mxu0 %v6703
      %v6739 = vpop.f32.mrb[0].mxu0
      %v6740 = vadd.f32 0.0, %v6739
      %v6741 = vpop.f32.mrb[0].mxu0
      %v6742 = vpop.f32.mrb[0].mxu0
      %v6743 = vpop.f32.mrb[0].mxu0
      %6744 = vdwg.mxu0
      %v6746 = vunpack.c.l.b16 %v6489
      %v6747 = vunpack.c.h.b16 %v6489
      %6748 = vset.pattern.permute.xlu0 0
      %6749 = vperm.xlu0 %6748, %v6746
      %v6750 = vpop.permute.xlu0 %6749
      %6751 = vset.pattern.permute.xlu0 0
      %6752 = vperm.xlu0 %6751, %v6747
      %v6753 = vpop.permute.xlu0 %6752
      %v6754 = vlaneseq
      %v6755 = vshrl.u32 %v6754, 7
      %v6756 = vsub.s32 %v2104, %v6755
      %v6757 = vrot.slane %v6750, %v6756
      %v6758 = vlaneseq
      %v6759 = vshrl.u32 %v6758, 7
      %v6760 = vsub.s32 %v2109, %v6759
      %v6761 = vrot.slane %v6753, %v6760
      %v6762 = vsel %vm2114, %v6761, %v6757
      %v6763 = vpack.c.b16 %v6762, %v6762
      %v6765 = vsel %vm2117, %v6763, 0
      %6767 = vmatprep.subr.bf16.mxu0 0
      %6768 = vmatpush1.bf16.msra.mxu0 %v6477
      %6769 = vmatprep.subr.bf16.mxu0 0
      %6770 = vmatpush1.bf16.msra.mxu0 0
      %6771 = vmatprep.subr.bf16.mxu0 0
      %6772 = vmatpush1.bf16.msra.mxu0 0
      %6773 = vmatprep.subr.bf16.mxu0 0
      %6774 = vmatpush1.bf16.msra.mxu0 0
      %6775 = vmatprep.subr.bf16.mxu0 0
      %6776 = vmatpush1.bf16.msra.mxu0 0
      %6777 = vmatprep.subr.bf16.mxu0 0
      %6778 = vmatpush1.bf16.msra.mxu0 0
      %6779 = vmatprep.subr.bf16.mxu0 0
      %6780 = vmatpush1.bf16.msra.mxu0 0
      %6781 = vmatprep.subr.bf16.mxu0 0
      %6782 = vmatpush1.bf16.msra.mxu0 0
      %6783 = vmatprep.subr.bf16.mxu0 0
      %6784 = vmatpush1.bf16.msra.mxu0 0
      %6785 = vmatprep.subr.bf16.mxu0 0
      %6786 = vmatpush1.bf16.msra.mxu0 0
      %6787 = vmatprep.subr.bf16.mxu0 0
      %6788 = vmatpush1.bf16.msra.mxu0 0
      %6789 = vmatprep.subr.bf16.mxu0 0
      %6790 = vmatpush1.bf16.msra.mxu0 0
      %6791 = vmatprep.subr.bf16.mxu0 0
      %6792 = vmatpush1.bf16.msra.mxu0 0
      %6793 = vmatprep.subr.bf16.mxu0 0
      %6794 = vmatpush1.bf16.msra.mxu0 0
      %6795 = vmatprep.subr.bf16.mxu0 0
      %6796 = vmatpush1.bf16.msra.mxu0 0
      %6797 = vmatprep.subr.bf16.mxu0 0
      %6798 = vmatpush1.bf16.msra.mxu0 0
      %6799 = vmatprep.mubr.bf16.mxu0 0
      %6800 = vmatmul.mubr.bf16.gmra.mrb[0].mxu0 %v6765
      %v6801 = vpop.f32.mrb[0].mxu0
      %v6802 = vadd.f32 0.0, %v6801
      %v6803 = vpop.f32.mrb[0].mxu0
      %v6804 = vpop.f32.mrb[0].mxu0
      %v6805 = vpop.f32.mrb[0].mxu0
      %6806 = vdwg.mxu0
      %v6808 = vunpack.c.l.b16 %v6490
      %v6809 = vunpack.c.h.b16 %v6490
      %6810 = vset.pattern.permute.xlu0 0
      %6811 = vperm.xlu0 %6810, %v6808
      %v6812 = vpop.permute.xlu0 %6811
      %6813 = vset.pattern.permute.xlu0 0
      %6814 = vperm.xlu0 %6813, %v6809
      %v6815 = vpop.permute.xlu0 %6814
      %v6816 = vlaneseq
      %v6817 = vshrl.u32 %v6816, 7
      %v6818 = vsub.s32 %v2104, %v6817
      %v6819 = vrot.slane %v6812, %v6818
      %v6820 = vlaneseq
      %v6821 = vshrl.u32 %v6820, 7
      %v6822 = vsub.s32 %v2109, %v6821
      %v6823 = vrot.slane %v6815, %v6822
      %v6824 = vsel %vm2114, %v6823, %v6819
      %v6825 = vpack.c.b16 %v6824, %v6824
      %v6827 = vsel %vm2117, %v6825, 0
      %6829 = vmatprep.subr.bf16.mxu0 0
      %6830 = vmatpush1.bf16.msra.mxu0 %v6478
      %6831 = vmatprep.subr.bf16.mxu0 0
      %6832 = vmatpush1.bf16.msra.mxu0 0
      %6833 = vmatprep.subr.bf16.mxu0 0
      %6834 = vmatpush1.bf16.msra.mxu0 0
      %6835 = vmatprep.subr.bf16.mxu0 0
      %6836 = vmatpush1.bf16.msra.mxu0 0
      %6837 = vmatprep.subr.bf16.mxu0 0
      %6838 = vmatpush1.bf16.msra.mxu0 0
      %6839 = vmatprep.subr.bf16.mxu0 0
      %6840 = vmatpush1.bf16.msra.mxu0 0
      %6841 = vmatprep.subr.bf16.mxu0 0
      %6842 = vmatpush1.bf16.msra.mxu0 0
      %6843 = vmatprep.subr.bf16.mxu0 0
      %6844 = vmatpush1.bf16.msra.mxu0 0
      %6845 = vmatprep.subr.bf16.mxu0 0
      %6846 = vmatpush1.bf16.msra.mxu0 0
      %6847 = vmatprep.subr.bf16.mxu0 0
      %6848 = vmatpush1.bf16.msra.mxu0 0
      %6849 = vmatprep.subr.bf16.mxu0 0
      %6850 = vmatpush1.bf16.msra.mxu0 0
      %6851 = vmatprep.subr.bf16.mxu0 0
      %6852 = vmatpush1.bf16.msra.mxu0 0
      %6853 = vmatprep.subr.bf16.mxu0 0
      %6854 = vmatpush1.bf16.msra.mxu0 0
      %6855 = vmatprep.subr.bf16.mxu0 0
      %6856 = vmatpush1.bf16.msra.mxu0 0
      %6857 = vmatprep.subr.bf16.mxu0 0
      %6858 = vmatpush1.bf16.msra.mxu0 0
      %6859 = vmatprep.subr.bf16.mxu0 0
      %6860 = vmatpush1.bf16.msra.mxu0 0
      %6861 = vmatprep.mubr.bf16.mxu0 0
      %6862 = vmatmul.mubr.bf16.gmra.mrb[0].mxu0 %v6827
      %v6863 = vpop.f32.mrb[0].mxu0
      %v6864 = vadd.f32 0.0, %v6863
      %v6865 = vpop.f32.mrb[0].mxu0
      %v6866 = vpop.f32.mrb[0].mxu0
      %v6867 = vpop.f32.mrb[0].mxu0
      %6868 = vdwg.mxu0
      %v6870 = vunpack.c.l.b16 %v6491
      %v6871 = vunpack.c.h.b16 %v6491
      %6872 = vset.pattern.permute.xlu0 0
      %6873 = vperm.xlu0 %6872, %v6870
      %v6874 = vpop.permute.xlu0 %6873
      %6875 = vset.pattern.permute.xlu0 0
      %6876 = vperm.xlu0 %6875, %v6871
      %v6877 = vpop.permute.xlu0 %6876
      %v6878 = vlaneseq
      %v6879 = vshrl.u32 %v6878, 7
      %v6880 = vsub.s32 %v2104, %v6879
      %v6881 = vrot.slane %v6874, %v6880
      %v6882 = vlaneseq
      %v6883 = vshrl.u32 %v6882, 7
      %v6884 = vsub.s32 %v2109, %v6883
      %v6885 = vrot.slane %v6877, %v6884
      %v6886 = vsel %vm2114, %v6885, %v6881
      %v6887 = vpack.c.b16 %v6886, %v6886
      %v6889 = vsel %vm2117, %v6887, 0
      %6891 = vmatprep.subr.bf16.mxu0 0
      %6892 = vmatpush1.bf16.msra.mxu0 %v6479
      %6893 = vmatprep.subr.bf16.mxu0 0
      %6894 = vmatpush1.bf16.msra.mxu0 0
      %6895 = vmatprep.subr.bf16.mxu0 0
      %6896 = vmatpush1.bf16.msra.mxu0 0
      %6897 = vmatprep.subr.bf16.mxu0 0
      %6898 = vmatpush1.bf16.msra.mxu0 0
      %6899 = vmatprep.subr.bf16.mxu0 0
      %6900 = vmatpush1.bf16.msra.mxu0 0
      %6901 = vmatprep.subr.bf16.mxu0 0
      %6902 = vmatpush1.bf16.msra.mxu0 0
      %6903 = vmatprep.subr.bf16.mxu0 0
      %6904 = vmatpush1.bf16.msra.mxu0 0
      %6905 = vmatprep.subr.bf16.mxu0 0
      %6906 = vmatpush1.bf16.msra.mxu0 0
      %6907 = vmatprep.subr.bf16.mxu0 0
      %6908 = vmatpush1.bf16.msra.mxu0 0
      %6909 = vmatprep.subr.bf16.mxu0 0
      %6910 = vmatpush1.bf16.msra.mxu0 0
      %6911 = vmatprep.subr.bf16.mxu0 0
      %6912 = vmatpush1.bf16.msra.mxu0 0
      %6913 = vmatprep.subr.bf16.mxu0 0
      %6914 = vmatpush1.bf16.msra.mxu0 0
      %6915 = vmatprep.subr.bf16.mxu0 0
      %6916 = vmatpush1.bf16.msra.mxu0 0
      %6917 = vmatprep.subr.bf16.mxu0 0
      %6918 = vmatpush1.bf16.msra.mxu0 0
      %6919 = vmatprep.subr.bf16.mxu0 0
      %6920 = vmatpush1.bf16.msra.mxu0 0
      %6921 = vmatprep.subr.bf16.mxu0 0
      %6922 = vmatpush1.bf16.msra.mxu0 0
      %6923 = vmatprep.mubr.bf16.mxu0 0
      %6924 = vmatmul.mubr.bf16.gmra.mrb[0].mxu0 %v6889
      %v6925 = vpop.f32.mrb[0].mxu0
      %v6926 = vadd.f32 0.0, %v6925
      %v6927 = vpop.f32.mrb[0].mxu0
      %v6928 = vpop.f32.mrb[0].mxu0
      %v6929 = vpop.f32.mrb[0].mxu0
      %6930 = vdwg.mxu0
      %v6932 = vunpack.c.l.b16 %v6492
      %v6933 = vunpack.c.h.b16 %v6492
      %6934 = vset.pattern.permute.xlu0 0
      %6935 = vperm.xlu0 %6934, %v6932
      %v6936 = vpop.permute.xlu0 %6935
      %6937 = vset.pattern.permute.xlu0 0
      %6938 = vperm.xlu0 %6937, %v6933
      %v6939 = vpop.permute.xlu0 %6938
      %v6940 = vlaneseq
      %v6941 = vshrl.u32 %v6940, 7
      %v6942 = vsub.s32 %v2104, %v6941
      %v6943 = vrot.slane %v6936, %v6942
      %v6944 = vlaneseq
      %v6945 = vshrl.u32 %v6944, 7
      %v6946 = vsub.s32 %v2109, %v6945
      %v6947 = vrot.slane %v6939, %v6946
      %v6948 = vsel %vm2114, %v6947, %v6943
      %v6949 = vpack.c.b16 %v6948, %v6948
      %v6951 = vsel %vm2117, %v6949, 0
      %6953 = vmatprep.subr.bf16.mxu0 0
      %6954 = vmatpush1.bf16.msra.mxu0 %v6480
      %6955 = vmatprep.subr.bf16.mxu0 0
      %6956 = vmatpush1.bf16.msra.mxu0 0
      %6957 = vmatprep.subr.bf16.mxu0 0
      %6958 = vmatpush1.bf16.msra.mxu0 0
      %6959 = vmatprep.subr.bf16.mxu0 0
      %6960 = vmatpush1.bf16.msra.mxu0 0
      %6961 = vmatprep.subr.bf16.mxu0 0
      %6962 = vmatpush1.bf16.msra.mxu0 0
      %6963 = vmatprep.subr.bf16.mxu0 0
      %6964 = vmatpush1.bf16.msra.mxu0 0
      %6965 = vmatprep.subr.bf16.mxu0 0
      %6966 = vmatpush1.bf16.msra.mxu0 0
      %6967 = vmatprep.subr.bf16.mxu0 0
      %6968 = vmatpush1.bf16.msra.mxu0 0
      %6969 = vmatprep.subr.bf16.mxu0 0
      %6970 = vmatpush1.bf16.msra.mxu0 0
      %6971 = vmatprep.subr.bf16.mxu0 0
      %6972 = vmatpush1.bf16.msra.mxu0 0
      %6973 = vmatprep.subr.bf16.mxu0 0
      %6974 = vmatpush1.bf16.msra.mxu0 0
      %6975 = vmatprep.subr.bf16.mxu0 0
      %6976 = vmatpush1.bf16.msra.mxu0 0
      %6977 = vmatprep.subr.bf16.mxu0 0
      %6978 = vmatpush1.bf16.msra.mxu0 0
      %6979 = vmatprep.subr.bf16.mxu0 0
      %6980 = vmatpush1.bf16.msra.mxu0 0
      %6981 = vmatprep.subr.bf16.mxu0 0
      %6982 = vmatpush1.bf16.msra.mxu0 0
      %6983 = vmatprep.subr.bf16.mxu0 0
      %6984 = vmatpush1.bf16.msra.mxu0 0
      %6985 = vmatprep.mubr.bf16.mxu0 0
      %6986 = vmatmul.mubr.bf16.gmra.mrb[0].mxu0 %v6951
      %v6987 = vpop.f32.mrb[0].mxu0
      %v6988 = vadd.f32 0.0, %v6987
      %v6989 = vpop.f32.mrb[0].mxu0
      %v6990 = vpop.f32.mrb[0].mxu0
      %v6991 = vpop.f32.mrb[0].mxu0
      %6992 = vdwg.mxu0
      %v6994 = vunpack.c.l.b16 %v6493
      %v6995 = vunpack.c.h.b16 %v6493
      %6996 = vset.pattern.permute.xlu0 0
      %6997 = vperm.xlu0 %6996, %v6994
      %v6998 = vpop.permute.xlu0 %6997
      %6999 = vset.pattern.permute.xlu0 0
      %7000 = vperm.xlu0 %6999, %v6995
      %v7001 = vpop.permute.xlu0 %7000
      %v7002 = vlaneseq
      %v7003 = vshrl.u32 %v7002, 7
      %v7004 = vsub.s32 %v2104, %v7003
      %v7005 = vrot.slane %v6998, %v7004
      %v7006 = vlaneseq
      %v7007 = vshrl.u32 %v7006, 7
      %v7008 = vsub.s32 %v2109, %v7007
      %v7009 = vrot.slane %v7001, %v7008
      %v7010 = vsel %vm2114, %v7009, %v7005
      %v7011 = vpack.c.b16 %v7010, %v7010
      %v7013 = vsel %vm2117, %v7011, 0
      %7015 = vmatprep.subr.bf16.mxu0 0
      %7016 = vmatpush1.bf16.msra.mxu0 %v6481
      %7017 = vmatprep.subr.bf16.mxu0 0
      %7018 = vmatpush1.bf16.msra.mxu0 0
      %7019 = vmatprep.subr.bf16.mxu0 0
      %7020 = vmatpush1.bf16.msra.mxu0 0
      %7021 = vmatprep.subr.bf16.mxu0 0
      %7022 = vmatpush1.bf16.msra.mxu0 0
      %7023 = vmatprep.subr.bf16.mxu0 0
      %7024 = vmatpush1.bf16.msra.mxu0 0
      %7025 = vmatprep.subr.bf16.mxu0 0
      %7026 = vmatpush1.bf16.msra.mxu0 0
      %7027 = vmatprep.subr.bf16.mxu0 0
      %7028 = vmatpush1.bf16.msra.mxu0 0
      %7029 = vmatprep.subr.bf16.mxu0 0
      %7030 = vmatpush1.bf16.msra.mxu0 0
      %7031 = vmatprep.subr.bf16.mxu0 0
      %7032 = vmatpush1.bf16.msra.mxu0 0
      %7033 = vmatprep.subr.bf16.mxu0 0
      %7034 = vmatpush1.bf16.msra.mxu0 0
      %7035 = vmatprep.subr.bf16.mxu0 0
      %7036 = vmatpush1.bf16.msra.mxu0 0
      %7037 = vmatprep.subr.bf16.mxu0 0
      %7038 = vmatpush1.bf16.msra.mxu0 0
      %7039 = vmatprep.subr.bf16.mxu0 0
      %7040 = vmatpush1.bf16.msra.mxu0 0
      %7041 = vmatprep.subr.bf16.mxu0 0
      %7042 = vmatpush1.bf16.msra.mxu0 0
      %7043 = vmatprep.subr.bf16.mxu0 0
      %7044 = vmatpush1.bf16.msra.mxu0 0
      %7045 = vmatprep.subr.bf16.mxu0 0
      %7046 = vmatpush1.bf16.msra.mxu0 0
      %7047 = vmatprep.mubr.bf16.mxu0 0
      %7048 = vmatmul.mubr.bf16.gmra.mrb[0].mxu0 %v7013
      %v7049 = vpop.f32.mrb[0].mxu0
      %v7050 = vadd.f32 0.0, %v7049
      %v7051 = vpop.f32.mrb[0].mxu0
      %v7052 = vpop.f32.mrb[0].mxu0
      %v7053 = vpop.f32.mrb[0].mxu0
      %7054 = vdwg.mxu0
      %v7056 = vunpack.c.l.b16 %v6494
      %v7057 = vunpack.c.h.b16 %v6494
      %7058 = vset.pattern.permute.xlu0 0
      %7059 = vperm.xlu0 %7058, %v7056
      %v7060 = vpop.permute.xlu0 %7059
      %7061 = vset.pattern.permute.xlu0 0
      %7062 = vperm.xlu0 %7061, %v7057
      %v7063 = vpop.permute.xlu0 %7062
      %v7064 = vlaneseq
      %v7065 = vshrl.u32 %v7064, 7
      %v7066 = vsub.s32 %v2104, %v7065
      %v7067 = vrot.slane %v7060, %v7066
      %v7068 = vlaneseq
      %v7069 = vshrl.u32 %v7068, 7
      %v7070 = vsub.s32 %v2109, %v7069
      %v7071 = vrot.slane %v7063, %v7070
      %v7072 = vsel %vm2114, %v7071, %v7067
      %v7073 = vpack.c.b16 %v7072, %v7072
      %v7075 = vsel %vm2117, %v7073, 0
      %7077 = vmatprep.subr.bf16.mxu0 0
      %7078 = vmatpush1.bf16.msra.mxu0 %v6482
      %7079 = vmatprep.subr.bf16.mxu0 0
      %7080 = vmatpush1.bf16.msra.mxu0 0
      %7081 = vmatprep.subr.bf16.mxu0 0
      %7082 = vmatpush1.bf16.msra.mxu0 0
      %7083 = vmatprep.subr.bf16.mxu0 0
      %7084 = vmatpush1.bf16.msra.mxu0 0
      %7085 = vmatprep.subr.bf16.mxu0 0
      %7086 = vmatpush1.bf16.msra.mxu0 0
      %7087 = vmatprep.subr.bf16.mxu0 0
      %7088 = vmatpush1.bf16.msra.mxu0 0
      %7089 = vmatprep.subr.bf16.mxu0 0
      %7090 = vmatpush1.bf16.msra.mxu0 0
      %7091 = vmatprep.subr.bf16.mxu0 0
      %7092 = vmatpush1.bf16.msra.mxu0 0
      %7093 = vmatprep.subr.bf16.mxu0 0
      %7094 = vmatpush1.bf16.msra.mxu0 0
      %7095 = vmatprep.subr.bf16.mxu0 0
      %7096 = vmatpush1.bf16.msra.mxu0 0
      %7097 = vmatprep.subr.bf16.mxu0 0
      %7098 = vmatpush1.bf16.msra.mxu0 0
      %7099 = vmatprep.subr.bf16.mxu0 0
      %7100 = vmatpush1.bf16.msra.mxu0 0
      %7101 = vmatprep.subr.bf16.mxu0 0
      %7102 = vmatpush1.bf16.msra.mxu0 0
      %7103 = vmatprep.subr.bf16.mxu0 0
      %7104 = vmatpush1.bf16.msra.mxu0 0
      %7105 = vmatprep.subr.bf16.mxu0 0
      %7106 = vmatpush1.bf16.msra.mxu0 0
      %7107 = vmatprep.subr.bf16.mxu0 0
      %7108 = vmatpush1.bf16.msra.mxu0 0
      %7109 = vmatprep.mubr.bf16.mxu0 0
      %7110 = vmatmul.mubr.bf16.gmra.mrb[0].mxu0 %v7075
      %v7111 = vpop.f32.mrb[0].mxu0
      %v7112 = vadd.f32 0.0, %v7111
      %v7113 = vpop.f32.mrb[0].mxu0
      %v7114 = vpop.f32.mrb[0].mxu0
      %v7115 = vpop.f32.mrb[0].mxu0
      %7116 = vdwg.mxu0
      %v7118 = vunpack.c.l.b16 %v6495
      %v7119 = vunpack.c.h.b16 %v6495
      %7120 = vset.pattern.permute.xlu0 0
      %7121 = vperm.xlu0 %7120, %v7118
      %v7122 = vpop.permute.xlu0 %7121
      %7123 = vset.pattern.permute.xlu0 0
      %7124 = vperm.xlu0 %7123, %v7119
      %v7125 = vpop.permute.xlu0 %7124
      %v7126 = vlaneseq
      %v7127 = vshrl.u32 %v7126, 7
      %v7128 = vsub.s32 %v2104, %v7127
      %v7129 = vrot.slane %v7122, %v7128
      %v7130 = vlaneseq
      %v7131 = vshrl.u32 %v7130, 7
      %v7132 = vsub.s32 %v2109, %v7131
      %v7133 = vrot.slane %v7125, %v7132
      %v7134 = vsel %vm2114, %v7133, %v7129
      %v7135 = vpack.c.b16 %v7134, %v7134
      %v7137 = vsel %vm2117, %v7135, 0
      %7139 = vmatprep.subr.bf16.mxu0 0
      %7140 = vmatpush1.bf16.msra.mxu0 %v6483
      %7141 = vmatprep.subr.bf16.mxu0 0
      %7142 = vmatpush1.bf16.msra.mxu0 0
      %7143 = vmatprep.subr.bf16.mxu0 0
      %7144 = vmatpush1.bf16.msra.mxu0 0
      %7145 = vmatprep.subr.bf16.mxu0 0
      %7146 = vmatpush1.bf16.msra.mxu0 0
      %7147 = vmatprep.subr.bf16.mxu0 0
      %7148 = vmatpush1.bf16.msra.mxu0 0
      %7149 = vmatprep.subr.bf16.mxu0 0
      %7150 = vmatpush1.bf16.msra.mxu0 0
      %7151 = vmatprep.subr.bf16.mxu0 0
      %7152 = vmatpush1.bf16.msra.mxu0 0
      %7153 = vmatprep.subr.bf16.mxu0 0
      %7154 = vmatpush1.bf16.msra.mxu0 0
      %7155 = vmatprep.subr.bf16.mxu0 0
      %7156 = vmatpush1.bf16.msra.mxu0 0
      %7157 = vmatprep.subr.bf16.mxu0 0
      %7158 = vmatpush1.bf16.msra.mxu0 0
      %7159 = vmatprep.subr.bf16.mxu0 0
      %7160 = vmatpush1.bf16.msra.mxu0 0
      %7161 = vmatprep.subr.bf16.mxu0 0
      %7162 = vmatpush1.bf16.msra.mxu0 0
      %7163 = vmatprep.subr.bf16.mxu0 0
      %7164 = vmatpush1.bf16.msra.mxu0 0
      %7165 = vmatprep.subr.bf16.mxu0 0
      %7166 = vmatpush1.bf16.msra.mxu0 0
      %7167 = vmatprep.subr.bf16.mxu0 0
      %7168 = vmatpush1.bf16.msra.mxu0 0
      %7169 = vmatprep.subr.bf16.mxu0 0
      %7170 = vmatpush1.bf16.msra.mxu0 0
      %7171 = vmatprep.mubr.bf16.mxu0 0
      %7172 = vmatmul.mubr.bf16.gmra.mrb[0].mxu0 %v7137
      %v7173 = vpop.f32.mrb[0].mxu0
      %v7174 = vadd.f32 0.0, %v7173
      %v7175 = vpop.f32.mrb[0].mxu0
      %v7176 = vpop.f32.mrb[0].mxu0
      %v7177 = vpop.f32.mrb[0].mxu0
      %7178 = vdwg.mxu0
      %v7180 = vunpack.c.l.b16 %v6496
      %v7181 = vunpack.c.h.b16 %v6496
      %7182 = vset.pattern.permute.xlu0 0
      %7183 = vperm.xlu0 %7182, %v7180
      %v7184 = vpop.permute.xlu0 %7183
      %7185 = vset.pattern.permute.xlu0 0
      %7186 = vperm.xlu0 %7185, %v7181
      %v7187 = vpop.permute.xlu0 %7186
      %v7188 = vlaneseq
      %v7189 = vshrl.u32 %v7188, 7
      %v7190 = vsub.s32 %v2104, %v7189
      %v7191 = vrot.slane %v7184, %v7190
      %v7192 = vlaneseq
      %v7193 = vshrl.u32 %v7192, 7
      %v7194 = vsub.s32 %v2109, %v7193
      %v7195 = vrot.slane %v7187, %v7194
      %v7196 = vsel %vm2114, %v7195, %v7191
      %v7197 = vpack.c.b16 %v7196, %v7196
      %v7199 = vsel %vm2117, %v7197, 0
      %7201 = vmatprep.subr.bf16.mxu0 0
      %7202 = vmatpush1.bf16.msra.mxu0 %v6484
      %7203 = vmatprep.subr.bf16.mxu0 0
      %7204 = vmatpush1.bf16.msra.mxu0 0
      %7205 = vmatprep.subr.bf16.mxu0 0
      %7206 = vmatpush1.bf16.msra.mxu0 0
      %7207 = vmatprep.subr.bf16.mxu0 0
      %7208 = vmatpush1.bf16.msra.mxu0 0
      %7209 = vmatprep.subr.bf16.mxu0 0
      %7210 = vmatpush1.bf16.msra.mxu0 0
      %7211 = vmatprep.subr.bf16.mxu0 0
      %7212 = vmatpush1.bf16.msra.mxu0 0
      %7213 = vmatprep.subr.bf16.mxu0 0
      %7214 = vmatpush1.bf16.msra.mxu0 0
      %7215 = vmatprep.subr.bf16.mxu0 0
      %7216 = vmatpush1.bf16.msra.mxu0 0
      %7217 = vmatprep.subr.bf16.mxu0 0
      %7218 = vmatpush1.bf16.msra.mxu0 0
      %7219 = vmatprep.subr.bf16.mxu0 0
      %7220 = vmatpush1.bf16.msra.mxu0 0
      %7221 = vmatprep.subr.bf16.mxu0 0
      %7222 = vmatpush1.bf16.msra.mxu0 0
      %7223 = vmatprep.subr.bf16.mxu0 0
      %7224 = vmatpush1.bf16.msra.mxu0 0
      %7225 = vmatprep.subr.bf16.mxu0 0
      %7226 = vmatpush1.bf16.msra.mxu0 0
      %7227 = vmatprep.subr.bf16.mxu0 0
      %7228 = vmatpush1.bf16.msra.mxu0 0
      %7229 = vmatprep.subr.bf16.mxu0 0
      %7230 = vmatpush1.bf16.msra.mxu0 0
      %7231 = vmatprep.subr.bf16.mxu0 0
      %7232 = vmatpush1.bf16.msra.mxu0 0
      %7233 = vmatprep.mubr.bf16.mxu0 0
      %7234 = vmatmul.mubr.bf16.gmra.mrb[0].mxu0 %v7199
      %v7235 = vpop.f32.mrb[0].mxu0
      %v7236 = vadd.f32 0.0, %v7235
      %v7237 = vpop.f32.mrb[0].mxu0
      %v7238 = vpop.f32.mrb[0].mxu0
      %v7239 = vpop.f32.mrb[0].mxu0
      %7240 = vdwg.mxu0
      %v7253 = vlaneseq
      %v7254 = vshrl.u32 %v7253, 7
      %v7255 = vsub.s32 0, %v7254
      %v7256 = vrot.slane %v6554, %v7255
      %7258 = vbcast.lane.b32.xlu0 %v7256, 256
      %v7259 = vpop.permute.xlu0 %7258
      %s7261 = sor.u32 256, 8
      %7262 = vbcast.lane.b32.xlu0 %v7256, %s7261
      %v7263 = vpop.permute.xlu0 %7262
      %v7264 = vlaneseq
      %v7265 = vshrl.u32 %v7264, 7
      %v7266 = vsub.s32 0, %v7265
      %v7267 = vrot.slane %v6616, %v7266
      %7269 = vbcast.lane.b32.xlu0 %v7267, 256
      %v7270 = vpop.permute.xlu0 %7269
      %s7272 = sor.u32 256, 8
      %7273 = vbcast.lane.b32.xlu0 %v7267, %s7272
      %v7274 = vpop.permute.xlu0 %7273
      %v7275 = vlaneseq
      %v7276 = vshrl.u32 %v7275, 7
      %v7277 = vsub.s32 0, %v7276
      %v7278 = vrot.slane %v6678, %v7277
      %7280 = vbcast.lane.b32.xlu0 %v7278, 256
      %v7281 = vpop.permute.xlu0 %7280
      %s7283 = sor.u32 256, 8
      %7284 = vbcast.lane.b32.xlu0 %v7278, %s7283
      %v7285 = vpop.permute.xlu0 %7284
      %v7286 = vlaneseq
      %v7287 = vshrl.u32 %v7286, 7
      %v7288 = vsub.s32 0, %v7287
      %v7289 = vrot.slane %v6740, %v7288
      %7291 = vbcast.lane.b32.xlu0 %v7289, 256
      %v7292 = vpop.permute.xlu0 %7291
      %s7294 = sor.u32 256, 8
      %7295 = vbcast.lane.b32.xlu0 %v7289, %s7294
      %v7296 = vpop.permute.xlu0 %7295
      %v7297 = vlaneseq
      %v7298 = vshrl.u32 %v7297, 7
      %v7299 = vsub.s32 0, %v7298
      %v7300 = vrot.slane %v6802, %v7299
      %7302 = vbcast.lane.b32.xlu0 %v7300, 256
      %v7303 = vpop.permute.xlu0 %7302
      %s7305 = sor.u32 256, 8
      %7306 = vbcast.lane.b32.xlu0 %v7300, %s7305
      %v7307 = vpop.permute.xlu0 %7306
      %v7308 = vlaneseq
      %v7309 = vshrl.u32 %v7308, 7
      %v7310 = vsub.s32 0, %v7309
      %v7311 = vrot.slane %v6864, %v7310
      %7313 = vbcast.lane.b32.xlu0 %v7311, 256
      %v7314 = vpop.permute.xlu0 %7313
      %s7316 = sor.u32 256, 8
      %7317 = vbcast.lane.b32.xlu0 %v7311, %s7316
      %v7318 = vpop.permute.xlu0 %7317
      %v7319 = vlaneseq
      %v7320 = vshrl.u32 %v7319, 7
      %v7321 = vsub.s32 0, %v7320
      %v7322 = vrot.slane %v6926, %v7321
      %7324 = vbcast.lane.b32.xlu0 %v7322, 256
      %v7325 = vpop.permute.xlu0 %7324
      %s7327 = sor.u32 256, 8
      %7328 = vbcast.lane.b32.xlu0 %v7322, %s7327
      %v7329 = vpop.permute.xlu0 %7328
      %v7330 = vlaneseq
      %v7331 = vshrl.u32 %v7330, 7
      %v7332 = vsub.s32 0, %v7331
      %v7333 = vrot.slane %v6988, %v7332
      %7335 = vbcast.lane.b32.xlu0 %v7333, 256
      %v7336 = vpop.permute.xlu0 %7335
      %s7338 = sor.u32 256, 8
      %7339 = vbcast.lane.b32.xlu0 %v7333, %s7338
      %v7340 = vpop.permute.xlu0 %7339
      %v7341 = vlaneseq
      %v7342 = vshrl.u32 %v7341, 7
      %v7343 = vsub.s32 0, %v7342
      %v7344 = vrot.slane %v7050, %v7343
      %7346 = vbcast.lane.b32.xlu0 %v7344, 256
      %v7347 = vpop.permute.xlu0 %7346
      %s7349 = sor.u32 256, 8
      %7350 = vbcast.lane.b32.xlu0 %v7344, %s7349
      %v7351 = vpop.permute.xlu0 %7350
      %v7352 = vlaneseq
      %v7353 = vshrl.u32 %v7352, 7
      %v7354 = vsub.s32 0, %v7353
      %v7355 = vrot.slane %v7112, %v7354
      %7357 = vbcast.lane.b32.xlu0 %v7355, 256
      %v7358 = vpop.permute.xlu0 %7357
      %s7360 = sor.u32 256, 8
      %7361 = vbcast.lane.b32.xlu0 %v7355, %s7360
      %v7362 = vpop.permute.xlu0 %7361
      %v7363 = vlaneseq
      %v7364 = vshrl.u32 %v7363, 7
      %v7365 = vsub.s32 0, %v7364
      %v7366 = vrot.slane %v7174, %v7365
      %7368 = vbcast.lane.b32.xlu0 %v7366, 256
      %v7369 = vpop.permute.xlu0 %7368
      %s7371 = sor.u32 256, 8
      %7372 = vbcast.lane.b32.xlu0 %v7366, %s7371
      %v7373 = vpop.permute.xlu0 %7372
      %v7374 = vlaneseq
      %v7375 = vshrl.u32 %v7374, 7
      %v7376 = vsub.s32 0, %v7375
      %v7377 = vrot.slane %v7236, %v7376
      %7379 = vbcast.lane.b32.xlu0 %v7377, 256
      %v7380 = vpop.permute.xlu0 %7379
      %s7382 = sor.u32 256, 8
      %7383 = vbcast.lane.b32.xlu0 %v7377, %s7382
      %v7384 = vpop.permute.xlu0 %7383
      %v7409 = vadd.f32 %v5921, %v7259
      %v7410 = vadd.f32 %v5922, %v7263
      %v7411 = vadd.f32 %v5923, %v7270
      %v7412 = vadd.f32 %v5924, %v7274
      %v7413 = vadd.f32 %v5925, %v7281
      %v7414 = vadd.f32 %v5926, %v7285
      %v7415 = vadd.f32 %v5927, %v7292
      %v7416 = vadd.f32 %v5928, %v7296
      %v7417 = vadd.f32 %v5929, %v7303
      %v7418 = vadd.f32 %v5930, %v7307
      %v7419 = vadd.f32 %v5931, %v7314
      %v7420 = vadd.f32 %v5932, %v7318
      %v7421 = vadd.f32 %v5933, %v7325
      %v7422 = vadd.f32 %v5934, %v7329
      %v7423 = vadd.f32 %v5935, %v7336
      %v7424 = vadd.f32 %v5936, %v7340
      %v7425 = vadd.f32 %v5937, %v7347
      %v7426 = vadd.f32 %v5938, %v7351
      %v7427 = vadd.f32 %v5939, %v7358
      %v7428 = vadd.f32 %v5940, %v7362
      %v7429 = vadd.f32 %v5941, %v7369
      %v7430 = vadd.f32 %v5942, %v7373
      %v7431 = vadd.f32 %v5943, %v7380
      %v7432 = vadd.f32 %v5944, %v7384
      %v7433 = vpack.c.bf16 %v7410, %v7409
      %v7434 = vpack.c.bf16 %v7412, %v7411
      %v7435 = vpack.c.bf16 %v7414, %v7413
      %v7436 = vpack.c.bf16 %v7416, %v7415
      %v7437 = vpack.c.bf16 %v7418, %v7417
      %v7438 = vpack.c.bf16 %v7420, %v7419
      %v7439 = vpack.c.bf16 %v7422, %v7421
      %v7440 = vpack.c.bf16 %v7424, %v7423
      %v7441 = vpack.c.bf16 %v7426, %v7425
      %v7442 = vpack.c.bf16 %v7428, %v7427
      %v7443 = vpack.c.bf16 %v7430, %v7429
      %v7444 = vpack.c.bf16 %v7432, %v7431
      %v7446 = vunpack.c.l.b16 %v7433
      %v7447 = vunpack.c.h.b16 %v7433
      %7448 = vset.pattern.permute.xlu0 0
      %7449 = vperm.xlu0 %7448, %v7446
      %v7450 = vpop.permute.xlu0 %7449
      %7451 = vset.pattern.permute.xlu0 0
      %7452 = vperm.xlu0 %7451, %v7447
      %v7453 = vpop.permute.xlu0 %7452
      %v7454 = vlaneseq
      %v7455 = vshrl.u32 %v7454, 7
      %v7456 = vsub.s32 %v2104, %v7455
      %v7457 = vrot.slane %v7450, %v7456
      %v7458 = vlaneseq
      %v7459 = vshrl.u32 %v7458, 7
      %v7460 = vsub.s32 %v2109, %v7459
      %v7461 = vrot.slane %v7453, %v7460
      %v7462 = vsel %vm2114, %v7461, %v7457
      %v7463 = vpack.c.b16 %v7462, %v7462
      %v7465 = vsel %vm2117, %v7463, 0
      %7467 = vmatprep.subr.bf16.mxu0 0
      %7468 = vmatpush1.bf16.msra.mxu0 %v1344
      %7469 = vmatprep.subr.bf16.mxu0 0
      %7470 = vmatpush1.bf16.msra.mxu0 0
      %7471 = vmatprep.subr.bf16.mxu0 0
      %7472 = vmatpush1.bf16.msra.mxu0 0
      %7473 = vmatprep.subr.bf16.mxu0 0
      %7474 = vmatpush1.bf16.msra.mxu0 0
      %7475 = vmatprep.subr.bf16.mxu0 0
      %7476 = vmatpush1.bf16.msra.mxu0 0
      %7477 = vmatprep.subr.bf16.mxu0 0
      %7478 = vmatpush1.bf16.msra.mxu0 0
      %7479 = vmatprep.subr.bf16.mxu0 0
      %7480 = vmatpush1.bf16.msra.mxu0 0
      %7481 = vmatprep.subr.bf16.mxu0 0
      %7482 = vmatpush1.bf16.msra.mxu0 0
      %7483 = vmatprep.subr.bf16.mxu0 0
      %7484 = vmatpush1.bf16.msra.mxu0 0
      %7485 = vmatprep.subr.bf16.mxu0 0
      %7486 = vmatpush1.bf16.msra.mxu0 0
      %7487 = vmatprep.subr.bf16.mxu0 0
      %7488 = vmatpush1.bf16.msra.mxu0 0
      %7489 = vmatprep.subr.bf16.mxu0 0
      %7490 = vmatpush1.bf16.msra.mxu0 0
      %7491 = vmatprep.subr.bf16.mxu0 0
      %7492 = vmatpush1.bf16.msra.mxu0 0
      %7493 = vmatprep.subr.bf16.mxu0 0
      %7494 = vmatpush1.bf16.msra.mxu0 0
      %7495 = vmatprep.subr.bf16.mxu0 0
      %7496 = vmatpush1.bf16.msra.mxu0 0
      %7497 = vmatprep.subr.bf16.mxu0 0
      %7498 = vmatpush1.bf16.msra.mxu0 0
      %7499 = vmatprep.mubr.bf16.mxu0 0
      %7500 = vmatmul.mubr.bf16.gmra.mrb[0].mxu0 %v7465
      %v7501 = vpop.f32.mrb[0].mxu0
      %v7502 = vadd.f32 0.0, %v7501
      %v7503 = vpop.f32.mrb[0].mxu0
      %v7504 = vpop.f32.mrb[0].mxu0
      %v7505 = vpop.f32.mrb[0].mxu0
      %7506 = vdwg.mxu0
      %v7508 = vunpack.c.l.b16 %v7434
      %v7509 = vunpack.c.h.b16 %v7434
      %7510 = vset.pattern.permute.xlu0 0
      %7511 = vperm.xlu0 %7510, %v7508
      %v7512 = vpop.permute.xlu0 %7511
      %7513 = vset.pattern.permute.xlu0 0
      %7514 = vperm.xlu0 %7513, %v7509
      %v7515 = vpop.permute.xlu0 %7514
      %v7516 = vlaneseq
      %v7517 = vshrl.u32 %v7516, 7
      %v7518 = vsub.s32 %v2104, %v7517
      %v7519 = vrot.slane %v7512, %v7518
      %v7520 = vlaneseq
      %v7521 = vshrl.u32 %v7520, 7
      %v7522 = vsub.s32 %v2109, %v7521
      %v7523 = vrot.slane %v7515, %v7522
      %v7524 = vsel %vm2114, %v7523, %v7519
      %v7525 = vpack.c.b16 %v7524, %v7524
      %v7527 = vsel %vm2117, %v7525, 0
      %7529 = vmatprep.subr.bf16.mxu0 0
      %7530 = vmatpush1.bf16.msra.mxu0 %v1345
      %7531 = vmatprep.subr.bf16.mxu0 0
      %7532 = vmatpush1.bf16.msra.mxu0 0
      %7533 = vmatprep.subr.bf16.mxu0 0
      %7534 = vmatpush1.bf16.msra.mxu0 0
      %7535 = vmatprep.subr.bf16.mxu0 0
      %7536 = vmatpush1.bf16.msra.mxu0 0
      %7537 = vmatprep.subr.bf16.mxu0 0
      %7538 = vmatpush1.bf16.msra.mxu0 0
      %7539 = vmatprep.subr.bf16.mxu0 0
      %7540 = vmatpush1.bf16.msra.mxu0 0
      %7541 = vmatprep.subr.bf16.mxu0 0
      %7542 = vmatpush1.bf16.msra.mxu0 0
      %7543 = vmatprep.subr.bf16.mxu0 0
      %7544 = vmatpush1.bf16.msra.mxu0 0
      %7545 = vmatprep.subr.bf16.mxu0 0
      %7546 = vmatpush1.bf16.msra.mxu0 0
      %7547 = vmatprep.subr.bf16.mxu0 0
      %7548 = vmatpush1.bf16.msra.mxu0 0
      %7549 = vmatprep.subr.bf16.mxu0 0
      %7550 = vmatpush1.bf16.msra.mxu0 0
      %7551 = vmatprep.subr.bf16.mxu0 0
      %7552 = vmatpush1.bf16.msra.mxu0 0
      %7553 = vmatprep.subr.bf16.mxu0 0
      %7554 = vmatpush1.bf16.msra.mxu0 0
      %7555 = vmatprep.subr.bf16.mxu0 0
      %7556 = vmatpush1.bf16.msra.mxu0 0
      %7557 = vmatprep.subr.bf16.mxu0 0
      %7558 = vmatpush1.bf16.msra.mxu0 0
      %7559 = vmatprep.subr.bf16.mxu0 0
      %7560 = vmatpush1.bf16.msra.mxu0 0
      %7561 = vmatprep.mubr.bf16.mxu0 0
      %7562 = vmatmul.mubr.bf16.gmra.mrb[0].mxu0 %v7527
      %v7563 = vpop.f32.mrb[0].mxu0
      %v7564 = vadd.f32 0.0, %v7563
      %v7565 = vpop.f32.mrb[0].mxu0
      %v7566 = vpop.f32.mrb[0].mxu0
      %v7567 = vpop.f32.mrb[0].mxu0
      %7568 = vdwg.mxu0
      %v7570 = vunpack.c.l.b16 %v7435
      %v7571 = vunpack.c.h.b16 %v7435
      %7572 = vset.pattern.permute.xlu0 0
      %7573 = vperm.xlu0 %7572, %v7570
      %v7574 = vpop.permute.xlu0 %7573
      %7575 = vset.pattern.permute.xlu0 0
      %7576 = vperm.xlu0 %7575, %v7571
      %v7577 = vpop.permute.xlu0 %7576
      %v7578 = vlaneseq
      %v7579 = vshrl.u32 %v7578, 7
      %v7580 = vsub.s32 %v2104, %v7579
      %v7581 = vrot.slane %v7574, %v7580
      %v7582 = vlaneseq
      %v7583 = vshrl.u32 %v7582, 7
      %v7584 = vsub.s32 %v2109, %v7583
      %v7585 = vrot.slane %v7577, %v7584
      %v7586 = vsel %vm2114, %v7585, %v7581
      %v7587 = vpack.c.b16 %v7586, %v7586
      %v7589 = vsel %vm2117, %v7587, 0
      %7591 = vmatprep.subr.bf16.mxu0 0
      %7592 = vmatpush1.bf16.msra.mxu0 %v1346
      %7593 = vmatprep.subr.bf16.mxu0 0
      %7594 = vmatpush1.bf16.msra.mxu0 0
      %7595 = vmatprep.subr.bf16.mxu0 0
      %7596 = vmatpush1.bf16.msra.mxu0 0
      %7597 = vmatprep.subr.bf16.mxu0 0
      %7598 = vmatpush1.bf16.msra.mxu0 0
      %7599 = vmatprep.subr.bf16.mxu0 0
      %7600 = vmatpush1.bf16.msra.mxu0 0
      %7601 = vmatprep.subr.bf16.mxu0 0
      %7602 = vmatpush1.bf16.msra.mxu0 0
      %7603 = vmatprep.subr.bf16.mxu0 0
      %7604 = vmatpush1.bf16.msra.mxu0 0
      %7605 = vmatprep.subr.bf16.mxu0 0
      %7606 = vmatpush1.bf16.msra.mxu0 0
      %7607 = vmatprep.subr.bf16.mxu0 0
      %7608 = vmatpush1.bf16.msra.mxu0 0
      %7609 = vmatprep.subr.bf16.mxu0 0
      %7610 = vmatpush1.bf16.msra.mxu0 0
      %7611 = vmatprep.subr.bf16.mxu0 0
      %7612 = vmatpush1.bf16.msra.mxu0 0
      %7613 = vmatprep.subr.bf16.mxu0 0
      %7614 = vmatpush1.bf16.msra.mxu0 0
      %7615 = vmatprep.subr.bf16.mxu0 0
      %7616 = vmatpush1.bf16.msra.mxu0 0
      %7617 = vmatprep.subr.bf16.mxu0 0
      %7618 = vmatpush1.bf16.msra.mxu0 0
      %7619 = vmatprep.subr.bf16.mxu0 0
      %7620 = vmatpush1.bf16.msra.mxu0 0
      %7621 = vmatprep.subr.bf16.mxu0 0
      %7622 = vmatpush1.bf16.msra.mxu0 0
      %7623 = vmatprep.mubr.bf16.mxu0 0
      %7624 = vmatmul.mubr.bf16.gmra.mrb[0].mxu0 %v7589
      %v7625 = vpop.f32.mrb[0].mxu0
      %v7626 = vadd.f32 0.0, %v7625
      %v7627 = vpop.f32.mrb[0].mxu0
      %v7628 = vpop.f32.mrb[0].mxu0
      %v7629 = vpop.f32.mrb[0].mxu0
      %7630 = vdwg.mxu0
      %v7632 = vunpack.c.l.b16 %v7436
      %v7633 = vunpack.c.h.b16 %v7436
      %7634 = vset.pattern.permute.xlu0 0
      %7635 = vperm.xlu0 %7634, %v7632
      %v7636 = vpop.permute.xlu0 %7635
      %7637 = vset.pattern.permute.xlu0 0
      %7638 = vperm.xlu0 %7637, %v7633
      %v7639 = vpop.permute.xlu0 %7638
      %v7640 = vlaneseq
      %v7641 = vshrl.u32 %v7640, 7
      %v7642 = vsub.s32 %v2104, %v7641
      %v7643 = vrot.slane %v7636, %v7642
      %v7644 = vlaneseq
      %v7645 = vshrl.u32 %v7644, 7
      %v7646 = vsub.s32 %v2109, %v7645
      %v7647 = vrot.slane %v7639, %v7646
      %v7648 = vsel %vm2114, %v7647, %v7643
      %v7649 = vpack.c.b16 %v7648, %v7648
      %v7651 = vsel %vm2117, %v7649, 0
      %7653 = vmatprep.subr.bf16.mxu0 0
      %7654 = vmatpush1.bf16.msra.mxu0 %v1347
      %7655 = vmatprep.subr.bf16.mxu0 0
      %7656 = vmatpush1.bf16.msra.mxu0 0
      %7657 = vmatprep.subr.bf16.mxu0 0
      %7658 = vmatpush1.bf16.msra.mxu0 0
      %7659 = vmatprep.subr.bf16.mxu0 0
      %7660 = vmatpush1.bf16.msra.mxu0 0
      %7661 = vmatprep.subr.bf16.mxu0 0
      %7662 = vmatpush1.bf16.msra.mxu0 0
      %7663 = vmatprep.subr.bf16.mxu0 0
      %7664 = vmatpush1.bf16.msra.mxu0 0
      %7665 = vmatprep.subr.bf16.mxu0 0
      %7666 = vmatpush1.bf16.msra.mxu0 0
      %7667 = vmatprep.subr.bf16.mxu0 0
      %7668 = vmatpush1.bf16.msra.mxu0 0
      %7669 = vmatprep.subr.bf16.mxu0 0
      %7670 = vmatpush1.bf16.msra.mxu0 0
      %7671 = vmatprep.subr.bf16.mxu0 0
      %7672 = vmatpush1.bf16.msra.mxu0 0
      %7673 = vmatprep.subr.bf16.mxu0 0
      %7674 = vmatpush1.bf16.msra.mxu0 0
      %7675 = vmatprep.subr.bf16.mxu0 0
      %7676 = vmatpush1.bf16.msra.mxu0 0
      %7677 = vmatprep.subr.bf16.mxu0 0
      %7678 = vmatpush1.bf16.msra.mxu0 0
      %7679 = vmatprep.subr.bf16.mxu0 0
      %7680 = vmatpush1.bf16.msra.mxu0 0
      %7681 = vmatprep.subr.bf16.mxu0 0
      %7682 = vmatpush1.bf16.msra.mxu0 0
      %7683 = vmatprep.subr.bf16.mxu0 0
      %7684 = vmatpush1.bf16.msra.mxu0 0
      %7685 = vmatprep.mubr.bf16.mxu0 0
      %7686 = vmatmul.mubr.bf16.gmra.mrb[0].mxu0 %v7651
      %v7687 = vpop.f32.mrb[0].mxu0
      %v7688 = vadd.f32 0.0, %v7687
      %v7689 = vpop.f32.mrb[0].mxu0
      %v7690 = vpop.f32.mrb[0].mxu0
      %v7691 = vpop.f32.mrb[0].mxu0
      %7692 = vdwg.mxu0
      %v7694 = vunpack.c.l.b16 %v7437
      %v7695 = vunpack.c.h.b16 %v7437
      %7696 = vset.pattern.permute.xlu0 0
      %7697 = vperm.xlu0 %7696, %v7694
      %v7698 = vpop.permute.xlu0 %7697
      %7699 = vset.pattern.permute.xlu0 0
      %7700 = vperm.xlu0 %7699, %v7695
      %v7701 = vpop.permute.xlu0 %7700
      %v7702 = vlaneseq
      %v7703 = vshrl.u32 %v7702, 7
      %v7704 = vsub.s32 %v2104, %v7703
      %v7705 = vrot.slane %v7698, %v7704
      %v7706 = vlaneseq
      %v7707 = vshrl.u32 %v7706, 7
      %v7708 = vsub.s32 %v2109, %v7707
      %v7709 = vrot.slane %v7701, %v7708
      %v7710 = vsel %vm2114, %v7709, %v7705
      %v7711 = vpack.c.b16 %v7710, %v7710
      %v7713 = vsel %vm2117, %v7711, 0
      %7715 = vmatprep.subr.bf16.mxu0 0
      %7716 = vmatpush1.bf16.msra.mxu0 %v1348
      %7717 = vmatprep.subr.bf16.mxu0 0
      %7718 = vmatpush1.bf16.msra.mxu0 0
      %7719 = vmatprep.subr.bf16.mxu0 0
      %7720 = vmatpush1.bf16.msra.mxu0 0
      %7721 = vmatprep.subr.bf16.mxu0 0
      %7722 = vmatpush1.bf16.msra.mxu0 0
      %7723 = vmatprep.subr.bf16.mxu0 0
      %7724 = vmatpush1.bf16.msra.mxu0 0
      %7725 = vmatprep.subr.bf16.mxu0 0
      %7726 = vmatpush1.bf16.msra.mxu0 0
      %7727 = vmatprep.subr.bf16.mxu0 0
      %7728 = vmatpush1.bf16.msra.mxu0 0
      %7729 = vmatprep.subr.bf16.mxu0 0
      %7730 = vmatpush1.bf16.msra.mxu0 0
      %7731 = vmatprep.subr.bf16.mxu0 0
      %7732 = vmatpush1.bf16.msra.mxu0 0
      %7733 = vmatprep.subr.bf16.mxu0 0
      %7734 = vmatpush1.bf16.msra.mxu0 0
      %7735 = vmatprep.subr.bf16.mxu0 0
      %7736 = vmatpush1.bf16.msra.mxu0 0
      %7737 = vmatprep.subr.bf16.mxu0 0
      %7738 = vmatpush1.bf16.msra.mxu0 0
      %7739 = vmatprep.subr.bf16.mxu0 0
      %7740 = vmatpush1.bf16.msra.mxu0 0
      %7741 = vmatprep.subr.bf16.mxu0 0
      %7742 = vmatpush1.bf16.msra.mxu0 0
      %7743 = vmatprep.subr.bf16.mxu0 0
      %7744 = vmatpush1.bf16.msra.mxu0 0
      %7745 = vmatprep.subr.bf16.mxu0 0
      %7746 = vmatpush1.bf16.msra.mxu0 0
      %7747 = vmatprep.mubr.bf16.mxu0 0
      %7748 = vmatmul.mubr.bf16.gmra.mrb[0].mxu0 %v7713
      %v7749 = vpop.f32.mrb[0].mxu0
      %v7750 = vadd.f32 0.0, %v7749
      %v7751 = vpop.f32.mrb[0].mxu0
      %v7752 = vpop.f32.mrb[0].mxu0
      %v7753 = vpop.f32.mrb[0].mxu0
      %7754 = vdwg.mxu0
      %v7756 = vunpack.c.l.b16 %v7438
      %v7757 = vunpack.c.h.b16 %v7438
      %7758 = vset.pattern.permute.xlu0 0
      %7759 = vperm.xlu0 %7758, %v7756
      %v7760 = vpop.permute.xlu0 %7759
      %7761 = vset.pattern.permute.xlu0 0
      %7762 = vperm.xlu0 %7761, %v7757
      %v7763 = vpop.permute.xlu0 %7762
      %v7764 = vlaneseq
      %v7765 = vshrl.u32 %v7764, 7
      %v7766 = vsub.s32 %v2104, %v7765
      %v7767 = vrot.slane %v7760, %v7766
      %v7768 = vlaneseq
      %v7769 = vshrl.u32 %v7768, 7
      %v7770 = vsub.s32 %v2109, %v7769
      %v7771 = vrot.slane %v7763, %v7770
      %v7772 = vsel %vm2114, %v7771, %v7767
      %v7773 = vpack.c.b16 %v7772, %v7772
      %v7775 = vsel %vm2117, %v7773, 0
      %7777 = vmatprep.subr.bf16.mxu0 0
      %7778 = vmatpush1.bf16.msra.mxu0 %v1349
      %7779 = vmatprep.subr.bf16.mxu0 0
      %7780 = vmatpush1.bf16.msra.mxu0 0
      %7781 = vmatprep.subr.bf16.mxu0 0
      %7782 = vmatpush1.bf16.msra.mxu0 0
      %7783 = vmatprep.subr.bf16.mxu0 0
      %7784 = vmatpush1.bf16.msra.mxu0 0
      %7785 = vmatprep.subr.bf16.mxu0 0
      %7786 = vmatpush1.bf16.msra.mxu0 0
      %7787 = vmatprep.subr.bf16.mxu0 0
      %7788 = vmatpush1.bf16.msra.mxu0 0
      %7789 = vmatprep.subr.bf16.mxu0 0
      %7790 = vmatpush1.bf16.msra.mxu0 0
      %7791 = vmatprep.subr.bf16.mxu0 0
      %7792 = vmatpush1.bf16.msra.mxu0 0
      %7793 = vmatprep.subr.bf16.mxu0 0
      %7794 = vmatpush1.bf16.msra.mxu0 0
      %7795 = vmatprep.subr.bf16.mxu0 0
      %7796 = vmatpush1.bf16.msra.mxu0 0
      %7797 = vmatprep.subr.bf16.mxu0 0
      %7798 = vmatpush1.bf16.msra.mxu0 0
      %7799 = vmatprep.subr.bf16.mxu0 0
      %7800 = vmatpush1.bf16.msra.mxu0 0
      %7801 = vmatprep.subr.bf16.mxu0 0
      %7802 = vmatpush1.bf16.msra.mxu0 0
      %7803 = vmatprep.subr.bf16.mxu0 0
      %7804 = vmatpush1.bf16.msra.mxu0 0
      %7805 = vmatprep.subr.bf16.mxu0 0
      %7806 = vmatpush1.bf16.msra.mxu0 0
      %7807 = vmatprep.subr.bf16.mxu0 0
      %7808 = vmatpush1.bf16.msra.mxu0 0
      %7809 = vmatprep.mubr.bf16.mxu0 0
      %7810 = vmatmul.mubr.bf16.gmra.mrb[0].mxu0 %v7775
      %v7811 = vpop.f32.mrb[0].mxu0
      %v7812 = vadd.f32 0.0, %v7811
      %v7813 = vpop.f32.mrb[0].mxu0
      %v7814 = vpop.f32.mrb[0].mxu0
      %v7815 = vpop.f32.mrb[0].mxu0
      %7816 = vdwg.mxu0
      %v7818 = vunpack.c.l.b16 %v7439
      %v7819 = vunpack.c.h.b16 %v7439
      %7820 = vset.pattern.permute.xlu0 0
      %7821 = vperm.xlu0 %7820, %v7818
      %v7822 = vpop.permute.xlu0 %7821
      %7823 = vset.pattern.permute.xlu0 0
      %7824 = vperm.xlu0 %7823, %v7819
      %v7825 = vpop.permute.xlu0 %7824
      %v7826 = vlaneseq
      %v7827 = vshrl.u32 %v7826, 7
      %v7828 = vsub.s32 %v2104, %v7827
      %v7829 = vrot.slane %v7822, %v7828
      %v7830 = vlaneseq
      %v7831 = vshrl.u32 %v7830, 7
      %v7832 = vsub.s32 %v2109, %v7831
      %v7833 = vrot.slane %v7825, %v7832
      %v7834 = vsel %vm2114, %v7833, %v7829
      %v7835 = vpack.c.b16 %v7834, %v7834
      %v7837 = vsel %vm2117, %v7835, 0
      %7839 = vmatprep.subr.bf16.mxu0 0
      %7840 = vmatpush1.bf16.msra.mxu0 %v1350
      %7841 = vmatprep.subr.bf16.mxu0 0
      %7842 = vmatpush1.bf16.msra.mxu0 0
      %7843 = vmatprep.subr.bf16.mxu0 0
      %7844 = vmatpush1.bf16.msra.mxu0 0
      %7845 = vmatprep.subr.bf16.mxu0 0
      %7846 = vmatpush1.bf16.msra.mxu0 0
      %7847 = vmatprep.subr.bf16.mxu0 0
      %7848 = vmatpush1.bf16.msra.mxu0 0
      %7849 = vmatprep.subr.bf16.mxu0 0
      %7850 = vmatpush1.bf16.msra.mxu0 0
      %7851 = vmatprep.subr.bf16.mxu0 0
      %7852 = vmatpush1.bf16.msra.mxu0 0
      %7853 = vmatprep.subr.bf16.mxu0 0
      %7854 = vmatpush1.bf16.msra.mxu0 0
      %7855 = vmatprep.subr.bf16.mxu0 0
      %7856 = vmatpush1.bf16.msra.mxu0 0
      %7857 = vmatprep.subr.bf16.mxu0 0
      %7858 = vmatpush1.bf16.msra.mxu0 0
      %7859 = vmatprep.subr.bf16.mxu0 0
      %7860 = vmatpush1.bf16.msra.mxu0 0
      %7861 = vmatprep.subr.bf16.mxu0 0
      %7862 = vmatpush1.bf16.msra.mxu0 0
      %7863 = vmatprep.subr.bf16.mxu0 0
      %7864 = vmatpush1.bf16.msra.mxu0 0
      %7865 = vmatprep.subr.bf16.mxu0 0
      %7866 = vmatpush1.bf16.msra.mxu0 0
      %7867 = vmatprep.subr.bf16.mxu0 0
      %7868 = vmatpush1.bf16.msra.mxu0 0
      %7869 = vmatprep.subr.bf16.mxu0 0
      %7870 = vmatpush1.bf16.msra.mxu0 0
      %7871 = vmatprep.mubr.bf16.mxu0 0
      %7872 = vmatmul.mubr.bf16.gmra.mrb[0].mxu0 %v7837
      %v7873 = vpop.f32.mrb[0].mxu0
      %v7874 = vadd.f32 0.0, %v7873
      %v7875 = vpop.f32.mrb[0].mxu0
      %v7876 = vpop.f32.mrb[0].mxu0
      %v7877 = vpop.f32.mrb[0].mxu0
      %7878 = vdwg.mxu0
      %v7880 = vunpack.c.l.b16 %v7440
      %v7881 = vunpack.c.h.b16 %v7440
      %7882 = vset.pattern.permute.xlu0 0
      %7883 = vperm.xlu0 %7882, %v7880
      %v7884 = vpop.permute.xlu0 %7883
      %7885 = vset.pattern.permute.xlu0 0
      %7886 = vperm.xlu0 %7885, %v7881
      %v7887 = vpop.permute.xlu0 %7886
      %v7888 = vlaneseq
      %v7889 = vshrl.u32 %v7888, 7
      %v7890 = vsub.s32 %v2104, %v7889
      %v7891 = vrot.slane %v7884, %v7890
      %v7892 = vlaneseq
      %v7893 = vshrl.u32 %v7892, 7
      %v7894 = vsub.s32 %v2109, %v7893
      %v7895 = vrot.slane %v7887, %v7894
      %v7896 = vsel %vm2114, %v7895, %v7891
      %v7897 = vpack.c.b16 %v7896, %v7896
      %v7899 = vsel %vm2117, %v7897, 0
      %7901 = vmatprep.subr.bf16.mxu0 0
      %7902 = vmatpush1.bf16.msra.mxu0 %v1351
      %7903 = vmatprep.subr.bf16.mxu0 0
      %7904 = vmatpush1.bf16.msra.mxu0 0
      %7905 = vmatprep.subr.bf16.mxu0 0
      %7906 = vmatpush1.bf16.msra.mxu0 0
      %7907 = vmatprep.subr.bf16.mxu0 0
      %7908 = vmatpush1.bf16.msra.mxu0 0
      %7909 = vmatprep.subr.bf16.mxu0 0
      %7910 = vmatpush1.bf16.msra.mxu0 0
      %7911 = vmatprep.subr.bf16.mxu0 0
      %7912 = vmatpush1.bf16.msra.mxu0 0
      %7913 = vmatprep.subr.bf16.mxu0 0
      %7914 = vmatpush1.bf16.msra.mxu0 0
      %7915 = vmatprep.subr.bf16.mxu0 0
      %7916 = vmatpush1.bf16.msra.mxu0 0
      %7917 = vmatprep.subr.bf16.mxu0 0
      %7918 = vmatpush1.bf16.msra.mxu0 0
      %7919 = vmatprep.subr.bf16.mxu0 0
      %7920 = vmatpush1.bf16.msra.mxu0 0
      %7921 = vmatprep.subr.bf16.mxu0 0
      %7922 = vmatpush1.bf16.msra.mxu0 0
      %7923 = vmatprep.subr.bf16.mxu0 0
      %7924 = vmatpush1.bf16.msra.mxu0 0
      %7925 = vmatprep.subr.bf16.mxu0 0
      %7926 = vmatpush1.bf16.msra.mxu0 0
      %7927 = vmatprep.subr.bf16.mxu0 0
      %7928 = vmatpush1.bf16.msra.mxu0 0
      %7929 = vmatprep.subr.bf16.mxu0 0
      %7930 = vmatpush1.bf16.msra.mxu0 0
      %7931 = vmatprep.subr.bf16.mxu0 0
      %7932 = vmatpush1.bf16.msra.mxu0 0
      %7933 = vmatprep.mubr.bf16.mxu0 0
      %7934 = vmatmul.mubr.bf16.gmra.mrb[0].mxu0 %v7899
      %v7935 = vpop.f32.mrb[0].mxu0
      %v7936 = vadd.f32 0.0, %v7935
      %v7937 = vpop.f32.mrb[0].mxu0
      %v7938 = vpop.f32.mrb[0].mxu0
      %v7939 = vpop.f32.mrb[0].mxu0
      %7940 = vdwg.mxu0
      %v7942 = vunpack.c.l.b16 %v7441
      %v7943 = vunpack.c.h.b16 %v7441
      %7944 = vset.pattern.permute.xlu0 0
      %7945 = vperm.xlu0 %7944, %v7942
      %v7946 = vpop.permute.xlu0 %7945
      %7947 = vset.pattern.permute.xlu0 0
      %7948 = vperm.xlu0 %7947, %v7943
      %v7949 = vpop.permute.xlu0 %7948
      %v7950 = vlaneseq
      %v7951 = vshrl.u32 %v7950, 7
      %v7952 = vsub.s32 %v2104, %v7951
      %v7953 = vrot.slane %v7946, %v7952
      %v7954 = vlaneseq
      %v7955 = vshrl.u32 %v7954, 7
      %v7956 = vsub.s32 %v2109, %v7955
      %v7957 = vrot.slane %v7949, %v7956
      %v7958 = vsel %vm2114, %v7957, %v7953
      %v7959 = vpack.c.b16 %v7958, %v7958
      %v7961 = vsel %vm2117, %v7959, 0
      %7963 = vmatprep.subr.bf16.mxu0 0
      %7964 = vmatpush1.bf16.msra.mxu0 %v1352
      %7965 = vmatprep.subr.bf16.mxu0 0
      %7966 = vmatpush1.bf16.msra.mxu0 0
      %7967 = vmatprep.subr.bf16.mxu0 0
      %7968 = vmatpush1.bf16.msra.mxu0 0
      %7969 = vmatprep.subr.bf16.mxu0 0
      %7970 = vmatpush1.bf16.msra.mxu0 0
      %7971 = vmatprep.subr.bf16.mxu0 0
      %7972 = vmatpush1.bf16.msra.mxu0 0
      %7973 = vmatprep.subr.bf16.mxu0 0
      %7974 = vmatpush1.bf16.msra.mxu0 0
      %7975 = vmatprep.subr.bf16.mxu0 0
      %7976 = vmatpush1.bf16.msra.mxu0 0
      %7977 = vmatprep.subr.bf16.mxu0 0
      %7978 = vmatpush1.bf16.msra.mxu0 0
      %7979 = vmatprep.subr.bf16.mxu0 0
      %7980 = vmatpush1.bf16.msra.mxu0 0
      %7981 = vmatprep.subr.bf16.mxu0 0
      %7982 = vmatpush1.bf16.msra.mxu0 0
      %7983 = vmatprep.subr.bf16.mxu0 0
      %7984 = vmatpush1.bf16.msra.mxu0 0
      %7985 = vmatprep.subr.bf16.mxu0 0
      %7986 = vmatpush1.bf16.msra.mxu0 0
      %7987 = vmatprep.subr.bf16.mxu0 0
      %7988 = vmatpush1.bf16.msra.mxu0 0
      %7989 = vmatprep.subr.bf16.mxu0 0
      %7990 = vmatpush1.bf16.msra.mxu0 0
      %7991 = vmatprep.subr.bf16.mxu0 0
      %7992 = vmatpush1.bf16.msra.mxu0 0
      %7993 = vmatprep.subr.bf16.mxu0 0
      %7994 = vmatpush1.bf16.msra.mxu0 0
      %7995 = vmatprep.mubr.bf16.mxu0 0
      %7996 = vmatmul.mubr.bf16.gmra.mrb[0].mxu0 %v7961
      %v7997 = vpop.f32.mrb[0].mxu0
      %v7998 = vadd.f32 0.0, %v7997
      %v7999 = vpop.f32.mrb[0].mxu0
      %v8000 = vpop.f32.mrb[0].mxu0
      %v8001 = vpop.f32.mrb[0].mxu0
      %8002 = vdwg.mxu0
      %v8004 = vunpack.c.l.b16 %v7442
      %v8005 = vunpack.c.h.b16 %v7442
      %8006 = vset.pattern.permute.xlu0 0
      %8007 = vperm.xlu0 %8006, %v8004
      %v8008 = vpop.permute.xlu0 %8007
      %8009 = vset.pattern.permute.xlu0 0
      %8010 = vperm.xlu0 %8009, %v8005
      %v8011 = vpop.permute.xlu0 %8010
      %v8012 = vlaneseq
      %v8013 = vshrl.u32 %v8012, 7
      %v8014 = vsub.s32 %v2104, %v8013
      %v8015 = vrot.slane %v8008, %v8014
      %v8016 = vlaneseq
      %v8017 = vshrl.u32 %v8016, 7
      %v8018 = vsub.s32 %v2109, %v8017
      %v8019 = vrot.slane %v8011, %v8018
      %v8020 = vsel %vm2114, %v8019, %v8015
      %v8021 = vpack.c.b16 %v8020, %v8020
      %v8023 = vsel %vm2117, %v8021, 0
      %8025 = vmatprep.subr.bf16.mxu0 0
      %8026 = vmatpush1.bf16.msra.mxu0 %v1353
      %8027 = vmatprep.subr.bf16.mxu0 0
      %8028 = vmatpush1.bf16.msra.mxu0 0
      %8029 = vmatprep.subr.bf16.mxu0 0
      %8030 = vmatpush1.bf16.msra.mxu0 0
      %8031 = vmatprep.subr.bf16.mxu0 0
      %8032 = vmatpush1.bf16.msra.mxu0 0
      %8033 = vmatprep.subr.bf16.mxu0 0
      %8034 = vmatpush1.bf16.msra.mxu0 0
      %8035 = vmatprep.subr.bf16.mxu0 0
      %8036 = vmatpush1.bf16.msra.mxu0 0
      %8037 = vmatprep.subr.bf16.mxu0 0
      %8038 = vmatpush1.bf16.msra.mxu0 0
      %8039 = vmatprep.subr.bf16.mxu0 0
      %8040 = vmatpush1.bf16.msra.mxu0 0
      %8041 = vmatprep.subr.bf16.mxu0 0
      %8042 = vmatpush1.bf16.msra.mxu0 0
      %8043 = vmatprep.subr.bf16.mxu0 0
      %8044 = vmatpush1.bf16.msra.mxu0 0
      %8045 = vmatprep.subr.bf16.mxu0 0
      %8046 = vmatpush1.bf16.msra.mxu0 0
      %8047 = vmatprep.subr.bf16.mxu0 0
      %8048 = vmatpush1.bf16.msra.mxu0 0
      %8049 = vmatprep.subr.bf16.mxu0 0
      %8050 = vmatpush1.bf16.msra.mxu0 0
      %8051 = vmatprep.subr.bf16.mxu0 0
      %8052 = vmatpush1.bf16.msra.mxu0 0
      %8053 = vmatprep.subr.bf16.mxu0 0
      %8054 = vmatpush1.bf16.msra.mxu0 0
      %8055 = vmatprep.subr.bf16.mxu0 0
      %8056 = vmatpush1.bf16.msra.mxu0 0
      %8057 = vmatprep.mubr.bf16.mxu0 0
      %8058 = vmatmul.mubr.bf16.gmra.mrb[0].mxu0 %v8023
      %v8059 = vpop.f32.mrb[0].mxu0
      %v8060 = vadd.f32 0.0, %v8059
      %v8061 = vpop.f32.mrb[0].mxu0
      %v8062 = vpop.f32.mrb[0].mxu0
      %v8063 = vpop.f32.mrb[0].mxu0
      %8064 = vdwg.mxu0
      %v8066 = vunpack.c.l.b16 %v7443
      %v8067 = vunpack.c.h.b16 %v7443
      %8068 = vset.pattern.permute.xlu0 0
      %8069 = vperm.xlu0 %8068, %v8066
      %v8070 = vpop.permute.xlu0 %8069
      %8071 = vset.pattern.permute.xlu0 0
      %8072 = vperm.xlu0 %8071, %v8067
      %v8073 = vpop.permute.xlu0 %8072
      %v8074 = vlaneseq
      %v8075 = vshrl.u32 %v8074, 7
      %v8076 = vsub.s32 %v2104, %v8075
      %v8077 = vrot.slane %v8070, %v8076
      %v8078 = vlaneseq
      %v8079 = vshrl.u32 %v8078, 7
      %v8080 = vsub.s32 %v2109, %v8079
      %v8081 = vrot.slane %v8073, %v8080
      %v8082 = vsel %vm2114, %v8081, %v8077
      %v8083 = vpack.c.b16 %v8082, %v8082
      %v8085 = vsel %vm2117, %v8083, 0
      %8087 = vmatprep.subr.bf16.mxu0 0
      %8088 = vmatpush1.bf16.msra.mxu0 %v1354
      %8089 = vmatprep.subr.bf16.mxu0 0
      %8090 = vmatpush1.bf16.msra.mxu0 0
      %8091 = vmatprep.subr.bf16.mxu0 0
      %8092 = vmatpush1.bf16.msra.mxu0 0
      %8093 = vmatprep.subr.bf16.mxu0 0
      %8094 = vmatpush1.bf16.msra.mxu0 0
      %8095 = vmatprep.subr.bf16.mxu0 0
      %8096 = vmatpush1.bf16.msra.mxu0 0
      %8097 = vmatprep.subr.bf16.mxu0 0
      %8098 = vmatpush1.bf16.msra.mxu0 0
      %8099 = vmatprep.subr.bf16.mxu0 0
      %8100 = vmatpush1.bf16.msra.mxu0 0
      %8101 = vmatprep.subr.bf16.mxu0 0
      %8102 = vmatpush1.bf16.msra.mxu0 0
      %8103 = vmatprep.subr.bf16.mxu0 0
      %8104 = vmatpush1.bf16.msra.mxu0 0
      %8105 = vmatprep.subr.bf16.mxu0 0
      %8106 = vmatpush1.bf16.msra.mxu0 0
      %8107 = vmatprep.subr.bf16.mxu0 0
      %8108 = vmatpush1.bf16.msra.mxu0 0
      %8109 = vmatprep.subr.bf16.mxu0 0
      %8110 = vmatpush1.bf16.msra.mxu0 0
      %8111 = vmatprep.subr.bf16.mxu0 0
      %8112 = vmatpush1.bf16.msra.mxu0 0
      %8113 = vmatprep.subr.bf16.mxu0 0
      %8114 = vmatpush1.bf16.msra.mxu0 0
      %8115 = vmatprep.subr.bf16.mxu0 0
      %8116 = vmatpush1.bf16.msra.mxu0 0
      %8117 = vmatprep.subr.bf16.mxu0 0
      %8118 = vmatpush1.bf16.msra.mxu0 0
      %8119 = vmatprep.mubr.bf16.mxu0 0
      %8120 = vmatmul.mubr.bf16.gmra.mrb[0].mxu0 %v8085
      %v8121 = vpop.f32.mrb[0].mxu0
      %v8122 = vadd.f32 0.0, %v8121
      %v8123 = vpop.f32.mrb[0].mxu0
      %v8124 = vpop.f32.mrb[0].mxu0
      %v8125 = vpop.f32.mrb[0].mxu0
      %8126 = vdwg.mxu0
      %v8128 = vunpack.c.l.b16 %v7444
      %v8129 = vunpack.c.h.b16 %v7444
      %8130 = vset.pattern.permute.xlu0 0
      %8131 = vperm.xlu0 %8130, %v8128
      %v8132 = vpop.permute.xlu0 %8131
      %8133 = vset.pattern.permute.xlu0 0
      %8134 = vperm.xlu0 %8133, %v8129
      %v8135 = vpop.permute.xlu0 %8134
      %v8136 = vlaneseq
      %v8137 = vshrl.u32 %v8136, 7
      %v8138 = vsub.s32 %v2104, %v8137
      %v8139 = vrot.slane %v8132, %v8138
      %v8140 = vlaneseq
      %v8141 = vshrl.u32 %v8140, 7
      %v8142 = vsub.s32 %v2109, %v8141
      %v8143 = vrot.slane %v8135, %v8142
      %v8144 = vsel %vm2114, %v8143, %v8139
      %v8145 = vpack.c.b16 %v8144, %v8144
      %v8147 = vsel %vm2117, %v8145, 0
      %8149 = vmatprep.subr.bf16.mxu0 0
      %8150 = vmatpush1.bf16.msra.mxu0 %v1355
      %8151 = vmatprep.subr.bf16.mxu0 0
      %8152 = vmatpush1.bf16.msra.mxu0 0
      %8153 = vmatprep.subr.bf16.mxu0 0
      %8154 = vmatpush1.bf16.msra.mxu0 0
      %8155 = vmatprep.subr.bf16.mxu0 0
      %8156 = vmatpush1.bf16.msra.mxu0 0
      %8157 = vmatprep.subr.bf16.mxu0 0
      %8158 = vmatpush1.bf16.msra.mxu0 0
      %8159 = vmatprep.subr.bf16.mxu0 0
      %8160 = vmatpush1.bf16.msra.mxu0 0
      %8161 = vmatprep.subr.bf16.mxu0 0
      %8162 = vmatpush1.bf16.msra.mxu0 0
      %8163 = vmatprep.subr.bf16.mxu0 0
      %8164 = vmatpush1.bf16.msra.mxu0 0
      %8165 = vmatprep.subr.bf16.mxu0 0
      %8166 = vmatpush1.bf16.msra.mxu0 0
      %8167 = vmatprep.subr.bf16.mxu0 0
      %8168 = vmatpush1.bf16.msra.mxu0 0
      %8169 = vmatprep.subr.bf16.mxu0 0
      %8170 = vmatpush1.bf16.msra.mxu0 0
      %8171 = vmatprep.subr.bf16.mxu0 0
      %8172 = vmatpush1.bf16.msra.mxu0 0
      %8173 = vmatprep.subr.bf16.mxu0 0
      %8174 = vmatpush1.bf16.msra.mxu0 0
      %8175 = vmatprep.subr.bf16.mxu0 0
      %8176 = vmatpush1.bf16.msra.mxu0 0
      %8177 = vmatprep.subr.bf16.mxu0 0
      %8178 = vmatpush1.bf16.msra.mxu0 0
      %8179 = vmatprep.subr.bf16.mxu0 0
      %8180 = vmatpush1.bf16.msra.mxu0 0
      %8181 = vmatprep.mubr.bf16.mxu0 0
      %8182 = vmatmul.mubr.bf16.gmra.mrb[0].mxu0 %v8147
      %v8183 = vpop.f32.mrb[0].mxu0
      %v8184 = vadd.f32 0.0, %v8183
      %v8185 = vpop.f32.mrb[0].mxu0
      %v8186 = vpop.f32.mrb[0].mxu0
      %v8187 = vpop.f32.mrb[0].mxu0
      %8188 = vdwg.mxu0
      %v8189 = vmul.f32 %v7502, 0.5
      %v8190 = vmul.f32 %v7564, 0.5
      %v8191 = vmul.f32 %v7626, 0.5
      %v8192 = vmul.f32 %v7688, 0.5
      %v8193 = vmul.f32 %v7750, 0.5
      %v8194 = vmul.f32 %v7812, 0.5
      %v8195 = vmul.f32 %v7874, 0.5
      %v8196 = vmul.f32 %v7936, 0.5
      %v8197 = vmul.f32 %v7998, 0.5
      %v8198 = vmul.f32 %v8060, 0.5
      %v8199 = vmul.f32 %v8122, 0.5
      %v8200 = vmul.f32 %v8184, 0.5
      %v8213 = vrot.slane %v8190, 7
      %vm8214 = vcmask 1041409
      %v8215 = vsel %vm8214, %v8213, %v8189
      %v8216 = vrot.slane %v8191, 6
      %vm8217 = vcmask 1042434
      %v8218 = vsel %vm8217, %v8216, %v8215
      %v8219 = vrot.slane %v8192, 5
      %vm8220 = vcmask 1043459
      %v8221 = vsel %vm8220, %v8219, %v8218
      %v8222 = vrot.slane %v8193, 4
      %vm8223 = vcmask 1044484
      %v8224 = vsel %vm8223, %v8222, %v8221
      %v8225 = vrot.slane %v8194, 3
      %vm8226 = vcmask 1045509
      %v8227 = vsel %vm8226, %v8225, %v8224
      %v8228 = vrot.slane %v8195, 2
      %vm8229 = vcmask 1046534
      %v8230 = vsel %vm8229, %v8228, %v8227
      %v8231 = vrot.slane %v8196, 1
      %vm8232 = vcmask 1047559
      %v8233 = vsel %vm8232, %v8231, %v8230
      %v8234 = vrot.slane %v8198, 7
      %v8235 = vsel %vm8214, %v8234, %v8197
      %v8236 = vrot.slane %v8199, 6
      %v8237 = vsel %vm8217, %v8236, %v8235
      %v8238 = vrot.slane %v8200, 5
      %v8239 = vsel %vm8220, %v8238, %v8237
      %v8242 = vsel %vm283, %v8233, 0.0
      %8243 = vadd.xlane.f32.xlu0 %v8242
      %v8244 = vpop.xlane.xlu0 %8243
      %vm8245 = vcmask 257024
      %v8246 = vsel %vm8245, %v8239, 0.0
      %8247 = vadd.xlane.f32.xlu0 %v8246
      %v8248 = vpop.xlane.xlu0 %8247
      %v8251 = vrot.slane %v8244, 1
      %v8252 = vrot.slane %v8244, 2
      %v8253 = vrot.slane %v8244, 3
      %v8254 = vrot.slane %v8244, 4
      %v8255 = vrot.slane %v8244, 5
      %v8256 = vrot.slane %v8244, 6
      %v8257 = vrot.slane %v8244, 7
      %v8258 = vrot.slane %v8248, 1
      %v8259 = vrot.slane %v8248, 2
      %v8260 = vrot.slane %v8248, 3
      %v8273 = vrcp.pop %v8244
      %v8274 = vmul.f32 %v8189, %v8273
      %v8275 = vrcp.pop %v8251
      %v8276 = vmul.f32 %v8190, %v8275
      %v8277 = vrcp.pop %v8252
      %v8278 = vmul.f32 %v8191, %v8277
      %v8279 = vrcp.pop %v8253
      %v8280 = vmul.f32 %v8192, %v8279
      %v8281 = vrcp.pop %v8254
      %v8282 = vmul.f32 %v8193, %v8281
      %v8283 = vrcp.pop %v8255
      %v8284 = vmul.f32 %v8194, %v8283
      %v8285 = vrcp.pop %v8256
      %v8286 = vmul.f32 %v8195, %v8285
      %v8287 = vrcp.pop %v8257
      %v8288 = vmul.f32 %v8196, %v8287
      %v8289 = vrcp.pop %v8248
      %v8290 = vmul.f32 %v8197, %v8289
      %v8291 = vrcp.pop %v8258
      %v8292 = vmul.f32 %v8198, %v8291
      %v8293 = vrcp.pop %v8259
      %v8294 = vmul.f32 %v8199, %v8293
      %v8295 = vrcp.pop %v8260
      %v8296 = vmul.f32 %v8200, %v8295
      %v8297 = vld [vmem:[%s2] sm:$0xff]
      %v8298 = vld [vmem:[%s2 + $0x8] sm:$0xff]
      %v8299 = vld [vmem:[%s2 + $0x10] sm:$0xff]
      %v8300 = vld [vmem:[%s2 + $0x18] sm:$0xff]
      %v8313 = vrot.slane %v8276, 7
      %v8314 = vsel %vm8214, %v8313, %v8274
      %v8315 = vrot.slane %v8278, 6
      %v8316 = vsel %vm8217, %v8315, %v8314
      %v8317 = vrot.slane %v8280, 5
      %v8318 = vsel %vm8220, %v8317, %v8316
      %v8319 = vrot.slane %v8282, 4
      %v8320 = vsel %vm8223, %v8319, %v8318
      %v8321 = vrot.slane %v8284, 3
      %v8322 = vsel %vm8226, %v8321, %v8320
      %v8323 = vrot.slane %v8286, 2
      %v8324 = vsel %vm8229, %v8323, %v8322
      %v8325 = vrot.slane %v8288, 1
      %v8326 = vsel %vm8232, %v8325, %v8324
      %v8327 = vrot.slane %v8292, 7
      %v8328 = vsel %vm8214, %v8327, %v8290
      %v8329 = vrot.slane %v8294, 6
      %v8330 = vsel %vm8217, %v8329, %v8328
      %v8331 = vrot.slane %v8296, 5
      %v8332 = vsel %vm8220, %v8331, %v8330
      %v8333 = vsel %vm283, %v8326, 0
      %v8335 = vsel %vm283, %v8332, 0
      %8337 = vmatprep.subr.mxu0 0.0
      %8338 = vmatpush1.msra.mxu0 %v8297
      %8339 = vmatprep.subr.mxu0 0.0
      %8340 = vmatpush1.msra.mxu0 %v8298
      %8341 = vmatprep.subr.mxu0 0.0
      %8342 = vmatpush1.msra.mxu0 %v8299
      %8343 = vmatprep.subr.mxu0 0.0
      %8344 = vmatpush1.msra.mxu0 %v8300
      %8345 = vmatprep.subr.mxu0 0.0
      %8346 = vmatpush1.msra.mxu0 0.0
      %8347 = vmatprep.subr.mxu0 0.0
      %8348 = vmatpush1.msra.mxu0 0.0
      %8349 = vmatprep.subr.mxu0 0.0
      %8350 = vmatpush1.msra.mxu0 0.0
      %8351 = vmatprep.subr.mxu0 0.0
      %8352 = vmatpush1.msra.mxu0 0.0
      %8353 = vmatprep.subr.mxu0 0.0
      %8354 = vmatpush1.msra.mxu0 0.0
      %8355 = vmatprep.subr.mxu0 0.0
      %8356 = vmatpush1.msra.mxu0 0.0
      %8357 = vmatprep.subr.mxu0 0.0
      %8358 = vmatpush1.msra.mxu0 0.0
      %8359 = vmatprep.subr.mxu0 0.0
      %8360 = vmatpush1.msra.mxu0 0.0
      %8361 = vmatprep.subr.mxu0 0.0
      %8362 = vmatpush1.msra.mxu0 0.0
      %8363 = vmatprep.subr.mxu0 0.0
      %8364 = vmatpush1.msra.mxu0 0.0
      %8365 = vmatprep.subr.mxu0 0.0
      %8366 = vmatpush1.msra.mxu0 0.0
      %8367 = vmatprep.subr.mxu0 0.0
      %8368 = vmatpush1.msra.mxu0 0.0
      %8369 = vmatprep.subr.mxu0 0.0
      %8370 = vmatpush1.msra.mxu0 0.0
      %8371 = vmatprep.subr.mxu0 0.0
      %8372 = vmatpush1.msra.mxu0 0.0
      %8373 = vmatprep.subr.mxu0 0.0
      %8374 = vmatpush1.msra.mxu0 0.0
      %8375 = vmatprep.subr.mxu0 0.0
      %8376 = vmatpush1.msra.mxu0 0.0
      %8377 = vmatprep.subr.mxu0 0.0
      %8378 = vmatpush1.msra.mxu0 0.0
      %8379 = vmatprep.subr.mxu0 0.0
      %8380 = vmatpush1.msra.mxu0 0.0
      %8381 = vmatprep.subr.mxu0 0.0
      %8382 = vmatpush1.msra.mxu0 0.0
      %8383 = vmatprep.subr.mxu0 0.0
      %8384 = vmatpush1.msra.mxu0 0.0
      %8385 = vmatprep.subr.mxu0 0.0
      %8386 = vmatpush1.msra.mxu0 0.0
      %8387 = vmatprep.subr.mxu0 0.0
      %8388 = vmatpush1.msra.mxu0 0.0
      %8389 = vmatprep.subr.mxu0 0.0
      %8390 = vmatpush1.msra.mxu0 0.0
      %8391 = vmatprep.subr.mxu0 0.0
      %8392 = vmatpush1.msra.mxu0 0.0
      %8393 = vmatprep.subr.mxu0 0.0
      %8394 = vmatpush1.msra.mxu0 0.0
      %8395 = vmatprep.subr.mxu0 0.0
      %8396 = vmatpush1.msra.mxu0 0.0
      %8397 = vmatprep.subr.mxu0 0.0
      %8398 = vmatpush1.msra.mxu0 0.0
      %8399 = vmatprep.subr.mxu0 0.0
      %8400 = vmatpush1.msra.mxu0 0.0
      %8401 = vmatprep.mubr.f32.mxu0 0.0
      %8402 = vmatmul.mubr.f32.gmra.mrb[0].mxu0 %v8333
      %v8403 = vpop.f32.mrb[0].mxu0
      %v8404 = vadd.f32 0.0, %v8403
      %v8405 = vpop.f32.mrb[0].mxu0
      %8406 = vmatprep.mubr.f32.mxu0 0.0
      %8407 = vmatmul.mubr.f32.gmra.mrb[0].mxu0 %v8335
      %v8408 = vpop.f32.mrb[0].mxu0
      %v8409 = vadd.f32 0.0, %v8408
      %v8410 = vpop.f32.mrb[0].mxu0
      %8411 = vdwg.mxu0
      %8412 = vst [vmem:[%s228] sm:$0xff] %v8404
      %8413 = vst [vmem:[%s228 + $0x8] sm:$0xf] %v8409
      %s8414 = smul.u32 2, %s19
      %p8415 = scmp.lt.s32.totalorder %s18, 1
      %s8416 = scalar_select %p8415, %s18, 1
      %p8417 = scmp.lt.s32.totalorder %s8414, 1
      %s8418 = scalar_select %p8417, %s8414, 1
      %s8419 = smul.addr %s8416, 2
      %s8420 = sadd.s32 %s8418, %s8419
      %s8421 = smul.addr %s8420, 8
      %s8422 = scalar_lea.vmem %s3, %s8421
      // Predicated region
      $region33: #{tpu_custom_call.1} parent=31 // pred_check
        %p8423 = pneg %p121
      $region34: #{tpu_custom_call.1} parent=31 // pred_check_branch
        %8425 = sbr.rel (%p8423) target = $region36
      $region35: #{tpu_custom_call.1} parent=31 // pred_region
        %s8426 = smul.u32 2, %s19
      $region36: #{tpu_custom_call.1} parent=31 // pred_fallthru
        _
    $region32: #{tpu_custom_call.1} parent=5 // pred_fallthru
      _
    %p8427 = scmp.le.s32.totalorder 2, %s9
    // Predicated region
    $region37: #{tpu_custom_call.1} parent=5 // pred_check
      %p8428 = pneg %p8427
    $region38: #{tpu_custom_call.1} parent=5 // pred_check_branch
      %8430 = sbr.rel (%p8428) target = $region40
    $region39: #{tpu_custom_call.1} parent=5 // pred_region
      %s8431 = ssub.s32 %s9, 2
      // Predicated region
      $region41: #{tpu_custom_call.1} parent=39 // pred_check
        %p8432 = pneg %p127
      $region42: #{tpu_custom_call.1} parent=39 // pred_check_branch
        %8434 = sbr.rel (%p8432) target = $region44
      $region43: #{tpu_custom_call.1} parent=39 // pred_region
        %s8435 = smul.u32 2, %s21
        %p8436 = scmp.lt.s32.totalorder %s20, 1
        %s8437 = scalar_select %p8436, %s20, 1
        %p8438 = scmp.lt.s32.totalorder %s8435, 1
        %s8439 = scalar_select %p8438, %s8435, 1
        %s8440 = smul.addr %s8437, 2
        %s8441 = sadd.s32 %s8439, %s8440
        %s8442 = smul.addr %s8441, 8
        %s8443 = scalar_lea.vmem %s3, %s8442
      $region44: #{tpu_custom_call.1} parent=39 // pred_fallthru
        _
    $region40: #{tpu_custom_call.1} parent=5 // pred_fallthru
      _
  $region6: #{tpu_custom_call.1} parent=0 // loop_footer
    %s13 = sadd.s32 1, %s9
  $region7: #{tpu_custom_call.1} parent=0 // loop_footer_branch
    %8 = sbr.rel target = $region3
  $region8: #{tpu_custom_call.1} parent=0 // loop_exit
    _

</llo_original>
